<compile_context>
chip_gen: v5e
topology: v5e:2x2
jax: 0.10.0
libtpu: 0.0.40
codegen_flags: <defaults>
</compile_context>

<pallas_src>
import jax
import jax.numpy as jnp
from jax.experimental import pallas as pl
from jax.experimental.pallas import tpu as pltpu


# --------------------------- fused Pallas kernel -----------------------------

def _spaceatt_kernel(low_ref, high_ref,
                     wq1_ref, bq1_ref, wq2_ref, bq2_ref,
                     wk1_ref, bk1_ref, wk2_ref, bk2_ref,
                     wv1_ref, bv1_ref, wv2_ref, bv2_ref,
                     ws_ref, bs_ref,
                     out_ref,
                     xpad_ref, ypad_ref):
    _, C, H, W = low_ref.shape
    C2 = wk1_ref.shape[0]
    f32, bf16 = jnp.float32, jnp.bfloat16

    def conv1x1(xs, w_ref, b_ref, cout):
        # xs: list of cin (H, W) arrays; w_ref: (cout, cin) in SMEM.
        out = []
        for o in range(cout):
            acc = jnp.zeros((H, W), f32)
            for c in range(len(xs)):
                acc = acc + w_ref[o, c] * xs[c]
            out.append(acc + b_ref[o])
        return out

    def conv3x3(pad_ref, w_ref, b_ref, cout, cin):
        # pad_ref: zero-padded (cin, H+2, W+2) input tile in VMEM.
        # w_ref:   (cout, cin*9) in SMEM, indexed [o, c*9 + dy*3 + dx].
        acc = [jnp.zeros((H, W), f32) for _ in range(cout)]
        for c in range(cin):
            for dy in range(3):
                for dx in range(3):
                    win = pad_ref[c, dy:dy + H, dx:dx + W]        # (H, W)
                    k = c * 9 + dy * 3 + dx
                    for o in range(cout):
                        acc[o] = acc[o] + w_ref[o, k] * win
        return [acc[o] + b_ref[o] for o in range(cout)]

    def fill_halo(pad_ref, xs):
        for c, x in enumerate(xs):
            pad_ref[c, 1:H + 1, 1:W + 1] = x

    # Zero the halo'd scratch tiles once per grid step (borders stay zero; the
    # interiors are fully overwritten before every use below).
    xpad_ref[...] = jnp.zeros_like(xpad_ref)
    ypad_ref[...] = jnp.zeros_like(ypad_ref)

    low = [low_ref[0, c] for c in range(C)]
    high = [high_ref[0, c] for c in range(C)]

    # ---- Q = Sigmoid(Conv1x1(BN(Conv1x1(low))))  (BN folded into wq1) ----
    q1 = conv1x1(low, wq1_ref, bq1_ref, C2)
    q = jax.nn.sigmoid(conv1x1(q1, wq2_ref, bq2_ref, 1)[0])           # (H, W)

    # ---- K = Conv3x3(BN(Conv3x3(low))) ----
    fill_halo(xpad_ref, low)
    k1 = conv3x3(xpad_ref, wk1_ref, bk1_ref, C2, C)
    fill_halo(ypad_ref, k1)
    k2 = conv3x3(ypad_ref, wk2_ref, bk2_ref, C2, C2)

    # ---- V = Conv3x3(BN(Conv3x3(high))) ----
    fill_halo(xpad_ref, high)
    v1 = conv3x3(xpad_ref, wv1_ref, bv1_ref, C2, C)
    fill_halo(ypad_ref, v1)
    v2 = conv3x3(ypad_ref, wv2_ref, bv2_ref, C2, C2)

    # ---- att = Q * K ;  att = att @ V   (per-channel HxW matmul on the MXU,
    #      bf16 operands, f32 accumulation) ----
    attv = []
    for c in range(C2):
        att_c = q * k2[c]                                             # (H, W) f32
        attv.append(jnp.dot(att_c.astype(bf16), v2[c].astype(bf16),
                            preferred_element_type=f32))              # (H, W) f32

    # ---- out = ReLU(BN(Conv3x3(att)))  (BN folded into ws) ----
    fill_halo(ypad_ref, attv)
    out = conv3x3(ypad_ref, ws_ref, bs_ref, C, C2)
    for o in range(C):
        out_ref[0, o] = jnp.maximum(out[o], 0.0)


# ------------------------------- glue ----------------------------------------

def _fold_bn(w, b, gamma, beta, mean, var, eps=1e-5):
    """Fold eval-mode BatchNorm2d into the preceding conv (OIHW weight)."""
    scale = gamma / jnp.sqrt(var + eps)
    return w * scale[:, None, None, None], (b - mean) * scale + beta


def spaceatt_forward(low, high, p):
    """Pallas implementation of Spaceatt.forward (inputs & output NCHW)."""
    N, C, H, W = low.shape
    assert H == W, "att @ V requires square spatial dims"
    C2 = p["k2"][0].shape[0]

    # Fold eval-mode BN into the first conv of each branch.
    # TODO(synk): training-mode BatchNorm (batch statistics) is not implemented.
    wq1, bq1 = _fold_bn(*p["q1"], *p["q1_bn"]); wq2, bq2 = p["q2"]
    wk1, bk1 = _fold_bn(*p["k1"], *p["k1_bn"]); wk2, bk2 = p["k2"]
    wv1, bv1 = _fold_bn(*p["v1"], *p["v1_bn"]); wv2, bv2 = p["v2"]
    ws,  bs  = _fold_bn(*p["s"],  *p["s_bn"])

    # Small scalar weight tables live in SMEM; 3x3 weights flattened to
    # (cout, cin*9) so the kernel indexes [o, c*9 + dy*3 + dx].
    scalars = [
        wq1[:, :, 0, 0], bq1, wq2[:, :, 0, 0], bq2,
        wk1.reshape(C2, -1), bk1, wk2.reshape(C2, -1), bk2,
        wv1.reshape(C2, -1), bv1, wv2.reshape(C2, -1), bv2,
        ws.reshape(C, -1), bs,
    ]

    img_spec = pl.BlockSpec((1, C, H, W), lambda n: (n, 0, 0, 0))
    smem_spec = pl.BlockSpec(memory_space=pltpu.MemorySpace.SMEM)

    return pl.pallas_call(
        _spaceatt_kernel,
        out_shape=jax.ShapeDtypeStruct((N, C, H, W), jnp.float32),
        grid_spec=pltpu.PrefetchScalarGridSpec(
            num_scalar_prefetch=0,
            grid=(N,),                      # one batch element per grid step
            in_specs=[img_spec, img_spec] + [smem_spec] * len(scalars),
            out_specs=img_spec,
            scratch_shapes=[
                pltpu.VMEM((C, H + 2, W + 2), jnp.float32),   # halo'd low/high
                pltpu.VMEM((C2, H + 2, W + 2), jnp.float32),  # halo'd k1/v1/att
            ],
        ),
        compiler_params=pltpu.CompilerParams(
            dimension_semantics=("parallel",)),               # megacore split over N
    )(low, high, *scalars)


def init_params(key, in_channel, decay=2):
    C, C2 = in_channel, in_channel // decay
    keys = iter(jax.random.split(key, 40))

    def conv(cout, cin, k):
        w = 0.2 * jax.random.normal(next(keys), (cout, cin, k, k), jnp.float32)
        b = 0.1 * jax.random.normal(next(keys), (cout,), jnp.float32)
        return (w, b)

    def bn(c):
        gamma = 1.0 + 0.1 * jax.random.normal(next(keys), (c,), jnp.float32)
        beta = 0.1 * jax.random.normal(next(keys), (c,), jnp.float32)
        mean = 0.1 * jax.random.normal(next(keys), (c,), jnp.float32)
        var = 1.0 + 0.1 * jax.random.uniform(next(keys), (c,), jnp.float32)
        return (gamma, beta, mean, var)

    return {
        "q1": conv(C2, C, 1), "q1_bn": bn(C2), "q2": conv(1, C2, 1),
        "k1": conv(C2, C, 3), "k1_bn": bn(C2), "k2": conv(C2, C2, 3),
        "v1": conv(C2, C, 3), "v1_bn": bn(C2), "v2": conv(C2, C2, 3),
        "s":  conv(C, C2, 3), "s_bn":  bn(C),
    }


# --------------------------- pure-JAX reference -------------------------------

def _conv_nchw(x, w, b, pad):
    y = jax.lax.conv_general_dilated(
        x, w, window_strides=(1, 1), padding=[(pad, pad), (pad, pad)],
        dimension_numbers=("NCHW", "OIHW", "NCHW"),
        precision=jax.lax.Precision.HIGHEST)
    return y + b[None, :, None, None]


def spaceatt_reference(low, high, p):
    wq1, bq1 = _fold_bn(*p["q1"], *p["q1_bn"]); wq2, bq2 = p["q2"]
    wk1, bk1 = _fold_bn(*p["k1"], *p["k1_bn"]); wk2, bk2 = p["k2"]
    wv1, bv1 = _fold_bn(*p["v1"], *p["v1_bn"]); wv2, bv2 = p["v2"]
    ws,  bs  = _fold_bn(*p["s"],  *p["s_bn"])
    q = jax.nn.sigmoid(_conv_nchw(_conv_nchw(low, wq1, bq1, 0), wq2, bq2, 0))
    k = _conv_nchw(_conv_nchw(low, wk1, bk1, 1), wk2, bk2, 1)
    v = _conv_nchw(_conv_nchw(high, wv1, bv1, 1), wv2, bv2, 1)
    att = q * k
    # Same numerics as the kernel's attention: bf16 operands, f32 accumulation.
    att = jnp.matmul(att.astype(jnp.bfloat16), v.astype(jnp.bfloat16),
                     preferred_element_type=jnp.float32)
    return jnp.maximum(_conv_nchw(att, ws, bs, 1), 0.0)


# --------------------------------- main ---------------------------------------

if __name__ == "__main__":
    key = jax.random.PRNGKey(0)
    k_low, k_high, k_par = jax.random.split(key, 3)

    N, C, H, W = 2, 4, 16, 16   # in_channel=4, decay=2 -> C2=2; square spatial
    low = jax.random.normal(k_low, (N, C, H, W), jnp.float32)
    high = jax.random.normal(k_high, (N, C, H, W), jnp.float32)
    params = init_params(k_par, C, decay=2)

    out = jax.jit(spaceatt_forward)(low, high, params)
    out = jax.block_until_ready(out)
    assert out.shape == (N, C, H, W)

    ref = spaceatt_reference(low, high, params)
    max_err = float(jnp.max(jnp.abs(out - ref)))
    if not bool(jnp.allclose(out, ref, rtol=2e-3, atol=2e-3)):
        raise AssertionError(f"Pallas result mismatch vs reference, max|err|={max_err}")

    print("KERNEL_OK")
</pallas_src>

<mosaic_0001>
module attributes {stable_mosaic.version = 11 : i64} {
  func.func @_spaceatt_kernel(%arg0: i32, %arg1: memref<1x4x16x16xf32, #tpu.memory_space<vmem>>, %arg2: memref<1x4x16x16xf32, #tpu.memory_space<vmem>>, %arg3: memref<2x4xf32, #tpu.memory_space<smem>>, %arg4: memref<2xf32, #tpu.memory_space<smem>>, %arg5: memref<1x2xf32, #tpu.memory_space<smem>>, %arg6: memref<1xf32, #tpu.memory_space<smem>>, %arg7: memref<2x36xf32, #tpu.memory_space<smem>>, %arg8: memref<2xf32, #tpu.memory_space<smem>>, %arg9: memref<2x18xf32, #tpu.memory_space<smem>>, %arg10: memref<2xf32, #tpu.memory_space<smem>>, %arg11: memref<2x36xf32, #tpu.memory_space<smem>>, %arg12: memref<2xf32, #tpu.memory_space<smem>>, %arg13: memref<2x18xf32, #tpu.memory_space<smem>>, %arg14: memref<2xf32, #tpu.memory_space<smem>>, %arg15: memref<4x18xf32, #tpu.memory_space<smem>>, %arg16: memref<4xf32, #tpu.memory_space<smem>>, %arg17: memref<1x4x16x16xf32, #tpu.memory_space<vmem>>, %arg18: memref<4x18x18xf32, #tpu.memory_space<vmem>>, %arg19: memref<2x18x18xf32, #tpu.memory_space<vmem>>) attributes {dimension_semantics = [#tpu.dimension_semantics<parallel>], iteration_bounds = array<i64: 2>, scalar_prefetch = 0 : i64, scratch_operands = 2 : i64, tpu.core_type = #tpu.core_type<tc>, window_params = [{transform_indices = @transform_0, window_bounds = array<i64: 1, 4, 16, 16>}, {transform_indices = @transform_1, window_bounds = array<i64: 1, 4, 16, 16>}, {transform_indices = @transform_2, window_bounds = array<i64: 2, 4>}, {transform_indices = @transform_3, window_bounds = array<i64: 2>}, {transform_indices = @transform_4, window_bounds = array<i64: 1, 2>}, {transform_indices = @transform_5, window_bounds = array<i64: 1>}, {transform_indices = @transform_6, window_bounds = array<i64: 2, 36>}, {transform_indices = @transform_7, window_bounds = array<i64: 2>}, {transform_indices = @transform_8, window_bounds = array<i64: 2, 18>}, {transform_indices = @transform_9, window_bounds = array<i64: 2>}, {transform_indices = @transform_10, window_bounds = array<i64: 2, 36>}, {transform_indices = @transform_11, window_bounds = array<i64: 2>}, {transform_indices = @transform_12, window_bounds = array<i64: 2, 18>}, {transform_indices = @transform_13, window_bounds = array<i64: 2>}, {transform_indices = @transform_14, window_bounds = array<i64: 4, 18>}, {transform_indices = @transform_15, window_bounds = array<i64: 4>}, {transform_indices = @transform_16, window_bounds = array<i64: 1, 4, 16, 16>}]} {
    %cst = arith.constant 0.000000e+00 : f32
    %0 = vector.broadcast %cst : f32 to vector<4x18x18xf32>
    %c0 = arith.constant 0 : index
    %c0_0 = arith.constant 0 : index
    %c0_1 = arith.constant 0 : index
    %1 = vector.load %arg18[%c0, %c0_0, %c0_1] : memref<4x18x18xf32, #tpu.memory_space<vmem>>, vector<4x18x18xf32>
    tpu.vector_store %arg18[%c0, %c0_0, %c0_1], %0 {strides = array<i32>} : memref<4x18x18xf32, #tpu.memory_space<vmem>>, vector<4x18x18xf32>,
    %cst_2 = arith.constant 0.000000e+00 : f32
    %2 = vector.broadcast %cst_2 : f32 to vector<2x18x18xf32>
    %c0_3 = arith.constant 0 : index
    %c0_4 = arith.constant 0 : index
    %c0_5 = arith.constant 0 : index
    %3 = vector.load %arg19[%c0_3, %c0_4, %c0_5] : memref<2x18x18xf32, #tpu.memory_space<vmem>>, vector<2x18x18xf32>
    tpu.vector_store %arg19[%c0_3, %c0_4, %c0_5], %2 {strides = array<i32>} : memref<2x18x18xf32, #tpu.memory_space<vmem>>, vector<2x18x18xf32>,
    %c0_6 = arith.constant 0 : index
    %c0_7 = arith.constant 0 : index
    %c0_8 = arith.constant 0 : index
    %c0_9 = arith.constant 0 : index
    %4 = vector.load %arg1[%c0_6, %c0_7, %c0_8, %c0_9] : memref<1x4x16x16xf32, #tpu.memory_space<vmem>>, vector<1x1x16x16xf32>
    %5 = vector.shape_cast %4 : vector<1x1x16x16xf32> to vector<16x16xf32>
    %c0_10 = arith.constant 0 : index
    %c1 = arith.constant 1 : index
    %c0_11 = arith.constant 0 : index
    %c0_12 = arith.constant 0 : index
    %6 = vector.load %arg1[%c0_10, %c1, %c0_11, %c0_12] : memref<1x4x16x16xf32, #tpu.memory_space<vmem>>, vector<1x1x16x16xf32>
    %7 = vector.shape_cast %6 : vector<1x1x16x16xf32> to vector<16x16xf32>
    %c0_13 = arith.constant 0 : index
    %c2 = arith.constant 2 : index
    %c0_14 = arith.constant 0 : index
    %c0_15 = arith.constant 0 : index
    %8 = vector.load %arg1[%c0_13, %c2, %c0_14, %c0_15] : memref<1x4x16x16xf32, #tpu.memory_space<vmem>>, vector<1x1x16x16xf32>
    %9 = vector.shape_cast %8 : vector<1x1x16x16xf32> to vector<16x16xf32>
    %c0_16 = arith.constant 0 : index
    %c3 = arith.constant 3 : index
    %c0_17 = arith.constant 0 : index
    %c0_18 = arith.constant 0 : index
    %10 = vector.load %arg1[%c0_16, %c3, %c0_17, %c0_18] : memref<1x4x16x16xf32, #tpu.memory_space<vmem>>, vector<1x1x16x16xf32>
    %11 = vector.shape_cast %10 : vector<1x1x16x16xf32> to vector<16x16xf32>
    %c0_19 = arith.constant 0 : index
    %c0_20 = arith.constant 0 : index
    %c0_21 = arith.constant 0 : index
    %c0_22 = arith.constant 0 : index
    %12 = vector.load %arg2[%c0_19, %c0_20, %c0_21, %c0_22] : memref<1x4x16x16xf32, #tpu.memory_space<vmem>>, vector<1x1x16x16xf32>
    %13 = vector.shape_cast %12 : vector<1x1x16x16xf32> to vector<16x16xf32>
    %c0_23 = arith.constant 0 : index
    %c1_24 = arith.constant 1 : index
    %c0_25 = arith.constant 0 : index
    %c0_26 = arith.constant 0 : index
    %14 = vector.load %arg2[%c0_23, %c1_24, %c0_25, %c0_26] : memref<1x4x16x16xf32, #tpu.memory_space<vmem>>, vector<1x1x16x16xf32>
    %15 = vector.shape_cast %14 : vector<1x1x16x16xf32> to vector<16x16xf32>
    %c0_27 = arith.constant 0 : index
    %c2_28 = arith.constant 2 : index
    %c0_29 = arith.constant 0 : index
    %c0_30 = arith.constant 0 : index
    %16 = vector.load %arg2[%c0_27, %c2_28, %c0_29, %c0_30] : memref<1x4x16x16xf32, #tpu.memory_space<vmem>>, vector<1x1x16x16xf32>
    %17 = vector.shape_cast %16 : vector<1x1x16x16xf32> to vector<16x16xf32>
    %c0_31 = arith.constant 0 : index
    %c3_32 = arith.constant 3 : index
    %c0_33 = arith.constant 0 : index
    %c0_34 = arith.constant 0 : index
    %18 = vector.load %arg2[%c0_31, %c3_32, %c0_33, %c0_34] : memref<1x4x16x16xf32, #tpu.memory_space<vmem>>, vector<1x1x16x16xf32>
    %19 = vector.shape_cast %18 : vector<1x1x16x16xf32> to vector<16x16xf32>
    %cst_35 = arith.constant 0.000000e+00 : f32
    %20 = vector.broadcast %cst_35 : f32 to vector<16x16xf32>
    %c0_36 = arith.constant 0 : index
    %c0_37 = arith.constant 0 : index
    %21 = memref.load %arg3[%c0_36, %c0_37] : memref<2x4xf32, #tpu.memory_space<smem>>
    %22 = vector.broadcast %21 : f32 to vector<16x16xf32>
    %23 = arith.mulf %22, %5 : vector<16x16xf32>
    %24 = arith.addf %20, %23 : vector<16x16xf32>
    %c0_38 = arith.constant 0 : index
    %c1_39 = arith.constant 1 : index
    %25 = memref.load %arg3[%c0_38, %c1_39] : memref<2x4xf32, #tpu.memory_space<smem>>
    %26 = vector.broadcast %25 : f32 to vector<16x16xf32>
    %27 = arith.mulf %26, %7 : vector<16x16xf32>
    %28 = arith.addf %24, %27 : vector<16x16xf32>
    %c0_40 = arith.constant 0 : index
    %c2_41 = arith.constant 2 : index
    %29 = memref.load %arg3[%c0_40, %c2_41] : memref<2x4xf32, #tpu.memory_space<smem>>
    %30 = vector.broadcast %29 : f32 to vector<16x16xf32>
    %31 = arith.mulf %30, %9 : vector<16x16xf32>
    %32 = arith.addf %28, %31 : vector<16x16xf32>
    %c0_42 = arith.constant 0 : index
    %c3_43 = arith.constant 3 : index
    %33 = memref.load %arg3[%c0_42, %c3_43] : memref<2x4xf32, #tpu.memory_space<smem>>
    %34 = vector.broadcast %33 : f32 to vector<16x16xf32>
    %35 = arith.mulf %34, %11 : vector<16x16xf32>
    %36 = arith.addf %32, %35 : vector<16x16xf32>
    %c0_44 = arith.constant 0 : index
    %37 = memref.load %arg4[%c0_44] : memref<2xf32, #tpu.memory_space<smem>>
    %38 = vector.broadcast %37 : f32 to vector<16x16xf32>
    %39 = arith.addf %36, %38 : vector<16x16xf32>
    %cst_45 = arith.constant 0.000000e+00 : f32
    %40 = vector.broadcast %cst_45 : f32 to vector<16x16xf32>
    %c1_46 = arith.constant 1 : index
    %c0_47 = arith.constant 0 : index
    %41 = memref.load %arg3[%c1_46, %c0_47] : memref<2x4xf32, #tpu.memory_space<smem>>
    %42 = vector.broadcast %41 : f32 to vector<16x16xf32>
    %43 = arith.mulf %42, %5 : vector<16x16xf32>
    %44 = arith.addf %40, %43 : vector<16x16xf32>
    %c1_48 = arith.constant 1 : index
    %c1_49 = arith.constant 1 : index
    %45 = memref.load %arg3[%c1_48, %c1_49] : memref<2x4xf32, #tpu.memory_space<smem>>
    %46 = vector.broadcast %45 : f32 to vector<16x16xf32>
    %47 = arith.mulf %46, %7 : vector<16x16xf32>
    %48 = arith.addf %44, %47 : vector<16x16xf32>
    %c1_50 = arith.constant 1 : index
    %c2_51 = arith.constant 2 : index
    %49 = memref.load %arg3[%c1_50, %c2_51] : memref<2x4xf32, #tpu.memory_space<smem>>
    %50 = vector.broadcast %49 : f32 to vector<16x16xf32>
    %51 = arith.mulf %50, %9 : vector<16x16xf32>
    %52 = arith.addf %48, %51 : vector<16x16xf32>
    %c1_52 = arith.constant 1 : index
    %c3_53 = arith.constant 3 : index
    %53 = memref.load %arg3[%c1_52, %c3_53] : memref<2x4xf32, #tpu.memory_space<smem>>
    %54 = vector.broadcast %53 : f32 to vector<16x16xf32>
    %55 = arith.mulf %54, %11 : vector<16x16xf32>
    %56 = arith.addf %52, %55 : vector<16x16xf32>
    %c1_54 = arith.constant 1 : index
    %57 = memref.load %arg4[%c1_54] : memref<2xf32, #tpu.memory_space<smem>>
    %58 = vector.broadcast %57 : f32 to vector<16x16xf32>
    %59 = arith.addf %56, %58 : vector<16x16xf32>
    %cst_55 = arith.constant 0.000000e+00 : f32
    %60 = vector.broadcast %cst_55 : f32 to vector<16x16xf32>
    %c0_56 = arith.constant 0 : index
    %c0_57 = arith.constant 0 : index
    %61 = memref.load %arg5[%c0_56, %c0_57] : memref<1x2xf32, #tpu.memory_space<smem>>
    %62 = vector.broadcast %61 : f32 to vector<16x16xf32>
    %63 = arith.mulf %62, %39 : vector<16x16xf32>
    %64 = arith.addf %60, %63 : vector<16x16xf32>
    %c0_58 = arith.constant 0 : index
    %c1_59 = arith.constant 1 : index
    %65 = memref.load %arg5[%c0_58, %c1_59] : memref<1x2xf32, #tpu.memory_space<smem>>
    %66 = vector.broadcast %65 : f32 to vector<16x16xf32>
    %67 = arith.mulf %66, %59 : vector<16x16xf32>
    %68 = arith.addf %64, %67 : vector<16x16xf32>
    %c0_60 = arith.constant 0 : index
    %69 = memref.load %arg6[%c0_60] : memref<1xf32, #tpu.memory_space<smem>>
    %70 = vector.broadcast %69 : f32 to vector<16x16xf32>
    %71 = arith.addf %68, %70 : vector<16x16xf32>
    %72 = arith.negf %71 : vector<16x16xf32>
    %73 = math.exp %72 : vector<16x16xf32>
    %cst_61 = arith.constant 1.000000e+00 : f32
    %74 = vector.broadcast %cst_61 : f32 to vector<16x16xf32>
    %75 = arith.addf %74, %73 : vector<16x16xf32>
    %76 = arith.divf %74, %75 : vector<16x16xf32>
    %c0_62 = arith.constant 0 : index
    %c1_63 = arith.constant 1 : index
    %c1_64 = arith.constant 1 : index
    %77 = vector.load %arg18[%c0_62, %c1_63, %c1_64] : memref<4x18x18xf32, #tpu.memory_space<vmem>>, vector<1x16x16xf32>
    %78 = vector.shape_cast %77 : vector<1x16x16xf32> to vector<16x16xf32>
    %79 = vector.shape_cast %5 : vector<16x16xf32> to vector<1x16x16xf32>
    tpu.vector_store %arg18[%c0_62, %c1_63, %c1_64], %79 {strides = array<i32>} : memref<4x18x18xf32, #tpu.memory_space<vmem>>, vector<1x16x16xf32>,
    %c1_65 = arith.constant 1 : index
    %c1_66 = arith.constant 1 : index
    %c1_67 = arith.constant 1 : index
    %80 = vector.load %arg18[%c1_65, %c1_66, %c1_67] : memref<4x18x18xf32, #tpu.memory_space<vmem>>, vector<1x16x16xf32>
    %81 = vector.shape_cast %80 : vector<1x16x16xf32> to vector<16x16xf32>
    %82 = vector.shape_cast %7 : vector<16x16xf32> to vector<1x16x16xf32>
    tpu.vector_store %arg18[%c1_65, %c1_66, %c1_67], %82 {strides = array<i32>} : memref<4x18x18xf32, #tpu.memory_space<vmem>>, vector<1x16x16xf32>,
    %c2_68 = arith.constant 2 : index
    %c1_69 = arith.constant 1 : index
    %c1_70 = arith.constant 1 : index
    %83 = vector.load %arg18[%c2_68, %c1_69, %c1_70] : memref<4x18x18xf32, #tpu.memory_space<vmem>>, vector<1x16x16xf32>
    %84 = vector.shape_cast %83 : vector<1x16x16xf32> to vector<16x16xf32>
    %85 = vector.shape_cast %9 : vector<16x16xf32> to vector<1x16x16xf32>
    tpu.vector_store %arg18[%c2_68, %c1_69, %c1_70], %85 {strides = array<i32>} : memref<4x18x18xf32, #tpu.memory_space<vmem>>, vector<1x16x16xf32>,
    %c3_71 = arith.constant 3 : index
    %c1_72 = arith.constant 1 : index
    %c1_73 = arith.constant 1 : index
    %86 = vector.load %arg18[%c3_71, %c1_72, %c1_73] : memref<4x18x18xf32, #tpu.memory_space<vmem>>, vector<1x16x16xf32>
    %87 = vector.shape_cast %86 : vector<1x16x16xf32> to vector<16x16xf32>
    %88 = vector.shape_cast %11 : vector<16x16xf32> to vector<1x16x16xf32>
    tpu.vector_store %arg18[%c3_71, %c1_72, %c1_73], %88 {strides = array<i32>} : memref<4x18x18xf32, #tpu.memory_space<vmem>>, vector<1x16x16xf32>,
    %cst_74 = arith.constant 0.000000e+00 : f32
    %89 = vector.broadcast %cst_74 : f32 to vector<16x16xf32>
    %cst_75 = arith.constant 0.000000e+00 : f32
    %90 = vector.broadcast %cst_75 : f32 to vector<16x16xf32>
    %c0_76 = arith.constant 0 : index
    %c0_77 = arith.constant 0 : index
    %c0_78 = arith.constant 0 : index
    %91 = vector.load %arg18[%c0_76, %c0_77, %c0_78] : memref<4x18x18xf32, #tpu.memory_space<vmem>>, vector<1x16x16xf32>
    %92 = vector.shape_cast %91 : vector<1x16x16xf32> to vector<16x16xf32>
    %c0_79 = arith.constant 0 : index
    %c0_80 = arith.constant 0 : index
    %93 = memref.load %arg7[%c0_79, %c0_80] : memref<2x36xf32, #tpu.memory_space<smem>>
    %94 = vector.broadcast %93 : f32 to vector<16x16xf32>
    %95 = arith.mulf %94, %92 : vector<16x16xf32>
    %96 = arith.addf %89, %95 : vector<16x16xf32>
    %c1_81 = arith.constant 1 : index
    %c0_82 = arith.constant 0 : index
    %97 = memref.load %arg7[%c1_81, %c0_82] : memref<2x36xf32, #tpu.memory_space<smem>>
    %98 = vector.broadcast %97 : f32 to vector<16x16xf32>
    %99 = arith.mulf %98, %92 : vector<16x16xf32>
    %100 = arith.addf %90, %99 : vector<16x16xf32>
    %c0_83 = arith.constant 0 : index
    %c0_84 = arith.constant 0 : index
    %c1_85 = arith.constant 1 : index
    %101 = vector.load %arg18[%c0_83, %c0_84, %c1_85] : memref<4x18x18xf32, #tpu.memory_space<vmem>>, vector<1x16x16xf32>
    %102 = vector.shape_cast %101 : vector<1x16x16xf32> to vector<16x16xf32>
    %c0_86 = arith.constant 0 : index
    %c1_87 = arith.constant 1 : index
    %103 = memref.load %arg7[%c0_86, %c1_87] : memref<2x36xf32, #tpu.memory_space<smem>>
    %104 = vector.broadcast %103 : f32 to vector<16x16xf32>
    %105 = arith.mulf %104, %102 : vector<16x16xf32>
    %106 = arith.addf %96, %105 : vector<16x16xf32>
    %c1_88 = arith.constant 1 : index
    %c1_89 = arith.constant 1 : index
    %107 = memref.load %arg7[%c1_88, %c1_89] : memref<2x36xf32, #tpu.memory_space<smem>>
    %108 = vector.broadcast %107 : f32 to vector<16x16xf32>
    %109 = arith.mulf %108, %102 : vector<16x16xf32>
    %110 = arith.addf %100, %109 : vector<16x16xf32>
    %c0_90 = arith.constant 0 : index
    %c0_91 = arith.constant 0 : index
    %c2_92 = arith.constant 2 : index
    %111 = vector.load %arg18[%c0_90, %c0_91, %c2_92] : memref<4x18x18xf32, #tpu.memory_space<vmem>>, vector<1x16x16xf32>
    %112 = vector.shape_cast %111 : vector<1x16x16xf32> to vector<16x16xf32>
    %c0_93 = arith.constant 0 : index
    %c2_94 = arith.constant 2 : index
    %113 = memref.load %arg7[%c0_93, %c2_94] : memref<2x36xf32, #tpu.memory_space<smem>>
    %114 = vector.broadcast %113 : f32 to vector<16x16xf32>
    %115 = arith.mulf %114, %112 : vector<16x16xf32>
    %116 = arith.addf %106, %115 : vector<16x16xf32>
    %c1_95 = arith.constant 1 : index
    %c2_96 = arith.constant 2 : index
    %117 = memref.load %arg7[%c1_95, %c2_96] : memref<2x36xf32, #tpu.memory_space<smem>>
    %118 = vector.broadcast %117 : f32 to vector<16x16xf32>
    %119 = arith.mulf %118, %112 : vector<16x16xf32>
    %120 = arith.addf %110, %119 : vector<16x16xf32>
    %c0_97 = arith.constant 0 : index
    %c1_98 = arith.constant 1 : index
    %c0_99 = arith.constant 0 : index
    %121 = vector.load %arg18[%c0_97, %c1_98, %c0_99] : memref<4x18x18xf32, #tpu.memory_space<vmem>>, vector<1x16x16xf32>
    %122 = vector.shape_cast %121 : vector<1x16x16xf32> to vector<16x16xf32>
    %c0_100 = arith.constant 0 : index
    %c3_101 = arith.constant 3 : index
    %123 = memref.load %arg7[%c0_100, %c3_101] : memref<2x36xf32, #tpu.memory_space<smem>>
    %124 = vector.broadcast %123 : f32 to vector<16x16xf32>
    %125 = arith.mulf %124, %122 : vector<16x16xf32>
    %126 = arith.addf %116, %125 : vector<16x16xf32>
    %c1_102 = arith.constant 1 : index
    %c3_103 = arith.constant 3 : index
    %127 = memref.load %arg7[%c1_102, %c3_103] : memref<2x36xf32, #tpu.memory_space<smem>>
    %128 = vector.broadcast %127 : f32 to vector<16x16xf32>
    %129 = arith.mulf %128, %122 : vector<16x16xf32>
    %130 = arith.addf %120, %129 : vector<16x16xf32>
    %c0_104 = arith.constant 0 : index
    %c1_105 = arith.constant 1 : index
    %c1_106 = arith.constant 1 : index
    %131 = vector.load %arg18[%c0_104, %c1_105, %c1_106] : memref<4x18x18xf32, #tpu.memory_space<vmem>>, vector<1x16x16xf32>
    %132 = vector.shape_cast %131 : vector<1x16x16xf32> to vector<16x16xf32>
    %c0_107 = arith.constant 0 : index
    %c4 = arith.constant 4 : index
    %133 = memref.load %arg7[%c0_107, %c4] : memref<2x36xf32, #tpu.memory_space<smem>>
    %134 = vector.broadcast %133 : f32 to vector<16x16xf32>
    %135 = arith.mulf %134, %132 : vector<16x16xf32>
    %136 = arith.addf %126, %135 : vector<16x16xf32>
    %c1_108 = arith.constant 1 : index
    %c4_109 = arith.constant 4 : index
    %137 = memref.load %arg7[%c1_108, %c4_109] : memref<2x36xf32, #tpu.memory_space<smem>>
    %138 = vector.broadcast %137 : f32 to vector<16x16xf32>
    %139 = arith.mulf %138, %132 : vector<16x16xf32>
    %140 = arith.addf %130, %139 : vector<16x16xf32>
    %c0_110 = arith.constant 0 : index
    %c1_111 = arith.constant 1 : index
    %c2_112 = arith.constant 2 : index
    %141 = vector.load %arg18[%c0_110, %c1_111, %c2_112] : memref<4x18x18xf32, #tpu.memory_space<vmem>>, vector<1x16x16xf32>
    %142 = vector.shape_cast %141 : vector<1x16x16xf32> to vector<16x16xf32>
    %c0_113 = arith.constant 0 : index
    %c5 = arith.constant 5 : index
    %143 = memref.load %arg7[%c0_113, %c5] : memref<2x36xf32, #tpu.memory_space<smem>>
    %144 = vector.broadcast %143 : f32 to vector<16x16xf32>
    %145 = arith.mulf %144, %142 : vector<16x16xf32>
    %146 = arith.addf %136, %145 : vector<16x16xf32>
    %c1_114 = arith.constant 1 : index
    %c5_115 = arith.constant 5 : index
    %147 = memref.load %arg7[%c1_114, %c5_115] : memref<2x36xf32, #tpu.memory_space<smem>>
    %148 = vector.broadcast %147 : f32 to vector<16x16xf32>
    %149 = arith.mulf %148, %142 : vector<16x16xf32>
    %150 = arith.addf %140, %149 : vector<16x16xf32>
    %c0_116 = arith.constant 0 : index
    %c2_117 = arith.constant 2 : index
    %c0_118 = arith.constant 0 : index
    %151 = vector.load %arg18[%c0_116, %c2_117, %c0_118] : memref<4x18x18xf32, #tpu.memory_space<vmem>>, vector<1x16x16xf32>
    %152 = vector.shape_cast %151 : vector<1x16x16xf32> to vector<16x16xf32>
    %c0_119 = arith.constant 0 : index
    %c6 = arith.constant 6 : index
    %153 = memref.load %arg7[%c0_119, %c6] : memref<2x36xf32, #tpu.memory_space<smem>>
    %154 = vector.broadcast %153 : f32 to vector<16x16xf32>
    %155 = arith.mulf %154, %152 : vector<16x16xf32>
    %156 = arith.addf %146, %155 : vector<16x16xf32>
    %c1_120 = arith.constant 1 : index
    %c6_121 = arith.constant 6 : index
    %157 = memref.load %arg7[%c1_120, %c6_121] : memref<2x36xf32, #tpu.memory_space<smem>>
    %158 = vector.broadcast %157 : f32 to vector<16x16xf32>
    %159 = arith.mulf %158, %152 : vector<16x16xf32>
    %160 = arith.addf %150, %159 : vector<16x16xf32>
    %c0_122 = arith.constant 0 : index
    %c2_123 = arith.constant 2 : index
    %c1_124 = arith.constant 1 : index
    %161 = vector.load %arg18[%c0_122, %c2_123, %c1_124] : memref<4x18x18xf32, #tpu.memory_space<vmem>>, vector<1x16x16xf32>
    %162 = vector.shape_cast %161 : vector<1x16x16xf32> to vector<16x16xf32>
    %c0_125 = arith.constant 0 : index
    %c7 = arith.constant 7 : index
    %163 = memref.load %arg7[%c0_125, %c7] : memref<2x36xf32, #tpu.memory_space<smem>>
    %164 = vector.broadcast %163 : f32 to vector<16x16xf32>
    %165 = arith.mulf %164, %162 : vector<16x16xf32>
    %166 = arith.addf %156, %165 : vector<16x16xf32>
    %c1_126 = arith.constant 1 : index
    %c7_127 = arith.constant 7 : index
    %167 = memref.load %arg7[%c1_126, %c7_127] : memref<2x36xf32, #tpu.memory_space<smem>>
    %168 = vector.broadcast %167 : f32 to vector<16x16xf32>
    %169 = arith.mulf %168, %162 : vector<16x16xf32>
    %170 = arith.addf %160, %169 : vector<16x16xf32>
    %c0_128 = arith.constant 0 : index
    %c2_129 = arith.constant 2 : index
    %c2_130 = arith.constant 2 : index
    %171 = vector.load %arg18[%c0_128, %c2_129, %c2_130] : memref<4x18x18xf32, #tpu.memory_space<vmem>>, vector<1x16x16xf32>
    %172 = vector.shape_cast %171 : vector<1x16x16xf32> to vector<16x16xf32>
    %c0_131 = arith.constant 0 : index
    %c8 = arith.constant 8 : index
    %173 = memref.load %arg7[%c0_131, %c8] : memref<2x36xf32, #tpu.memory_space<smem>>
    %174 = vector.broadcast %173 : f32 to vector<16x16xf32>
    %175 = arith.mulf %174, %172 : vector<16x16xf32>
    %176 = arith.addf %166, %175 : vector<16x16xf32>
    %c1_132 = arith.constant 1 : index
    %c8_133 = arith.constant 8 : index
    %177 = memref.load %arg7[%c1_132, %c8_133] : memref<2x36xf32, #tpu.memory_space<smem>>
    %178 = vector.broadcast %177 : f32 to vector<16x16xf32>
    %179 = arith.mulf %178, %172 : vector<16x16xf32>
    %180 = arith.addf %170, %179 : vector<16x16xf32>
    %c1_134 = arith.constant 1 : index
    %c0_135 = arith.constant 0 : index
    %c0_136 = arith.constant 0 : index
    %181 = vector.load %arg18[%c1_134, %c0_135, %c0_136] : memref<4x18x18xf32, #tpu.memory_space<vmem>>, vector<1x16x16xf32>
    %182 = vector.shape_cast %181 : vector<1x16x16xf32> to vector<16x16xf32>
    %c0_137 = arith.constant 0 : index
    %c9 = arith.constant 9 : index
    %183 = memref.load %arg7[%c0_137, %c9] : memref<2x36xf32, #tpu.memory_space<smem>>
    %184 = vector.broadcast %183 : f32 to vector<16x16xf32>
    %185 = arith.mulf %184, %182 : vector<16x16xf32>
    %186 = arith.addf %176, %185 : vector<16x16xf32>
    %c1_138 = arith.constant 1 : index
    %c9_139 = arith.constant 9 : index
    %187 = memref.load %arg7[%c1_138, %c9_139] : memref<2x36xf32, #tpu.memory_space<smem>>
    %188 = vector.broadcast %187 : f32 to vector<16x16xf32>
    %189 = arith.mulf %188, %182 : vector<16x16xf32>
    %190 = arith.addf %180, %189 : vector<16x16xf32>
    %c1_140 = arith.constant 1 : index
    %c0_141 = arith.constant 0 : index
    %c1_142 = arith.constant 1 : index
    %191 = vector.load %arg18[%c1_140, %c0_141, %c1_142] : memref<4x18x18xf32, #tpu.memory_space<vmem>>, vector<1x16x16xf32>
    %192 = vector.shape_cast %191 : vector<1x16x16xf32> to vector<16x16xf32>
    %c0_143 = arith.constant 0 : index
    %c10 = arith.constant 10 : index
    %193 = memref.load %arg7[%c0_143, %c10] : memref<2x36xf32, #tpu.memory_space<smem>>
    %194 = vector.broadcast %193 : f32 to vector<16x16xf32>
    %195 = arith.mulf %194, %192 : vector<16x16xf32>
    %196 = arith.addf %186, %195 : vector<16x16xf32>
    %c1_144 = arith.constant 1 : index
    %c10_145 = arith.constant 10 : index
    %197 = memref.load %arg7[%c1_144, %c10_145] : memref<2x36xf32, #tpu.memory_space<smem>>
    %198 = vector.broadcast %197 : f32 to vector<16x16xf32>
    %199 = arith.mulf %198, %192 : vector<16x16xf32>
    %200 = arith.addf %190, %199 : vector<16x16xf32>
    %c1_146 = arith.constant 1 : index
    %c0_147 = arith.constant 0 : index
    %c2_148 = arith.constant 2 : index
    %201 = vector.load %arg18[%c1_146, %c0_147, %c2_148] : memref<4x18x18xf32, #tpu.memory_space<vmem>>, vector<1x16x16xf32>
    %202 = vector.shape_cast %201 : vector<1x16x16xf32> to vector<16x16xf32>
    %c0_149 = arith.constant 0 : index
    %c11 = arith.constant 11 : index
    %203 = memref.load %arg7[%c0_149, %c11] : memref<2x36xf32, #tpu.memory_space<smem>>
    %204 = vector.broadcast %203 : f32 to vector<16x16xf32>
    %205 = arith.mulf %204, %202 : vector<16x16xf32>
    %206 = arith.addf %196, %205 : vector<16x16xf32>
    %c1_150 = arith.constant 1 : index
    %c11_151 = arith.constant 11 : index
    %207 = memref.load %arg7[%c1_150, %c11_151] : memref<2x36xf32, #tpu.memory_space<smem>>
    %208 = vector.broadcast %207 : f32 to vector<16x16xf32>
    %209 = arith.mulf %208, %202 : vector<16x16xf32>
    %210 = arith.addf %200, %209 : vector<16x16xf32>
    %c1_152 = arith.constant 1 : index
    %c1_153 = arith.constant 1 : index
    %c0_154 = arith.constant 0 : index
    %211 = vector.load %arg18[%c1_152, %c1_153, %c0_154] : memref<4x18x18xf32, #tpu.memory_space<vmem>>, vector<1x16x16xf32>
    %212 = vector.shape_cast %211 : vector<1x16x16xf32> to vector<16x16xf32>
    %c0_155 = arith.constant 0 : index
    %c12 = arith.constant 12 : index
    %213 = memref.load %arg7[%c0_155, %c12] : memref<2x36xf32, #tpu.memory_space<smem>>
    %214 = vector.broadcast %213 : f32 to vector<16x16xf32>
    %215 = arith.mulf %214, %212 : vector<16x16xf32>
    %216 = arith.addf %206, %215 : vector<16x16xf32>
    %c1_156 = arith.constant 1 : index
    %c12_157 = arith.constant 12 : index
    %217 = memref.load %arg7[%c1_156, %c12_157] : memref<2x36xf32, #tpu.memory_space<smem>>
    %218 = vector.broadcast %217 : f32 to vector<16x16xf32>
    %219 = arith.mulf %218, %212 : vector<16x16xf32>
    %220 = arith.addf %210, %219 : vector<16x16xf32>
    %c1_158 = arith.constant 1 : index
    %c1_159 = arith.constant 1 : index
    %c1_160 = arith.constant 1 : index
    %221 = vector.load %arg18[%c1_158, %c1_159, %c1_160] : memref<4x18x18xf32, #tpu.memory_space<vmem>>, vector<1x16x16xf32>
    %222 = vector.shape_cast %221 : vector<1x16x16xf32> to vector<16x16xf32>
    %c0_161 = arith.constant 0 : index
    %c13 = arith.constant 13 : index
    %223 = memref.load %arg7[%c0_161, %c13] : memref<2x36xf32, #tpu.memory_space<smem>>
    %224 = vector.broadcast %223 : f32 to vector<16x16xf32>
    %225 = arith.mulf %224, %222 : vector<16x16xf32>
    %226 = arith.addf %216, %225 : vector<16x16xf32>
    %c1_162 = arith.constant 1 : index
    %c13_163 = arith.constant 13 : index
    %227 = memref.load %arg7[%c1_162, %c13_163] : memref<2x36xf32, #tpu.memory_space<smem>>
    %228 = vector.broadcast %227 : f32 to vector<16x16xf32>
    %229 = arith.mulf %228, %222 : vector<16x16xf32>
    %230 = arith.addf %220, %229 : vector<16x16xf32>
    %c1_164 = arith.constant 1 : index
    %c1_165 = arith.constant 1 : index
    %c2_166 = arith.constant 2 : index
    %231 = vector.load %arg18[%c1_164, %c1_165, %c2_166] : memref<4x18x18xf32, #tpu.memory_space<vmem>>, vector<1x16x16xf32>
    %232 = vector.shape_cast %231 : vector<1x16x16xf32> to vector<16x16xf32>
    %c0_167 = arith.constant 0 : index
    %c14 = arith.constant 14 : index
    %233 = memref.load %arg7[%c0_167, %c14] : memref<2x36xf32, #tpu.memory_space<smem>>
    %234 = vector.broadcast %233 : f32 to vector<16x16xf32>
    %235 = arith.mulf %234, %232 : vector<16x16xf32>
    %236 = arith.addf %226, %235 : vector<16x16xf32>
    %c1_168 = arith.constant 1 : index
    %c14_169 = arith.constant 14 : index
    %237 = memref.load %arg7[%c1_168, %c14_169] : memref<2x36xf32, #tpu.memory_space<smem>>
    %238 = vector.broadcast %237 : f32 to vector<16x16xf32>
    %239 = arith.mulf %238, %232 : vector<16x16xf32>
    %240 = arith.addf %230, %239 : vector<16x16xf32>
    %c1_170 = arith.constant 1 : index
    %c2_171 = arith.constant 2 : index
    %c0_172 = arith.constant 0 : index
    %241 = vector.load %arg18[%c1_170, %c2_171, %c0_172] : memref<4x18x18xf32, #tpu.memory_space<vmem>>, vector<1x16x16xf32>
    %242 = vector.shape_cast %241 : vector<1x16x16xf32> to vector<16x16xf32>
    %c0_173 = arith.constant 0 : index
    %c15 = arith.constant 15 : index
    %243 = memref.load %arg7[%c0_173, %c15] : memref<2x36xf32, #tpu.memory_space<smem>>
    %244 = vector.broadcast %243 : f32 to vector<16x16xf32>
    %245 = arith.mulf %244, %242 : vector<16x16xf32>
    %246 = arith.addf %236, %245 : vector<16x16xf32>
    %c1_174 = arith.constant 1 : index
    %c15_175 = arith.constant 15 : index
    %247 = memref.load %arg7[%c1_174, %c15_175] : memref<2x36xf32, #tpu.memory_space<smem>>
    %248 = vector.broadcast %247 : f32 to vector<16x16xf32>
    %249 = arith.mulf %248, %242 : vector<16x16xf32>
    %250 = arith.addf %240, %249 : vector<16x16xf32>
    %c1_176 = arith.constant 1 : index
    %c2_177 = arith.constant 2 : index
    %c1_178 = arith.constant 1 : index
    %251 = vector.load %arg18[%c1_176, %c2_177, %c1_178] : memref<4x18x18xf32, #tpu.memory_space<vmem>>, vector<1x16x16xf32>
    %252 = vector.shape_cast %251 : vector<1x16x16xf32> to vector<16x16xf32>
    %c0_179 = arith.constant 0 : index
    %c16 = arith.constant 16 : index
    %253 = memref.load %arg7[%c0_179, %c16] : memref<2x36xf32, #tpu.memory_space<smem>>
    %254 = vector.broadcast %253 : f32 to vector<16x16xf32>
    %255 = arith.mulf %254, %252 : vector<16x16xf32>
    %256 = arith.addf %246, %255 : vector<16x16xf32>
    %c1_180 = arith.constant 1 : index
    %c16_181 = arith.constant 16 : index
    %257 = memref.load %arg7[%c1_180, %c16_181] : memref<2x36xf32, #tpu.memory_space<smem>>
    %258 = vector.broadcast %257 : f32 to vector<16x16xf32>
    %259 = arith.mulf %258, %252 : vector<16x16xf32>
    %260 = arith.addf %250, %259 : vector<16x16xf32>
    %c1_182 = arith.constant 1 : index
    %c2_183 = arith.constant 2 : index
    %c2_184 = arith.constant 2 : index
    %261 = vector.load %arg18[%c1_182, %c2_183, %c2_184] : memref<4x18x18xf32, #tpu.memory_space<vmem>>, vector<1x16x16xf32>
    %262 = vector.shape_cast %261 : vector<1x16x16xf32> to vector<16x16xf32>
    %c0_185 = arith.constant 0 : index
    %c17 = arith.constant 17 : index
    %263 = memref.load %arg7[%c0_185, %c17] : memref<2x36xf32, #tpu.memory_space<smem>>
    %264 = vector.broadcast %263 : f32 to vector<16x16xf32>
    %265 = arith.mulf %264, %262 : vector<16x16xf32>
    %266 = arith.addf %256, %265 : vector<16x16xf32>
    %c1_186 = arith.constant 1 : index
    %c17_187 = arith.constant 17 : index
    %267 = memref.load %arg7[%c1_186, %c17_187] : memref<2x36xf32, #tpu.memory_space<smem>>
    %268 = vector.broadcast %267 : f32 to vector<16x16xf32>
    %269 = arith.mulf %268, %262 : vector<16x16xf32>
    %270 = arith.addf %260, %269 : vector<16x16xf32>
    %c2_188 = arith.constant 2 : index
    %c0_189 = arith.constant 0 : index
    %c0_190 = arith.constant 0 : index
    %271 = vector.load %arg18[%c2_188, %c0_189, %c0_190] : memref<4x18x18xf32, #tpu.memory_space<vmem>>, vector<1x16x16xf32>
    %272 = vector.shape_cast %271 : vector<1x16x16xf32> to vector<16x16xf32>
    %c0_191 = arith.constant 0 : index
    %c18 = arith.constant 18 : index
    %273 = memref.load %arg7[%c0_191, %c18] : memref<2x36xf32, #tpu.memory_space<smem>>
    %274 = vector.broadcast %273 : f32 to vector<16x16xf32>
    %275 = arith.mulf %274, %272 : vector<16x16xf32>
    %276 = arith.addf %266, %275 : vector<16x16xf32>
    %c1_192 = arith.constant 1 : index
    %c18_193 = arith.constant 18 : index
    %277 = memref.load %arg7[%c1_192, %c18_193] : memref<2x36xf32, #tpu.memory_space<smem>>
    %278 = vector.broadcast %277 : f32 to vector<16x16xf32>
    %279 = arith.mulf %278, %272 : vector<16x16xf32>
    %280 = arith.addf %270, %279 : vector<16x16xf32>
    %c2_194 = arith.constant 2 : index
    %c0_195 = arith.constant 0 : index
    %c1_196 = arith.constant 1 : index
    %281 = vector.load %arg18[%c2_194, %c0_195, %c1_196] : memref<4x18x18xf32, #tpu.memory_space<vmem>>, vector<1x16x16xf32>
    %282 = vector.shape_cast %281 : vector<1x16x16xf32> to vector<16x16xf32>
    %c0_197 = arith.constant 0 : index
    %c19 = arith.constant 19 : index
    %283 = memref.load %arg7[%c0_197, %c19] : memref<2x36xf32, #tpu.memory_space<smem>>
    %284 = vector.broadcast %283 : f32 to vector<16x16xf32>
    %285 = arith.mulf %284, %282 : vector<16x16xf32>
    %286 = arith.addf %276, %285 : vector<16x16xf32>
    %c1_198 = arith.constant 1 : index
    %c19_199 = arith.constant 19 : index
    %287 = memref.load %arg7[%c1_198, %c19_199] : memref<2x36xf32, #tpu.memory_space<smem>>
    %288 = vector.broadcast %287 : f32 to vector<16x16xf32>
    %289 = arith.mulf %288, %282 : vector<16x16xf32>
    %290 = arith.addf %280, %289 : vector<16x16xf32>
    %c2_200 = arith.constant 2 : index
    %c0_201 = arith.constant 0 : index
    %c2_202 = arith.constant 2 : index
    %291 = vector.load %arg18[%c2_200, %c0_201, %c2_202] : memref<4x18x18xf32, #tpu.memory_space<vmem>>, vector<1x16x16xf32>
    %292 = vector.shape_cast %291 : vector<1x16x16xf32> to vector<16x16xf32>
    %c0_203 = arith.constant 0 : index
    %c20 = arith.constant 20 : index
    %293 = memref.load %arg7[%c0_203, %c20] : memref<2x36xf32, #tpu.memory_space<smem>>
    %294 = vector.broadcast %293 : f32 to vector<16x16xf32>
    %295 = arith.mulf %294, %292 : vector<16x16xf32>
    %296 = arith.addf %286, %295 : vector<16x16xf32>
    %c1_204 = arith.constant 1 : index
    %c20_205 = arith.constant 20 : index
    %297 = memref.load %arg7[%c1_204, %c20_205] : memref<2x36xf32, #tpu.memory_space<smem>>
    %298 = vector.broadcast %297 : f32 to vector<16x16xf32>
    %299 = arith.mulf %298, %292 : vector<16x16xf32>
    %300 = arith.addf %290, %299 : vector<16x16xf32>
    %c2_206 = arith.constant 2 : index
    %c1_207 = arith.constant 1 : index
    %c0_208 = arith.constant 0 : index
    %301 = vector.load %arg18[%c2_206, %c1_207, %c0_208] : memref<4x18x18xf32, #tpu.memory_space<vmem>>, vector<1x16x16xf32>
    %302 = vector.shape_cast %301 : vector<1x16x16xf32> to vector<16x16xf32>
    %c0_209 = arith.constant 0 : index
    %c21 = arith.constant 21 : index
    %303 = memref.load %arg7[%c0_209, %c21] : memref<2x36xf32, #tpu.memory_space<smem>>
    %304 = vector.broadcast %303 : f32 to vector<16x16xf32>
    %305 = arith.mulf %304, %302 : vector<16x16xf32>
    %306 = arith.addf %296, %305 : vector<16x16xf32>
    %c1_210 = arith.constant 1 : index
    %c21_211 = arith.constant 21 : index
    %307 = memref.load %arg7[%c1_210, %c21_211] : memref<2x36xf32, #tpu.memory_space<smem>>
    %308 = vector.broadcast %307 : f32 to vector<16x16xf32>
    %309 = arith.mulf %308, %302 : vector<16x16xf32>
    %310 = arith.addf %300, %309 : vector<16x16xf32>
    %c2_212 = arith.constant 2 : index
    %c1_213 = arith.constant 1 : index
    %c1_214 = arith.constant 1 : index
    %311 = vector.load %arg18[%c2_212, %c1_213, %c1_214] : memref<4x18x18xf32, #tpu.memory_space<vmem>>, vector<1x16x16xf32>
    %312 = vector.shape_cast %311 : vector<1x16x16xf32> to vector<16x16xf32>
    %c0_215 = arith.constant 0 : index
    %c22 = arith.constant 22 : index
    %313 = memref.load %arg7[%c0_215, %c22] : memref<2x36xf32, #tpu.memory_space<smem>>
    %314 = vector.broadcast %313 : f32 to vector<16x16xf32>
    %315 = arith.mulf %314, %312 : vector<16x16xf32>
    %316 = arith.addf %306, %315 : vector<16x16xf32>
    %c1_216 = arith.constant 1 : index
    %c22_217 = arith.constant 22 : index
    %317 = memref.load %arg7[%c1_216, %c22_217] : memref<2x36xf32, #tpu.memory_space<smem>>
    %318 = vector.broadcast %317 : f32 to vector<16x16xf32>
    %319 = arith.mulf %318, %312 : vector<16x16xf32>
    %320 = arith.addf %310, %319 : vector<16x16xf32>
    %c2_218 = arith.constant 2 : index
    %c1_219 = arith.constant 1 : index
    %c2_220 = arith.constant 2 : index
    %321 = vector.load %arg18[%c2_218, %c1_219, %c2_220] : memref<4x18x18xf32, #tpu.memory_space<vmem>>, vector<1x16x16xf32>
    %322 = vector.shape_cast %321 : vector<1x16x16xf32> to vector<16x16xf32>
    %c0_221 = arith.constant 0 : index
    %c23 = arith.constant 23 : index
    %323 = memref.load %arg7[%c0_221, %c23] : memref<2x36xf32, #tpu.memory_space<smem>>
    %324 = vector.broadcast %323 : f32 to vector<16x16xf32>
    %325 = arith.mulf %324, %322 : vector<16x16xf32>
    %326 = arith.addf %316, %325 : vector<16x16xf32>
    %c1_222 = arith.constant 1 : index
    %c23_223 = arith.constant 23 : index
    %327 = memref.load %arg7[%c1_222, %c23_223] : memref<2x36xf32, #tpu.memory_space<smem>>
    %328 = vector.broadcast %327 : f32 to vector<16x16xf32>
    %329 = arith.mulf %328, %322 : vector<16x16xf32>
    %330 = arith.addf %320, %329 : vector<16x16xf32>
    %c2_224 = arith.constant 2 : index
    %c2_225 = arith.constant 2 : index
    %c0_226 = arith.constant 0 : index
    %331 = vector.load %arg18[%c2_224, %c2_225, %c0_226] : memref<4x18x18xf32, #tpu.memory_space<vmem>>, vector<1x16x16xf32>
    %332 = vector.shape_cast %331 : vector<1x16x16xf32> to vector<16x16xf32>
    %c0_227 = arith.constant 0 : index
    %c24 = arith.constant 24 : index
    %333 = memref.load %arg7[%c0_227, %c24] : memref<2x36xf32, #tpu.memory_space<smem>>
    %334 = vector.broadcast %333 : f32 to vector<16x16xf32>
    %335 = arith.mulf %334, %332 : vector<16x16xf32>
    %336 = arith.addf %326, %335 : vector<16x16xf32>
    %c1_228 = arith.constant 1 : index
    %c24_229 = arith.constant 24 : index
    %337 = memref.load %arg7[%c1_228, %c24_229] : memref<2x36xf32, #tpu.memory_space<smem>>
    %338 = vector.broadcast %337 : f32 to vector<16x16xf32>
    %339 = arith.mulf %338, %332 : vector<16x16xf32>
    %340 = arith.addf %330, %339 : vector<16x16xf32>
    %c2_230 = arith.constant 2 : index
    %c2_231 = arith.constant 2 : index
    %c1_232 = arith.constant 1 : index
    %341 = vector.load %arg18[%c2_230, %c2_231, %c1_232] : memref<4x18x18xf32, #tpu.memory_space<vmem>>, vector<1x16x16xf32>
    %342 = vector.shape_cast %341 : vector<1x16x16xf32> to vector<16x16xf32>
    %c0_233 = arith.constant 0 : index
    %c25 = arith.constant 25 : index
    %343 = memref.load %arg7[%c0_233, %c25] : memref<2x36xf32, #tpu.memory_space<smem>>
    %344 = vector.broadcast %343 : f32 to vector<16x16xf32>
    %345 = arith.mulf %344, %342 : vector<16x16xf32>
    %346 = arith.addf %336, %345 : vector<16x16xf32>
    %c1_234 = arith.constant 1 : index
    %c25_235 = arith.constant 25 : index
    %347 = memref.load %arg7[%c1_234, %c25_235] : memref<2x36xf32, #tpu.memory_space<smem>>
    %348 = vector.broadcast %347 : f32 to vector<16x16xf32>
    %349 = arith.mulf %348, %342 : vector<16x16xf32>
    %350 = arith.addf %340, %349 : vector<16x16xf32>
    %c2_236 = arith.constant 2 : index
    %c2_237 = arith.constant 2 : index
    %c2_238 = arith.constant 2 : index
    %351 = vector.load %arg18[%c2_236, %c2_237, %c2_238] : memref<4x18x18xf32, #tpu.memory_space<vmem>>, vector<1x16x16xf32>
    %352 = vector.shape_cast %351 : vector<1x16x16xf32> to vector<16x16xf32>
    %c0_239 = arith.constant 0 : index
    %c26 = arith.constant 26 : index
    %353 = memref.load %arg7[%c0_239, %c26] : memref<2x36xf32, #tpu.memory_space<smem>>
    %354 = vector.broadcast %353 : f32 to vector<16x16xf32>
    %355 = arith.mulf %354, %352 : vector<16x16xf32>
    %356 = arith.addf %346, %355 : vector<16x16xf32>
    %c1_240 = arith.constant 1 : index
    %c26_241 = arith.constant 26 : index
    %357 = memref.load %arg7[%c1_240, %c26_241] : memref<2x36xf32, #tpu.memory_space<smem>>
    %358 = vector.broadcast %357 : f32 to vector<16x16xf32>
    %359 = arith.mulf %358, %352 : vector<16x16xf32>
    %360 = arith.addf %350, %359 : vector<16x16xf32>
    %c3_242 = arith.constant 3 : index
    %c0_243 = arith.constant 0 : index
    %c0_244 = arith.constant 0 : index
    %361 = vector.load %arg18[%c3_242, %c0_243, %c0_244] : memref<4x18x18xf32, #tpu.memory_space<vmem>>, vector<1x16x16xf32>
    %362 = vector.shape_cast %361 : vector<1x16x16xf32> to vector<16x16xf32>
    %c0_245 = arith.constant 0 : index
    %c27 = arith.constant 27 : index
    %363 = memref.load %arg7[%c0_245, %c27] : memref<2x36xf32, #tpu.memory_space<smem>>
    %364 = vector.broadcast %363 : f32 to vector<16x16xf32>
    %365 = arith.mulf %364, %362 : vector<16x16xf32>
    %366 = arith.addf %356, %365 : vector<16x16xf32>
    %c1_246 = arith.constant 1 : index
    %c27_247 = arith.constant 27 : index
    %367 = memref.load %arg7[%c1_246, %c27_247] : memref<2x36xf32, #tpu.memory_space<smem>>
    %368 = vector.broadcast %367 : f32 to vector<16x16xf32>
    %369 = arith.mulf %368, %362 : vector<16x16xf32>
    %370 = arith.addf %360, %369 : vector<16x16xf32>
    %c3_248 = arith.constant 3 : index
    %c0_249 = arith.constant 0 : index
    %c1_250 = arith.constant 1 : index
    %371 = vector.load %arg18[%c3_248, %c0_249, %c1_250] : memref<4x18x18xf32, #tpu.memory_space<vmem>>, vector<1x16x16xf32>
    %372 = vector.shape_cast %371 : vector<1x16x16xf32> to vector<16x16xf32>
    %c0_251 = arith.constant 0 : index
    %c28 = arith.constant 28 : index
    %373 = memref.load %arg7[%c0_251, %c28] : memref<2x36xf32, #tpu.memory_space<smem>>
    %374 = vector.broadcast %373 : f32 to vector<16x16xf32>
    %375 = arith.mulf %374, %372 : vector<16x16xf32>
    %376 = arith.addf %366, %375 : vector<16x16xf32>
    %c1_252 = arith.constant 1 : index
    %c28_253 = arith.constant 28 : index
    %377 = memref.load %arg7[%c1_252, %c28_253] : memref<2x36xf32, #tpu.memory_space<smem>>
    %378 = vector.broadcast %377 : f32 to vector<16x16xf32>
    %379 = arith.mulf %378, %372 : vector<16x16xf32>
    %380 = arith.addf %370, %379 : vector<16x16xf32>
    %c3_254 = arith.constant 3 : index
    %c0_255 = arith.constant 0 : index
    %c2_256 = arith.constant 2 : index
    %381 = vector.load %arg18[%c3_254, %c0_255, %c2_256] : memref<4x18x18xf32, #tpu.memory_space<vmem>>, vector<1x16x16xf32>
    %382 = vector.shape_cast %381 : vector<1x16x16xf32> to vector<16x16xf32>
    %c0_257 = arith.constant 0 : index
    %c29 = arith.constant 29 : index
    %383 = memref.load %arg7[%c0_257, %c29] : memref<2x36xf32, #tpu.memory_space<smem>>
    %384 = vector.broadcast %383 : f32 to vector<16x16xf32>
    %385 = arith.mulf %384, %382 : vector<16x16xf32>
    %386 = arith.addf %376, %385 : vector<16x16xf32>
    %c1_258 = arith.constant 1 : index
    %c29_259 = arith.constant 29 : index
    %387 = memref.load %arg7[%c1_258, %c29_259] : memref<2x36xf32, #tpu.memory_space<smem>>
    %388 = vector.broadcast %387 : f32 to vector<16x16xf32>
    %389 = arith.mulf %388, %382 : vector<16x16xf32>
    %390 = arith.addf %380, %389 : vector<16x16xf32>
    %c3_260 = arith.constant 3 : index
    %c1_261 = arith.constant 1 : index
    %c0_262 = arith.constant 0 : index
    %391 = vector.load %arg18[%c3_260, %c1_261, %c0_262] : memref<4x18x18xf32, #tpu.memory_space<vmem>>, vector<1x16x16xf32>
    %392 = vector.shape_cast %391 : vector<1x16x16xf32> to vector<16x16xf32>
    %c0_263 = arith.constant 0 : index
    %c30 = arith.constant 30 : index
    %393 = memref.load %arg7[%c0_263, %c30] : memref<2x36xf32, #tpu.memory_space<smem>>
    %394 = vector.broadcast %393 : f32 to vector<16x16xf32>
    %395 = arith.mulf %394, %392 : vector<16x16xf32>
    %396 = arith.addf %386, %395 : vector<16x16xf32>
    %c1_264 = arith.constant 1 : index
    %c30_265 = arith.constant 30 : index
    %397 = memref.load %arg7[%c1_264, %c30_265] : memref<2x36xf32, #tpu.memory_space<smem>>
    %398 = vector.broadcast %397 : f32 to vector<16x16xf32>
    %399 = arith.mulf %398, %392 : vector<16x16xf32>
    %400 = arith.addf %390, %399 : vector<16x16xf32>
    %c3_266 = arith.constant 3 : index
    %c1_267 = arith.constant 1 : index
    %c1_268 = arith.constant 1 : index
    %401 = vector.load %arg18[%c3_266, %c1_267, %c1_268] : memref<4x18x18xf32, #tpu.memory_space<vmem>>, vector<1x16x16xf32>
    %402 = vector.shape_cast %401 : vector<1x16x16xf32> to vector<16x16xf32>
    %c0_269 = arith.constant 0 : index
    %c31 = arith.constant 31 : index
    %403 = memref.load %arg7[%c0_269, %c31] : memref<2x36xf32, #tpu.memory_space<smem>>
    %404 = vector.broadcast %403 : f32 to vector<16x16xf32>
    %405 = arith.mulf %404, %402 : vector<16x16xf32>
    %406 = arith.addf %396, %405 : vector<16x16xf32>
    %c1_270 = arith.constant 1 : index
    %c31_271 = arith.constant 31 : index
    %407 = memref.load %arg7[%c1_270, %c31_271] : memref<2x36xf32, #tpu.memory_space<smem>>
    %408 = vector.broadcast %407 : f32 to vector<16x16xf32>
    %409 = arith.mulf %408, %402 : vector<16x16xf32>
    %410 = arith.addf %400, %409 : vector<16x16xf32>
    %c3_272 = arith.constant 3 : index
    %c1_273 = arith.constant 1 : index
    %c2_274 = arith.constant 2 : index
    %411 = vector.load %arg18[%c3_272, %c1_273, %c2_274] : memref<4x18x18xf32, #tpu.memory_space<vmem>>, vector<1x16x16xf32>
    %412 = vector.shape_cast %411 : vector<1x16x16xf32> to vector<16x16xf32>
    %c0_275 = arith.constant 0 : index
    %c32 = arith.constant 32 : index
    %413 = memref.load %arg7[%c0_275, %c32] : memref<2x36xf32, #tpu.memory_space<smem>>
    %414 = vector.broadcast %413 : f32 to vector<16x16xf32>
    %415 = arith.mulf %414, %412 : vector<16x16xf32>
    %416 = arith.addf %406, %415 : vector<16x16xf32>
    %c1_276 = arith.constant 1 : index
    %c32_277 = arith.constant 32 : index
    %417 = memref.load %arg7[%c1_276, %c32_277] : memref<2x36xf32, #tpu.memory_space<smem>>
    %418 = vector.broadcast %417 : f32 to vector<16x16xf32>
    %419 = arith.mulf %418, %412 : vector<16x16xf32>
    %420 = arith.addf %410, %419 : vector<16x16xf32>
    %c3_278 = arith.constant 3 : index
    %c2_279 = arith.constant 2 : index
    %c0_280 = arith.constant 0 : index
    %421 = vector.load %arg18[%c3_278, %c2_279, %c0_280] : memref<4x18x18xf32, #tpu.memory_space<vmem>>, vector<1x16x16xf32>
    %422 = vector.shape_cast %421 : vector<1x16x16xf32> to vector<16x16xf32>
    %c0_281 = arith.constant 0 : index
    %c33 = arith.constant 33 : index
    %423 = memref.load %arg7[%c0_281, %c33] : memref<2x36xf32, #tpu.memory_space<smem>>
    %424 = vector.broadcast %423 : f32 to vector<16x16xf32>
    %425 = arith.mulf %424, %422 : vector<16x16xf32>
    %426 = arith.addf %416, %425 : vector<16x16xf32>
    %c1_282 = arith.constant 1 : index
    %c33_283 = arith.constant 33 : index
    %427 = memref.load %arg7[%c1_282, %c33_283] : memref<2x36xf32, #tpu.memory_space<smem>>
    %428 = vector.broadcast %427 : f32 to vector<16x16xf32>
    %429 = arith.mulf %428, %422 : vector<16x16xf32>
    %430 = arith.addf %420, %429 : vector<16x16xf32>
    %c3_284 = arith.constant 3 : index
    %c2_285 = arith.constant 2 : index
    %c1_286 = arith.constant 1 : index
    %431 = vector.load %arg18[%c3_284, %c2_285, %c1_286] : memref<4x18x18xf32, #tpu.memory_space<vmem>>, vector<1x16x16xf32>
    %432 = vector.shape_cast %431 : vector<1x16x16xf32> to vector<16x16xf32>
    %c0_287 = arith.constant 0 : index
    %c34 = arith.constant 34 : index
    %433 = memref.load %arg7[%c0_287, %c34] : memref<2x36xf32, #tpu.memory_space<smem>>
    %434 = vector.broadcast %433 : f32 to vector<16x16xf32>
    %435 = arith.mulf %434, %432 : vector<16x16xf32>
    %436 = arith.addf %426, %435 : vector<16x16xf32>
    %c1_288 = arith.constant 1 : index
    %c34_289 = arith.constant 34 : index
    %437 = memref.load %arg7[%c1_288, %c34_289] : memref<2x36xf32, #tpu.memory_space<smem>>
    %438 = vector.broadcast %437 : f32 to vector<16x16xf32>
    %439 = arith.mulf %438, %432 : vector<16x16xf32>
    %440 = arith.addf %430, %439 : vector<16x16xf32>
    %c3_290 = arith.constant 3 : index
    %c2_291 = arith.constant 2 : index
    %c2_292 = arith.constant 2 : index
    %441 = vector.load %arg18[%c3_290, %c2_291, %c2_292] : memref<4x18x18xf32, #tpu.memory_space<vmem>>, vector<1x16x16xf32>
    %442 = vector.shape_cast %441 : vector<1x16x16xf32> to vector<16x16xf32>
    %c0_293 = arith.constant 0 : index
    %c35 = arith.constant 35 : index
    %443 = memref.load %arg7[%c0_293, %c35] : memref<2x36xf32, #tpu.memory_space<smem>>
    %444 = vector.broadcast %443 : f32 to vector<16x16xf32>
    %445 = arith.mulf %444, %442 : vector<16x16xf32>
    %446 = arith.addf %436, %445 : vector<16x16xf32>
    %c1_294 = arith.constant 1 : index
    %c35_295 = arith.constant 35 : index
    %447 = memref.load %arg7[%c1_294, %c35_295] : memref<2x36xf32, #tpu.memory_space<smem>>
    %448 = vector.broadcast %447 : f32 to vector<16x16xf32>
    %449 = arith.mulf %448, %442 : vector<16x16xf32>
    %450 = arith.addf %440, %449 : vector<16x16xf32>
    %c0_296 = arith.constant 0 : index
    %451 = memref.load %arg8[%c0_296] : memref<2xf32, #tpu.memory_space<smem>>
    %452 = vector.broadcast %451 : f32 to vector<16x16xf32>
    %453 = arith.addf %446, %452 : vector<16x16xf32>
    %c1_297 = arith.constant 1 : index
    %454 = memref.load %arg8[%c1_297] : memref<2xf32, #tpu.memory_space<smem>>
    %455 = vector.broadcast %454 : f32 to vector<16x16xf32>
    %456 = arith.addf %450, %455 : vector<16x16xf32>
    %c0_298 = arith.constant 0 : index
    %c1_299 = arith.constant 1 : index
    %c1_300 = arith.constant 1 : index
    %457 = vector.load %arg19[%c0_298, %c1_299, %c1_300] : memref<2x18x18xf32, #tpu.memory_space<vmem>>, vector<1x16x16xf32>
    %458 = vector.shape_cast %457 : vector<1x16x16xf32> to vector<16x16xf32>
    %459 = vector.shape_cast %453 : vector<16x16xf32> to vector<1x16x16xf32>
    tpu.vector_store %arg19[%c0_298, %c1_299, %c1_300], %459 {strides = array<i32>} : memref<2x18x18xf32, #tpu.memory_space<vmem>>, vector<1x16x16xf32>,
    %c1_301 = arith.constant 1 : index
    %c1_302 = arith.constant 1 : index
    %c1_303 = arith.constant 1 : index
    %460 = vector.load %arg19[%c1_301, %c1_302, %c1_303] : memref<2x18x18xf32, #tpu.memory_space<vmem>>, vector<1x16x16xf32>
    %461 = vector.shape_cast %460 : vector<1x16x16xf32> to vector<16x16xf32>
    %462 = vector.shape_cast %456 : vector<16x16xf32> to vector<1x16x16xf32>
    tpu.vector_store %arg19[%c1_301, %c1_302, %c1_303], %462 {strides = array<i32>} : memref<2x18x18xf32, #tpu.memory_space<vmem>>, vector<1x16x16xf32>,
    %cst_304 = arith.constant 0.000000e+00 : f32
    %463 = vector.broadcast %cst_304 : f32 to vector<16x16xf32>
    %cst_305 = arith.constant 0.000000e+00 : f32
    %464 = vector.broadcast %cst_305 : f32 to vector<16x16xf32>
    %c0_306 = arith.constant 0 : index
    %c0_307 = arith.constant 0 : index
    %c0_308 = arith.constant 0 : index
    %465 = vector.load %arg19[%c0_306, %c0_307, %c0_308] : memref<2x18x18xf32, #tpu.memory_space<vmem>>, vector<1x16x16xf32>
    %466 = vector.shape_cast %465 : vector<1x16x16xf32> to vector<16x16xf32>
    %c0_309 = arith.constant 0 : index
    %c0_310 = arith.constant 0 : index
    %467 = memref.load %arg9[%c0_309, %c0_310] : memref<2x18xf32, #tpu.memory_space<smem>>
    %468 = vector.broadcast %467 : f32 to vector<16x16xf32>
    %469 = arith.mulf %468, %466 : vector<16x16xf32>
    %470 = arith.addf %463, %469 : vector<16x16xf32>
    %c1_311 = arith.constant 1 : index
    %c0_312 = arith.constant 0 : index
    %471 = memref.load %arg9[%c1_311, %c0_312] : memref<2x18xf32, #tpu.memory_space<smem>>
    %472 = vector.broadcast %471 : f32 to vector<16x16xf32>
    %473 = arith.mulf %472, %466 : vector<16x16xf32>
    %474 = arith.addf %464, %473 : vector<16x16xf32>
    %c0_313 = arith.constant 0 : index
    %c0_314 = arith.constant 0 : index
    %c1_315 = arith.constant 1 : index
    %475 = vector.load %arg19[%c0_313, %c0_314, %c1_315] : memref<2x18x18xf32, #tpu.memory_space<vmem>>, vector<1x16x16xf32>
    %476 = vector.shape_cast %475 : vector<1x16x16xf32> to vector<16x16xf32>
    %c0_316 = arith.constant 0 : index
    %c1_317 = arith.constant 1 : index
    %477 = memref.load %arg9[%c0_316, %c1_317] : memref<2x18xf32, #tpu.memory_space<smem>>
    %478 = vector.broadcast %477 : f32 to vector<16x16xf32>
    %479 = arith.mulf %478, %476 : vector<16x16xf32>
    %480 = arith.addf %470, %479 : vector<16x16xf32>
    %c1_318 = arith.constant 1 : index
    %c1_319 = arith.constant 1 : index
    %481 = memref.load %arg9[%c1_318, %c1_319] : memref<2x18xf32, #tpu.memory_space<smem>>
    %482 = vector.broadcast %481 : f32 to vector<16x16xf32>
    %483 = arith.mulf %482, %476 : vector<16x16xf32>
    %484 = arith.addf %474, %483 : vector<16x16xf32>
    %c0_320 = arith.constant 0 : index
    %c0_321 = arith.constant 0 : index
    %c2_322 = arith.constant 2 : index
    %485 = vector.load %arg19[%c0_320, %c0_321, %c2_322] : memref<2x18x18xf32, #tpu.memory_space<vmem>>, vector<1x16x16xf32>
    %486 = vector.shape_cast %485 : vector<1x16x16xf32> to vector<16x16xf32>
    %c0_323 = arith.constant 0 : index
    %c2_324 = arith.constant 2 : index
    %487 = memref.load %arg9[%c0_323, %c2_324] : memref<2x18xf32, #tpu.memory_space<smem>>
    %488 = vector.broadcast %487 : f32 to vector<16x16xf32>
    %489 = arith.mulf %488, %486 : vector<16x16xf32>
    %490 = arith.addf %480, %489 : vector<16x16xf32>
    %c1_325 = arith.constant 1 : index
    %c2_326 = arith.constant 2 : index
    %491 = memref.load %arg9[%c1_325, %c2_326] : memref<2x18xf32, #tpu.memory_space<smem>>
    %492 = vector.broadcast %491 : f32 to vector<16x16xf32>
    %493 = arith.mulf %492, %486 : vector<16x16xf32>
    %494 = arith.addf %484, %493 : vector<16x16xf32>
    %c0_327 = arith.constant 0 : index
    %c1_328 = arith.constant 1 : index
    %c0_329 = arith.constant 0 : index
    %495 = vector.load %arg19[%c0_327, %c1_328, %c0_329] : memref<2x18x18xf32, #tpu.memory_space<vmem>>, vector<1x16x16xf32>
    %496 = vector.shape_cast %495 : vector<1x16x16xf32> to vector<16x16xf32>
    %c0_330 = arith.constant 0 : index
    %c3_331 = arith.constant 3 : index
    %497 = memref.load %arg9[%c0_330, %c3_331] : memref<2x18xf32, #tpu.memory_space<smem>>
    %498 = vector.broadcast %497 : f32 to vector<16x16xf32>
    %499 = arith.mulf %498, %496 : vector<16x16xf32>
    %500 = arith.addf %490, %499 : vector<16x16xf32>
    %c1_332 = arith.constant 1 : index
    %c3_333 = arith.constant 3 : index
    %501 = memref.load %arg9[%c1_332, %c3_333] : memref<2x18xf32, #tpu.memory_space<smem>>
    %502 = vector.broadcast %501 : f32 to vector<16x16xf32>
    %503 = arith.mulf %502, %496 : vector<16x16xf32>
    %504 = arith.addf %494, %503 : vector<16x16xf32>
    %c0_334 = arith.constant 0 : index
    %c1_335 = arith.constant 1 : index
    %c1_336 = arith.constant 1 : index
    %505 = vector.load %arg19[%c0_334, %c1_335, %c1_336] : memref<2x18x18xf32, #tpu.memory_space<vmem>>, vector<1x16x16xf32>
    %506 = vector.shape_cast %505 : vector<1x16x16xf32> to vector<16x16xf32>
    %c0_337 = arith.constant 0 : index
    %c4_338 = arith.constant 4 : index
    %507 = memref.load %arg9[%c0_337, %c4_338] : memref<2x18xf32, #tpu.memory_space<smem>>
    %508 = vector.broadcast %507 : f32 to vector<16x16xf32>
    %509 = arith.mulf %508, %506 : vector<16x16xf32>
    %510 = arith.addf %500, %509 : vector<16x16xf32>
    %c1_339 = arith.constant 1 : index
    %c4_340 = arith.constant 4 : index
    %511 = memref.load %arg9[%c1_339, %c4_340] : memref<2x18xf32, #tpu.memory_space<smem>>
    %512 = vector.broadcast %511 : f32 to vector<16x16xf32>
    %513 = arith.mulf %512, %506 : vector<16x16xf32>
    %514 = arith.addf %504, %513 : vector<16x16xf32>
    %c0_341 = arith.constant 0 : index
    %c1_342 = arith.constant 1 : index
    %c2_343 = arith.constant 2 : index
    %515 = vector.load %arg19[%c0_341, %c1_342, %c2_343] : memref<2x18x18xf32, #tpu.memory_space<vmem>>, vector<1x16x16xf32>
    %516 = vector.shape_cast %515 : vector<1x16x16xf32> to vector<16x16xf32>
    %c0_344 = arith.constant 0 : index
    %c5_345 = arith.constant 5 : index
    %517 = memref.load %arg9[%c0_344, %c5_345] : memref<2x18xf32, #tpu.memory_space<smem>>
    %518 = vector.broadcast %517 : f32 to vector<16x16xf32>
    %519 = arith.mulf %518, %516 : vector<16x16xf32>
    %520 = arith.addf %510, %519 : vector<16x16xf32>
    %c1_346 = arith.constant 1 : index
    %c5_347 = arith.constant 5 : index
    %521 = memref.load %arg9[%c1_346, %c5_347] : memref<2x18xf32, #tpu.memory_space<smem>>
    %522 = vector.broadcast %521 : f32 to vector<16x16xf32>
    %523 = arith.mulf %522, %516 : vector<16x16xf32>
    %524 = arith.addf %514, %523 : vector<16x16xf32>
    %c0_348 = arith.constant 0 : index
    %c2_349 = arith.constant 2 : index
    %c0_350 = arith.constant 0 : index
    %525 = vector.load %arg19[%c0_348, %c2_349, %c0_350] : memref<2x18x18xf32, #tpu.memory_space<vmem>>, vector<1x16x16xf32>
    %526 = vector.shape_cast %525 : vector<1x16x16xf32> to vector<16x16xf32>
    %c0_351 = arith.constant 0 : index
    %c6_352 = arith.constant 6 : index
    %527 = memref.load %arg9[%c0_351, %c6_352] : memref<2x18xf32, #tpu.memory_space<smem>>
    %528 = vector.broadcast %527 : f32 to vector<16x16xf32>
    %529 = arith.mulf %528, %526 : vector<16x16xf32>
    %530 = arith.addf %520, %529 : vector<16x16xf32>
    %c1_353 = arith.constant 1 : index
    %c6_354 = arith.constant 6 : index
    %531 = memref.load %arg9[%c1_353, %c6_354] : memref<2x18xf32, #tpu.memory_space<smem>>
    %532 = vector.broadcast %531 : f32 to vector<16x16xf32>
    %533 = arith.mulf %532, %526 : vector<16x16xf32>
    %534 = arith.addf %524, %533 : vector<16x16xf32>
    %c0_355 = arith.constant 0 : index
    %c2_356 = arith.constant 2 : index
    %c1_357 = arith.constant 1 : index
    %535 = vector.load %arg19[%c0_355, %c2_356, %c1_357] : memref<2x18x18xf32, #tpu.memory_space<vmem>>, vector<1x16x16xf32>
    %536 = vector.shape_cast %535 : vector<1x16x16xf32> to vector<16x16xf32>
    %c0_358 = arith.constant 0 : index
    %c7_359 = arith.constant 7 : index
    %537 = memref.load %arg9[%c0_358, %c7_359] : memref<2x18xf32, #tpu.memory_space<smem>>
    %538 = vector.broadcast %537 : f32 to vector<16x16xf32>
    %539 = arith.mulf %538, %536 : vector<16x16xf32>
    %540 = arith.addf %530, %539 : vector<16x16xf32>
    %c1_360 = arith.constant 1 : index
    %c7_361 = arith.constant 7 : index
    %541 = memref.load %arg9[%c1_360, %c7_361] : memref<2x18xf32, #tpu.memory_space<smem>>
    %542 = vector.broadcast %541 : f32 to vector<16x16xf32>
    %543 = arith.mulf %542, %536 : vector<16x16xf32>
    %544 = arith.addf %534, %543 : vector<16x16xf32>
    %c0_362 = arith.constant 0 : index
    %c2_363 = arith.constant 2 : index
    %c2_364 = arith.constant 2 : index
    %545 = vector.load %arg19[%c0_362, %c2_363, %c2_364] : memref<2x18x18xf32, #tpu.memory_space<vmem>>, vector<1x16x16xf32>
    %546 = vector.shape_cast %545 : vector<1x16x16xf32> to vector<16x16xf32>
    %c0_365 = arith.constant 0 : index
    %c8_366 = arith.constant 8 : index
    %547 = memref.load %arg9[%c0_365, %c8_366] : memref<2x18xf32, #tpu.memory_space<smem>>
    %548 = vector.broadcast %547 : f32 to vector<16x16xf32>
    %549 = arith.mulf %548, %546 : vector<16x16xf32>
    %550 = arith.addf %540, %549 : vector<16x16xf32>
    %c1_367 = arith.constant 1 : index
    %c8_368 = arith.constant 8 : index
    %551 = memref.load %arg9[%c1_367, %c8_368] : memref<2x18xf32, #tpu.memory_space<smem>>
    %552 = vector.broadcast %551 : f32 to vector<16x16xf32>
    %553 = arith.mulf %552, %546 : vector<16x16xf32>
    %554 = arith.addf %544, %553 : vector<16x16xf32>
    %c1_369 = arith.constant 1 : index
    %c0_370 = arith.constant 0 : index
    %c0_371 = arith.constant 0 : index
    %555 = vector.load %arg19[%c1_369, %c0_370, %c0_371] : memref<2x18x18xf32, #tpu.memory_space<vmem>>, vector<1x16x16xf32>
    %556 = vector.shape_cast %555 : vector<1x16x16xf32> to vector<16x16xf32>
    %c0_372 = arith.constant 0 : index
    %c9_373 = arith.constant 9 : index
    %557 = memref.load %arg9[%c0_372, %c9_373] : memref<2x18xf32, #tpu.memory_space<smem>>
    %558 = vector.broadcast %557 : f32 to vector<16x16xf32>
    %559 = arith.mulf %558, %556 : vector<16x16xf32>
    %560 = arith.addf %550, %559 : vector<16x16xf32>
    %c1_374 = arith.constant 1 : index
    %c9_375 = arith.constant 9 : index
    %561 = memref.load %arg9[%c1_374, %c9_375] : memref<2x18xf32, #tpu.memory_space<smem>>
    %562 = vector.broadcast %561 : f32 to vector<16x16xf32>
    %563 = arith.mulf %562, %556 : vector<16x16xf32>
    %564 = arith.addf %554, %563 : vector<16x16xf32>
    %c1_376 = arith.constant 1 : index
    %c0_377 = arith.constant 0 : index
    %c1_378 = arith.constant 1 : index
    %565 = vector.load %arg19[%c1_376, %c0_377, %c1_378] : memref<2x18x18xf32, #tpu.memory_space<vmem>>, vector<1x16x16xf32>
    %566 = vector.shape_cast %565 : vector<1x16x16xf32> to vector<16x16xf32>
    %c0_379 = arith.constant 0 : index
    %c10_380 = arith.constant 10 : index
    %567 = memref.load %arg9[%c0_379, %c10_380] : memref<2x18xf32, #tpu.memory_space<smem>>
    %568 = vector.broadcast %567 : f32 to vector<16x16xf32>
    %569 = arith.mulf %568, %566 : vector<16x16xf32>
    %570 = arith.addf %560, %569 : vector<16x16xf32>
    %c1_381 = arith.constant 1 : index
    %c10_382 = arith.constant 10 : index
    %571 = memref.load %arg9[%c1_381, %c10_382] : memref<2x18xf32, #tpu.memory_space<smem>>
    %572 = vector.broadcast %571 : f32 to vector<16x16xf32>
    %573 = arith.mulf %572, %566 : vector<16x16xf32>
    %574 = arith.addf %564, %573 : vector<16x16xf32>
    %c1_383 = arith.constant 1 : index
    %c0_384 = arith.constant 0 : index
    %c2_385 = arith.constant 2 : index
    %575 = vector.load %arg19[%c1_383, %c0_384, %c2_385] : memref<2x18x18xf32, #tpu.memory_space<vmem>>, vector<1x16x16xf32>
    %576 = vector.shape_cast %575 : vector<1x16x16xf32> to vector<16x16xf32>
    %c0_386 = arith.constant 0 : index
    %c11_387 = arith.constant 11 : index
    %577 = memref.load %arg9[%c0_386, %c11_387] : memref<2x18xf32, #tpu.memory_space<smem>>
    %578 = vector.broadcast %577 : f32 to vector<16x16xf32>
    %579 = arith.mulf %578, %576 : vector<16x16xf32>
    %580 = arith.addf %570, %579 : vector<16x16xf32>
    %c1_388 = arith.constant 1 : index
    %c11_389 = arith.constant 11 : index
    %581 = memref.load %arg9[%c1_388, %c11_389] : memref<2x18xf32, #tpu.memory_space<smem>>
    %582 = vector.broadcast %581 : f32 to vector<16x16xf32>
    %583 = arith.mulf %582, %576 : vector<16x16xf32>
    %584 = arith.addf %574, %583 : vector<16x16xf32>
    %c1_390 = arith.constant 1 : index
    %c1_391 = arith.constant 1 : index
    %c0_392 = arith.constant 0 : index
    %585 = vector.load %arg19[%c1_390, %c1_391, %c0_392] : memref<2x18x18xf32, #tpu.memory_space<vmem>>, vector<1x16x16xf32>
    %586 = vector.shape_cast %585 : vector<1x16x16xf32> to vector<16x16xf32>
    %c0_393 = arith.constant 0 : index
    %c12_394 = arith.constant 12 : index
    %587 = memref.load %arg9[%c0_393, %c12_394] : memref<2x18xf32, #tpu.memory_space<smem>>
    %588 = vector.broadcast %587 : f32 to vector<16x16xf32>
    %589 = arith.mulf %588, %586 : vector<16x16xf32>
    %590 = arith.addf %580, %589 : vector<16x16xf32>
    %c1_395 = arith.constant 1 : index
    %c12_396 = arith.constant 12 : index
    %591 = memref.load %arg9[%c1_395, %c12_396] : memref<2x18xf32, #tpu.memory_space<smem>>
    %592 = vector.broadcast %591 : f32 to vector<16x16xf32>
    %593 = arith.mulf %592, %586 : vector<16x16xf32>
    %594 = arith.addf %584, %593 : vector<16x16xf32>
    %c1_397 = arith.constant 1 : index
    %c1_398 = arith.constant 1 : index
    %c1_399 = arith.constant 1 : index
    %595 = vector.load %arg19[%c1_397, %c1_398, %c1_399] : memref<2x18x18xf32, #tpu.memory_space<vmem>>, vector<1x16x16xf32>
    %596 = vector.shape_cast %595 : vector<1x16x16xf32> to vector<16x16xf32>
    %c0_400 = arith.constant 0 : index
    %c13_401 = arith.constant 13 : index
    %597 = memref.load %arg9[%c0_400, %c13_401] : memref<2x18xf32, #tpu.memory_space<smem>>
    %598 = vector.broadcast %597 : f32 to vector<16x16xf32>
    %599 = arith.mulf %598, %596 : vector<16x16xf32>
    %600 = arith.addf %590, %599 : vector<16x16xf32>
    %c1_402 = arith.constant 1 : index
    %c13_403 = arith.constant 13 : index
    %601 = memref.load %arg9[%c1_402, %c13_403] : memref<2x18xf32, #tpu.memory_space<smem>>
    %602 = vector.broadcast %601 : f32 to vector<16x16xf32>
    %603 = arith.mulf %602, %596 : vector<16x16xf32>
    %604 = arith.addf %594, %603 : vector<16x16xf32>
    %c1_404 = arith.constant 1 : index
    %c1_405 = arith.constant 1 : index
    %c2_406 = arith.constant 2 : index
    %605 = vector.load %arg19[%c1_404, %c1_405, %c2_406] : memref<2x18x18xf32, #tpu.memory_space<vmem>>, vector<1x16x16xf32>
    %606 = vector.shape_cast %605 : vector<1x16x16xf32> to vector<16x16xf32>
    %c0_407 = arith.constant 0 : index
    %c14_408 = arith.constant 14 : index
    %607 = memref.load %arg9[%c0_407, %c14_408] : memref<2x18xf32, #tpu.memory_space<smem>>
    %608 = vector.broadcast %607 : f32 to vector<16x16xf32>
    %609 = arith.mulf %608, %606 : vector<16x16xf32>
    %610 = arith.addf %600, %609 : vector<16x16xf32>
    %c1_409 = arith.constant 1 : index
    %c14_410 = arith.constant 14 : index
    %611 = memref.load %arg9[%c1_409, %c14_410] : memref<2x18xf32, #tpu.memory_space<smem>>
    %612 = vector.broadcast %611 : f32 to vector<16x16xf32>
    %613 = arith.mulf %612, %606 : vector<16x16xf32>
    %614 = arith.addf %604, %613 : vector<16x16xf32>
    %c1_411 = arith.constant 1 : index
    %c2_412 = arith.constant 2 : index
    %c0_413 = arith.constant 0 : index
    %615 = vector.load %arg19[%c1_411, %c2_412, %c0_413] : memref<2x18x18xf32, #tpu.memory_space<vmem>>, vector<1x16x16xf32>
    %616 = vector.shape_cast %615 : vector<1x16x16xf32> to vector<16x16xf32>
    %c0_414 = arith.constant 0 : index
    %c15_415 = arith.constant 15 : index
    %617 = memref.load %arg9[%c0_414, %c15_415] : memref<2x18xf32, #tpu.memory_space<smem>>
    %618 = vector.broadcast %617 : f32 to vector<16x16xf32>
    %619 = arith.mulf %618, %616 : vector<16x16xf32>
    %620 = arith.addf %610, %619 : vector<16x16xf32>
    %c1_416 = arith.constant 1 : index
    %c15_417 = arith.constant 15 : index
    %621 = memref.load %arg9[%c1_416, %c15_417] : memref<2x18xf32, #tpu.memory_space<smem>>
    %622 = vector.broadcast %621 : f32 to vector<16x16xf32>
    %623 = arith.mulf %622, %616 : vector<16x16xf32>
    %624 = arith.addf %614, %623 : vector<16x16xf32>
    %c1_418 = arith.constant 1 : index
    %c2_419 = arith.constant 2 : index
    %c1_420 = arith.constant 1 : index
    %625 = vector.load %arg19[%c1_418, %c2_419, %c1_420] : memref<2x18x18xf32, #tpu.memory_space<vmem>>, vector<1x16x16xf32>
    %626 = vector.shape_cast %625 : vector<1x16x16xf32> to vector<16x16xf32>
    %c0_421 = arith.constant 0 : index
    %c16_422 = arith.constant 16 : index
    %627 = memref.load %arg9[%c0_421, %c16_422] : memref<2x18xf32, #tpu.memory_space<smem>>
    %628 = vector.broadcast %627 : f32 to vector<16x16xf32>
    %629 = arith.mulf %628, %626 : vector<16x16xf32>
    %630 = arith.addf %620, %629 : vector<16x16xf32>
    %c1_423 = arith.constant 1 : index
    %c16_424 = arith.constant 16 : index
    %631 = memref.load %arg9[%c1_423, %c16_424] : memref<2x18xf32, #tpu.memory_space<smem>>
    %632 = vector.broadcast %631 : f32 to vector<16x16xf32>
    %633 = arith.mulf %632, %626 : vector<16x16xf32>
    %634 = arith.addf %624, %633 : vector<16x16xf32>
    %c1_425 = arith.constant 1 : index
    %c2_426 = arith.constant 2 : index
    %c2_427 = arith.constant 2 : index
    %635 = vector.load %arg19[%c1_425, %c2_426, %c2_427] : memref<2x18x18xf32, #tpu.memory_space<vmem>>, vector<1x16x16xf32>
    %636 = vector.shape_cast %635 : vector<1x16x16xf32> to vector<16x16xf32>
    %c0_428 = arith.constant 0 : index
    %c17_429 = arith.constant 17 : index
    %637 = memref.load %arg9[%c0_428, %c17_429] : memref<2x18xf32, #tpu.memory_space<smem>>
    %638 = vector.broadcast %637 : f32 to vector<16x16xf32>
    %639 = arith.mulf %638, %636 : vector<16x16xf32>
    %640 = arith.addf %630, %639 : vector<16x16xf32>
    %c1_430 = arith.constant 1 : index
    %c17_431 = arith.constant 17 : index
    %641 = memref.load %arg9[%c1_430, %c17_431] : memref<2x18xf32, #tpu.memory_space<smem>>
    %642 = vector.broadcast %641 : f32 to vector<16x16xf32>
    %643 = arith.mulf %642, %636 : vector<16x16xf32>
    %644 = arith.addf %634, %643 : vector<16x16xf32>
    %c0_432 = arith.constant 0 : index
    %645 = memref.load %arg10[%c0_432] : memref<2xf32, #tpu.memory_space<smem>>
    %646 = vector.broadcast %645 : f32 to vector<16x16xf32>
    %647 = arith.addf %640, %646 : vector<16x16xf32>
    %c1_433 = arith.constant 1 : index
    %648 = memref.load %arg10[%c1_433] : memref<2xf32, #tpu.memory_space<smem>>
    %649 = vector.broadcast %648 : f32 to vector<16x16xf32>
    %650 = arith.addf %644, %649 : vector<16x16xf32>
    %c0_434 = arith.constant 0 : index
    %c1_435 = arith.constant 1 : index
    %c1_436 = arith.constant 1 : index
    %651 = vector.load %arg18[%c0_434, %c1_435, %c1_436] : memref<4x18x18xf32, #tpu.memory_space<vmem>>, vector<1x16x16xf32>
    %652 = vector.shape_cast %651 : vector<1x16x16xf32> to vector<16x16xf32>
    %653 = vector.shape_cast %13 : vector<16x16xf32> to vector<1x16x16xf32>
    tpu.vector_store %arg18[%c0_434, %c1_435, %c1_436], %653 {strides = array<i32>} : memref<4x18x18xf32, #tpu.memory_space<vmem>>, vector<1x16x16xf32>,
    %c1_437 = arith.constant 1 : index
    %c1_438 = arith.constant 1 : index
    %c1_439 = arith.constant 1 : index
    %654 = vector.load %arg18[%c1_437, %c1_438, %c1_439] : memref<4x18x18xf32, #tpu.memory_space<vmem>>, vector<1x16x16xf32>
    %655 = vector.shape_cast %654 : vector<1x16x16xf32> to vector<16x16xf32>
    %656 = vector.shape_cast %15 : vector<16x16xf32> to vector<1x16x16xf32>
    tpu.vector_store %arg18[%c1_437, %c1_438, %c1_439], %656 {strides = array<i32>} : memref<4x18x18xf32, #tpu.memory_space<vmem>>, vector<1x16x16xf32>,
    %c2_440 = arith.constant 2 : index
    %c1_441 = arith.constant 1 : index
    %c1_442 = arith.constant 1 : index
    %657 = vector.load %arg18[%c2_440, %c1_441, %c1_442] : memref<4x18x18xf32, #tpu.memory_space<vmem>>, vector<1x16x16xf32>
    %658 = vector.shape_cast %657 : vector<1x16x16xf32> to vector<16x16xf32>
    %659 = vector.shape_cast %17 : vector<16x16xf32> to vector<1x16x16xf32>
    tpu.vector_store %arg18[%c2_440, %c1_441, %c1_442], %659 {strides = array<i32>} : memref<4x18x18xf32, #tpu.memory_space<vmem>>, vector<1x16x16xf32>,
    %c3_443 = arith.constant 3 : index
    %c1_444 = arith.constant 1 : index
    %c1_445 = arith.constant 1 : index
    %660 = vector.load %arg18[%c3_443, %c1_444, %c1_445] : memref<4x18x18xf32, #tpu.memory_space<vmem>>, vector<1x16x16xf32>
    %661 = vector.shape_cast %660 : vector<1x16x16xf32> to vector<16x16xf32>
    %662 = vector.shape_cast %19 : vector<16x16xf32> to vector<1x16x16xf32>
    tpu.vector_store %arg18[%c3_443, %c1_444, %c1_445], %662 {strides = array<i32>} : memref<4x18x18xf32, #tpu.memory_space<vmem>>, vector<1x16x16xf32>,
    %cst_446 = arith.constant 0.000000e+00 : f32
    %663 = vector.broadcast %cst_446 : f32 to vector<16x16xf32>
    %cst_447 = arith.constant 0.000000e+00 : f32
    %664 = vector.broadcast %cst_447 : f32 to vector<16x16xf32>
    %c0_448 = arith.constant 0 : index
    %c0_449 = arith.constant 0 : index
    %c0_450 = arith.constant 0 : index
    %665 = vector.load %arg18[%c0_448, %c0_449, %c0_450] : memref<4x18x18xf32, #tpu.memory_space<vmem>>, vector<1x16x16xf32>
    %666 = vector.shape_cast %665 : vector<1x16x16xf32> to vector<16x16xf32>
    %c0_451 = arith.constant 0 : index
    %c0_452 = arith.constant 0 : index
    %667 = memref.load %arg11[%c0_451, %c0_452] : memref<2x36xf32, #tpu.memory_space<smem>>
    %668 = vector.broadcast %667 : f32 to vector<16x16xf32>
    %669 = arith.mulf %668, %666 : vector<16x16xf32>
    %670 = arith.addf %663, %669 : vector<16x16xf32>
    %c1_453 = arith.constant 1 : index
    %c0_454 = arith.constant 0 : index
    %671 = memref.load %arg11[%c1_453, %c0_454] : memref<2x36xf32, #tpu.memory_space<smem>>
    %672 = vector.broadcast %671 : f32 to vector<16x16xf32>
    %673 = arith.mulf %672, %666 : vector<16x16xf32>
    %674 = arith.addf %664, %673 : vector<16x16xf32>
    %c0_455 = arith.constant 0 : index
    %c0_456 = arith.constant 0 : index
    %c1_457 = arith.constant 1 : index
    %675 = vector.load %arg18[%c0_455, %c0_456, %c1_457] : memref<4x18x18xf32, #tpu.memory_space<vmem>>, vector<1x16x16xf32>
    %676 = vector.shape_cast %675 : vector<1x16x16xf32> to vector<16x16xf32>
    %c0_458 = arith.constant 0 : index
    %c1_459 = arith.constant 1 : index
    %677 = memref.load %arg11[%c0_458, %c1_459] : memref<2x36xf32, #tpu.memory_space<smem>>
    %678 = vector.broadcast %677 : f32 to vector<16x16xf32>
    %679 = arith.mulf %678, %676 : vector<16x16xf32>
    %680 = arith.addf %670, %679 : vector<16x16xf32>
    %c1_460 = arith.constant 1 : index
    %c1_461 = arith.constant 1 : index
    %681 = memref.load %arg11[%c1_460, %c1_461] : memref<2x36xf32, #tpu.memory_space<smem>>
    %682 = vector.broadcast %681 : f32 to vector<16x16xf32>
    %683 = arith.mulf %682, %676 : vector<16x16xf32>
    %684 = arith.addf %674, %683 : vector<16x16xf32>
    %c0_462 = arith.constant 0 : index
    %c0_463 = arith.constant 0 : index
    %c2_464 = arith.constant 2 : index
    %685 = vector.load %arg18[%c0_462, %c0_463, %c2_464] : memref<4x18x18xf32, #tpu.memory_space<vmem>>, vector<1x16x16xf32>
    %686 = vector.shape_cast %685 : vector<1x16x16xf32> to vector<16x16xf32>
    %c0_465 = arith.constant 0 : index
    %c2_466 = arith.constant 2 : index
    %687 = memref.load %arg11[%c0_465, %c2_466] : memref<2x36xf32, #tpu.memory_space<smem>>
    %688 = vector.broadcast %687 : f32 to vector<16x16xf32>
    %689 = arith.mulf %688, %686 : vector<16x16xf32>
    %690 = arith.addf %680, %689 : vector<16x16xf32>
    %c1_467 = arith.constant 1 : index
    %c2_468 = arith.constant 2 : index
    %691 = memref.load %arg11[%c1_467, %c2_468] : memref<2x36xf32, #tpu.memory_space<smem>>
    %692 = vector.broadcast %691 : f32 to vector<16x16xf32>
    %693 = arith.mulf %692, %686 : vector<16x16xf32>
    %694 = arith.addf %684, %693 : vector<16x16xf32>
    %c0_469 = arith.constant 0 : index
    %c1_470 = arith.constant 1 : index
    %c0_471 = arith.constant 0 : index
    %695 = vector.load %arg18[%c0_469, %c1_470, %c0_471] : memref<4x18x18xf32, #tpu.memory_space<vmem>>, vector<1x16x16xf32>
    %696 = vector.shape_cast %695 : vector<1x16x16xf32> to vector<16x16xf32>
    %c0_472 = arith.constant 0 : index
    %c3_473 = arith.constant 3 : index
    %697 = memref.load %arg11[%c0_472, %c3_473] : memref<2x36xf32, #tpu.memory_space<smem>>
    %698 = vector.broadcast %697 : f32 to vector<16x16xf32>
    %699 = arith.mulf %698, %696 : vector<16x16xf32>
    %700 = arith.addf %690, %699 : vector<16x16xf32>
    %c1_474 = arith.constant 1 : index
    %c3_475 = arith.constant 3 : index
    %701 = memref.load %arg11[%c1_474, %c3_475] : memref<2x36xf32, #tpu.memory_space<smem>>
    %702 = vector.broadcast %701 : f32 to vector<16x16xf32>
    %703 = arith.mulf %702, %696 : vector<16x16xf32>
    %704 = arith.addf %694, %703 : vector<16x16xf32>
    %c0_476 = arith.constant 0 : index
    %c1_477 = arith.constant 1 : index
    %c1_478 = arith.constant 1 : index
    %705 = vector.load %arg18[%c0_476, %c1_477, %c1_478] : memref<4x18x18xf32, #tpu.memory_space<vmem>>, vector<1x16x16xf32>
    %706 = vector.shape_cast %705 : vector<1x16x16xf32> to vector<16x16xf32>
    %c0_479 = arith.constant 0 : index
    %c4_480 = arith.constant 4 : index
    %707 = memref.load %arg11[%c0_479, %c4_480] : memref<2x36xf32, #tpu.memory_space<smem>>
    %708 = vector.broadcast %707 : f32 to vector<16x16xf32>
    %709 = arith.mulf %708, %706 : vector<16x16xf32>
    %710 = arith.addf %700, %709 : vector<16x16xf32>
    %c1_481 = arith.constant 1 : index
    %c4_482 = arith.constant 4 : index
    %711 = memref.load %arg11[%c1_481, %c4_482] : memref<2x36xf32, #tpu.memory_space<smem>>
    %712 = vector.broadcast %711 : f32 to vector<16x16xf32>
    %713 = arith.mulf %712, %706 : vector<16x16xf32>
    %714 = arith.addf %704, %713 : vector<16x16xf32>
    %c0_483 = arith.constant 0 : index
    %c1_484 = arith.constant 1 : index
    %c2_485 = arith.constant 2 : index
    %715 = vector.load %arg18[%c0_483, %c1_484, %c2_485] : memref<4x18x18xf32, #tpu.memory_space<vmem>>, vector<1x16x16xf32>
    %716 = vector.shape_cast %715 : vector<1x16x16xf32> to vector<16x16xf32>
    %c0_486 = arith.constant 0 : index
    %c5_487 = arith.constant 5 : index
    %717 = memref.load %arg11[%c0_486, %c5_487] : memref<2x36xf32, #tpu.memory_space<smem>>
    %718 = vector.broadcast %717 : f32 to vector<16x16xf32>
    %719 = arith.mulf %718, %716 : vector<16x16xf32>
    %720 = arith.addf %710, %719 : vector<16x16xf32>
    %c1_488 = arith.constant 1 : index
    %c5_489 = arith.constant 5 : index
    %721 = memref.load %arg11[%c1_488, %c5_489] : memref<2x36xf32, #tpu.memory_space<smem>>
    %722 = vector.broadcast %721 : f32 to vector<16x16xf32>
    %723 = arith.mulf %722, %716 : vector<16x16xf32>
    %724 = arith.addf %714, %723 : vector<16x16xf32>
    %c0_490 = arith.constant 0 : index
    %c2_491 = arith.constant 2 : index
    %c0_492 = arith.constant 0 : index
    %725 = vector.load %arg18[%c0_490, %c2_491, %c0_492] : memref<4x18x18xf32, #tpu.memory_space<vmem>>, vector<1x16x16xf32>
    %726 = vector.shape_cast %725 : vector<1x16x16xf32> to vector<16x16xf32>
    %c0_493 = arith.constant 0 : index
    %c6_494 = arith.constant 6 : index
    %727 = memref.load %arg11[%c0_493, %c6_494] : memref<2x36xf32, #tpu.memory_space<smem>>
    %728 = vector.broadcast %727 : f32 to vector<16x16xf32>
    %729 = arith.mulf %728, %726 : vector<16x16xf32>
    %730 = arith.addf %720, %729 : vector<16x16xf32>
    %c1_495 = arith.constant 1 : index
    %c6_496 = arith.constant 6 : index
    %731 = memref.load %arg11[%c1_495, %c6_496] : memref<2x36xf32, #tpu.memory_space<smem>>
    %732 = vector.broadcast %731 : f32 to vector<16x16xf32>
    %733 = arith.mulf %732, %726 : vector<16x16xf32>
    %734 = arith.addf %724, %733 : vector<16x16xf32>
    %c0_497 = arith.constant 0 : index
    %c2_498 = arith.constant 2 : index
    %c1_499 = arith.constant 1 : index
    %735 = vector.load %arg18[%c0_497, %c2_498, %c1_499] : memref<4x18x18xf32, #tpu.memory_space<vmem>>, vector<1x16x16xf32>
    %736 = vector.shape_cast %735 : vector<1x16x16xf32> to vector<16x16xf32>
    %c0_500 = arith.constant 0 : index
    %c7_501 = arith.constant 7 : index
    %737 = memref.load %arg11[%c0_500, %c7_501] : memref<2x36xf32, #tpu.memory_space<smem>>
    %738 = vector.broadcast %737 : f32 to vector<16x16xf32>
    %739 = arith.mulf %738, %736 : vector<16x16xf32>
    %740 = arith.addf %730, %739 : vector<16x16xf32>
    %c1_502 = arith.constant 1 : index
    %c7_503 = arith.constant 7 : index
    %741 = memref.load %arg11[%c1_502, %c7_503] : memref<2x36xf32, #tpu.memory_space<smem>>
    %742 = vector.broadcast %741 : f32 to vector<16x16xf32>
    %743 = arith.mulf %742, %736 : vector<16x16xf32>
    %744 = arith.addf %734, %743 : vector<16x16xf32>
    %c0_504 = arith.constant 0 : index
    %c2_505 = arith.constant 2 : index
    %c2_506 = arith.constant 2 : index
    %745 = vector.load %arg18[%c0_504, %c2_505, %c2_506] : memref<4x18x18xf32, #tpu.memory_space<vmem>>, vector<1x16x16xf32>
    %746 = vector.shape_cast %745 : vector<1x16x16xf32> to vector<16x16xf32>
    %c0_507 = arith.constant 0 : index
    %c8_508 = arith.constant 8 : index
    %747 = memref.load %arg11[%c0_507, %c8_508] : memref<2x36xf32, #tpu.memory_space<smem>>
    %748 = vector.broadcast %747 : f32 to vector<16x16xf32>
    %749 = arith.mulf %748, %746 : vector<16x16xf32>
    %750 = arith.addf %740, %749 : vector<16x16xf32>
    %c1_509 = arith.constant 1 : index
    %c8_510 = arith.constant 8 : index
    %751 = memref.load %arg11[%c1_509, %c8_510] : memref<2x36xf32, #tpu.memory_space<smem>>
    %752 = vector.broadcast %751 : f32 to vector<16x16xf32>
    %753 = arith.mulf %752, %746 : vector<16x16xf32>
    %754 = arith.addf %744, %753 : vector<16x16xf32>
    %c1_511 = arith.constant 1 : index
    %c0_512 = arith.constant 0 : index
    %c0_513 = arith.constant 0 : index
    %755 = vector.load %arg18[%c1_511, %c0_512, %c0_513] : memref<4x18x18xf32, #tpu.memory_space<vmem>>, vector<1x16x16xf32>
    %756 = vector.shape_cast %755 : vector<1x16x16xf32> to vector<16x16xf32>
    %c0_514 = arith.constant 0 : index
    %c9_515 = arith.constant 9 : index
    %757 = memref.load %arg11[%c0_514, %c9_515] : memref<2x36xf32, #tpu.memory_space<smem>>
    %758 = vector.broadcast %757 : f32 to vector<16x16xf32>
    %759 = arith.mulf %758, %756 : vector<16x16xf32>
    %760 = arith.addf %750, %759 : vector<16x16xf32>
    %c1_516 = arith.constant 1 : index
    %c9_517 = arith.constant 9 : index
    %761 = memref.load %arg11[%c1_516, %c9_517] : memref<2x36xf32, #tpu.memory_space<smem>>
    %762 = vector.broadcast %761 : f32 to vector<16x16xf32>
    %763 = arith.mulf %762, %756 : vector<16x16xf32>
    %764 = arith.addf %754, %763 : vector<16x16xf32>
    %c1_518 = arith.constant 1 : index
    %c0_519 = arith.constant 0 : index
    %c1_520 = arith.constant 1 : index
    %765 = vector.load %arg18[%c1_518, %c0_519, %c1_520] : memref<4x18x18xf32, #tpu.memory_space<vmem>>, vector<1x16x16xf32>
    %766 = vector.shape_cast %765 : vector<1x16x16xf32> to vector<16x16xf32>
    %c0_521 = arith.constant 0 : index
    %c10_522 = arith.constant 10 : index
    %767 = memref.load %arg11[%c0_521, %c10_522] : memref<2x36xf32, #tpu.memory_space<smem>>
    %768 = vector.broadcast %767 : f32 to vector<16x16xf32>
    %769 = arith.mulf %768, %766 : vector<16x16xf32>
    %770 = arith.addf %760, %769 : vector<16x16xf32>
    %c1_523 = arith.constant 1 : index
    %c10_524 = arith.constant 10 : index
    %771 = memref.load %arg11[%c1_523, %c10_524] : memref<2x36xf32, #tpu.memory_space<smem>>
    %772 = vector.broadcast %771 : f32 to vector<16x16xf32>
    %773 = arith.mulf %772, %766 : vector<16x16xf32>
    %774 = arith.addf %764, %773 : vector<16x16xf32>
    %c1_525 = arith.constant 1 : index
    %c0_526 = arith.constant 0 : index
    %c2_527 = arith.constant 2 : index
    %775 = vector.load %arg18[%c1_525, %c0_526, %c2_527] : memref<4x18x18xf32, #tpu.memory_space<vmem>>, vector<1x16x16xf32>
    %776 = vector.shape_cast %775 : vector<1x16x16xf32> to vector<16x16xf32>
    %c0_528 = arith.constant 0 : index
    %c11_529 = arith.constant 11 : index
    %777 = memref.load %arg11[%c0_528, %c11_529] : memref<2x36xf32, #tpu.memory_space<smem>>
    %778 = vector.broadcast %777 : f32 to vector<16x16xf32>
    %779 = arith.mulf %778, %776 : vector<16x16xf32>
    %780 = arith.addf %770, %779 : vector<16x16xf32>
    %c1_530 = arith.constant 1 : index
    %c11_531 = arith.constant 11 : index
    %781 = memref.load %arg11[%c1_530, %c11_531] : memref<2x36xf32, #tpu.memory_space<smem>>
    %782 = vector.broadcast %781 : f32 to vector<16x16xf32>
    %783 = arith.mulf %782, %776 : vector<16x16xf32>
    %784 = arith.addf %774, %783 : vector<16x16xf32>
    %c1_532 = arith.constant 1 : index
    %c1_533 = arith.constant 1 : index
    %c0_534 = arith.constant 0 : index
    %785 = vector.load %arg18[%c1_532, %c1_533, %c0_534] : memref<4x18x18xf32, #tpu.memory_space<vmem>>, vector<1x16x16xf32>
    %786 = vector.shape_cast %785 : vector<1x16x16xf32> to vector<16x16xf32>
    %c0_535 = arith.constant 0 : index
    %c12_536 = arith.constant 12 : index
    %787 = memref.load %arg11[%c0_535, %c12_536] : memref<2x36xf32, #tpu.memory_space<smem>>
    %788 = vector.broadcast %787 : f32 to vector<16x16xf32>
    %789 = arith.mulf %788, %786 : vector<16x16xf32>
    %790 = arith.addf %780, %789 : vector<16x16xf32>
    %c1_537 = arith.constant 1 : index
    %c12_538 = arith.constant 12 : index
    %791 = memref.load %arg11[%c1_537, %c12_538] : memref<2x36xf32, #tpu.memory_space<smem>>
    %792 = vector.broadcast %791 : f32 to vector<16x16xf32>
    %793 = arith.mulf %792, %786 : vector<16x16xf32>
    %794 = arith.addf %784, %793 : vector<16x16xf32>
    %c1_539 = arith.constant 1 : index
    %c1_540 = arith.constant 1 : index
    %c1_541 = arith.constant 1 : index
    %795 = vector.load %arg18[%c1_539, %c1_540, %c1_541] : memref<4x18x18xf32, #tpu.memory_space<vmem>>, vector<1x16x16xf32>
    %796 = vector.shape_cast %795 : vector<1x16x16xf32> to vector<16x16xf32>
    %c0_542 = arith.constant 0 : index
    %c13_543 = arith.constant 13 : index
    %797 = memref.load %arg11[%c0_542, %c13_543] : memref<2x36xf32, #tpu.memory_space<smem>>
    %798 = vector.broadcast %797 : f32 to vector<16x16xf32>
    %799 = arith.mulf %798, %796 : vector<16x16xf32>
    %800 = arith.addf %790, %799 : vector<16x16xf32>
    %c1_544 = arith.constant 1 : index
    %c13_545 = arith.constant 13 : index
    %801 = memref.load %arg11[%c1_544, %c13_545] : memref<2x36xf32, #tpu.memory_space<smem>>
    %802 = vector.broadcast %801 : f32 to vector<16x16xf32>
    %803 = arith.mulf %802, %796 : vector<16x16xf32>
    %804 = arith.addf %794, %803 : vector<16x16xf32>
    %c1_546 = arith.constant 1 : index
    %c1_547 = arith.constant 1 : index
    %c2_548 = arith.constant 2 : index
    %805 = vector.load %arg18[%c1_546, %c1_547, %c2_548] : memref<4x18x18xf32, #tpu.memory_space<vmem>>, vector<1x16x16xf32>
    %806 = vector.shape_cast %805 : vector<1x16x16xf32> to vector<16x16xf32>
    %c0_549 = arith.constant 0 : index
    %c14_550 = arith.constant 14 : index
    %807 = memref.load %arg11[%c0_549, %c14_550] : memref<2x36xf32, #tpu.memory_space<smem>>
    %808 = vector.broadcast %807 : f32 to vector<16x16xf32>
    %809 = arith.mulf %808, %806 : vector<16x16xf32>
    %810 = arith.addf %800, %809 : vector<16x16xf32>
    %c1_551 = arith.constant 1 : index
    %c14_552 = arith.constant 14 : index
    %811 = memref.load %arg11[%c1_551, %c14_552] : memref<2x36xf32, #tpu.memory_space<smem>>
    %812 = vector.broadcast %811 : f32 to vector<16x16xf32>
    %813 = arith.mulf %812, %806 : vector<16x16xf32>
    %814 = arith.addf %804, %813 : vector<16x16xf32>
    %c1_553 = arith.constant 1 : index
    %c2_554 = arith.constant 2 : index
    %c0_555 = arith.constant 0 : index
    %815 = vector.load %arg18[%c1_553, %c2_554, %c0_555] : memref<4x18x18xf32, #tpu.memory_space<vmem>>, vector<1x16x16xf32>
    %816 = vector.shape_cast %815 : vector<1x16x16xf32> to vector<16x16xf32>
    %c0_556 = arith.constant 0 : index
    %c15_557 = arith.constant 15 : index
    %817 = memref.load %arg11[%c0_556, %c15_557] : memref<2x36xf32, #tpu.memory_space<smem>>
    %818 = vector.broadcast %817 : f32 to vector<16x16xf32>
    %819 = arith.mulf %818, %816 : vector<16x16xf32>
    %820 = arith.addf %810, %819 : vector<16x16xf32>
    %c1_558 = arith.constant 1 : index
    %c15_559 = arith.constant 15 : index
    %821 = memref.load %arg11[%c1_558, %c15_559] : memref<2x36xf32, #tpu.memory_space<smem>>
    %822 = vector.broadcast %821 : f32 to vector<16x16xf32>
    %823 = arith.mulf %822, %816 : vector<16x16xf32>
    %824 = arith.addf %814, %823 : vector<16x16xf32>
    %c1_560 = arith.constant 1 : index
    %c2_561 = arith.constant 2 : index
    %c1_562 = arith.constant 1 : index
    %825 = vector.load %arg18[%c1_560, %c2_561, %c1_562] : memref<4x18x18xf32, #tpu.memory_space<vmem>>, vector<1x16x16xf32>
    %826 = vector.shape_cast %825 : vector<1x16x16xf32> to vector<16x16xf32>
    %c0_563 = arith.constant 0 : index
    %c16_564 = arith.constant 16 : index
    %827 = memref.load %arg11[%c0_563, %c16_564] : memref<2x36xf32, #tpu.memory_space<smem>>
    %828 = vector.broadcast %827 : f32 to vector<16x16xf32>
    %829 = arith.mulf %828, %826 : vector<16x16xf32>
    %830 = arith.addf %820, %829 : vector<16x16xf32>
    %c1_565 = arith.constant 1 : index
    %c16_566 = arith.constant 16 : index
    %831 = memref.load %arg11[%c1_565, %c16_566] : memref<2x36xf32, #tpu.memory_space<smem>>
    %832 = vector.broadcast %831 : f32 to vector<16x16xf32>
    %833 = arith.mulf %832, %826 : vector<16x16xf32>
    %834 = arith.addf %824, %833 : vector<16x16xf32>
    %c1_567 = arith.constant 1 : index
    %c2_568 = arith.constant 2 : index
    %c2_569 = arith.constant 2 : index
    %835 = vector.load %arg18[%c1_567, %c2_568, %c2_569] : memref<4x18x18xf32, #tpu.memory_space<vmem>>, vector<1x16x16xf32>
    %836 = vector.shape_cast %835 : vector<1x16x16xf32> to vector<16x16xf32>
    %c0_570 = arith.constant 0 : index
    %c17_571 = arith.constant 17 : index
    %837 = memref.load %arg11[%c0_570, %c17_571] : memref<2x36xf32, #tpu.memory_space<smem>>
    %838 = vector.broadcast %837 : f32 to vector<16x16xf32>
    %839 = arith.mulf %838, %836 : vector<16x16xf32>
    %840 = arith.addf %830, %839 : vector<16x16xf32>
    %c1_572 = arith.constant 1 : index
    %c17_573 = arith.constant 17 : index
    %841 = memref.load %arg11[%c1_572, %c17_573] : memref<2x36xf32, #tpu.memory_space<smem>>
    %842 = vector.broadcast %841 : f32 to vector<16x16xf32>
    %843 = arith.mulf %842, %836 : vector<16x16xf32>
    %844 = arith.addf %834, %843 : vector<16x16xf32>
    %c2_574 = arith.constant 2 : index
    %c0_575 = arith.constant 0 : index
    %c0_576 = arith.constant 0 : index
    %845 = vector.load %arg18[%c2_574, %c0_575, %c0_576] : memref<4x18x18xf32, #tpu.memory_space<vmem>>, vector<1x16x16xf32>
    %846 = vector.shape_cast %845 : vector<1x16x16xf32> to vector<16x16xf32>
    %c0_577 = arith.constant 0 : index
    %c18_578 = arith.constant 18 : index
    %847 = memref.load %arg11[%c0_577, %c18_578] : memref<2x36xf32, #tpu.memory_space<smem>>
    %848 = vector.broadcast %847 : f32 to vector<16x16xf32>
    %849 = arith.mulf %848, %846 : vector<16x16xf32>
    %850 = arith.addf %840, %849 : vector<16x16xf32>
    %c1_579 = arith.constant 1 : index
    %c18_580 = arith.constant 18 : index
    %851 = memref.load %arg11[%c1_579, %c18_580] : memref<2x36xf32, #tpu.memory_space<smem>>
    %852 = vector.broadcast %851 : f32 to vector<16x16xf32>
    %853 = arith.mulf %852, %846 : vector<16x16xf32>
    %854 = arith.addf %844, %853 : vector<16x16xf32>
    %c2_581 = arith.constant 2 : index
    %c0_582 = arith.constant 0 : index
    %c1_583 = arith.constant 1 : index
    %855 = vector.load %arg18[%c2_581, %c0_582, %c1_583] : memref<4x18x18xf32, #tpu.memory_space<vmem>>, vector<1x16x16xf32>
    %856 = vector.shape_cast %855 : vector<1x16x16xf32> to vector<16x16xf32>
    %c0_584 = arith.constant 0 : index
    %c19_585 = arith.constant 19 : index
    %857 = memref.load %arg11[%c0_584, %c19_585] : memref<2x36xf32, #tpu.memory_space<smem>>
    %858 = vector.broadcast %857 : f32 to vector<16x16xf32>
    %859 = arith.mulf %858, %856 : vector<16x16xf32>
    %860 = arith.addf %850, %859 : vector<16x16xf32>
    %c1_586 = arith.constant 1 : index
    %c19_587 = arith.constant 19 : index
    %861 = memref.load %arg11[%c1_586, %c19_587] : memref<2x36xf32, #tpu.memory_space<smem>>
    %862 = vector.broadcast %861 : f32 to vector<16x16xf32>
    %863 = arith.mulf %862, %856 : vector<16x16xf32>
    %864 = arith.addf %854, %863 : vector<16x16xf32>
    %c2_588 = arith.constant 2 : index
    %c0_589 = arith.constant 0 : index
    %c2_590 = arith.constant 2 : index
    %865 = vector.load %arg18[%c2_588, %c0_589, %c2_590] : memref<4x18x18xf32, #tpu.memory_space<vmem>>, vector<1x16x16xf32>
    %866 = vector.shape_cast %865 : vector<1x16x16xf32> to vector<16x16xf32>
    %c0_591 = arith.constant 0 : index
    %c20_592 = arith.constant 20 : index
    %867 = memref.load %arg11[%c0_591, %c20_592] : memref<2x36xf32, #tpu.memory_space<smem>>
    %868 = vector.broadcast %867 : f32 to vector<16x16xf32>
    %869 = arith.mulf %868, %866 : vector<16x16xf32>
    %870 = arith.addf %860, %869 : vector<16x16xf32>
    %c1_593 = arith.constant 1 : index
    %c20_594 = arith.constant 20 : index
    %871 = memref.load %arg11[%c1_593, %c20_594] : memref<2x36xf32, #tpu.memory_space<smem>>
    %872 = vector.broadcast %871 : f32 to vector<16x16xf32>
    %873 = arith.mulf %872, %866 : vector<16x16xf32>
    %874 = arith.addf %864, %873 : vector<16x16xf32>
    %c2_595 = arith.constant 2 : index
    %c1_596 = arith.constant 1 : index
    %c0_597 = arith.constant 0 : index
    %875 = vector.load %arg18[%c2_595, %c1_596, %c0_597] : memref<4x18x18xf32, #tpu.memory_space<vmem>>, vector<1x16x16xf32>
    %876 = vector.shape_cast %875 : vector<1x16x16xf32> to vector<16x16xf32>
    %c0_598 = arith.constant 0 : index
    %c21_599 = arith.constant 21 : index
    %877 = memref.load %arg11[%c0_598, %c21_599] : memref<2x36xf32, #tpu.memory_space<smem>>
    %878 = vector.broadcast %877 : f32 to vector<16x16xf32>
    %879 = arith.mulf %878, %876 : vector<16x16xf32>
    %880 = arith.addf %870, %879 : vector<16x16xf32>
    %c1_600 = arith.constant 1 : index
    %c21_601 = arith.constant 21 : index
    %881 = memref.load %arg11[%c1_600, %c21_601] : memref<2x36xf32, #tpu.memory_space<smem>>
    %882 = vector.broadcast %881 : f32 to vector<16x16xf32>
    %883 = arith.mulf %882, %876 : vector<16x16xf32>
    %884 = arith.addf %874, %883 : vector<16x16xf32>
    %c2_602 = arith.constant 2 : index
    %c1_603 = arith.constant 1 : index
    %c1_604 = arith.constant 1 : index
    %885 = vector.load %arg18[%c2_602, %c1_603, %c1_604] : memref<4x18x18xf32, #tpu.memory_space<vmem>>, vector<1x16x16xf32>
    %886 = vector.shape_cast %885 : vector<1x16x16xf32> to vector<16x16xf32>
    %c0_605 = arith.constant 0 : index
    %c22_606 = arith.constant 22 : index
    %887 = memref.load %arg11[%c0_605, %c22_606] : memref<2x36xf32, #tpu.memory_space<smem>>
    %888 = vector.broadcast %887 : f32 to vector<16x16xf32>
    %889 = arith.mulf %888, %886 : vector<16x16xf32>
    %890 = arith.addf %880, %889 : vector<16x16xf32>
    %c1_607 = arith.constant 1 : index
    %c22_608 = arith.constant 22 : index
    %891 = memref.load %arg11[%c1_607, %c22_608] : memref<2x36xf32, #tpu.memory_space<smem>>
    %892 = vector.broadcast %891 : f32 to vector<16x16xf32>
    %893 = arith.mulf %892, %886 : vector<16x16xf32>
    %894 = arith.addf %884, %893 : vector<16x16xf32>
    %c2_609 = arith.constant 2 : index
    %c1_610 = arith.constant 1 : index
    %c2_611 = arith.constant 2 : index
    %895 = vector.load %arg18[%c2_609, %c1_610, %c2_611] : memref<4x18x18xf32, #tpu.memory_space<vmem>>, vector<1x16x16xf32>
    %896 = vector.shape_cast %895 : vector<1x16x16xf32> to vector<16x16xf32>
    %c0_612 = arith.constant 0 : index
    %c23_613 = arith.constant 23 : index
    %897 = memref.load %arg11[%c0_612, %c23_613] : memref<2x36xf32, #tpu.memory_space<smem>>
    %898 = vector.broadcast %897 : f32 to vector<16x16xf32>
    %899 = arith.mulf %898, %896 : vector<16x16xf32>
    %900 = arith.addf %890, %899 : vector<16x16xf32>
    %c1_614 = arith.constant 1 : index
    %c23_615 = arith.constant 23 : index
    %901 = memref.load %arg11[%c1_614, %c23_615] : memref<2x36xf32, #tpu.memory_space<smem>>
    %902 = vector.broadcast %901 : f32 to vector<16x16xf32>
    %903 = arith.mulf %902, %896 : vector<16x16xf32>
    %904 = arith.addf %894, %903 : vector<16x16xf32>
    %c2_616 = arith.constant 2 : index
    %c2_617 = arith.constant 2 : index
    %c0_618 = arith.constant 0 : index
    %905 = vector.load %arg18[%c2_616, %c2_617, %c0_618] : memref<4x18x18xf32, #tpu.memory_space<vmem>>, vector<1x16x16xf32>
    %906 = vector.shape_cast %905 : vector<1x16x16xf32> to vector<16x16xf32>
    %c0_619 = arith.constant 0 : index
    %c24_620 = arith.constant 24 : index
    %907 = memref.load %arg11[%c0_619, %c24_620] : memref<2x36xf32, #tpu.memory_space<smem>>
    %908 = vector.broadcast %907 : f32 to vector<16x16xf32>
    %909 = arith.mulf %908, %906 : vector<16x16xf32>
    %910 = arith.addf %900, %909 : vector<16x16xf32>
    %c1_621 = arith.constant 1 : index
    %c24_622 = arith.constant 24 : index
    %911 = memref.load %arg11[%c1_621, %c24_622] : memref<2x36xf32, #tpu.memory_space<smem>>
    %912 = vector.broadcast %911 : f32 to vector<16x16xf32>
    %913 = arith.mulf %912, %906 : vector<16x16xf32>
    %914 = arith.addf %904, %913 : vector<16x16xf32>
    %c2_623 = arith.constant 2 : index
    %c2_624 = arith.constant 2 : index
    %c1_625 = arith.constant 1 : index
    %915 = vector.load %arg18[%c2_623, %c2_624, %c1_625] : memref<4x18x18xf32, #tpu.memory_space<vmem>>, vector<1x16x16xf32>
    %916 = vector.shape_cast %915 : vector<1x16x16xf32> to vector<16x16xf32>
    %c0_626 = arith.constant 0 : index
    %c25_627 = arith.constant 25 : index
    %917 = memref.load %arg11[%c0_626, %c25_627] : memref<2x36xf32, #tpu.memory_space<smem>>
    %918 = vector.broadcast %917 : f32 to vector<16x16xf32>
    %919 = arith.mulf %918, %916 : vector<16x16xf32>
    %920 = arith.addf %910, %919 : vector<16x16xf32>
    %c1_628 = arith.constant 1 : index
    %c25_629 = arith.constant 25 : index
    %921 = memref.load %arg11[%c1_628, %c25_629] : memref<2x36xf32, #tpu.memory_space<smem>>
    %922 = vector.broadcast %921 : f32 to vector<16x16xf32>
    %923 = arith.mulf %922, %916 : vector<16x16xf32>
    %924 = arith.addf %914, %923 : vector<16x16xf32>
    %c2_630 = arith.constant 2 : index
    %c2_631 = arith.constant 2 : index
    %c2_632 = arith.constant 2 : index
    %925 = vector.load %arg18[%c2_630, %c2_631, %c2_632] : memref<4x18x18xf32, #tpu.memory_space<vmem>>, vector<1x16x16xf32>
    %926 = vector.shape_cast %925 : vector<1x16x16xf32> to vector<16x16xf32>
    %c0_633 = arith.constant 0 : index
    %c26_634 = arith.constant 26 : index
    %927 = memref.load %arg11[%c0_633, %c26_634] : memref<2x36xf32, #tpu.memory_space<smem>>
    %928 = vector.broadcast %927 : f32 to vector<16x16xf32>
    %929 = arith.mulf %928, %926 : vector<16x16xf32>
    %930 = arith.addf %920, %929 : vector<16x16xf32>
    %c1_635 = arith.constant 1 : index
    %c26_636 = arith.constant 26 : index
    %931 = memref.load %arg11[%c1_635, %c26_636] : memref<2x36xf32, #tpu.memory_space<smem>>
    %932 = vector.broadcast %931 : f32 to vector<16x16xf32>
    %933 = arith.mulf %932, %926 : vector<16x16xf32>
    %934 = arith.addf %924, %933 : vector<16x16xf32>
    %c3_637 = arith.constant 3 : index
    %c0_638 = arith.constant 0 : index
    %c0_639 = arith.constant 0 : index
    %935 = vector.load %arg18[%c3_637, %c0_638, %c0_639] : memref<4x18x18xf32, #tpu.memory_space<vmem>>, vector<1x16x16xf32>
    %936 = vector.shape_cast %935 : vector<1x16x16xf32> to vector<16x16xf32>
    %c0_640 = arith.constant 0 : index
    %c27_641 = arith.constant 27 : index
    %937 = memref.load %arg11[%c0_640, %c27_641] : memref<2x36xf32, #tpu.memory_space<smem>>
    %938 = vector.broadcast %937 : f32 to vector<16x16xf32>
    %939 = arith.mulf %938, %936 : vector<16x16xf32>
    %940 = arith.addf %930, %939 : vector<16x16xf32>
    %c1_642 = arith.constant 1 : index
    %c27_643 = arith.constant 27 : index
    %941 = memref.load %arg11[%c1_642, %c27_643] : memref<2x36xf32, #tpu.memory_space<smem>>
    %942 = vector.broadcast %941 : f32 to vector<16x16xf32>
    %943 = arith.mulf %942, %936 : vector<16x16xf32>
    %944 = arith.addf %934, %943 : vector<16x16xf32>
    %c3_644 = arith.constant 3 : index
    %c0_645 = arith.constant 0 : index
    %c1_646 = arith.constant 1 : index
    %945 = vector.load %arg18[%c3_644, %c0_645, %c1_646] : memref<4x18x18xf32, #tpu.memory_space<vmem>>, vector<1x16x16xf32>
    %946 = vector.shape_cast %945 : vector<1x16x16xf32> to vector<16x16xf32>
    %c0_647 = arith.constant 0 : index
    %c28_648 = arith.constant 28 : index
    %947 = memref.load %arg11[%c0_647, %c28_648] : memref<2x36xf32, #tpu.memory_space<smem>>
    %948 = vector.broadcast %947 : f32 to vector<16x16xf32>
    %949 = arith.mulf %948, %946 : vector<16x16xf32>
    %950 = arith.addf %940, %949 : vector<16x16xf32>
    %c1_649 = arith.constant 1 : index
    %c28_650 = arith.constant 28 : index
    %951 = memref.load %arg11[%c1_649, %c28_650] : memref<2x36xf32, #tpu.memory_space<smem>>
    %952 = vector.broadcast %951 : f32 to vector<16x16xf32>
    %953 = arith.mulf %952, %946 : vector<16x16xf32>
    %954 = arith.addf %944, %953 : vector<16x16xf32>
    %c3_651 = arith.constant 3 : index
    %c0_652 = arith.constant 0 : index
    %c2_653 = arith.constant 2 : index
    %955 = vector.load %arg18[%c3_651, %c0_652, %c2_653] : memref<4x18x18xf32, #tpu.memory_space<vmem>>, vector<1x16x16xf32>
    %956 = vector.shape_cast %955 : vector<1x16x16xf32> to vector<16x16xf32>
    %c0_654 = arith.constant 0 : index
    %c29_655 = arith.constant 29 : index
    %957 = memref.load %arg11[%c0_654, %c29_655] : memref<2x36xf32, #tpu.memory_space<smem>>
    %958 = vector.broadcast %957 : f32 to vector<16x16xf32>
    %959 = arith.mulf %958, %956 : vector<16x16xf32>
    %960 = arith.addf %950, %959 : vector<16x16xf32>
    %c1_656 = arith.constant 1 : index
    %c29_657 = arith.constant 29 : index
    %961 = memref.load %arg11[%c1_656, %c29_657] : memref<2x36xf32, #tpu.memory_space<smem>>
    %962 = vector.broadcast %961 : f32 to vector<16x16xf32>
    %963 = arith.mulf %962, %956 : vector<16x16xf32>
    %964 = arith.addf %954, %963 : vector<16x16xf32>
    %c3_658 = arith.constant 3 : index
    %c1_659 = arith.constant 1 : index
    %c0_660 = arith.constant 0 : index
    %965 = vector.load %arg18[%c3_658, %c1_659, %c0_660] : memref<4x18x18xf32, #tpu.memory_space<vmem>>, vector<1x16x16xf32>
    %966 = vector.shape_cast %965 : vector<1x16x16xf32> to vector<16x16xf32>
    %c0_661 = arith.constant 0 : index
    %c30_662 = arith.constant 30 : index
    %967 = memref.load %arg11[%c0_661, %c30_662] : memref<2x36xf32, #tpu.memory_space<smem>>
    %968 = vector.broadcast %967 : f32 to vector<16x16xf32>
    %969 = arith.mulf %968, %966 : vector<16x16xf32>
    %970 = arith.addf %960, %969 : vector<16x16xf32>
    %c1_663 = arith.constant 1 : index
    %c30_664 = arith.constant 30 : index
    %971 = memref.load %arg11[%c1_663, %c30_664] : memref<2x36xf32, #tpu.memory_space<smem>>
    %972 = vector.broadcast %971 : f32 to vector<16x16xf32>
    %973 = arith.mulf %972, %966 : vector<16x16xf32>
    %974 = arith.addf %964, %973 : vector<16x16xf32>
    %c3_665 = arith.constant 3 : index
    %c1_666 = arith.constant 1 : index
    %c1_667 = arith.constant 1 : index
    %975 = vector.load %arg18[%c3_665, %c1_666, %c1_667] : memref<4x18x18xf32, #tpu.memory_space<vmem>>, vector<1x16x16xf32>
    %976 = vector.shape_cast %975 : vector<1x16x16xf32> to vector<16x16xf32>
    %c0_668 = arith.constant 0 : index
    %c31_669 = arith.constant 31 : index
    %977 = memref.load %arg11[%c0_668, %c31_669] : memref<2x36xf32, #tpu.memory_space<smem>>
    %978 = vector.broadcast %977 : f32 to vector<16x16xf32>
    %979 = arith.mulf %978, %976 : vector<16x16xf32>
    %980 = arith.addf %970, %979 : vector<16x16xf32>
    %c1_670 = arith.constant 1 : index
    %c31_671 = arith.constant 31 : index
    %981 = memref.load %arg11[%c1_670, %c31_671] : memref<2x36xf32, #tpu.memory_space<smem>>
    %982 = vector.broadcast %981 : f32 to vector<16x16xf32>
    %983 = arith.mulf %982, %976 : vector<16x16xf32>
    %984 = arith.addf %974, %983 : vector<16x16xf32>
    %c3_672 = arith.constant 3 : index
    %c1_673 = arith.constant 1 : index
    %c2_674 = arith.constant 2 : index
    %985 = vector.load %arg18[%c3_672, %c1_673, %c2_674] : memref<4x18x18xf32, #tpu.memory_space<vmem>>, vector<1x16x16xf32>
    %986 = vector.shape_cast %985 : vector<1x16x16xf32> to vector<16x16xf32>
    %c0_675 = arith.constant 0 : index
    %c32_676 = arith.constant 32 : index
    %987 = memref.load %arg11[%c0_675, %c32_676] : memref<2x36xf32, #tpu.memory_space<smem>>
    %988 = vector.broadcast %987 : f32 to vector<16x16xf32>
    %989 = arith.mulf %988, %986 : vector<16x16xf32>
    %990 = arith.addf %980, %989 : vector<16x16xf32>
    %c1_677 = arith.constant 1 : index
    %c32_678 = arith.constant 32 : index
    %991 = memref.load %arg11[%c1_677, %c32_678] : memref<2x36xf32, #tpu.memory_space<smem>>
    %992 = vector.broadcast %991 : f32 to vector<16x16xf32>
    %993 = arith.mulf %992, %986 : vector<16x16xf32>
    %994 = arith.addf %984, %993 : vector<16x16xf32>
    %c3_679 = arith.constant 3 : index
    %c2_680 = arith.constant 2 : index
    %c0_681 = arith.constant 0 : index
    %995 = vector.load %arg18[%c3_679, %c2_680, %c0_681] : memref<4x18x18xf32, #tpu.memory_space<vmem>>, vector<1x16x16xf32>
    %996 = vector.shape_cast %995 : vector<1x16x16xf32> to vector<16x16xf32>
    %c0_682 = arith.constant 0 : index
    %c33_683 = arith.constant 33 : index
    %997 = memref.load %arg11[%c0_682, %c33_683] : memref<2x36xf32, #tpu.memory_space<smem>>
    %998 = vector.broadcast %997 : f32 to vector<16x16xf32>
    %999 = arith.mulf %998, %996 : vector<16x16xf32>
    %1000 = arith.addf %990, %999 : vector<16x16xf32>
    %c1_684 = arith.constant 1 : index
    %c33_685 = arith.constant 33 : index
    %1001 = memref.load %arg11[%c1_684, %c33_685] : memref<2x36xf32, #tpu.memory_space<smem>>
    %1002 = vector.broadcast %1001 : f32 to vector<16x16xf32>
    %1003 = arith.mulf %1002, %996 : vector<16x16xf32>
    %1004 = arith.addf %994, %1003 : vector<16x16xf32>
    %c3_686 = arith.constant 3 : index
    %c2_687 = arith.constant 2 : index
    %c1_688 = arith.constant 1 : index
    %1005 = vector.load %arg18[%c3_686, %c2_687, %c1_688] : memref<4x18x18xf32, #tpu.memory_space<vmem>>, vector<1x16x16xf32>
    %1006 = vector.shape_cast %1005 : vector<1x16x16xf32> to vector<16x16xf32>
    %c0_689 = arith.constant 0 : index
    %c34_690 = arith.constant 34 : index
    %1007 = memref.load %arg11[%c0_689, %c34_690] : memref<2x36xf32, #tpu.memory_space<smem>>
    %1008 = vector.broadcast %1007 : f32 to vector<16x16xf32>
    %1009 = arith.mulf %1008, %1006 : vector<16x16xf32>
    %1010 = arith.addf %1000, %1009 : vector<16x16xf32>
    %c1_691 = arith.constant 1 : index
    %c34_692 = arith.constant 34 : index
    %1011 = memref.load %arg11[%c1_691, %c34_692] : memref<2x36xf32, #tpu.memory_space<smem>>
    %1012 = vector.broadcast %1011 : f32 to vector<16x16xf32>
    %1013 = arith.mulf %1012, %1006 : vector<16x16xf32>
    %1014 = arith.addf %1004, %1013 : vector<16x16xf32>
    %c3_693 = arith.constant 3 : index
    %c2_694 = arith.constant 2 : index
    %c2_695 = arith.constant 2 : index
    %1015 = vector.load %arg18[%c3_693, %c2_694, %c2_695] : memref<4x18x18xf32, #tpu.memory_space<vmem>>, vector<1x16x16xf32>
    %1016 = vector.shape_cast %1015 : vector<1x16x16xf32> to vector<16x16xf32>
    %c0_696 = arith.constant 0 : index
    %c35_697 = arith.constant 35 : index
    %1017 = memref.load %arg11[%c0_696, %c35_697] : memref<2x36xf32, #tpu.memory_space<smem>>
    %1018 = vector.broadcast %1017 : f32 to vector<16x16xf32>
    %1019 = arith.mulf %1018, %1016 : vector<16x16xf32>
    %1020 = arith.addf %1010, %1019 : vector<16x16xf32>
    %c1_698 = arith.constant 1 : index
    %c35_699 = arith.constant 35 : index
    %1021 = memref.load %arg11[%c1_698, %c35_699] : memref<2x36xf32, #tpu.memory_space<smem>>
    %1022 = vector.broadcast %1021 : f32 to vector<16x16xf32>
    %1023 = arith.mulf %1022, %1016 : vector<16x16xf32>
    %1024 = arith.addf %1014, %1023 : vector<16x16xf32>
    %c0_700 = arith.constant 0 : index
    %1025 = memref.load %arg12[%c0_700] : memref<2xf32, #tpu.memory_space<smem>>
    %1026 = vector.broadcast %1025 : f32 to vector<16x16xf32>
    %1027 = arith.addf %1020, %1026 : vector<16x16xf32>
    %c1_701 = arith.constant 1 : index
    %1028 = memref.load %arg12[%c1_701] : memref<2xf32, #tpu.memory_space<smem>>
    %1029 = vector.broadcast %1028 : f32 to vector<16x16xf32>
    %1030 = arith.addf %1024, %1029 : vector<16x16xf32>
    %c0_702 = arith.constant 0 : index
    %c1_703 = arith.constant 1 : index
    %c1_704 = arith.constant 1 : index
    %1031 = vector.load %arg19[%c0_702, %c1_703, %c1_704] : memref<2x18x18xf32, #tpu.memory_space<vmem>>, vector<1x16x16xf32>
    %1032 = vector.shape_cast %1031 : vector<1x16x16xf32> to vector<16x16xf32>
    %1033 = vector.shape_cast %1027 : vector<16x16xf32> to vector<1x16x16xf32>
    tpu.vector_store %arg19[%c0_702, %c1_703, %c1_704], %1033 {strides = array<i32>} : memref<2x18x18xf32, #tpu.memory_space<vmem>>, vector<1x16x16xf32>,
    %c1_705 = arith.constant 1 : index
    %c1_706 = arith.constant 1 : index
    %c1_707 = arith.constant 1 : index
    %1034 = vector.load %arg19[%c1_705, %c1_706, %c1_707] : memref<2x18x18xf32, #tpu.memory_space<vmem>>, vector<1x16x16xf32>
    %1035 = vector.shape_cast %1034 : vector<1x16x16xf32> to vector<16x16xf32>
    %1036 = vector.shape_cast %1030 : vector<16x16xf32> to vector<1x16x16xf32>
    tpu.vector_store %arg19[%c1_705, %c1_706, %c1_707], %1036 {strides = array<i32>} : memref<2x18x18xf32, #tpu.memory_space<vmem>>, vector<1x16x16xf32>,
    %cst_708 = arith.constant 0.000000e+00 : f32
    %1037 = vector.broadcast %cst_708 : f32 to vector<16x16xf32>
    %cst_709 = arith.constant 0.000000e+00 : f32
    %1038 = vector.broadcast %cst_709 : f32 to vector<16x16xf32>
    %c0_710 = arith.constant 0 : index
    %c0_711 = arith.constant 0 : index
    %c0_712 = arith.constant 0 : index
    %1039 = vector.load %arg19[%c0_710, %c0_711, %c0_712] : memref<2x18x18xf32, #tpu.memory_space<vmem>>, vector<1x16x16xf32>
    %1040 = vector.shape_cast %1039 : vector<1x16x16xf32> to vector<16x16xf32>
    %c0_713 = arith.constant 0 : index
    %c0_714 = arith.constant 0 : index
    %1041 = memref.load %arg13[%c0_713, %c0_714] : memref<2x18xf32, #tpu.memory_space<smem>>
    %1042 = vector.broadcast %1041 : f32 to vector<16x16xf32>
    %1043 = arith.mulf %1042, %1040 : vector<16x16xf32>
    %1044 = arith.addf %1037, %1043 : vector<16x16xf32>
    %c1_715 = arith.constant 1 : index
    %c0_716 = arith.constant 0 : index
    %1045 = memref.load %arg13[%c1_715, %c0_716] : memref<2x18xf32, #tpu.memory_space<smem>>
    %1046 = vector.broadcast %1045 : f32 to vector<16x16xf32>
    %1047 = arith.mulf %1046, %1040 : vector<16x16xf32>
    %1048 = arith.addf %1038, %1047 : vector<16x16xf32>
    %c0_717 = arith.constant 0 : index
    %c0_718 = arith.constant 0 : index
    %c1_719 = arith.constant 1 : index
    %1049 = vector.load %arg19[%c0_717, %c0_718, %c1_719] : memref<2x18x18xf32, #tpu.memory_space<vmem>>, vector<1x16x16xf32>
    %1050 = vector.shape_cast %1049 : vector<1x16x16xf32> to vector<16x16xf32>
    %c0_720 = arith.constant 0 : index
    %c1_721 = arith.constant 1 : index
    %1051 = memref.load %arg13[%c0_720, %c1_721] : memref<2x18xf32, #tpu.memory_space<smem>>
    %1052 = vector.broadcast %1051 : f32 to vector<16x16xf32>
    %1053 = arith.mulf %1052, %1050 : vector<16x16xf32>
    %1054 = arith.addf %1044, %1053 : vector<16x16xf32>
    %c1_722 = arith.constant 1 : index
    %c1_723 = arith.constant 1 : index
    %1055 = memref.load %arg13[%c1_722, %c1_723] : memref<2x18xf32, #tpu.memory_space<smem>>
    %1056 = vector.broadcast %1055 : f32 to vector<16x16xf32>
    %1057 = arith.mulf %1056, %1050 : vector<16x16xf32>
    %1058 = arith.addf %1048, %1057 : vector<16x16xf32>
    %c0_724 = arith.constant 0 : index
    %c0_725 = arith.constant 0 : index
    %c2_726 = arith.constant 2 : index
    %1059 = vector.load %arg19[%c0_724, %c0_725, %c2_726] : memref<2x18x18xf32, #tpu.memory_space<vmem>>, vector<1x16x16xf32>
    %1060 = vector.shape_cast %1059 : vector<1x16x16xf32> to vector<16x16xf32>
    %c0_727 = arith.constant 0 : index
    %c2_728 = arith.constant 2 : index
    %1061 = memref.load %arg13[%c0_727, %c2_728] : memref<2x18xf32, #tpu.memory_space<smem>>
    %1062 = vector.broadcast %1061 : f32 to vector<16x16xf32>
    %1063 = arith.mulf %1062, %1060 : vector<16x16xf32>
    %1064 = arith.addf %1054, %1063 : vector<16x16xf32>
    %c1_729 = arith.constant 1 : index
    %c2_730 = arith.constant 2 : index
    %1065 = memref.load %arg13[%c1_729, %c2_730] : memref<2x18xf32, #tpu.memory_space<smem>>
    %1066 = vector.broadcast %1065 : f32 to vector<16x16xf32>
    %1067 = arith.mulf %1066, %1060 : vector<16x16xf32>
    %1068 = arith.addf %1058, %1067 : vector<16x16xf32>
    %c0_731 = arith.constant 0 : index
    %c1_732 = arith.constant 1 : index
    %c0_733 = arith.constant 0 : index
    %1069 = vector.load %arg19[%c0_731, %c1_732, %c0_733] : memref<2x18x18xf32, #tpu.memory_space<vmem>>, vector<1x16x16xf32>
    %1070 = vector.shape_cast %1069 : vector<1x16x16xf32> to vector<16x16xf32>
    %c0_734 = arith.constant 0 : index
    %c3_735 = arith.constant 3 : index
    %1071 = memref.load %arg13[%c0_734, %c3_735] : memref<2x18xf32, #tpu.memory_space<smem>>
    %1072 = vector.broadcast %1071 : f32 to vector<16x16xf32>
    %1073 = arith.mulf %1072, %1070 : vector<16x16xf32>
    %1074 = arith.addf %1064, %1073 : vector<16x16xf32>
    %c1_736 = arith.constant 1 : index
    %c3_737 = arith.constant 3 : index
    %1075 = memref.load %arg13[%c1_736, %c3_737] : memref<2x18xf32, #tpu.memory_space<smem>>
    %1076 = vector.broadcast %1075 : f32 to vector<16x16xf32>
    %1077 = arith.mulf %1076, %1070 : vector<16x16xf32>
    %1078 = arith.addf %1068, %1077 : vector<16x16xf32>
    %c0_738 = arith.constant 0 : index
    %c1_739 = arith.constant 1 : index
    %c1_740 = arith.constant 1 : index
    %1079 = vector.load %arg19[%c0_738, %c1_739, %c1_740] : memref<2x18x18xf32, #tpu.memory_space<vmem>>, vector<1x16x16xf32>
    %1080 = vector.shape_cast %1079 : vector<1x16x16xf32> to vector<16x16xf32>
    %c0_741 = arith.constant 0 : index
    %c4_742 = arith.constant 4 : index
    %1081 = memref.load %arg13[%c0_741, %c4_742] : memref<2x18xf32, #tpu.memory_space<smem>>
    %1082 = vector.broadcast %1081 : f32 to vector<16x16xf32>
    %1083 = arith.mulf %1082, %1080 : vector<16x16xf32>
    %1084 = arith.addf %1074, %1083 : vector<16x16xf32>
    %c1_743 = arith.constant 1 : index
    %c4_744 = arith.constant 4 : index
    %1085 = memref.load %arg13[%c1_743, %c4_744] : memref<2x18xf32, #tpu.memory_space<smem>>
    %1086 = vector.broadcast %1085 : f32 to vector<16x16xf32>
    %1087 = arith.mulf %1086, %1080 : vector<16x16xf32>
    %1088 = arith.addf %1078, %1087 : vector<16x16xf32>
    %c0_745 = arith.constant 0 : index
    %c1_746 = arith.constant 1 : index
    %c2_747 = arith.constant 2 : index
    %1089 = vector.load %arg19[%c0_745, %c1_746, %c2_747] : memref<2x18x18xf32, #tpu.memory_space<vmem>>, vector<1x16x16xf32>
    %1090 = vector.shape_cast %1089 : vector<1x16x16xf32> to vector<16x16xf32>
    %c0_748 = arith.constant 0 : index
    %c5_749 = arith.constant 5 : index
    %1091 = memref.load %arg13[%c0_748, %c5_749] : memref<2x18xf32, #tpu.memory_space<smem>>
    %1092 = vector.broadcast %1091 : f32 to vector<16x16xf32>
    %1093 = arith.mulf %1092, %1090 : vector<16x16xf32>
    %1094 = arith.addf %1084, %1093 : vector<16x16xf32>
    %c1_750 = arith.constant 1 : index
    %c5_751 = arith.constant 5 : index
    %1095 = memref.load %arg13[%c1_750, %c5_751] : memref<2x18xf32, #tpu.memory_space<smem>>
    %1096 = vector.broadcast %1095 : f32 to vector<16x16xf32>
    %1097 = arith.mulf %1096, %1090 : vector<16x16xf32>
    %1098 = arith.addf %1088, %1097 : vector<16x16xf32>
    %c0_752 = arith.constant 0 : index
    %c2_753 = arith.constant 2 : index
    %c0_754 = arith.constant 0 : index
    %1099 = vector.load %arg19[%c0_752, %c2_753, %c0_754] : memref<2x18x18xf32, #tpu.memory_space<vmem>>, vector<1x16x16xf32>
    %1100 = vector.shape_cast %1099 : vector<1x16x16xf32> to vector<16x16xf32>
    %c0_755 = arith.constant 0 : index
    %c6_756 = arith.constant 6 : index
    %1101 = memref.load %arg13[%c0_755, %c6_756] : memref<2x18xf32, #tpu.memory_space<smem>>
    %1102 = vector.broadcast %1101 : f32 to vector<16x16xf32>
    %1103 = arith.mulf %1102, %1100 : vector<16x16xf32>
    %1104 = arith.addf %1094, %1103 : vector<16x16xf32>
    %c1_757 = arith.constant 1 : index
    %c6_758 = arith.constant 6 : index
    %1105 = memref.load %arg13[%c1_757, %c6_758] : memref<2x18xf32, #tpu.memory_space<smem>>
    %1106 = vector.broadcast %1105 : f32 to vector<16x16xf32>
    %1107 = arith.mulf %1106, %1100 : vector<16x16xf32>
    %1108 = arith.addf %1098, %1107 : vector<16x16xf32>
    %c0_759 = arith.constant 0 : index
    %c2_760 = arith.constant 2 : index
    %c1_761 = arith.constant 1 : index
    %1109 = vector.load %arg19[%c0_759, %c2_760, %c1_761] : memref<2x18x18xf32, #tpu.memory_space<vmem>>, vector<1x16x16xf32>
    %1110 = vector.shape_cast %1109 : vector<1x16x16xf32> to vector<16x16xf32>
    %c0_762 = arith.constant 0 : index
    %c7_763 = arith.constant 7 : index
    %1111 = memref.load %arg13[%c0_762, %c7_763] : memref<2x18xf32, #tpu.memory_space<smem>>
    %1112 = vector.broadcast %1111 : f32 to vector<16x16xf32>
    %1113 = arith.mulf %1112, %1110 : vector<16x16xf32>
    %1114 = arith.addf %1104, %1113 : vector<16x16xf32>
    %c1_764 = arith.constant 1 : index
    %c7_765 = arith.constant 7 : index
    %1115 = memref.load %arg13[%c1_764, %c7_765] : memref<2x18xf32, #tpu.memory_space<smem>>
    %1116 = vector.broadcast %1115 : f32 to vector<16x16xf32>
    %1117 = arith.mulf %1116, %1110 : vector<16x16xf32>
    %1118 = arith.addf %1108, %1117 : vector<16x16xf32>
    %c0_766 = arith.constant 0 : index
    %c2_767 = arith.constant 2 : index
    %c2_768 = arith.constant 2 : index
    %1119 = vector.load %arg19[%c0_766, %c2_767, %c2_768] : memref<2x18x18xf32, #tpu.memory_space<vmem>>, vector<1x16x16xf32>
    %1120 = vector.shape_cast %1119 : vector<1x16x16xf32> to vector<16x16xf32>
    %c0_769 = arith.constant 0 : index
    %c8_770 = arith.constant 8 : index
    %1121 = memref.load %arg13[%c0_769, %c8_770] : memref<2x18xf32, #tpu.memory_space<smem>>
    %1122 = vector.broadcast %1121 : f32 to vector<16x16xf32>
    %1123 = arith.mulf %1122, %1120 : vector<16x16xf32>
    %1124 = arith.addf %1114, %1123 : vector<16x16xf32>
    %c1_771 = arith.constant 1 : index
    %c8_772 = arith.constant 8 : index
    %1125 = memref.load %arg13[%c1_771, %c8_772] : memref<2x18xf32, #tpu.memory_space<smem>>
    %1126 = vector.broadcast %1125 : f32 to vector<16x16xf32>
    %1127 = arith.mulf %1126, %1120 : vector<16x16xf32>
    %1128 = arith.addf %1118, %1127 : vector<16x16xf32>
    %c1_773 = arith.constant 1 : index
    %c0_774 = arith.constant 0 : index
    %c0_775 = arith.constant 0 : index
    %1129 = vector.load %arg19[%c1_773, %c0_774, %c0_775] : memref<2x18x18xf32, #tpu.memory_space<vmem>>, vector<1x16x16xf32>
    %1130 = vector.shape_cast %1129 : vector<1x16x16xf32> to vector<16x16xf32>
    %c0_776 = arith.constant 0 : index
    %c9_777 = arith.constant 9 : index
    %1131 = memref.load %arg13[%c0_776, %c9_777] : memref<2x18xf32, #tpu.memory_space<smem>>
    %1132 = vector.broadcast %1131 : f32 to vector<16x16xf32>
    %1133 = arith.mulf %1132, %1130 : vector<16x16xf32>
    %1134 = arith.addf %1124, %1133 : vector<16x16xf32>
    %c1_778 = arith.constant 1 : index
    %c9_779 = arith.constant 9 : index
    %1135 = memref.load %arg13[%c1_778, %c9_779] : memref<2x18xf32, #tpu.memory_space<smem>>
    %1136 = vector.broadcast %1135 : f32 to vector<16x16xf32>
    %1137 = arith.mulf %1136, %1130 : vector<16x16xf32>
    %1138 = arith.addf %1128, %1137 : vector<16x16xf32>
    %c1_780 = arith.constant 1 : index
    %c0_781 = arith.constant 0 : index
    %c1_782 = arith.constant 1 : index
    %1139 = vector.load %arg19[%c1_780, %c0_781, %c1_782] : memref<2x18x18xf32, #tpu.memory_space<vmem>>, vector<1x16x16xf32>
    %1140 = vector.shape_cast %1139 : vector<1x16x16xf32> to vector<16x16xf32>
    %c0_783 = arith.constant 0 : index
    %c10_784 = arith.constant 10 : index
    %1141 = memref.load %arg13[%c0_783, %c10_784] : memref<2x18xf32, #tpu.memory_space<smem>>
    %1142 = vector.broadcast %1141 : f32 to vector<16x16xf32>
    %1143 = arith.mulf %1142, %1140 : vector<16x16xf32>
    %1144 = arith.addf %1134, %1143 : vector<16x16xf32>
    %c1_785 = arith.constant 1 : index
    %c10_786 = arith.constant 10 : index
    %1145 = memref.load %arg13[%c1_785, %c10_786] : memref<2x18xf32, #tpu.memory_space<smem>>
    %1146 = vector.broadcast %1145 : f32 to vector<16x16xf32>
    %1147 = arith.mulf %1146, %1140 : vector<16x16xf32>
    %1148 = arith.addf %1138, %1147 : vector<16x16xf32>
    %c1_787 = arith.constant 1 : index
    %c0_788 = arith.constant 0 : index
    %c2_789 = arith.constant 2 : index
    %1149 = vector.load %arg19[%c1_787, %c0_788, %c2_789] : memref<2x18x18xf32, #tpu.memory_space<vmem>>, vector<1x16x16xf32>
    %1150 = vector.shape_cast %1149 : vector<1x16x16xf32> to vector<16x16xf32>
    %c0_790 = arith.constant 0 : index
    %c11_791 = arith.constant 11 : index
    %1151 = memref.load %arg13[%c0_790, %c11_791] : memref<2x18xf32, #tpu.memory_space<smem>>
    %1152 = vector.broadcast %1151 : f32 to vector<16x16xf32>
    %1153 = arith.mulf %1152, %1150 : vector<16x16xf32>
    %1154 = arith.addf %1144, %1153 : vector<16x16xf32>
    %c1_792 = arith.constant 1 : index
    %c11_793 = arith.constant 11 : index
    %1155 = memref.load %arg13[%c1_792, %c11_793] : memref<2x18xf32, #tpu.memory_space<smem>>
    %1156 = vector.broadcast %1155 : f32 to vector<16x16xf32>
    %1157 = arith.mulf %1156, %1150 : vector<16x16xf32>
    %1158 = arith.addf %1148, %1157 : vector<16x16xf32>
    %c1_794 = arith.constant 1 : index
    %c1_795 = arith.constant 1 : index
    %c0_796 = arith.constant 0 : index
    %1159 = vector.load %arg19[%c1_794, %c1_795, %c0_796] : memref<2x18x18xf32, #tpu.memory_space<vmem>>, vector<1x16x16xf32>
    %1160 = vector.shape_cast %1159 : vector<1x16x16xf32> to vector<16x16xf32>
    %c0_797 = arith.constant 0 : index
    %c12_798 = arith.constant 12 : index
    %1161 = memref.load %arg13[%c0_797, %c12_798] : memref<2x18xf32, #tpu.memory_space<smem>>
    %1162 = vector.broadcast %1161 : f32 to vector<16x16xf32>
    %1163 = arith.mulf %1162, %1160 : vector<16x16xf32>
    %1164 = arith.addf %1154, %1163 : vector<16x16xf32>
    %c1_799 = arith.constant 1 : index
    %c12_800 = arith.constant 12 : index
    %1165 = memref.load %arg13[%c1_799, %c12_800] : memref<2x18xf32, #tpu.memory_space<smem>>
    %1166 = vector.broadcast %1165 : f32 to vector<16x16xf32>
    %1167 = arith.mulf %1166, %1160 : vector<16x16xf32>
    %1168 = arith.addf %1158, %1167 : vector<16x16xf32>
    %c1_801 = arith.constant 1 : index
    %c1_802 = arith.constant 1 : index
    %c1_803 = arith.constant 1 : index
    %1169 = vector.load %arg19[%c1_801, %c1_802, %c1_803] : memref<2x18x18xf32, #tpu.memory_space<vmem>>, vector<1x16x16xf32>
    %1170 = vector.shape_cast %1169 : vector<1x16x16xf32> to vector<16x16xf32>
    %c0_804 = arith.constant 0 : index
    %c13_805 = arith.constant 13 : index
    %1171 = memref.load %arg13[%c0_804, %c13_805] : memref<2x18xf32, #tpu.memory_space<smem>>
    %1172 = vector.broadcast %1171 : f32 to vector<16x16xf32>
    %1173 = arith.mulf %1172, %1170 : vector<16x16xf32>
    %1174 = arith.addf %1164, %1173 : vector<16x16xf32>
    %c1_806 = arith.constant 1 : index
    %c13_807 = arith.constant 13 : index
    %1175 = memref.load %arg13[%c1_806, %c13_807] : memref<2x18xf32, #tpu.memory_space<smem>>
    %1176 = vector.broadcast %1175 : f32 to vector<16x16xf32>
    %1177 = arith.mulf %1176, %1170 : vector<16x16xf32>
    %1178 = arith.addf %1168, %1177 : vector<16x16xf32>
    %c1_808 = arith.constant 1 : index
    %c1_809 = arith.constant 1 : index
    %c2_810 = arith.constant 2 : index
    %1179 = vector.load %arg19[%c1_808, %c1_809, %c2_810] : memref<2x18x18xf32, #tpu.memory_space<vmem>>, vector<1x16x16xf32>
    %1180 = vector.shape_cast %1179 : vector<1x16x16xf32> to vector<16x16xf32>
    %c0_811 = arith.constant 0 : index
    %c14_812 = arith.constant 14 : index
    %1181 = memref.load %arg13[%c0_811, %c14_812] : memref<2x18xf32, #tpu.memory_space<smem>>
    %1182 = vector.broadcast %1181 : f32 to vector<16x16xf32>
    %1183 = arith.mulf %1182, %1180 : vector<16x16xf32>
    %1184 = arith.addf %1174, %1183 : vector<16x16xf32>
    %c1_813 = arith.constant 1 : index
    %c14_814 = arith.constant 14 : index
    %1185 = memref.load %arg13[%c1_813, %c14_814] : memref<2x18xf32, #tpu.memory_space<smem>>
    %1186 = vector.broadcast %1185 : f32 to vector<16x16xf32>
    %1187 = arith.mulf %1186, %1180 : vector<16x16xf32>
    %1188 = arith.addf %1178, %1187 : vector<16x16xf32>
    %c1_815 = arith.constant 1 : index
    %c2_816 = arith.constant 2 : index
    %c0_817 = arith.constant 0 : index
    %1189 = vector.load %arg19[%c1_815, %c2_816, %c0_817] : memref<2x18x18xf32, #tpu.memory_space<vmem>>, vector<1x16x16xf32>
    %1190 = vector.shape_cast %1189 : vector<1x16x16xf32> to vector<16x16xf32>
    %c0_818 = arith.constant 0 : index
    %c15_819 = arith.constant 15 : index
    %1191 = memref.load %arg13[%c0_818, %c15_819] : memref<2x18xf32, #tpu.memory_space<smem>>
    %1192 = vector.broadcast %1191 : f32 to vector<16x16xf32>
    %1193 = arith.mulf %1192, %1190 : vector<16x16xf32>
    %1194 = arith.addf %1184, %1193 : vector<16x16xf32>
    %c1_820 = arith.constant 1 : index
    %c15_821 = arith.constant 15 : index
    %1195 = memref.load %arg13[%c1_820, %c15_821] : memref<2x18xf32, #tpu.memory_space<smem>>
    %1196 = vector.broadcast %1195 : f32 to vector<16x16xf32>
    %1197 = arith.mulf %1196, %1190 : vector<16x16xf32>
    %1198 = arith.addf %1188, %1197 : vector<16x16xf32>
    %c1_822 = arith.constant 1 : index
    %c2_823 = arith.constant 2 : index
    %c1_824 = arith.constant 1 : index
    %1199 = vector.load %arg19[%c1_822, %c2_823, %c1_824] : memref<2x18x18xf32, #tpu.memory_space<vmem>>, vector<1x16x16xf32>
    %1200 = vector.shape_cast %1199 : vector<1x16x16xf32> to vector<16x16xf32>
    %c0_825 = arith.constant 0 : index
    %c16_826 = arith.constant 16 : index
    %1201 = memref.load %arg13[%c0_825, %c16_826] : memref<2x18xf32, #tpu.memory_space<smem>>
    %1202 = vector.broadcast %1201 : f32 to vector<16x16xf32>
    %1203 = arith.mulf %1202, %1200 : vector<16x16xf32>
    %1204 = arith.addf %1194, %1203 : vector<16x16xf32>
    %c1_827 = arith.constant 1 : index
    %c16_828 = arith.constant 16 : index
    %1205 = memref.load %arg13[%c1_827, %c16_828] : memref<2x18xf32, #tpu.memory_space<smem>>
    %1206 = vector.broadcast %1205 : f32 to vector<16x16xf32>
    %1207 = arith.mulf %1206, %1200 : vector<16x16xf32>
    %1208 = arith.addf %1198, %1207 : vector<16x16xf32>
    %c1_829 = arith.constant 1 : index
    %c2_830 = arith.constant 2 : index
    %c2_831 = arith.constant 2 : index
    %1209 = vector.load %arg19[%c1_829, %c2_830, %c2_831] : memref<2x18x18xf32, #tpu.memory_space<vmem>>, vector<1x16x16xf32>
    %1210 = vector.shape_cast %1209 : vector<1x16x16xf32> to vector<16x16xf32>
    %c0_832 = arith.constant 0 : index
    %c17_833 = arith.constant 17 : index
    %1211 = memref.load %arg13[%c0_832, %c17_833] : memref<2x18xf32, #tpu.memory_space<smem>>
    %1212 = vector.broadcast %1211 : f32 to vector<16x16xf32>
    %1213 = arith.mulf %1212, %1210 : vector<16x16xf32>
    %1214 = arith.addf %1204, %1213 : vector<16x16xf32>
    %c1_834 = arith.constant 1 : index
    %c17_835 = arith.constant 17 : index
    %1215 = memref.load %arg13[%c1_834, %c17_835] : memref<2x18xf32, #tpu.memory_space<smem>>
    %1216 = vector.broadcast %1215 : f32 to vector<16x16xf32>
    %1217 = arith.mulf %1216, %1210 : vector<16x16xf32>
    %1218 = arith.addf %1208, %1217 : vector<16x16xf32>
    %c0_836 = arith.constant 0 : index
    %1219 = memref.load %arg14[%c0_836] : memref<2xf32, #tpu.memory_space<smem>>
    %1220 = vector.broadcast %1219 : f32 to vector<16x16xf32>
    %1221 = arith.addf %1214, %1220 : vector<16x16xf32>
    %c1_837 = arith.constant 1 : index
    %1222 = memref.load %arg14[%c1_837] : memref<2xf32, #tpu.memory_space<smem>>
    %1223 = vector.broadcast %1222 : f32 to vector<16x16xf32>
    %1224 = arith.addf %1218, %1223 : vector<16x16xf32>
    %1225 = arith.mulf %76, %647 : vector<16x16xf32>
    %1226 = arith.truncf %1225 : vector<16x16xf32> to vector<16x16xbf16>
    %1227 = arith.truncf %1221 : vector<16x16xf32> to vector<16x16xbf16>
    %cst_838 = arith.constant dense<0.000000e+00> : vector<16x16xf32>
    %1228 = tpu.matmul %1226, %1227, %cst_838 {dimension_numbers = #tpu.dot_dimension_numbers<[1], [0], [0], [1], [0, 0, 1, 1], [], []>} : vector<16x16xbf16>, vector<16x16xbf16>, vector<16x16xf32> -> vector<16x16xf32>
    %1229 = arith.mulf %76, %650 : vector<16x16xf32>
    %1230 = arith.truncf %1229 : vector<16x16xf32> to vector<16x16xbf16>
    %1231 = arith.truncf %1224 : vector<16x16xf32> to vector<16x16xbf16>
    %cst_839 = arith.constant dense<0.000000e+00> : vector<16x16xf32>
    %1232 = tpu.matmul %1230, %1231, %cst_839 {dimension_numbers = #tpu.dot_dimension_numbers<[1], [0], [0], [1], [0, 0, 1, 1], [], []>} : vector<16x16xbf16>, vector<16x16xbf16>, vector<16x16xf32> -> vector<16x16xf32>
    %c0_840 = arith.constant 0 : index
    %c1_841 = arith.constant 1 : index
    %c1_842 = arith.constant 1 : index
    %1233 = vector.load %arg19[%c0_840, %c1_841, %c1_842] : memref<2x18x18xf32, #tpu.memory_space<vmem>>, vector<1x16x16xf32>
    %1234 = vector.shape_cast %1233 : vector<1x16x16xf32> to vector<16x16xf32>
    %1235 = vector.shape_cast %1228 : vector<16x16xf32> to vector<1x16x16xf32>
    tpu.vector_store %arg19[%c0_840, %c1_841, %c1_842], %1235 {strides = array<i32>} : memref<2x18x18xf32, #tpu.memory_space<vmem>>, vector<1x16x16xf32>,
    %c1_843 = arith.constant 1 : index
    %c1_844 = arith.constant 1 : index
    %c1_845 = arith.constant 1 : index
    %1236 = vector.load %arg19[%c1_843, %c1_844, %c1_845] : memref<2x18x18xf32, #tpu.memory_space<vmem>>, vector<1x16x16xf32>
    %1237 = vector.shape_cast %1236 : vector<1x16x16xf32> to vector<16x16xf32>
    %1238 = vector.shape_cast %1232 : vector<16x16xf32> to vector<1x16x16xf32>
    tpu.vector_store %arg19[%c1_843, %c1_844, %c1_845], %1238 {strides = array<i32>} : memref<2x18x18xf32, #tpu.memory_space<vmem>>, vector<1x16x16xf32>,
    %cst_846 = arith.constant 0.000000e+00 : f32
    %1239 = vector.broadcast %cst_846 : f32 to vector<16x16xf32>
    %cst_847 = arith.constant 0.000000e+00 : f32
    %1240 = vector.broadcast %cst_847 : f32 to vector<16x16xf32>
    %cst_848 = arith.constant 0.000000e+00 : f32
    %1241 = vector.broadcast %cst_848 : f32 to vector<16x16xf32>
    %cst_849 = arith.constant 0.000000e+00 : f32
    %1242 = vector.broadcast %cst_849 : f32 to vector<16x16xf32>
    %c0_850 = arith.constant 0 : index
    %c0_851 = arith.constant 0 : index
    %c0_852 = arith.constant 0 : index
    %1243 = vector.load %arg19[%c0_850, %c0_851, %c0_852] : memref<2x18x18xf32, #tpu.memory_space<vmem>>, vector<1x16x16xf32>
    %1244 = vector.shape_cast %1243 : vector<1x16x16xf32> to vector<16x16xf32>
    %c0_853 = arith.constant 0 : index
    %c0_854 = arith.constant 0 : index
    %1245 = memref.load %arg15[%c0_853, %c0_854] : memref<4x18xf32, #tpu.memory_space<smem>>
    %1246 = vector.broadcast %1245 : f32 to vector<16x16xf32>
    %1247 = arith.mulf %1246, %1244 : vector<16x16xf32>
    %1248 = arith.addf %1239, %1247 : vector<16x16xf32>
    %c1_855 = arith.constant 1 : index
    %c0_856 = arith.constant 0 : index
    %1249 = memref.load %arg15[%c1_855, %c0_856] : memref<4x18xf32, #tpu.memory_space<smem>>
    %1250 = vector.broadcast %1249 : f32 to vector<16x16xf32>
    %1251 = arith.mulf %1250, %1244 : vector<16x16xf32>
    %1252 = arith.addf %1240, %1251 : vector<16x16xf32>
    %c2_857 = arith.constant 2 : index
    %c0_858 = arith.constant 0 : index
    %1253 = memref.load %arg15[%c2_857, %c0_858] : memref<4x18xf32, #tpu.memory_space<smem>>
    %1254 = vector.broadcast %1253 : f32 to vector<16x16xf32>
    %1255 = arith.mulf %1254, %1244 : vector<16x16xf32>
    %1256 = arith.addf %1241, %1255 : vector<16x16xf32>
    %c3_859 = arith.constant 3 : index
    %c0_860 = arith.constant 0 : index
    %1257 = memref.load %arg15[%c3_859, %c0_860] : memref<4x18xf32, #tpu.memory_space<smem>>
    %1258 = vector.broadcast %1257 : f32 to vector<16x16xf32>
    %1259 = arith.mulf %1258, %1244 : vector<16x16xf32>
    %1260 = arith.addf %1242, %1259 : vector<16x16xf32>
    %c0_861 = arith.constant 0 : index
    %c0_862 = arith.constant 0 : index
    %c1_863 = arith.constant 1 : index
    %1261 = vector.load %arg19[%c0_861, %c0_862, %c1_863] : memref<2x18x18xf32, #tpu.memory_space<vmem>>, vector<1x16x16xf32>
    %1262 = vector.shape_cast %1261 : vector<1x16x16xf32> to vector<16x16xf32>
    %c0_864 = arith.constant 0 : index
    %c1_865 = arith.constant 1 : index
    %1263 = memref.load %arg15[%c0_864, %c1_865] : memref<4x18xf32, #tpu.memory_space<smem>>
    %1264 = vector.broadcast %1263 : f32 to vector<16x16xf32>
    %1265 = arith.mulf %1264, %1262 : vector<16x16xf32>
    %1266 = arith.addf %1248, %1265 : vector<16x16xf32>
    %c1_866 = arith.constant 1 : index
    %c1_867 = arith.constant 1 : index
    %1267 = memref.load %arg15[%c1_866, %c1_867] : memref<4x18xf32, #tpu.memory_space<smem>>
    %1268 = vector.broadcast %1267 : f32 to vector<16x16xf32>
    %1269 = arith.mulf %1268, %1262 : vector<16x16xf32>
    %1270 = arith.addf %1252, %1269 : vector<16x16xf32>
    %c2_868 = arith.constant 2 : index
    %c1_869 = arith.constant 1 : index
    %1271 = memref.load %arg15[%c2_868, %c1_869] : memref<4x18xf32, #tpu.memory_space<smem>>
    %1272 = vector.broadcast %1271 : f32 to vector<16x16xf32>
    %1273 = arith.mulf %1272, %1262 : vector<16x16xf32>
    %1274 = arith.addf %1256, %1273 : vector<16x16xf32>
    %c3_870 = arith.constant 3 : index
    %c1_871 = arith.constant 1 : index
    %1275 = memref.load %arg15[%c3_870, %c1_871] : memref<4x18xf32, #tpu.memory_space<smem>>
    %1276 = vector.broadcast %1275 : f32 to vector<16x16xf32>
    %1277 = arith.mulf %1276, %1262 : vector<16x16xf32>
    %1278 = arith.addf %1260, %1277 : vector<16x16xf32>
    %c0_872 = arith.constant 0 : index
    %c0_873 = arith.constant 0 : index
    %c2_874 = arith.constant 2 : index
    %1279 = vector.load %arg19[%c0_872, %c0_873, %c2_874] : memref<2x18x18xf32, #tpu.memory_space<vmem>>, vector<1x16x16xf32>
    %1280 = vector.shape_cast %1279 : vector<1x16x16xf32> to vector<16x16xf32>
    %c0_875 = arith.constant 0 : index
    %c2_876 = arith.constant 2 : index
    %1281 = memref.load %arg15[%c0_875, %c2_876] : memref<4x18xf32, #tpu.memory_space<smem>>
    %1282 = vector.broadcast %1281 : f32 to vector<16x16xf32>
    %1283 = arith.mulf %1282, %1280 : vector<16x16xf32>
    %1284 = arith.addf %1266, %1283 : vector<16x16xf32>
    %c1_877 = arith.constant 1 : index
    %c2_878 = arith.constant 2 : index
    %1285 = memref.load %arg15[%c1_877, %c2_878] : memref<4x18xf32, #tpu.memory_space<smem>>
    %1286 = vector.broadcast %1285 : f32 to vector<16x16xf32>
    %1287 = arith.mulf %1286, %1280 : vector<16x16xf32>
    %1288 = arith.addf %1270, %1287 : vector<16x16xf32>
    %c2_879 = arith.constant 2 : index
    %c2_880 = arith.constant 2 : index
    %1289 = memref.load %arg15[%c2_879, %c2_880] : memref<4x18xf32, #tpu.memory_space<smem>>
    %1290 = vector.broadcast %1289 : f32 to vector<16x16xf32>
    %1291 = arith.mulf %1290, %1280 : vector<16x16xf32>
    %1292 = arith.addf %1274, %1291 : vector<16x16xf32>
    %c3_881 = arith.constant 3 : index
    %c2_882 = arith.constant 2 : index
    %1293 = memref.load %arg15[%c3_881, %c2_882] : memref<4x18xf32, #tpu.memory_space<smem>>
    %1294 = vector.broadcast %1293 : f32 to vector<16x16xf32>
    %1295 = arith.mulf %1294, %1280 : vector<16x16xf32>
    %1296 = arith.addf %1278, %1295 : vector<16x16xf32>
    %c0_883 = arith.constant 0 : index
    %c1_884 = arith.constant 1 : index
    %c0_885 = arith.constant 0 : index
    %1297 = vector.load %arg19[%c0_883, %c1_884, %c0_885] : memref<2x18x18xf32, #tpu.memory_space<vmem>>, vector<1x16x16xf32>
    %1298 = vector.shape_cast %1297 : vector<1x16x16xf32> to vector<16x16xf32>
    %c0_886 = arith.constant 0 : index
    %c3_887 = arith.constant 3 : index
    %1299 = memref.load %arg15[%c0_886, %c3_887] : memref<4x18xf32, #tpu.memory_space<smem>>
    %1300 = vector.broadcast %1299 : f32 to vector<16x16xf32>
    %1301 = arith.mulf %1300, %1298 : vector<16x16xf32>
    %1302 = arith.addf %1284, %1301 : vector<16x16xf32>
    %c1_888 = arith.constant 1 : index
    %c3_889 = arith.constant 3 : index
    %1303 = memref.load %arg15[%c1_888, %c3_889] : memref<4x18xf32, #tpu.memory_space<smem>>
    %1304 = vector.broadcast %1303 : f32 to vector<16x16xf32>
    %1305 = arith.mulf %1304, %1298 : vector<16x16xf32>
    %1306 = arith.addf %1288, %1305 : vector<16x16xf32>
    %c2_890 = arith.constant 2 : index
    %c3_891 = arith.constant 3 : index
    %1307 = memref.load %arg15[%c2_890, %c3_891] : memref<4x18xf32, #tpu.memory_space<smem>>
    %1308 = vector.broadcast %1307 : f32 to vector<16x16xf32>
    %1309 = arith.mulf %1308, %1298 : vector<16x16xf32>
    %1310 = arith.addf %1292, %1309 : vector<16x16xf32>
    %c3_892 = arith.constant 3 : index
    %c3_893 = arith.constant 3 : index
    %1311 = memref.load %arg15[%c3_892, %c3_893] : memref<4x18xf32, #tpu.memory_space<smem>>
    %1312 = vector.broadcast %1311 : f32 to vector<16x16xf32>
    %1313 = arith.mulf %1312, %1298 : vector<16x16xf32>
    %1314 = arith.addf %1296, %1313 : vector<16x16xf32>
    %c0_894 = arith.constant 0 : index
    %c1_895 = arith.constant 1 : index
    %c1_896 = arith.constant 1 : index
    %1315 = vector.load %arg19[%c0_894, %c1_895, %c1_896] : memref<2x18x18xf32, #tpu.memory_space<vmem>>, vector<1x16x16xf32>
    %1316 = vector.shape_cast %1315 : vector<1x16x16xf32> to vector<16x16xf32>
    %c0_897 = arith.constant 0 : index
    %c4_898 = arith.constant 4 : index
    %1317 = memref.load %arg15[%c0_897, %c4_898] : memref<4x18xf32, #tpu.memory_space<smem>>
    %1318 = vector.broadcast %1317 : f32 to vector<16x16xf32>
    %1319 = arith.mulf %1318, %1316 : vector<16x16xf32>
    %1320 = arith.addf %1302, %1319 : vector<16x16xf32>
    %c1_899 = arith.constant 1 : index
    %c4_900 = arith.constant 4 : index
    %1321 = memref.load %arg15[%c1_899, %c4_900] : memref<4x18xf32, #tpu.memory_space<smem>>
    %1322 = vector.broadcast %1321 : f32 to vector<16x16xf32>
    %1323 = arith.mulf %1322, %1316 : vector<16x16xf32>
    %1324 = arith.addf %1306, %1323 : vector<16x16xf32>
    %c2_901 = arith.constant 2 : index
    %c4_902 = arith.constant 4 : index
    %1325 = memref.load %arg15[%c2_901, %c4_902] : memref<4x18xf32, #tpu.memory_space<smem>>
    %1326 = vector.broadcast %1325 : f32 to vector<16x16xf32>
    %1327 = arith.mulf %1326, %1316 : vector<16x16xf32>
    %1328 = arith.addf %1310, %1327 : vector<16x16xf32>
    %c3_903 = arith.constant 3 : index
    %c4_904 = arith.constant 4 : index
    %1329 = memref.load %arg15[%c3_903, %c4_904] : memref<4x18xf32, #tpu.memory_space<smem>>
    %1330 = vector.broadcast %1329 : f32 to vector<16x16xf32>
    %1331 = arith.mulf %1330, %1316 : vector<16x16xf32>
    %1332 = arith.addf %1314, %1331 : vector<16x16xf32>
    %c0_905 = arith.constant 0 : index
    %c1_906 = arith.constant 1 : index
    %c2_907 = arith.constant 2 : index
    %1333 = vector.load %arg19[%c0_905, %c1_906, %c2_907] : memref<2x18x18xf32, #tpu.memory_space<vmem>>, vector<1x16x16xf32>
    %1334 = vector.shape_cast %1333 : vector<1x16x16xf32> to vector<16x16xf32>
    %c0_908 = arith.constant 0 : index
    %c5_909 = arith.constant 5 : index
    %1335 = memref.load %arg15[%c0_908, %c5_909] : memref<4x18xf32, #tpu.memory_space<smem>>
    %1336 = vector.broadcast %1335 : f32 to vector<16x16xf32>
    %1337 = arith.mulf %1336, %1334 : vector<16x16xf32>
    %1338 = arith.addf %1320, %1337 : vector<16x16xf32>
    %c1_910 = arith.constant 1 : index
    %c5_911 = arith.constant 5 : index
    %1339 = memref.load %arg15[%c1_910, %c5_911] : memref<4x18xf32, #tpu.memory_space<smem>>
    %1340 = vector.broadcast %1339 : f32 to vector<16x16xf32>
    %1341 = arith.mulf %1340, %1334 : vector<16x16xf32>
    %1342 = arith.addf %1324, %1341 : vector<16x16xf32>
    %c2_912 = arith.constant 2 : index
    %c5_913 = arith.constant 5 : index
    %1343 = memref.load %arg15[%c2_912, %c5_913] : memref<4x18xf32, #tpu.memory_space<smem>>
    %1344 = vector.broadcast %1343 : f32 to vector<16x16xf32>
    %1345 = arith.mulf %1344, %1334 : vector<16x16xf32>
    %1346 = arith.addf %1328, %1345 : vector<16x16xf32>
    %c3_914 = arith.constant 3 : index
    %c5_915 = arith.constant 5 : index
    %1347 = memref.load %arg15[%c3_914, %c5_915] : memref<4x18xf32, #tpu.memory_space<smem>>
    %1348 = vector.broadcast %1347 : f32 to vector<16x16xf32>
    %1349 = arith.mulf %1348, %1334 : vector<16x16xf32>
    %1350 = arith.addf %1332, %1349 : vector<16x16xf32>
    %c0_916 = arith.constant 0 : index
    %c2_917 = arith.constant 2 : index
    %c0_918 = arith.constant 0 : index
    %1351 = vector.load %arg19[%c0_916, %c2_917, %c0_918] : memref<2x18x18xf32, #tpu.memory_space<vmem>>, vector<1x16x16xf32>
    %1352 = vector.shape_cast %1351 : vector<1x16x16xf32> to vector<16x16xf32>
    %c0_919 = arith.constant 0 : index
    %c6_920 = arith.constant 6 : index
    %1353 = memref.load %arg15[%c0_919, %c6_920] : memref<4x18xf32, #tpu.memory_space<smem>>
    %1354 = vector.broadcast %1353 : f32 to vector<16x16xf32>
    %1355 = arith.mulf %1354, %1352 : vector<16x16xf32>
    %1356 = arith.addf %1338, %1355 : vector<16x16xf32>
    %c1_921 = arith.constant 1 : index
    %c6_922 = arith.constant 6 : index
    %1357 = memref.load %arg15[%c1_921, %c6_922] : memref<4x18xf32, #tpu.memory_space<smem>>
    %1358 = vector.broadcast %1357 : f32 to vector<16x16xf32>
    %1359 = arith.mulf %1358, %1352 : vector<16x16xf32>
    %1360 = arith.addf %1342, %1359 : vector<16x16xf32>
    %c2_923 = arith.constant 2 : index
    %c6_924 = arith.constant 6 : index
    %1361 = memref.load %arg15[%c2_923, %c6_924] : memref<4x18xf32, #tpu.memory_space<smem>>
    %1362 = vector.broadcast %1361 : f32 to vector<16x16xf32>
    %1363 = arith.mulf %1362, %1352 : vector<16x16xf32>
    %1364 = arith.addf %1346, %1363 : vector<16x16xf32>
    %c3_925 = arith.constant 3 : index
    %c6_926 = arith.constant 6 : index
    %1365 = memref.load %arg15[%c3_925, %c6_926] : memref<4x18xf32, #tpu.memory_space<smem>>
    %1366 = vector.broadcast %1365 : f32 to vector<16x16xf32>
    %1367 = arith.mulf %1366, %1352 : vector<16x16xf32>
    %1368 = arith.addf %1350, %1367 : vector<16x16xf32>
    %c0_927 = arith.constant 0 : index
    %c2_928 = arith.constant 2 : index
    %c1_929 = arith.constant 1 : index
    %1369 = vector.load %arg19[%c0_927, %c2_928, %c1_929] : memref<2x18x18xf32, #tpu.memory_space<vmem>>, vector<1x16x16xf32>
    %1370 = vector.shape_cast %1369 : vector<1x16x16xf32> to vector<16x16xf32>
    %c0_930 = arith.constant 0 : index
    %c7_931 = arith.constant 7 : index
    %1371 = memref.load %arg15[%c0_930, %c7_931] : memref<4x18xf32, #tpu.memory_space<smem>>
    %1372 = vector.broadcast %1371 : f32 to vector<16x16xf32>
    %1373 = arith.mulf %1372, %1370 : vector<16x16xf32>
    %1374 = arith.addf %1356, %1373 : vector<16x16xf32>
    %c1_932 = arith.constant 1 : index
    %c7_933 = arith.constant 7 : index
    %1375 = memref.load %arg15[%c1_932, %c7_933] : memref<4x18xf32, #tpu.memory_space<smem>>
    %1376 = vector.broadcast %1375 : f32 to vector<16x16xf32>
    %1377 = arith.mulf %1376, %1370 : vector<16x16xf32>
    %1378 = arith.addf %1360, %1377 : vector<16x16xf32>
    %c2_934 = arith.constant 2 : index
    %c7_935 = arith.constant 7 : index
    %1379 = memref.load %arg15[%c2_934, %c7_935] : memref<4x18xf32, #tpu.memory_space<smem>>
    %1380 = vector.broadcast %1379 : f32 to vector<16x16xf32>
    %1381 = arith.mulf %1380, %1370 : vector<16x16xf32>
    %1382 = arith.addf %1364, %1381 : vector<16x16xf32>
    %c3_936 = arith.constant 3 : index
    %c7_937 = arith.constant 7 : index
    %1383 = memref.load %arg15[%c3_936, %c7_937] : memref<4x18xf32, #tpu.memory_space<smem>>
    %1384 = vector.broadcast %1383 : f32 to vector<16x16xf32>
    %1385 = arith.mulf %1384, %1370 : vector<16x16xf32>
    %1386 = arith.addf %1368, %1385 : vector<16x16xf32>
    %c0_938 = arith.constant 0 : index
    %c2_939 = arith.constant 2 : index
    %c2_940 = arith.constant 2 : index
    %1387 = vector.load %arg19[%c0_938, %c2_939, %c2_940] : memref<2x18x18xf32, #tpu.memory_space<vmem>>, vector<1x16x16xf32>
    %1388 = vector.shape_cast %1387 : vector<1x16x16xf32> to vector<16x16xf32>
    %c0_941 = arith.constant 0 : index
    %c8_942 = arith.constant 8 : index
    %1389 = memref.load %arg15[%c0_941, %c8_942] : memref<4x18xf32, #tpu.memory_space<smem>>
    %1390 = vector.broadcast %1389 : f32 to vector<16x16xf32>
    %1391 = arith.mulf %1390, %1388 : vector<16x16xf32>
    %1392 = arith.addf %1374, %1391 : vector<16x16xf32>
    %c1_943 = arith.constant 1 : index
    %c8_944 = arith.constant 8 : index
    %1393 = memref.load %arg15[%c1_943, %c8_944] : memref<4x18xf32, #tpu.memory_space<smem>>
    %1394 = vector.broadcast %1393 : f32 to vector<16x16xf32>
    %1395 = arith.mulf %1394, %1388 : vector<16x16xf32>
    %1396 = arith.addf %1378, %1395 : vector<16x16xf32>
    %c2_945 = arith.constant 2 : index
    %c8_946 = arith.constant 8 : index
    %1397 = memref.load %arg15[%c2_945, %c8_946] : memref<4x18xf32, #tpu.memory_space<smem>>
    %1398 = vector.broadcast %1397 : f32 to vector<16x16xf32>
    %1399 = arith.mulf %1398, %1388 : vector<16x16xf32>
    %1400 = arith.addf %1382, %1399 : vector<16x16xf32>
    %c3_947 = arith.constant 3 : index
    %c8_948 = arith.constant 8 : index
    %1401 = memref.load %arg15[%c3_947, %c8_948] : memref<4x18xf32, #tpu.memory_space<smem>>
    %1402 = vector.broadcast %1401 : f32 to vector<16x16xf32>
    %1403 = arith.mulf %1402, %1388 : vector<16x16xf32>
    %1404 = arith.addf %1386, %1403 : vector<16x16xf32>
    %c1_949 = arith.constant 1 : index
    %c0_950 = arith.constant 0 : index
    %c0_951 = arith.constant 0 : index
    %1405 = vector.load %arg19[%c1_949, %c0_950, %c0_951] : memref<2x18x18xf32, #tpu.memory_space<vmem>>, vector<1x16x16xf32>
    %1406 = vector.shape_cast %1405 : vector<1x16x16xf32> to vector<16x16xf32>
    %c0_952 = arith.constant 0 : index
    %c9_953 = arith.constant 9 : index
    %1407 = memref.load %arg15[%c0_952, %c9_953] : memref<4x18xf32, #tpu.memory_space<smem>>
    %1408 = vector.broadcast %1407 : f32 to vector<16x16xf32>
    %1409 = arith.mulf %1408, %1406 : vector<16x16xf32>
    %1410 = arith.addf %1392, %1409 : vector<16x16xf32>
    %c1_954 = arith.constant 1 : index
    %c9_955 = arith.constant 9 : index
    %1411 = memref.load %arg15[%c1_954, %c9_955] : memref<4x18xf32, #tpu.memory_space<smem>>
    %1412 = vector.broadcast %1411 : f32 to vector<16x16xf32>
    %1413 = arith.mulf %1412, %1406 : vector<16x16xf32>
    %1414 = arith.addf %1396, %1413 : vector<16x16xf32>
    %c2_956 = arith.constant 2 : index
    %c9_957 = arith.constant 9 : index
    %1415 = memref.load %arg15[%c2_956, %c9_957] : memref<4x18xf32, #tpu.memory_space<smem>>
    %1416 = vector.broadcast %1415 : f32 to vector<16x16xf32>
    %1417 = arith.mulf %1416, %1406 : vector<16x16xf32>
    %1418 = arith.addf %1400, %1417 : vector<16x16xf32>
    %c3_958 = arith.constant 3 : index
    %c9_959 = arith.constant 9 : index
    %1419 = memref.load %arg15[%c3_958, %c9_959] : memref<4x18xf32, #tpu.memory_space<smem>>
    %1420 = vector.broadcast %1419 : f32 to vector<16x16xf32>
    %1421 = arith.mulf %1420, %1406 : vector<16x16xf32>
    %1422 = arith.addf %1404, %1421 : vector<16x16xf32>
    %c1_960 = arith.constant 1 : index
    %c0_961 = arith.constant 0 : index
    %c1_962 = arith.constant 1 : index
    %1423 = vector.load %arg19[%c1_960, %c0_961, %c1_962] : memref<2x18x18xf32, #tpu.memory_space<vmem>>, vector<1x16x16xf32>
    %1424 = vector.shape_cast %1423 : vector<1x16x16xf32> to vector<16x16xf32>
    %c0_963 = arith.constant 0 : index
    %c10_964 = arith.constant 10 : index
    %1425 = memref.load %arg15[%c0_963, %c10_964] : memref<4x18xf32, #tpu.memory_space<smem>>
    %1426 = vector.broadcast %1425 : f32 to vector<16x16xf32>
    %1427 = arith.mulf %1426, %1424 : vector<16x16xf32>
    %1428 = arith.addf %1410, %1427 : vector<16x16xf32>
    %c1_965 = arith.constant 1 : index
    %c10_966 = arith.constant 10 : index
    %1429 = memref.load %arg15[%c1_965, %c10_966] : memref<4x18xf32, #tpu.memory_space<smem>>
    %1430 = vector.broadcast %1429 : f32 to vector<16x16xf32>
    %1431 = arith.mulf %1430, %1424 : vector<16x16xf32>
    %1432 = arith.addf %1414, %1431 : vector<16x16xf32>
    %c2_967 = arith.constant 2 : index
    %c10_968 = arith.constant 10 : index
    %1433 = memref.load %arg15[%c2_967, %c10_968] : memref<4x18xf32, #tpu.memory_space<smem>>
    %1434 = vector.broadcast %1433 : f32 to vector<16x16xf32>
    %1435 = arith.mulf %1434, %1424 : vector<16x16xf32>
    %1436 = arith.addf %1418, %1435 : vector<16x16xf32>
    %c3_969 = arith.constant 3 : index
    %c10_970 = arith.constant 10 : index
    %1437 = memref.load %arg15[%c3_969, %c10_970] : memref<4x18xf32, #tpu.memory_space<smem>>
    %1438 = vector.broadcast %1437 : f32 to vector<16x16xf32>
    %1439 = arith.mulf %1438, %1424 : vector<16x16xf32>
    %1440 = arith.addf %1422, %1439 : vector<16x16xf32>
    %c1_971 = arith.constant 1 : index
    %c0_972 = arith.constant 0 : index
    %c2_973 = arith.constant 2 : index
    %1441 = vector.load %arg19[%c1_971, %c0_972, %c2_973] : memref<2x18x18xf32, #tpu.memory_space<vmem>>, vector<1x16x16xf32>
    %1442 = vector.shape_cast %1441 : vector<1x16x16xf32> to vector<16x16xf32>
    %c0_974 = arith.constant 0 : index
    %c11_975 = arith.constant 11 : index
    %1443 = memref.load %arg15[%c0_974, %c11_975] : memref<4x18xf32, #tpu.memory_space<smem>>
    %1444 = vector.broadcast %1443 : f32 to vector<16x16xf32>
    %1445 = arith.mulf %1444, %1442 : vector<16x16xf32>
    %1446 = arith.addf %1428, %1445 : vector<16x16xf32>
    %c1_976 = arith.constant 1 : index
    %c11_977 = arith.constant 11 : index
    %1447 = memref.load %arg15[%c1_976, %c11_977] : memref<4x18xf32, #tpu.memory_space<smem>>
    %1448 = vector.broadcast %1447 : f32 to vector<16x16xf32>
    %1449 = arith.mulf %1448, %1442 : vector<16x16xf32>
    %1450 = arith.addf %1432, %1449 : vector<16x16xf32>
    %c2_978 = arith.constant 2 : index
    %c11_979 = arith.constant 11 : index
    %1451 = memref.load %arg15[%c2_978, %c11_979] : memref<4x18xf32, #tpu.memory_space<smem>>
    %1452 = vector.broadcast %1451 : f32 to vector<16x16xf32>
    %1453 = arith.mulf %1452, %1442 : vector<16x16xf32>
    %1454 = arith.addf %1436, %1453 : vector<16x16xf32>
    %c3_980 = arith.constant 3 : index
    %c11_981 = arith.constant 11 : index
    %1455 = memref.load %arg15[%c3_980, %c11_981] : memref<4x18xf32, #tpu.memory_space<smem>>
    %1456 = vector.broadcast %1455 : f32 to vector<16x16xf32>
    %1457 = arith.mulf %1456, %1442 : vector<16x16xf32>
    %1458 = arith.addf %1440, %1457 : vector<16x16xf32>
    %c1_982 = arith.constant 1 : index
    %c1_983 = arith.constant 1 : index
    %c0_984 = arith.constant 0 : index
    %1459 = vector.load %arg19[%c1_982, %c1_983, %c0_984] : memref<2x18x18xf32, #tpu.memory_space<vmem>>, vector<1x16x16xf32>
    %1460 = vector.shape_cast %1459 : vector<1x16x16xf32> to vector<16x16xf32>
    %c0_985 = arith.constant 0 : index
    %c12_986 = arith.constant 12 : index
    %1461 = memref.load %arg15[%c0_985, %c12_986] : memref<4x18xf32, #tpu.memory_space<smem>>
    %1462 = vector.broadcast %1461 : f32 to vector<16x16xf32>
    %1463 = arith.mulf %1462, %1460 : vector<16x16xf32>
    %1464 = arith.addf %1446, %1463 : vector<16x16xf32>
    %c1_987 = arith.constant 1 : index
    %c12_988 = arith.constant 12 : index
    %1465 = memref.load %arg15[%c1_987, %c12_988] : memref<4x18xf32, #tpu.memory_space<smem>>
    %1466 = vector.broadcast %1465 : f32 to vector<16x16xf32>
    %1467 = arith.mulf %1466, %1460 : vector<16x16xf32>
    %1468 = arith.addf %1450, %1467 : vector<16x16xf32>
    %c2_989 = arith.constant 2 : index
    %c12_990 = arith.constant 12 : index
    %1469 = memref.load %arg15[%c2_989, %c12_990] : memref<4x18xf32, #tpu.memory_space<smem>>
    %1470 = vector.broadcast %1469 : f32 to vector<16x16xf32>
    %1471 = arith.mulf %1470, %1460 : vector<16x16xf32>
    %1472 = arith.addf %1454, %1471 : vector<16x16xf32>
    %c3_991 = arith.constant 3 : index
    %c12_992 = arith.constant 12 : index
    %1473 = memref.load %arg15[%c3_991, %c12_992] : memref<4x18xf32, #tpu.memory_space<smem>>
    %1474 = vector.broadcast %1473 : f32 to vector<16x16xf32>
    %1475 = arith.mulf %1474, %1460 : vector<16x16xf32>
    %1476 = arith.addf %1458, %1475 : vector<16x16xf32>
    %c1_993 = arith.constant 1 : index
    %c1_994 = arith.constant 1 : index
    %c1_995 = arith.constant 1 : index
    %1477 = vector.load %arg19[%c1_993, %c1_994, %c1_995] : memref<2x18x18xf32, #tpu.memory_space<vmem>>, vector<1x16x16xf32>
    %1478 = vector.shape_cast %1477 : vector<1x16x16xf32> to vector<16x16xf32>
    %c0_996 = arith.constant 0 : index
    %c13_997 = arith.constant 13 : index
    %1479 = memref.load %arg15[%c0_996, %c13_997] : memref<4x18xf32, #tpu.memory_space<smem>>
    %1480 = vector.broadcast %1479 : f32 to vector<16x16xf32>
    %1481 = arith.mulf %1480, %1478 : vector<16x16xf32>
    %1482 = arith.addf %1464, %1481 : vector<16x16xf32>
    %c1_998 = arith.constant 1 : index
    %c13_999 = arith.constant 13 : index
    %1483 = memref.load %arg15[%c1_998, %c13_999] : memref<4x18xf32, #tpu.memory_space<smem>>
    %1484 = vector.broadcast %1483 : f32 to vector<16x16xf32>
    %1485 = arith.mulf %1484, %1478 : vector<16x16xf32>
    %1486 = arith.addf %1468, %1485 : vector<16x16xf32>
    %c2_1000 = arith.constant 2 : index
    %c13_1001 = arith.constant 13 : index
    %1487 = memref.load %arg15[%c2_1000, %c13_1001] : memref<4x18xf32, #tpu.memory_space<smem>>
    %1488 = vector.broadcast %1487 : f32 to vector<16x16xf32>
    %1489 = arith.mulf %1488, %1478 : vector<16x16xf32>
    %1490 = arith.addf %1472, %1489 : vector<16x16xf32>
    %c3_1002 = arith.constant 3 : index
    %c13_1003 = arith.constant 13 : index
    %1491 = memref.load %arg15[%c3_1002, %c13_1003] : memref<4x18xf32, #tpu.memory_space<smem>>
    %1492 = vector.broadcast %1491 : f32 to vector<16x16xf32>
    %1493 = arith.mulf %1492, %1478 : vector<16x16xf32>
    %1494 = arith.addf %1476, %1493 : vector<16x16xf32>
    %c1_1004 = arith.constant 1 : index
    %c1_1005 = arith.constant 1 : index
    %c2_1006 = arith.constant 2 : index
    %1495 = vector.load %arg19[%c1_1004, %c1_1005, %c2_1006] : memref<2x18x18xf32, #tpu.memory_space<vmem>>, vector<1x16x16xf32>
    %1496 = vector.shape_cast %1495 : vector<1x16x16xf32> to vector<16x16xf32>
    %c0_1007 = arith.constant 0 : index
    %c14_1008 = arith.constant 14 : index
    %1497 = memref.load %arg15[%c0_1007, %c14_1008] : memref<4x18xf32, #tpu.memory_space<smem>>
    %1498 = vector.broadcast %1497 : f32 to vector<16x16xf32>
    %1499 = arith.mulf %1498, %1496 : vector<16x16xf32>
    %1500 = arith.addf %1482, %1499 : vector<16x16xf32>
    %c1_1009 = arith.constant 1 : index
    %c14_1010 = arith.constant 14 : index
    %1501 = memref.load %arg15[%c1_1009, %c14_1010] : memref<4x18xf32, #tpu.memory_space<smem>>
    %1502 = vector.broadcast %1501 : f32 to vector<16x16xf32>
    %1503 = arith.mulf %1502, %1496 : vector<16x16xf32>
    %1504 = arith.addf %1486, %1503 : vector<16x16xf32>
    %c2_1011 = arith.constant 2 : index
    %c14_1012 = arith.constant 14 : index
    %1505 = memref.load %arg15[%c2_1011, %c14_1012] : memref<4x18xf32, #tpu.memory_space<smem>>
    %1506 = vector.broadcast %1505 : f32 to vector<16x16xf32>
    %1507 = arith.mulf %1506, %1496 : vector<16x16xf32>
    %1508 = arith.addf %1490, %1507 : vector<16x16xf32>
    %c3_1013 = arith.constant 3 : index
    %c14_1014 = arith.constant 14 : index
    %1509 = memref.load %arg15[%c3_1013, %c14_1014] : memref<4x18xf32, #tpu.memory_space<smem>>
    %1510 = vector.broadcast %1509 : f32 to vector<16x16xf32>
    %1511 = arith.mulf %1510, %1496 : vector<16x16xf32>
    %1512 = arith.addf %1494, %1511 : vector<16x16xf32>
    %c1_1015 = arith.constant 1 : index
    %c2_1016 = arith.constant 2 : index
    %c0_1017 = arith.constant 0 : index
    %1513 = vector.load %arg19[%c1_1015, %c2_1016, %c0_1017] : memref<2x18x18xf32, #tpu.memory_space<vmem>>, vector<1x16x16xf32>
    %1514 = vector.shape_cast %1513 : vector<1x16x16xf32> to vector<16x16xf32>
    %c0_1018 = arith.constant 0 : index
    %c15_1019 = arith.constant 15 : index
    %1515 = memref.load %arg15[%c0_1018, %c15_1019] : memref<4x18xf32, #tpu.memory_space<smem>>
    %1516 = vector.broadcast %1515 : f32 to vector<16x16xf32>
    %1517 = arith.mulf %1516, %1514 : vector<16x16xf32>
    %1518 = arith.addf %1500, %1517 : vector<16x16xf32>
    %c1_1020 = arith.constant 1 : index
    %c15_1021 = arith.constant 15 : index
    %1519 = memref.load %arg15[%c1_1020, %c15_1021] : memref<4x18xf32, #tpu.memory_space<smem>>
    %1520 = vector.broadcast %1519 : f32 to vector<16x16xf32>
    %1521 = arith.mulf %1520, %1514 : vector<16x16xf32>
    %1522 = arith.addf %1504, %1521 : vector<16x16xf32>
    %c2_1022 = arith.constant 2 : index
    %c15_1023 = arith.constant 15 : index
    %1523 = memref.load %arg15[%c2_1022, %c15_1023] : memref<4x18xf32, #tpu.memory_space<smem>>
    %1524 = vector.broadcast %1523 : f32 to vector<16x16xf32>
    %1525 = arith.mulf %1524, %1514 : vector<16x16xf32>
    %1526 = arith.addf %1508, %1525 : vector<16x16xf32>
    %c3_1024 = arith.constant 3 : index
    %c15_1025 = arith.constant 15 : index
    %1527 = memref.load %arg15[%c3_1024, %c15_1025] : memref<4x18xf32, #tpu.memory_space<smem>>
    %1528 = vector.broadcast %1527 : f32 to vector<16x16xf32>
    %1529 = arith.mulf %1528, %1514 : vector<16x16xf32>
    %1530 = arith.addf %1512, %1529 : vector<16x16xf32>
    %c1_1026 = arith.constant 1 : index
    %c2_1027 = arith.constant 2 : index
    %c1_1028 = arith.constant 1 : index
    %1531 = vector.load %arg19[%c1_1026, %c2_1027, %c1_1028] : memref<2x18x18xf32, #tpu.memory_space<vmem>>, vector<1x16x16xf32>
    %1532 = vector.shape_cast %1531 : vector<1x16x16xf32> to vector<16x16xf32>
    %c0_1029 = arith.constant 0 : index
    %c16_1030 = arith.constant 16 : index
    %1533 = memref.load %arg15[%c0_1029, %c16_1030] : memref<4x18xf32, #tpu.memory_space<smem>>
    %1534 = vector.broadcast %1533 : f32 to vector<16x16xf32>
    %1535 = arith.mulf %1534, %1532 : vector<16x16xf32>
    %1536 = arith.addf %1518, %1535 : vector<16x16xf32>
    %c1_1031 = arith.constant 1 : index
    %c16_1032 = arith.constant 16 : index
    %1537 = memref.load %arg15[%c1_1031, %c16_1032] : memref<4x18xf32, #tpu.memory_space<smem>>
    %1538 = vector.broadcast %1537 : f32 to vector<16x16xf32>
    %1539 = arith.mulf %1538, %1532 : vector<16x16xf32>
    %1540 = arith.addf %1522, %1539 : vector<16x16xf32>
    %c2_1033 = arith.constant 2 : index
    %c16_1034 = arith.constant 16 : index
    %1541 = memref.load %arg15[%c2_1033, %c16_1034] : memref<4x18xf32, #tpu.memory_space<smem>>
    %1542 = vector.broadcast %1541 : f32 to vector<16x16xf32>
    %1543 = arith.mulf %1542, %1532 : vector<16x16xf32>
    %1544 = arith.addf %1526, %1543 : vector<16x16xf32>
    %c3_1035 = arith.constant 3 : index
    %c16_1036 = arith.constant 16 : index
    %1545 = memref.load %arg15[%c3_1035, %c16_1036] : memref<4x18xf32, #tpu.memory_space<smem>>
    %1546 = vector.broadcast %1545 : f32 to vector<16x16xf32>
    %1547 = arith.mulf %1546, %1532 : vector<16x16xf32>
    %1548 = arith.addf %1530, %1547 : vector<16x16xf32>
    %c1_1037 = arith.constant 1 : index
    %c2_1038 = arith.constant 2 : index
    %c2_1039 = arith.constant 2 : index
    %1549 = vector.load %arg19[%c1_1037, %c2_1038, %c2_1039] : memref<2x18x18xf32, #tpu.memory_space<vmem>>, vector<1x16x16xf32>
    %1550 = vector.shape_cast %1549 : vector<1x16x16xf32> to vector<16x16xf32>
    %c0_1040 = arith.constant 0 : index
    %c17_1041 = arith.constant 17 : index
    %1551 = memref.load %arg15[%c0_1040, %c17_1041] : memref<4x18xf32, #tpu.memory_space<smem>>
    %1552 = vector.broadcast %1551 : f32 to vector<16x16xf32>
    %1553 = arith.mulf %1552, %1550 : vector<16x16xf32>
    %1554 = arith.addf %1536, %1553 : vector<16x16xf32>
    %c1_1042 = arith.constant 1 : index
    %c17_1043 = arith.constant 17 : index
    %1555 = memref.load %arg15[%c1_1042, %c17_1043] : memref<4x18xf32, #tpu.memory_space<smem>>
    %1556 = vector.broadcast %1555 : f32 to vector<16x16xf32>
    %1557 = arith.mulf %1556, %1550 : vector<16x16xf32>
    %1558 = arith.addf %1540, %1557 : vector<16x16xf32>
    %c2_1044 = arith.constant 2 : index
    %c17_1045 = arith.constant 17 : index
    %1559 = memref.load %arg15[%c2_1044, %c17_1045] : memref<4x18xf32, #tpu.memory_space<smem>>
    %1560 = vector.broadcast %1559 : f32 to vector<16x16xf32>
    %1561 = arith.mulf %1560, %1550 : vector<16x16xf32>
    %1562 = arith.addf %1544, %1561 : vector<16x16xf32>
    %c3_1046 = arith.constant 3 : index
    %c17_1047 = arith.constant 17 : index
    %1563 = memref.load %arg15[%c3_1046, %c17_1047] : memref<4x18xf32, #tpu.memory_space<smem>>
    %1564 = vector.broadcast %1563 : f32 to vector<16x16xf32>
    %1565 = arith.mulf %1564, %1550 : vector<16x16xf32>
    %1566 = arith.addf %1548, %1565 : vector<16x16xf32>
    %c0_1048 = arith.constant 0 : index
    %1567 = memref.load %arg16[%c0_1048] : memref<4xf32, #tpu.memory_space<smem>>
    %1568 = vector.broadcast %1567 : f32 to vector<16x16xf32>
    %1569 = arith.addf %1554, %1568 : vector<16x16xf32>
    %c1_1049 = arith.constant 1 : index
    %1570 = memref.load %arg16[%c1_1049] : memref<4xf32, #tpu.memory_space<smem>>
    %1571 = vector.broadcast %1570 : f32 to vector<16x16xf32>
    %1572 = arith.addf %1558, %1571 : vector<16x16xf32>
    %c2_1050 = arith.constant 2 : index
    %1573 = memref.load %arg16[%c2_1050] : memref<4xf32, #tpu.memory_space<smem>>
    %1574 = vector.broadcast %1573 : f32 to vector<16x16xf32>
    %1575 = arith.addf %1562, %1574 : vector<16x16xf32>
    %c3_1051 = arith.constant 3 : index
    %1576 = memref.load %arg16[%c3_1051] : memref<4xf32, #tpu.memory_space<smem>>
    %1577 = vector.broadcast %1576 : f32 to vector<16x16xf32>
    %1578 = arith.addf %1566, %1577 : vector<16x16xf32>
    %cst_1052 = arith.constant 0.000000e+00 : f32
    %1579 = vector.broadcast %cst_1052 : f32 to vector<16x16xf32>
    %1580 = arith.maximumf %1569, %1579 : vector<16x16xf32>
    %c0_1053 = arith.constant 0 : index
    %c0_1054 = arith.constant 0 : index
    %c0_1055 = arith.constant 0 : index
    %c0_1056 = arith.constant 0 : index
    %1581 = vector.load %arg17[%c0_1053, %c0_1054, %c0_1055, %c0_1056] : memref<1x4x16x16xf32, #tpu.memory_space<vmem>>, vector<1x1x16x16xf32>
    %1582 = vector.shape_cast %1581 : vector<1x1x16x16xf32> to vector<16x16xf32>
    %1583 = vector.shape_cast %1580 : vector<16x16xf32> to vector<1x1x16x16xf32>
    tpu.vector_store %arg17[%c0_1053, %c0_1054, %c0_1055, %c0_1056], %1583 {strides = array<i32>} : memref<1x4x16x16xf32, #tpu.memory_space<vmem>>, vector<1x1x16x16xf32>,
    %cst_1057 = arith.constant 0.000000e+00 : f32
    %1584 = vector.broadcast %cst_1057 : f32 to vector<16x16xf32>
    %1585 = arith.maximumf %1572, %1584 : vector<16x16xf32>
    %c0_1058 = arith.constant 0 : index
    %c1_1059 = arith.constant 1 : index
    %c0_1060 = arith.constant 0 : index
    %c0_1061 = arith.constant 0 : index
    %1586 = vector.load %arg17[%c0_1058, %c1_1059, %c0_1060, %c0_1061] : memref<1x4x16x16xf32, #tpu.memory_space<vmem>>, vector<1x1x16x16xf32>
    %1587 = vector.shape_cast %1586 : vector<1x1x16x16xf32> to vector<16x16xf32>
    %1588 = vector.shape_cast %1585 : vector<16x16xf32> to vector<1x1x16x16xf32>
    tpu.vector_store %arg17[%c0_1058, %c1_1059, %c0_1060, %c0_1061], %1588 {strides = array<i32>} : memref<1x4x16x16xf32, #tpu.memory_space<vmem>>, vector<1x1x16x16xf32>,
    %cst_1062 = arith.constant 0.000000e+00 : f32
    %1589 = vector.broadcast %cst_1062 : f32 to vector<16x16xf32>
    %1590 = arith.maximumf %1575, %1589 : vector<16x16xf32>
    %c0_1063 = arith.constant 0 : index
    %c2_1064 = arith.constant 2 : index
    %c0_1065 = arith.constant 0 : index
    %c0_1066 = arith.constant 0 : index
    %1591 = vector.load %arg17[%c0_1063, %c2_1064, %c0_1065, %c0_1066] : memref<1x4x16x16xf32, #tpu.memory_space<vmem>>, vector<1x1x16x16xf32>
    %1592 = vector.shape_cast %1591 : vector<1x1x16x16xf32> to vector<16x16xf32>
    %1593 = vector.shape_cast %1590 : vector<16x16xf32> to vector<1x1x16x16xf32>
    tpu.vector_store %arg17[%c0_1063, %c2_1064, %c0_1065, %c0_1066], %1593 {strides = array<i32>} : memref<1x4x16x16xf32, #tpu.memory_space<vmem>>, vector<1x1x16x16xf32>,
    %cst_1067 = arith.constant 0.000000e+00 : f32
    %1594 = vector.broadcast %cst_1067 : f32 to vector<16x16xf32>
    %1595 = arith.maximumf %1578, %1594 : vector<16x16xf32>
    %c0_1068 = arith.constant 0 : index
    %c3_1069 = arith.constant 3 : index
    %c0_1070 = arith.constant 0 : index
    %c0_1071 = arith.constant 0 : index
    %1596 = vector.load %arg17[%c0_1068, %c3_1069, %c0_1070, %c0_1071] : memref<1x4x16x16xf32, #tpu.memory_space<vmem>>, vector<1x1x16x16xf32>
    %1597 = vector.shape_cast %1596 : vector<1x1x16x16xf32> to vector<16x16xf32>
    %1598 = vector.shape_cast %1595 : vector<16x16xf32> to vector<1x1x16x16xf32>
    tpu.vector_store %arg17[%c0_1068, %c3_1069, %c0_1070, %c0_1071], %1598 {strides = array<i32>} : memref<1x4x16x16xf32, #tpu.memory_space<vmem>>, vector<1x1x16x16xf32>,
    return
  }
  func.func @transform_0(%arg0: i32) -> (i32, i32, i32, i32) {
    %c0_i32 = arith.constant 0 : i32
    %c0_i32_0 = arith.constant 0 : i32
    %c0_i32_1 = arith.constant 0 : i32
    %c0_i32_2 = arith.constant 0 : i32
    return %arg0, %c0_i32, %c0_i32_0, %c0_i32_1 : i32, i32, i32, i32
  }
  func.func @transform_1(%arg0: i32) -> (i32, i32, i32, i32) {
    %c0_i32 = arith.constant 0 : i32
    %c0_i32_0 = arith.constant 0 : i32
    %c0_i32_1 = arith.constant 0 : i32
    %c0_i32_2 = arith.constant 0 : i32
    return %arg0, %c0_i32, %c0_i32_0, %c0_i32_1 : i32, i32, i32, i32
  }
  func.func @transform_2(%arg0: i32) -> (i32, i32) {
    %c0_i32 = arith.constant 0 : i32
    %c0_i32_0 = arith.constant 0 : i32
    %c0_i32_1 = arith.constant 0 : i32
    return %c0_i32, %c0_i32_0 : i32, i32
  }
  func.func @transform_3(%arg0: i32) -> i32 {
    %c0_i32 = arith.constant 0 : i32
    %c0_i32_0 = arith.constant 0 : i32
    return %c0_i32 : i32
  }
  func.func @transform_4(%arg0: i32) -> (i32, i32) {
    %c0_i32 = arith.constant 0 : i32
    %c0_i32_0 = arith.constant 0 : i32
    %c0_i32_1 = arith.constant 0 : i32
    return %c0_i32, %c0_i32_0 : i32, i32
  }
  func.func @transform_5(%arg0: i32) -> i32 {
    %c0_i32 = arith.constant 0 : i32
    %c0_i32_0 = arith.constant 0 : i32
    return %c0_i32 : i32
  }
  func.func @transform_6(%arg0: i32) -> (i32, i32) {
    %c0_i32 = arith.constant 0 : i32
    %c0_i32_0 = arith.constant 0 : i32
    %c0_i32_1 = arith.constant 0 : i32
    return %c0_i32, %c0_i32_0 : i32, i32
  }
  func.func @transform_7(%arg0: i32) -> i32 {
    %c0_i32 = arith.constant 0 : i32
    %c0_i32_0 = arith.constant 0 : i32
    return %c0_i32 : i32
  }
  func.func @transform_8(%arg0: i32) -> (i32, i32) {
    %c0_i32 = arith.constant 0 : i32
    %c0_i32_0 = arith.constant 0 : i32
    %c0_i32_1 = arith.constant 0 : i32
    return %c0_i32, %c0_i32_0 : i32, i32
  }
  func.func @transform_9(%arg0: i32) -> i32 {
    %c0_i32 = arith.constant 0 : i32
    %c0_i32_0 = arith.constant 0 : i32
    return %c0_i32 : i32
  }
  func.func @transform_10(%arg0: i32) -> (i32, i32) {
    %c0_i32 = arith.constant 0 : i32
    %c0_i32_0 = arith.constant 0 : i32
    %c0_i32_1 = arith.constant 0 : i32
    return %c0_i32, %c0_i32_0 : i32, i32
  }
  func.func @transform_11(%arg0: i32) -> i32 {
    %c0_i32 = arith.constant 0 : i32
    %c0_i32_0 = arith.constant 0 : i32
    return %c0_i32 : i32
  }
  func.func @transform_12(%arg0: i32) -> (i32, i32) {
    %c0_i32 = arith.constant 0 : i32
    %c0_i32_0 = arith.constant 0 : i32
    %c0_i32_1 = arith.constant 0 : i32
    return %c0_i32, %c0_i32_0 : i32, i32
  }
  func.func @transform_13(%arg0: i32) -> i32 {
    %c0_i32 = arith.constant 0 : i32
    %c0_i32_0 = arith.constant 0 : i32
    return %c0_i32 : i32
  }
  func.func @transform_14(%arg0: i32) -> (i32, i32) {
    %c0_i32 = arith.constant 0 : i32
    %c0_i32_0 = arith.constant 0 : i32
    %c0_i32_1 = arith.constant 0 : i32
    return %c0_i32, %c0_i32_0 : i32, i32
  }
  func.func @transform_15(%arg0: i32) -> i32 {
    %c0_i32 = arith.constant 0 : i32
    %c0_i32_0 = arith.constant 0 : i32
    return %c0_i32 : i32
  }
  func.func @transform_16(%arg0: i32) -> (i32, i32, i32, i32) {
    %c0_i32 = arith.constant 0 : i32
    %c0_i32_0 = arith.constant 0 : i32
    %c0_i32_1 = arith.constant 0 : i32
    %c0_i32_2 = arith.constant 0 : i32
    return %arg0, %c0_i32, %c0_i32_0, %c0_i32_1 : i32, i32, i32, i32
  }
}

</mosaic_0001>

<llo_original>
// kernel: spaceatt_forward.1
$region0: #{spaceatt_forward.1}
  #allocation0 [shape = 'u32[]', space=smem, size = 0x4, offset = 0x4, fixed_abs, tag = 'smem constant byte address 0x4 - core index']
  #allocation1 [shape = 'u32[72,128]{1,0:T(1,128)}', space=vmem, size = 0x9000, scoped, tag = 'internal scratch']
  #allocation2 [shape = 'f32[4,18,18]{2,1,0:T(8,128)}', space=vmem, size = 0xc000, scoped, tag = 'scratch operand']
  #allocation3 [shape = 'f32[2,18,18]{2,1,0:T(8,128)}', space=vmem, size = 0x6000, scoped, tag = 'scratch operand']
  #allocation4 [shape = 'f32[1]{0:T(128)S(6)}', space=smem, size = 0x200, scoped, tag = 'scoped memory for spaceatt_forward.1']
  %s0 = inlined_call_operand.vmem [shape: f32[2,4,16,16], index: 0, kind: input, shape index: {}]
  %s1 = inlined_call_operand.vmem [shape: f32[2,4,16,16], index: 1, kind: input, shape index: {}]
  %s2 = inlined_call_operand.vmem [shape: f32[2,4], index: 2, kind: input, shape index: {}]
  %s3 = inlined_call_operand.vmem [shape: f32[2], index: 3, kind: input, shape index: {}]
  %s4 = inlined_call_operand.vmem [shape: f32[1,2], index: 4, kind: input, shape index: {}]
  %s5 = inlined_call_operand.<no memory space> [shape: f32[1], index: 5, kind: input, shape index: {}]
  %s6 = inlined_call_operand.vmem [shape: f32[2,36], index: 6, kind: input, shape index: {}]
  %s7 = inlined_call_operand.vmem [shape: f32[2], index: 7, kind: input, shape index: {}]
  %s8 = inlined_call_operand.vmem [shape: f32[2,18], index: 8, kind: input, shape index: {}]
  %s9 = inlined_call_operand.vmem [shape: f32[2], index: 9, kind: input, shape index: {}]
  %s10 = inlined_call_operand.vmem [shape: f32[2,36], index: 10, kind: input, shape index: {}]
  %s11 = inlined_call_operand.vmem [shape: f32[2], index: 11, kind: input, shape index: {}]
  %s12 = inlined_call_operand.vmem [shape: f32[2,18], index: 12, kind: input, shape index: {}]
  %s13 = inlined_call_operand.vmem [shape: f32[2], index: 13, kind: input, shape index: {}]
  %s14 = inlined_call_operand.vmem [shape: f32[4,18], index: 14, kind: input, shape index: {}]
  %s15 = inlined_call_operand.vmem [shape: f32[4], index: 15, kind: input, shape index: {}]
  %s16 = inlined_call_operand.hbm [shape: f32[2,4,16,16], index: 16, kind: output, shape index: {}]
  %s17 = sld [smem:[#allocation0]]
  $region149: #{spaceatt_forward.1} parent=0
    _
  %s19 = ssub.s32 1, %s17
  %s20 = scalar_select 0, %s19, %s17
  %21 = sst [smem:[#allocation4]] %s5
  $region1: #{spaceatt_forward.1} parent=0
    #allocation5 [shape = 'u8[1024]{0}', space=smem, size = 0x400, scoped, tag = 'input window, operand 2, single buffered']
    #allocation6 [shape = 's32[2]{0}', space=sflag, size = 0x8, scoped, tag = 'scoped memory for spaceatt_forward.1']
    #allocation7 [shape = 's32[2]{0}', space=sflag, size = 0x8, scoped, tag = 'scoped memory for spaceatt_forward.1']
    #allocation8 [shape = 'u8[512]{0}', space=smem, size = 0x200, scoped, tag = 'input window, operand 3, single buffered']
    #allocation9 [shape = 's32[1]{0}', space=sflag, size = 0x4, scoped, tag = 'scoped memory for spaceatt_forward.1']
    #allocation10 [shape = 'u8[512]{0}', space=smem, size = 0x200, scoped, tag = 'input window, operand 4, single buffered']
    #allocation11 [shape = 'u8[1024]{0}', space=smem, size = 0x400, scoped, tag = 'input window, operand 6, single buffered']
    #allocation12 [shape = 's32[1]{0}', space=sflag, size = 0x4, scoped, tag = 'scoped memory for spaceatt_forward.1']
    #allocation13 [shape = 'u8[512]{0}', space=smem, size = 0x200, scoped, tag = 'input window, operand 7, single buffered']
    #allocation14 [shape = 'u8[1024]{0}', space=smem, size = 0x400, scoped, tag = 'input window, operand 8, single buffered']
    #allocation15 [shape = 's32[1]{0}', space=sflag, size = 0x4, scoped, tag = 'scoped memory for spaceatt_forward.1']
    #allocation16 [shape = 'u8[512]{0}', space=smem, size = 0x200, scoped, tag = 'input window, operand 9, single buffered']
    #allocation17 [shape = 'u8[1024]{0}', space=smem, size = 0x400, scoped, tag = 'input window, operand 10, single buffered']
    #allocation18 [shape = 's32[1]{0}', space=sflag, size = 0x4, scoped, tag = 'scoped memory for spaceatt_forward.1']
    #allocation19 [shape = 'u8[512]{0}', space=smem, size = 0x200, scoped, tag = 'input window, operand 11, single buffered']
    #allocation20 [shape = 'u8[1024]{0}', space=smem, size = 0x400, scoped, tag = 'input window, operand 12, single buffered']
    #allocation21 [shape = 's32[1]{0}', space=sflag, size = 0x4, scoped, tag = 'scoped memory for spaceatt_forward.1']
    #allocation22 [shape = 'u8[512]{0}', space=smem, size = 0x200, scoped, tag = 'input window, operand 13, single buffered']
    #allocation23 [shape = 'u8[2048]{0}', space=smem, size = 0x800, scoped, tag = 'input window, operand 14, single buffered']
    #allocation24 [shape = 's32[1]{0}', space=sflag, size = 0x4, scoped, tag = 'scoped memory for spaceatt_forward.1']
    #allocation25 [shape = 'u8[512]{0}', space=smem, size = 0x200, scoped, tag = 'input window, operand 15, single buffered']
    #allocation26 [shape = 'u8[65536]{0}', space=vmem, size = 0x10000, scoped, tag = 'output window, operand 0']
    %22 = vsyncpa [#allocation7], 0
    %23 = vsyncpa [#allocation9], 0
    %24 = vsyncpa [#allocation12], 0
    %25 = vsyncpa [#allocation15], 0
    %26 = vsyncpa [#allocation18], 0
    %27 = vsyncpa [#allocation21], 0
    %28 = vsyncpa [#allocation24], 0
    %29 = vsyncpa [#allocation6], 0
    %s30 = scalar_lea.sflag [#allocation6], 1
    %31 = vsyncpa %s30, 0
    loop: start=0, step=1, limit=4
    $region2: #{spaceatt_forward.1} parent=1 // loop_pre_header
      _
    $region3: #{spaceatt_forward.1} parent=1 // loop_header
      %s33 = sphi 0, %s37
      %p34 = scmp.ge.s32.totalorder %s33, 4
      %s43 = sphi 0, %s45
      %s46 = sphi 0, %s43
      %s47 = sphi 0, %s46
      %s63 = sphi 0, %s47
      %s69 = sphi 0, %s71
      %s72 = sphi 0, %s69
      %s73 = sphi 0, %s72
      %s89 = sphi 0, %s73
      %s93 = sphi 0, %s93
      %s95 = sphi 0, %s93
      %s96 = sphi 0, %s95
      %s110 = sphi 0, %s96
      %s114 = sphi 0, %s114
      %s116 = sphi 0, %s114
      %s117 = sphi 0, %s116
      %s131 = sphi 0, %s117
      %s135 = sphi 0, %s135
      %s137 = sphi 0, %s135
      %s138 = sphi 0, %s137
      %s152 = sphi 0, %s138
      %s156 = sphi 0, %s156
      %s158 = sphi 0, %s156
      %s159 = sphi 0, %s158
      %s173 = sphi 0, %s159
      %s177 = sphi 0, %s177
      %s179 = sphi 0, %s177
      %s180 = sphi 0, %s179
      %s194 = sphi 0, %s180
      %s198 = sphi 0, %s198
      %s200 = sphi 0, %s198
      %s201 = sphi 0, %s200
      %s215 = sphi 0, %s201
      %s219 = sphi 0, %s219
      %s221 = sphi 0, %s219
      %s222 = sphi 0, %s221
      %s236 = sphi 0, %s222
      %s240 = sphi 0, %s240
      %s242 = sphi 0, %s240
      %s243 = sphi 0, %s242
      %s257 = sphi 0, %s243
      %s261 = sphi 0, %s261
      %s263 = sphi 0, %s261
      %s264 = sphi 0, %s263
      %s278 = sphi 0, %s264
      %s282 = sphi 0, %s282
      %s284 = sphi 0, %s282
      %s285 = sphi 0, %s284
      %s299 = sphi 0, %s285
      %s303 = sphi 0, %s303
      %s305 = sphi 0, %s303
      %s306 = sphi 0, %s305
      %s320 = sphi 0, %s306
      %s324 = sphi 0, %s324
      %s326 = sphi 0, %s324
      %s327 = sphi 0, %s326
      %s341 = sphi 0, %s327
      %s345 = sphi 0, %s345
      %s347 = sphi 0, %s345
      %s348 = sphi 0, %s347
      %s362 = sphi 0, %s348
      %s366 = sphi 0, %s366
      %s368 = sphi 0, %s366
      %s369 = sphi 0, %s368
      %s383 = sphi 0, %s369
      %s389 = sphi 0, %s391
      %s392 = sphi 0, %s389
      %s393 = sphi 0, %s392
      %s409 = sphi 0, %s393
    $region4: #{spaceatt_forward.1} parent=1 // loop_header_branch
      %36 = sbr.rel (%p34) target = $region8
    $region5: #{spaceatt_forward.1} parent=1 // loop_body
      %s38 = ssub.s32 %s33, 1
      %s39 = ssub.s32 %s33, 2
      %s40 = sadd.s32 %s33, 1
      %s41 = ssub.s32 %s33, %s40
      %p42 = scmp.eq.s32.totalorder %s41, 0
      %s44 = sadd.s32 %s43, 1
      %s45 = scalar_select %p42, %s43, %s44
      %p48 = pneg %p42
      %p49 = scmp.eq.s32.totalorder %s33, 1
      %p50 = por %p48, %p49
      %p51 = scmp.ne.s32.totalorder %s43, %s46
      %p52 = scmp.eq.s32.totalorder %s33, 0
      %p53 = por %p51, %p52
      %p54 = scmp.ne.s32.totalorder %s43, %s46
      %p55 = scmp.eq.s32.totalorder %s38, 1
      %p56 = por %p54, %p55
      %p57 = scmp.ne.s32.totalorder %s46, %s47
      %p58 = scmp.eq.s32.totalorder %s38, 0
      %p59 = por %p57, %p58
      %p60 = scmp.ne.s32.totalorder %s46, %s47
      %p61 = scmp.eq.s32.totalorder %s39, 1
      %p62 = por %p60, %p61
      %p64 = scmp.ne.s32.totalorder %s47, %s63
      %p65 = scmp.eq.s32.totalorder %s39, 0
      %p66 = por %p64, %p65
      %s67 = ssub.s32 %s33, %s40
      %p68 = scmp.eq.s32.totalorder %s67, 0
      %s70 = sadd.s32 %s69, 1
      %s71 = scalar_select %p68, %s69, %s70
      %p74 = pneg %p68
      %p75 = scmp.eq.s32.totalorder %s33, 1
      %p76 = por %p74, %p75
      %p77 = scmp.ne.s32.totalorder %s69, %s72
      %p78 = scmp.eq.s32.totalorder %s33, 0
      %p79 = por %p77, %p78
      %p80 = scmp.ne.s32.totalorder %s69, %s72
      %p81 = scmp.eq.s32.totalorder %s38, 1
      %p82 = por %p80, %p81
      %p83 = scmp.ne.s32.totalorder %s72, %s73
      %p84 = scmp.eq.s32.totalorder %s38, 0
      %p85 = por %p83, %p84
      %p86 = scmp.ne.s32.totalorder %s72, %s73
      %p87 = scmp.eq.s32.totalorder %s39, 1
      %p88 = por %p86, %p87
      %p90 = scmp.ne.s32.totalorder %s73, %s89
      %p91 = scmp.eq.s32.totalorder %s39, 0
      %p92 = por %p90, %p91
      %s94 = sadd.s32 %s93, 1
      %p97 = scmp.eq.s32.totalorder %s33, 1
      %p98 = scmp.ne.s32.totalorder %s93, %s95
      %p99 = scmp.eq.s32.totalorder %s33, 0
      %p100 = por %p98, %p99
      %p101 = scmp.ne.s32.totalorder %s93, %s95
      %p102 = scmp.eq.s32.totalorder %s38, 1
      %p103 = por %p101, %p102
      %p104 = scmp.ne.s32.totalorder %s95, %s96
      %p105 = scmp.eq.s32.totalorder %s38, 0
      %p106 = por %p104, %p105
      %p107 = scmp.ne.s32.totalorder %s95, %s96
      %p108 = scmp.eq.s32.totalorder %s39, 1
      %p109 = por %p107, %p108
      %p111 = scmp.ne.s32.totalorder %s96, %s110
      %p112 = scmp.eq.s32.totalorder %s39, 0
      %p113 = por %p111, %p112
      %s115 = sadd.s32 %s114, 1
      %p118 = scmp.eq.s32.totalorder %s33, 1
      %p119 = scmp.ne.s32.totalorder %s114, %s116
      %p120 = scmp.eq.s32.totalorder %s33, 0
      %p121 = por %p119, %p120
      %p122 = scmp.ne.s32.totalorder %s114, %s116
      %p123 = scmp.eq.s32.totalorder %s38, 1
      %p124 = por %p122, %p123
      %p125 = scmp.ne.s32.totalorder %s116, %s117
      %p126 = scmp.eq.s32.totalorder %s38, 0
      %p127 = por %p125, %p126
      %p128 = scmp.ne.s32.totalorder %s116, %s117
      %p129 = scmp.eq.s32.totalorder %s39, 1
      %p130 = por %p128, %p129
      %p132 = scmp.ne.s32.totalorder %s117, %s131
      %p133 = scmp.eq.s32.totalorder %s39, 0
      %p134 = por %p132, %p133
      %s136 = sadd.s32 %s135, 1
      %p139 = scmp.eq.s32.totalorder %s33, 1
      %p140 = scmp.ne.s32.totalorder %s135, %s137
      %p141 = scmp.eq.s32.totalorder %s33, 0
      %p142 = por %p140, %p141
      %p143 = scmp.ne.s32.totalorder %s135, %s137
      %p144 = scmp.eq.s32.totalorder %s38, 1
      %p145 = por %p143, %p144
      %p146 = scmp.ne.s32.totalorder %s137, %s138
      %p147 = scmp.eq.s32.totalorder %s38, 0
      %p148 = por %p146, %p147
      %p149 = scmp.ne.s32.totalorder %s137, %s138
      %p150 = scmp.eq.s32.totalorder %s39, 1
      %p151 = por %p149, %p150
      %p153 = scmp.ne.s32.totalorder %s138, %s152
      %p154 = scmp.eq.s32.totalorder %s39, 0
      %p155 = por %p153, %p154
      %s157 = sadd.s32 %s156, 1
      %p160 = scmp.eq.s32.totalorder %s33, 1
      %p161 = scmp.ne.s32.totalorder %s156, %s158
      %p162 = scmp.eq.s32.totalorder %s33, 0
      %p163 = por %p161, %p162
      %p164 = scmp.ne.s32.totalorder %s156, %s158
      %p165 = scmp.eq.s32.totalorder %s38, 1
      %p166 = por %p164, %p165
      %p167 = scmp.ne.s32.totalorder %s158, %s159
      %p168 = scmp.eq.s32.totalorder %s38, 0
      %p169 = por %p167, %p168
      %p170 = scmp.ne.s32.totalorder %s158, %s159
      %p171 = scmp.eq.s32.totalorder %s39, 1
      %p172 = por %p170, %p171
      %p174 = scmp.ne.s32.totalorder %s159, %s173
      %p175 = scmp.eq.s32.totalorder %s39, 0
      %p176 = por %p174, %p175
      %s178 = sadd.s32 %s177, 1
      %p181 = scmp.eq.s32.totalorder %s33, 1
      %p182 = scmp.ne.s32.totalorder %s177, %s179
      %p183 = scmp.eq.s32.totalorder %s33, 0
      %p184 = por %p182, %p183
      %p185 = scmp.ne.s32.totalorder %s177, %s179
      %p186 = scmp.eq.s32.totalorder %s38, 1
      %p187 = por %p185, %p186
      %p188 = scmp.ne.s32.totalorder %s179, %s180
      %p189 = scmp.eq.s32.totalorder %s38, 0
      %p190 = por %p188, %p189
      %p191 = scmp.ne.s32.totalorder %s179, %s180
      %p192 = scmp.eq.s32.totalorder %s39, 1
      %p193 = por %p191, %p192
      %p195 = scmp.ne.s32.totalorder %s180, %s194
      %p196 = scmp.eq.s32.totalorder %s39, 0
      %p197 = por %p195, %p196
      %s199 = sadd.s32 %s198, 1
      %p202 = scmp.eq.s32.totalorder %s33, 1
      %p203 = scmp.ne.s32.totalorder %s198, %s200
      %p204 = scmp.eq.s32.totalorder %s33, 0
      %p205 = por %p203, %p204
      %p206 = scmp.ne.s32.totalorder %s198, %s200
      %p207 = scmp.eq.s32.totalorder %s38, 1
      %p208 = por %p206, %p207
      %p209 = scmp.ne.s32.totalorder %s200, %s201
      %p210 = scmp.eq.s32.totalorder %s38, 0
      %p211 = por %p209, %p210
      %p212 = scmp.ne.s32.totalorder %s200, %s201
      %p213 = scmp.eq.s32.totalorder %s39, 1
      %p214 = por %p212, %p213
      %p216 = scmp.ne.s32.totalorder %s201, %s215
      %p217 = scmp.eq.s32.totalorder %s39, 0
      %p218 = por %p216, %p217
      %s220 = sadd.s32 %s219, 1
      %p223 = scmp.eq.s32.totalorder %s33, 1
      %p224 = scmp.ne.s32.totalorder %s219, %s221
      %p225 = scmp.eq.s32.totalorder %s33, 0
      %p226 = por %p224, %p225
      %p227 = scmp.ne.s32.totalorder %s219, %s221
      %p228 = scmp.eq.s32.totalorder %s38, 1
      %p229 = por %p227, %p228
      %p230 = scmp.ne.s32.totalorder %s221, %s222
      %p231 = scmp.eq.s32.totalorder %s38, 0
      %p232 = por %p230, %p231
      %p233 = scmp.ne.s32.totalorder %s221, %s222
      %p234 = scmp.eq.s32.totalorder %s39, 1
      %p235 = por %p233, %p234
      %p237 = scmp.ne.s32.totalorder %s222, %s236
      %p238 = scmp.eq.s32.totalorder %s39, 0
      %p239 = por %p237, %p238
      %s241 = sadd.s32 %s240, 1
      %p244 = scmp.eq.s32.totalorder %s33, 1
      %p245 = scmp.ne.s32.totalorder %s240, %s242
      %p246 = scmp.eq.s32.totalorder %s33, 0
      %p247 = por %p245, %p246
      %p248 = scmp.ne.s32.totalorder %s240, %s242
      %p249 = scmp.eq.s32.totalorder %s38, 1
      %p250 = por %p248, %p249
      %p251 = scmp.ne.s32.totalorder %s242, %s243
      %p252 = scmp.eq.s32.totalorder %s38, 0
      %p253 = por %p251, %p252
      %p254 = scmp.ne.s32.totalorder %s242, %s243
      %p255 = scmp.eq.s32.totalorder %s39, 1
      %p256 = por %p254, %p255
      %p258 = scmp.ne.s32.totalorder %s243, %s257
      %p259 = scmp.eq.s32.totalorder %s39, 0
      %p260 = por %p258, %p259
      %s262 = sadd.s32 %s261, 1
      %p265 = scmp.eq.s32.totalorder %s33, 1
      %p266 = scmp.ne.s32.totalorder %s261, %s263
      %p267 = scmp.eq.s32.totalorder %s33, 0
      %p268 = por %p266, %p267
      %p269 = scmp.ne.s32.totalorder %s261, %s263
      %p270 = scmp.eq.s32.totalorder %s38, 1
      %p271 = por %p269, %p270
      %p272 = scmp.ne.s32.totalorder %s263, %s264
      %p273 = scmp.eq.s32.totalorder %s38, 0
      %p274 = por %p272, %p273
      %p275 = scmp.ne.s32.totalorder %s263, %s264
      %p276 = scmp.eq.s32.totalorder %s39, 1
      %p277 = por %p275, %p276
      %p279 = scmp.ne.s32.totalorder %s264, %s278
      %p280 = scmp.eq.s32.totalorder %s39, 0
      %p281 = por %p279, %p280
      %s283 = sadd.s32 %s282, 1
      %p286 = scmp.eq.s32.totalorder %s33, 1
      %p287 = scmp.ne.s32.totalorder %s282, %s284
      %p288 = scmp.eq.s32.totalorder %s33, 0
      %p289 = por %p287, %p288
      %p290 = scmp.ne.s32.totalorder %s282, %s284
      %p291 = scmp.eq.s32.totalorder %s38, 1
      %p292 = por %p290, %p291
      %p293 = scmp.ne.s32.totalorder %s284, %s285
      %p294 = scmp.eq.s32.totalorder %s38, 0
      %p295 = por %p293, %p294
      %p296 = scmp.ne.s32.totalorder %s284, %s285
      %p297 = scmp.eq.s32.totalorder %s39, 1
      %p298 = por %p296, %p297
      %p300 = scmp.ne.s32.totalorder %s285, %s299
      %p301 = scmp.eq.s32.totalorder %s39, 0
      %p302 = por %p300, %p301
      %s304 = sadd.s32 %s303, 1
      %p307 = scmp.eq.s32.totalorder %s33, 1
      %p308 = scmp.ne.s32.totalorder %s303, %s305
      %p309 = scmp.eq.s32.totalorder %s33, 0
      %p310 = por %p308, %p309
      %p311 = scmp.ne.s32.totalorder %s303, %s305
      %p312 = scmp.eq.s32.totalorder %s38, 1
      %p313 = por %p311, %p312
      %p314 = scmp.ne.s32.totalorder %s305, %s306
      %p315 = scmp.eq.s32.totalorder %s38, 0
      %p316 = por %p314, %p315
      %p317 = scmp.ne.s32.totalorder %s305, %s306
      %p318 = scmp.eq.s32.totalorder %s39, 1
      %p319 = por %p317, %p318
      %p321 = scmp.ne.s32.totalorder %s306, %s320
      %p322 = scmp.eq.s32.totalorder %s39, 0
      %p323 = por %p321, %p322
      %s325 = sadd.s32 %s324, 1
      %p328 = scmp.eq.s32.totalorder %s33, 1
      %p329 = scmp.ne.s32.totalorder %s324, %s326
      %p330 = scmp.eq.s32.totalorder %s33, 0
      %p331 = por %p329, %p330
      %p332 = scmp.ne.s32.totalorder %s324, %s326
      %p333 = scmp.eq.s32.totalorder %s38, 1
      %p334 = por %p332, %p333
      %p335 = scmp.ne.s32.totalorder %s326, %s327
      %p336 = scmp.eq.s32.totalorder %s38, 0
      %p337 = por %p335, %p336
      %p338 = scmp.ne.s32.totalorder %s326, %s327
      %p339 = scmp.eq.s32.totalorder %s39, 1
      %p340 = por %p338, %p339
      %p342 = scmp.ne.s32.totalorder %s327, %s341
      %p343 = scmp.eq.s32.totalorder %s39, 0
      %p344 = por %p342, %p343
      %s346 = sadd.s32 %s345, 1
      %p349 = scmp.eq.s32.totalorder %s33, 1
      %p350 = scmp.ne.s32.totalorder %s345, %s347
      %p351 = scmp.eq.s32.totalorder %s33, 0
      %p352 = por %p350, %p351
      %p353 = scmp.ne.s32.totalorder %s345, %s347
      %p354 = scmp.eq.s32.totalorder %s38, 1
      %p355 = por %p353, %p354
      %p356 = scmp.ne.s32.totalorder %s347, %s348
      %p357 = scmp.eq.s32.totalorder %s38, 0
      %p358 = por %p356, %p357
      %p359 = scmp.ne.s32.totalorder %s347, %s348
      %p360 = scmp.eq.s32.totalorder %s39, 1
      %p361 = por %p359, %p360
      %p363 = scmp.ne.s32.totalorder %s348, %s362
      %p364 = scmp.eq.s32.totalorder %s39, 0
      %p365 = por %p363, %p364
      %s367 = sadd.s32 %s366, 1
      %p370 = scmp.eq.s32.totalorder %s33, 1
      %p371 = scmp.ne.s32.totalorder %s366, %s368
      %p372 = scmp.eq.s32.totalorder %s33, 0
      %p373 = por %p371, %p372
      %p374 = scmp.ne.s32.totalorder %s366, %s368
      %p375 = scmp.eq.s32.totalorder %s38, 1
      %p376 = por %p374, %p375
      %p377 = scmp.ne.s32.totalorder %s368, %s369
      %p378 = scmp.eq.s32.totalorder %s38, 0
      %p379 = por %p377, %p378
      %p380 = scmp.ne.s32.totalorder %s368, %s369
      %p381 = scmp.eq.s32.totalorder %s39, 1
      %p382 = por %p380, %p381
      %p384 = scmp.ne.s32.totalorder %s369, %s383
      %p385 = scmp.eq.s32.totalorder %s39, 0
      %p386 = por %p384, %p385
      %s387 = ssub.s32 %s33, %s40
      %p388 = scmp.eq.s32.totalorder %s387, 0
      %s390 = sadd.s32 %s389, 1
      %s391 = scalar_select %p388, %s389, %s390
      %p394 = pneg %p388
      %p395 = scmp.eq.s32.totalorder %s33, 1
      %p396 = por %p394, %p395
      %p397 = scmp.ne.s32.totalorder %s389, %s392
      %p398 = scmp.eq.s32.totalorder %s33, 0
      %p399 = por %p397, %p398
      %p400 = scmp.ne.s32.totalorder %s389, %s392
      %p401 = scmp.eq.s32.totalorder %s38, 1
      %p402 = por %p400, %p401
      %p403 = scmp.ne.s32.totalorder %s392, %s393
      %p404 = scmp.eq.s32.totalorder %s38, 0
      %p405 = por %p403, %p404
      %p406 = scmp.ne.s32.totalorder %s392, %s393
      %p407 = scmp.eq.s32.totalorder %s39, 1
      %p408 = por %p406, %p407
      %p410 = scmp.ne.s32.totalorder %s393, %s409
      %p411 = scmp.eq.s32.totalorder %s39, 0
      %p412 = por %p410, %p411
      %p413 = scmp.le.s32.totalorder 1, %s33
      %p414 = scmp.lt.s32.totalorder %s33, 3
      %p415 = pnand %p413, %p414
      %p416 = pneg %p415
      // Predicated region
      $region9: #{spaceatt_forward.1} parent=5 // pred_check
        _
      $region10: #{spaceatt_forward.1} parent=5 // pred_check_branch
        %418 = sbr.rel (%p415) target = $region12
      $region11: #{spaceatt_forward.1} parent=5 // pred_region
        %s419 = ssub.s32 %s33, 1
        // Predicated region
        $region13: #{spaceatt_forward.1} parent=11 // pred_check
          %p420 = pneg %p106
        $region14: #{spaceatt_forward.1} parent=11 // pred_check_branch
          %422 = sbr.rel (%p420) target = $region16
        $region15: #{spaceatt_forward.1} parent=11 // pred_region
          %424 = vsyncadd [#allocation7], 0
          %s426 = sshll.u32 %s2, 4
          %s427 = int_to_ptr.vmem [resolvable:$true] %s426
          %429 = dma.vmem_to_smem %s427, 32, [#allocation5], [#allocation7]
        $region16: #{spaceatt_forward.1} parent=11 // pred_fallthru
          _
        // Predicated region
        $region17: #{spaceatt_forward.1} parent=11 // pred_check
          %p430 = pneg %p127
        $region18: #{spaceatt_forward.1} parent=11 // pred_check_branch
          %432 = sbr.rel (%p430) target = $region20
        $region19: #{spaceatt_forward.1} parent=11 // pred_region
          %434 = vsyncadd [#allocation9], 0
          %s436 = sshll.u32 %s3, 4
          %s437 = int_to_ptr.vmem [resolvable:$true] %s436
          %439 = dma.vmem_to_smem %s437, 16, [#allocation8], [#allocation9]
        $region20: #{spaceatt_forward.1} parent=11 // pred_fallthru
          _
        // Predicated region
        $region21: #{spaceatt_forward.1} parent=11 // pred_check
          %p440 = pneg %p148
        $region22: #{spaceatt_forward.1} parent=11 // pred_check_branch
          %442 = sbr.rel (%p440) target = $region24
        $region23: #{spaceatt_forward.1} parent=11 // pred_region
          %444 = vsyncadd [#allocation9], 0
          %s446 = sshll.u32 %s4, 4
          %s447 = int_to_ptr.vmem [resolvable:$true] %s446
          %449 = dma.vmem_to_smem %s447, 16, [#allocation10], [#allocation9]
        $region24: #{spaceatt_forward.1} parent=11 // pred_fallthru
          _
        // Predicated region
        $region25: #{spaceatt_forward.1} parent=11 // pred_check
          %p450 = pneg %p169
        $region26: #{spaceatt_forward.1} parent=11 // pred_check_branch
          %452 = sbr.rel (%p450) target = $region28
        $region27: #{spaceatt_forward.1} parent=11 // pred_region
          _
        $region28: #{spaceatt_forward.1} parent=11 // pred_fallthru
          _
        // Predicated region
        $region29: #{spaceatt_forward.1} parent=11 // pred_check
          %p453 = pneg %p190
        $region30: #{spaceatt_forward.1} parent=11 // pred_check_branch
          %455 = sbr.rel (%p453) target = $region32
        $region31: #{spaceatt_forward.1} parent=11 // pred_region
          %457 = vsyncadd [#allocation12], 0
          %s459 = sshll.u32 %s6, 4
          %s460 = int_to_ptr.vmem [resolvable:$true] %s459
          %462 = dma.vmem_to_smem %s460, 32, [#allocation11], [#allocation12]
        $region32: #{spaceatt_forward.1} parent=11 // pred_fallthru
          _
        // Predicated region
        $region33: #{spaceatt_forward.1} parent=11 // pred_check
          %p463 = pneg %p211
        $region34: #{spaceatt_forward.1} parent=11 // pred_check_branch
          %465 = sbr.rel (%p463) target = $region36
        $region35: #{spaceatt_forward.1} parent=11 // pred_region
          %467 = vsyncadd [#allocation12], 0
          %s469 = sshll.u32 %s7, 4
          %s470 = int_to_ptr.vmem [resolvable:$true] %s469
          %472 = dma.vmem_to_smem %s470, 16, [#allocation13], [#allocation12]
        $region36: #{spaceatt_forward.1} parent=11 // pred_fallthru
          _
        // Predicated region
        $region37: #{spaceatt_forward.1} parent=11 // pred_check
          %p473 = pneg %p232
        $region38: #{spaceatt_forward.1} parent=11 // pred_check_branch
          %475 = sbr.rel (%p473) target = $region40
        $region39: #{spaceatt_forward.1} parent=11 // pred_region
          %477 = vsyncadd [#allocation15], 0
          %s479 = sshll.u32 %s8, 4
          %s480 = int_to_ptr.vmem [resolvable:$true] %s479
          %482 = dma.vmem_to_smem %s480, 32, [#allocation14], [#allocation15]
        $region40: #{spaceatt_forward.1} parent=11 // pred_fallthru
          _
        // Predicated region
        $region41: #{spaceatt_forward.1} parent=11 // pred_check
          %p483 = pneg %p253
        $region42: #{spaceatt_forward.1} parent=11 // pred_check_branch
          %485 = sbr.rel (%p483) target = $region44
        $region43: #{spaceatt_forward.1} parent=11 // pred_region
          %487 = vsyncadd [#allocation15], 0
          %s489 = sshll.u32 %s9, 4
          %s490 = int_to_ptr.vmem [resolvable:$true] %s489
          %492 = dma.vmem_to_smem %s490, 16, [#allocation16], [#allocation15]
        $region44: #{spaceatt_forward.1} parent=11 // pred_fallthru
          _
        // Predicated region
        $region45: #{spaceatt_forward.1} parent=11 // pred_check
          %p493 = pneg %p274
        $region46: #{spaceatt_forward.1} parent=11 // pred_check_branch
          %495 = sbr.rel (%p493) target = $region48
        $region47: #{spaceatt_forward.1} parent=11 // pred_region
          %497 = vsyncadd [#allocation18], 0
          %s499 = sshll.u32 %s10, 4
          %s500 = int_to_ptr.vmem [resolvable:$true] %s499
          %502 = dma.vmem_to_smem %s500, 32, [#allocation17], [#allocation18]
        $region48: #{spaceatt_forward.1} parent=11 // pred_fallthru
          _
        // Predicated region
        $region49: #{spaceatt_forward.1} parent=11 // pred_check
          %p503 = pneg %p295
        $region50: #{spaceatt_forward.1} parent=11 // pred_check_branch
          %505 = sbr.rel (%p503) target = $region52
        $region51: #{spaceatt_forward.1} parent=11 // pred_region
          %507 = vsyncadd [#allocation18], 0
          %s509 = sshll.u32 %s11, 4
          %s510 = int_to_ptr.vmem [resolvable:$true] %s509
          %512 = dma.vmem_to_smem %s510, 16, [#allocation19], [#allocation18]
        $region52: #{spaceatt_forward.1} parent=11 // pred_fallthru
          _
        // Predicated region
        $region53: #{spaceatt_forward.1} parent=11 // pred_check
          %p513 = pneg %p316
        $region54: #{spaceatt_forward.1} parent=11 // pred_check_branch
          %515 = sbr.rel (%p513) target = $region56
        $region55: #{spaceatt_forward.1} parent=11 // pred_region
          %517 = vsyncadd [#allocation21], 0
          %s519 = sshll.u32 %s12, 4
          %s520 = int_to_ptr.vmem [resolvable:$true] %s519
          %522 = dma.vmem_to_smem %s520, 32, [#allocation20], [#allocation21]
        $region56: #{spaceatt_forward.1} parent=11 // pred_fallthru
          _
        // Predicated region
        $region57: #{spaceatt_forward.1} parent=11 // pred_check
          %p523 = pneg %p337
        $region58: #{spaceatt_forward.1} parent=11 // pred_check_branch
          %525 = sbr.rel (%p523) target = $region60
        $region59: #{spaceatt_forward.1} parent=11 // pred_region
          %527 = vsyncadd [#allocation21], 0
          %s529 = sshll.u32 %s13, 4
          %s530 = int_to_ptr.vmem [resolvable:$true] %s529
          %532 = dma.vmem_to_smem %s530, 16, [#allocation22], [#allocation21]
        $region60: #{spaceatt_forward.1} parent=11 // pred_fallthru
          _
        // Predicated region
        $region61: #{spaceatt_forward.1} parent=11 // pred_check
          %p533 = pneg %p358
        $region62: #{spaceatt_forward.1} parent=11 // pred_check_branch
          %535 = sbr.rel (%p533) target = $region64
        $region63: #{spaceatt_forward.1} parent=11 // pred_region
          %537 = vsyncadd [#allocation24], 0
          %s539 = sshll.u32 %s14, 4
          %s540 = int_to_ptr.vmem [resolvable:$true] %s539
          %542 = dma.vmem_to_smem %s540, 64, [#allocation23], [#allocation24]
        $region64: #{spaceatt_forward.1} parent=11 // pred_fallthru
          _
        // Predicated region
        $region65: #{spaceatt_forward.1} parent=11 // pred_check
          %p543 = pneg %p379
        $region66: #{spaceatt_forward.1} parent=11 // pred_check_branch
          %545 = sbr.rel (%p543) target = $region68
        $region67: #{spaceatt_forward.1} parent=11 // pred_region
          %547 = vsyncadd [#allocation24], 0
          %s549 = sshll.u32 %s15, 4
          %s550 = int_to_ptr.vmem [resolvable:$true] %s549
          %552 = dma.vmem_to_smem %s550, 16, [#allocation25], [#allocation24]
        $region68: #{spaceatt_forward.1} parent=11 // pred_fallthru
          _
      $region12: #{spaceatt_forward.1} parent=5 // pred_fallthru
        _
      %p553 = scmp.lt.s32.totalorder %s33, 2
      // Predicated region
      $region69: #{spaceatt_forward.1} parent=5 // pred_check
        %p554 = pneg %p553
      $region70: #{spaceatt_forward.1} parent=5 // pred_check_branch
        %556 = sbr.rel (%p554) target = $region72
      $region71: #{spaceatt_forward.1} parent=5 // pred_region
        // Predicated region
        $region73: #{spaceatt_forward.1} parent=71 // pred_check
          %p557 = pneg %p53
        $region74: #{spaceatt_forward.1} parent=71 // pred_check_branch
          %559 = sbr.rel (%p557) target = $region76
        $region75: #{spaceatt_forward.1} parent=71 // pred_region
          %p560 = scmp.lt.s32.totalorder %s33, 1
          %s561 = scalar_select %p560, %s33, 1
          %s562 = smul.addr %s561, 8
          %s563 = smul.addr %s562, 8
          %s564 = scalar_lea.vmem %s0, %s563
        $region76: #{spaceatt_forward.1} parent=71 // pred_fallthru
          _
        // Predicated region
        $region77: #{spaceatt_forward.1} parent=71 // pred_check
          %p565 = pneg %p79
        $region78: #{spaceatt_forward.1} parent=71 // pred_check_branch
          %567 = sbr.rel (%p565) target = $region80
        $region79: #{spaceatt_forward.1} parent=71 // pred_region
          %p568 = scmp.lt.s32.totalorder %s33, 1
          %s569 = scalar_select %p568, %s33, 1
          %s570 = smul.addr %s569, 8
          %s571 = smul.addr %s570, 8
          %s572 = scalar_lea.vmem %s1, %s571
        $region80: #{spaceatt_forward.1} parent=71 // pred_fallthru
          _
      $region72: #{spaceatt_forward.1} parent=5 // pred_fallthru
        _
      %p573 = scmp.le.s32.totalorder 1, %s33
      %p574 = scmp.lt.s32.totalorder %s33, 3
      %p575 = pnand %p573, %p574
      %p576 = pneg %p575
      // Predicated region
      $region81: #{spaceatt_forward.1} parent=5 // pred_check
        _
      $region82: #{spaceatt_forward.1} parent=5 // pred_check_branch
        %578 = sbr.rel (%p575) target = $region84
      $region83: #{spaceatt_forward.1} parent=5 // pred_region
        %s579 = ssub.s32 %s33, 1
        // Predicated region
        $region85: #{spaceatt_forward.1} parent=83 // pred_check
          %p580 = pneg %p106
        $region86: #{spaceatt_forward.1} parent=83 // pred_check_branch
          %582 = sbr.rel (%p580) target = $region88
        $region87: #{spaceatt_forward.1} parent=83 // pred_region
          %584 = dma.done [#allocation7], 32
        $region88: #{spaceatt_forward.1} parent=83 // pred_fallthru
          _
        // Predicated region
        $region89: #{spaceatt_forward.1} parent=83 // pred_check
          %p585 = pneg %p127
        $region90: #{spaceatt_forward.1} parent=83 // pred_check_branch
          %587 = sbr.rel (%p585) target = $region92
        $region91: #{spaceatt_forward.1} parent=83 // pred_region
          %589 = dma.done [#allocation9], 16
        $region92: #{spaceatt_forward.1} parent=83 // pred_fallthru
          _
        // Predicated region
        $region93: #{spaceatt_forward.1} parent=83 // pred_check
          %p590 = pneg %p148
        $region94: #{spaceatt_forward.1} parent=83 // pred_check_branch
          %592 = sbr.rel (%p590) target = $region96
        $region95: #{spaceatt_forward.1} parent=83 // pred_region
          %594 = dma.done [#allocation9], 16
        $region96: #{spaceatt_forward.1} parent=83 // pred_fallthru
          _
        // Predicated region
        $region97: #{spaceatt_forward.1} parent=83 // pred_check
          %p595 = pneg %p190
        $region98: #{spaceatt_forward.1} parent=83 // pred_check_branch
          %597 = sbr.rel (%p595) target = $region100
        $region99: #{spaceatt_forward.1} parent=83 // pred_region
          %599 = dma.done [#allocation12], 32
        $region100: #{spaceatt_forward.1} parent=83 // pred_fallthru
          _
        // Predicated region
        $region101: #{spaceatt_forward.1} parent=83 // pred_check
          %p600 = pneg %p211
        $region102: #{spaceatt_forward.1} parent=83 // pred_check_branch
          %602 = sbr.rel (%p600) target = $region104
        $region103: #{spaceatt_forward.1} parent=83 // pred_region
          %604 = dma.done [#allocation12], 16
        $region104: #{spaceatt_forward.1} parent=83 // pred_fallthru
          _
        // Predicated region
        $region105: #{spaceatt_forward.1} parent=83 // pred_check
          %p605 = pneg %p232
        $region106: #{spaceatt_forward.1} parent=83 // pred_check_branch
          %607 = sbr.rel (%p605) target = $region108
        $region107: #{spaceatt_forward.1} parent=83 // pred_region
          %609 = dma.done [#allocation15], 32
        $region108: #{spaceatt_forward.1} parent=83 // pred_fallthru
          _
        // Predicated region
        $region109: #{spaceatt_forward.1} parent=83 // pred_check
          %p610 = pneg %p253
        $region110: #{spaceatt_forward.1} parent=83 // pred_check_branch
          %612 = sbr.rel (%p610) target = $region112
        $region111: #{spaceatt_forward.1} parent=83 // pred_region
          %614 = dma.done [#allocation15], 16
        $region112: #{spaceatt_forward.1} parent=83 // pred_fallthru
          _
        // Predicated region
        $region113: #{spaceatt_forward.1} parent=83 // pred_check
          %p615 = pneg %p274
        $region114: #{spaceatt_forward.1} parent=83 // pred_check_branch
          %617 = sbr.rel (%p615) target = $region116
        $region115: #{spaceatt_forward.1} parent=83 // pred_region
          %619 = dma.done [#allocation18], 32
        $region116: #{spaceatt_forward.1} parent=83 // pred_fallthru
          _
        // Predicated region
        $region117: #{spaceatt_forward.1} parent=83 // pred_check
          %p620 = pneg %p295
        $region118: #{spaceatt_forward.1} parent=83 // pred_check_branch
          %622 = sbr.rel (%p620) target = $region120
        $region119: #{spaceatt_forward.1} parent=83 // pred_region
          %624 = dma.done [#allocation18], 16
        $region120: #{spaceatt_forward.1} parent=83 // pred_fallthru
          _
        // Predicated region
        $region121: #{spaceatt_forward.1} parent=83 // pred_check
          %p625 = pneg %p316
        $region122: #{spaceatt_forward.1} parent=83 // pred_check_branch
          %627 = sbr.rel (%p625) target = $region124
        $region123: #{spaceatt_forward.1} parent=83 // pred_region
          %629 = dma.done [#allocation21], 32
        $region124: #{spaceatt_forward.1} parent=83 // pred_fallthru
          _
        // Predicated region
        $region125: #{spaceatt_forward.1} parent=83 // pred_check
          %p630 = pneg %p337
        $region126: #{spaceatt_forward.1} parent=83 // pred_check_branch
          %632 = sbr.rel (%p630) target = $region128
        $region127: #{spaceatt_forward.1} parent=83 // pred_region
          %634 = dma.done [#allocation21], 16
        $region128: #{spaceatt_forward.1} parent=83 // pred_fallthru
          _
        // Predicated region
        $region129: #{spaceatt_forward.1} parent=83 // pred_check
          %p635 = pneg %p358
        $region130: #{spaceatt_forward.1} parent=83 // pred_check_branch
          %637 = sbr.rel (%p635) target = $region132
        $region131: #{spaceatt_forward.1} parent=83 // pred_region
          %639 = dma.done [#allocation24], 64
        $region132: #{spaceatt_forward.1} parent=83 // pred_fallthru
          _
        // Predicated region
        $region133: #{spaceatt_forward.1} parent=83 // pred_check
          %p640 = pneg %p379
        $region134: #{spaceatt_forward.1} parent=83 // pred_check_branch
          %642 = sbr.rel (%p640) target = $region136
        $region135: #{spaceatt_forward.1} parent=83 // pred_region
          %644 = dma.done [#allocation24], 16
        $region136: #{spaceatt_forward.1} parent=83 // pred_fallthru
          _
        %645 = sfence
        %p646 = scmp.lt.s32.totalorder %s38, 1
        %s647 = scalar_select %p646, %s38, 1
        %s648 = smul.addr %s647, 8
        %s649 = smul.addr %s648, 8
        %s650 = scalar_lea.vmem %s0, %s649
        %p651 = pneg %p59
        %p652 = pneg %p56
        %p653 = scmp.lt.s32.totalorder %s38, 1
        %s654 = scalar_select %p653, %s38, 1
        %s655 = smul.addr %s654, 8
        %s656 = smul.addr %s655, 8
        %s657 = scalar_lea.vmem %s1, %s656
        %p658 = pneg %p85
        %p659 = pneg %p82
        %p660 = pneg %p106
        %p661 = pneg %p103
        %p662 = pneg %p127
        %p663 = pneg %p124
        %p664 = pneg %p148
        %p665 = pneg %p145
        %p666 = pneg %p169
        %p667 = pneg %p166
        %p668 = pneg %p190
        %p669 = pneg %p187
        %p670 = pneg %p211
        %p671 = pneg %p208
        %p672 = pneg %p232
        %p673 = pneg %p229
        %p674 = pneg %p253
        %p675 = pneg %p250
        %p676 = pneg %p274
        %p677 = pneg %p271
        %p678 = pneg %p295
        %p679 = pneg %p292
        %p680 = pneg %p316
        %p681 = pneg %p313
        %p682 = pneg %p337
        %p683 = pneg %p334
        %p684 = pneg %p358
        %p685 = pneg %p355
        %p686 = pneg %p379
        %p687 = pneg %p376
        %p688 = pneg %p405
        %p689 = pneg %p402
        %s690 = sand.u32 %s392, 1
        %s691 = scalar_lea.sflag [#allocation6], %s690
        %s692 = sand.u32 %s392, 1
        %s693 = smul.addr %s692, 64
        %s694 = scalar_lea.vmem [#allocation26], %s693
        %p695 = scmp.lt.s32.totalorder %s38, 1
        %s696 = scalar_select %p695, %s38, 1
        %s697 = smul.addr %s696, 8
        %s698 = smul.addr %s697, 8
        %s699 = scalar_lea.vmem %s0, %s698
        %p700 = scmp.lt.s32.totalorder %s38, 1
        %s701 = scalar_select %p700, %s38, 1
        %s702 = smul.addr %s701, 8
        %s703 = smul.addr %s702, 8
        %s704 = scalar_lea.vmem %s1, %s703
        %vm706 = vcmask 146432
        %707 = vst.msk [vmem:[#allocation2] sm:$0xff] %vm706, 0.0
        %708 = vst.msk [vmem:[#allocation2 + $0x8] sm:$0xff] %vm706, 0.0
        %vm709 = vcmask 140288
        %710 = vst.msk [vmem:[#allocation2 + $0x10] sm:$0x3] %vm709, 0.0
        %711 = vst.msk [vmem:[#allocation2 + $0x18] sm:$0xff] %vm706, 0.0
        %712 = vst.msk [vmem:[#allocation2 + $0x20] sm:$0xff] %vm706, 0.0
        %713 = vst.msk [vmem:[#allocation2 + $0x28] sm:$0x3] %vm709, 0.0
        %714 = vst.msk [vmem:[#allocation2 + $0x30] sm:$0xff] %vm706, 0.0
        %715 = vst.msk [vmem:[#allocation2 + $0x38] sm:$0xff] %vm706, 0.0
        %716 = vst.msk [vmem:[#allocation2 + $0x40] sm:$0x3] %vm709, 0.0
        %717 = vst.msk [vmem:[#allocation2 + $0x48] sm:$0xff] %vm706, 0.0
        %718 = vst.msk [vmem:[#allocation2 + $0x50] sm:$0xff] %vm706, 0.0
        %719 = vst.msk [vmem:[#allocation2 + $0x58] sm:$0x3] %vm709, 0.0
        %720 = vst.msk [vmem:[#allocation3] sm:$0xff] %vm706, 0.0
        %721 = vst.msk [vmem:[#allocation3 + $0x8] sm:$0xff] %vm706, 0.0
        %722 = vst.msk [vmem:[#allocation3 + $0x10] sm:$0x3] %vm709, 0.0
        %723 = vst.msk [vmem:[#allocation3 + $0x18] sm:$0xff] %vm706, 0.0
        %724 = vst.msk [vmem:[#allocation3 + $0x20] sm:$0xff] %vm706, 0.0
        %725 = vst.msk [vmem:[#allocation3 + $0x28] sm:$0x3] %vm709, 0.0
        %v726 = vld [vmem:[%s699] sm:$0xff]
        %v727 = vld [vmem:[%s699 + $0x8] sm:$0xff]
        %s728 = scalar_lea.vmem %s699, 16
        %v729 = vld [vmem:[%s728] sm:$0xff]
        %v730 = vld [vmem:[%s728 + $0x8] sm:$0xff]
        %s731 = scalar_lea.vmem %s699, 32
        %v732 = vld [vmem:[%s731] sm:$0xff]
        %v733 = vld [vmem:[%s731 + $0x8] sm:$0xff]
        %s734 = scalar_lea.vmem %s699, 48
        %v735 = vld [vmem:[%s734] sm:$0xff]
        %v736 = vld [vmem:[%s734 + $0x8] sm:$0xff]
        %v737 = vld [vmem:[%s704] sm:$0xff]
        %v738 = vld [vmem:[%s704 + $0x8] sm:$0xff]
        %s739 = scalar_lea.vmem %s704, 16
        %v740 = vld [vmem:[%s739] sm:$0xff]
        %v741 = vld [vmem:[%s739 + $0x8] sm:$0xff]
        %s742 = scalar_lea.vmem %s704, 32
        %v743 = vld [vmem:[%s742] sm:$0xff]
        %v744 = vld [vmem:[%s742 + $0x8] sm:$0xff]
        %s745 = scalar_lea.vmem %s704, 48
        %v746 = vld [vmem:[%s745] sm:$0xff]
        %v747 = vld [vmem:[%s745 + $0x8] sm:$0xff]
        %s748 = sld [smem:[#allocation5]]
        %v749 = vstv %s748
        %v750 = vmul.f32 %v749, %v726
        %v751 = vmul.f32 %v749, %v727
        %v752 = vadd.f32 %v750, 0.0
        %v753 = vadd.f32 %v751, 0.0
        %s754 = sld [smem:[#allocation5 + $0x1]]
        %v755 = vstv %s754
        %v756 = vmul.f32 %v755, %v729
        %v757 = vmul.f32 %v755, %v730
        %v758 = vadd.f32 %v752, %v756
        %v759 = vadd.f32 %v753, %v757
        %s760 = sld [smem:[#allocation5 + $0x2]]
        %v761 = vstv %s760
        %v762 = vmul.f32 %v761, %v732
        %v763 = vmul.f32 %v761, %v733
        %v764 = vadd.f32 %v758, %v762
        %v765 = vadd.f32 %v759, %v763
        %s766 = sld [smem:[#allocation5 + $0x3]]
        %v767 = vstv %s766
        %v768 = vmul.f32 %v767, %v735
        %v769 = vmul.f32 %v767, %v736
        %v770 = vadd.f32 %v764, %v768
        %v771 = vadd.f32 %v765, %v769
        %s772 = sld [smem:[#allocation8]]
        %v773 = vstv %s772
        %v774 = vadd.f32 %v770, %v773
        %v775 = vadd.f32 %v771, %v773
        %s776 = sld [smem:[#allocation5 + $0x80]]
        %v777 = vstv %s776
        %v778 = vmul.f32 %v777, %v726
        %v779 = vmul.f32 %v777, %v727
        %v780 = vadd.f32 %v778, 0.0
        %v781 = vadd.f32 %v779, 0.0
        %s782 = sld [smem:[#allocation5 + $0x81]]
        %v783 = vstv %s782
        %v784 = vmul.f32 %v783, %v729
        %v785 = vmul.f32 %v783, %v730
        %v786 = vadd.f32 %v780, %v784
        %v787 = vadd.f32 %v781, %v785
        %s788 = sld [smem:[#allocation5 + $0x82]]
        %v789 = vstv %s788
        %v790 = vmul.f32 %v789, %v732
        %v791 = vmul.f32 %v789, %v733
        %v792 = vadd.f32 %v786, %v790
        %v793 = vadd.f32 %v787, %v791
        %s794 = sld [smem:[#allocation5 + $0x83]]
        %v795 = vstv %s794
        %v796 = vmul.f32 %v795, %v735
        %v797 = vmul.f32 %v795, %v736
        %v798 = vadd.f32 %v792, %v796
        %v799 = vadd.f32 %v793, %v797
        %s800 = sld [smem:[#allocation8 + $0x1]]
        %v801 = vstv %s800
        %v802 = vadd.f32 %v798, %v801
        %v803 = vadd.f32 %v799, %v801
        %s804 = sld [smem:[#allocation10]]
        %v805 = vstv %s804
        %v806 = vmul.f32 %v805, %v774
        %v807 = vmul.f32 %v805, %v775
        %v808 = vadd.f32 %v806, 0.0
        %v809 = vadd.f32 %v807, 0.0
        %s810 = sld [smem:[#allocation10 + $0x1]]
        %v811 = vstv %s810
        %v812 = vmul.f32 %v811, %v802
        %v813 = vmul.f32 %v811, %v803
        %v814 = vadd.f32 %v808, %v812
        %v815 = vadd.f32 %v809, %v813
        %s816 = sld [smem:[#allocation4]]
        %v817 = vstv %s816
        %v818 = vadd.f32 %v814, %v817
        %v819 = vadd.f32 %v815, %v817
        %v820 = vxor.u32 %v818, 2147483648
        %v821 = vxor.u32 %v819, 2147483648
        %v822 = vmul.f32 %v820, 1.442695
        %v823 = vpow.pop %v822
        %v824 = vmul.f32 %v821, 1.442695
        %v825 = vpow.pop %v824
        %v826 = vadd.f32 %v823, 1.0
        %v827 = vadd.f32 %v825, 1.0
        %v828 = vrcp.pop %v826
        %v829 = vmul.f32 %v826, %v828
        %v830 = vsub.f32 1.0, %v829
        %v831 = vmul.f32 %v828, %v830
        %v832 = vadd.f32 %v828, %v831
        %vm833 = vweird.f32 %v826
        %vm834 = vweird.f32 %v828
        %vm835 = vmor %vm833, %vm834
        %v836 = vsel %vm835, %v828, %v832
        %v837 = vand.u32 2147483647, %v826
        %vm838 = vcmp.eq.f32.partialorder %v837, 8.507059e+37
        %v839 = vand.u32 %v826, 2147483648
        %v840 = vor.u32 1.1754944e-38, %v839
        %v841 = vsel %vm838, %v840, %v836
        %v842 = vmul.f32 1.0, %v841
        %v843 = vrcp.pop %v827
        %v844 = vmul.f32 %v827, %v843
        %v845 = vsub.f32 1.0, %v844
        %v846 = vmul.f32 %v843, %v845
        %v847 = vadd.f32 %v843, %v846
        %vm848 = vweird.f32 %v827
        %vm849 = vweird.f32 %v843
        %vm850 = vmor %vm848, %vm849
        %v851 = vsel %vm850, %v843, %v847
        %v852 = vand.u32 2147483647, %v827
        %vm853 = vcmp.eq.f32.partialorder %v852, 8.507059e+37
        %v854 = vand.u32 %v827, 2147483648
        %v855 = vor.u32 1.1754944e-38, %v854
        %v856 = vsel %vm853, %v855, %v851
        %v857 = vmul.f32 1.0, %v856
        %860 = vrot.lane.b32.xlu0 %v726, 1
        %v861 = vpop.permute.xlu0 %860
        %862 = vrot.lane.b32.xlu0 %v727, 1
        %v863 = vpop.permute.xlu0 %862
        %vm866 = vcmask 138248
        %867 = vst.msk [vmem:[#allocation2 + $0x1] sm:$0xff] %vm866, %v861
        %868 = vst.msk [vmem:[#allocation2 + $0x9] sm:$0xff] %vm866, %v863
        %871 = vrot.lane.b32.xlu0 %v729, 1
        %v872 = vpop.permute.xlu0 %871
        %873 = vrot.lane.b32.xlu0 %v730, 1
        %v874 = vpop.permute.xlu0 %873
        %s877 = scalar_lea.vmem [#allocation2], 24
        %878 = vst.msk [vmem:[%s877 + $0x1] sm:$0xff] %vm866, %v872
        %879 = vst.msk [vmem:[%s877 + $0x9] sm:$0xff] %vm866, %v874
        %882 = vrot.lane.b32.xlu0 %v732, 1
        %v883 = vpop.permute.xlu0 %882
        %884 = vrot.lane.b32.xlu0 %v733, 1
        %v885 = vpop.permute.xlu0 %884
        %s888 = scalar_lea.vmem [#allocation2], 48
        %889 = vst.msk [vmem:[%s888 + $0x1] sm:$0xff] %vm866, %v883
        %890 = vst.msk [vmem:[%s888 + $0x9] sm:$0xff] %vm866, %v885
        %893 = vrot.lane.b32.xlu0 %v735, 1
        %v894 = vpop.permute.xlu0 %893
        %895 = vrot.lane.b32.xlu0 %v736, 1
        %v896 = vpop.permute.xlu0 %895
        %s899 = scalar_lea.vmem [#allocation2], 72
        %900 = vst.msk [vmem:[%s899 + $0x1] sm:$0xff] %vm866, %v894
        %901 = vst.msk [vmem:[%s899 + $0x9] sm:$0xff] %vm866, %v896
        %v902 = vld [vmem:[#allocation2] sm:$0xff]
        %v903 = vld [vmem:[#allocation2 + $0x8] sm:$0xff]
        %s904 = sld [smem:[#allocation11]]
        %v905 = vstv %s904
        %v906 = vmul.f32 %v905, %v902
        %v907 = vmul.f32 %v905, %v903
        %v908 = vadd.f32 %v906, 0.0
        %v909 = vadd.f32 %v907, 0.0
        %s910 = sld [smem:[#allocation11 + $0x80]]
        %v911 = vstv %s910
        %v912 = vmul.f32 %v911, %v902
        %v913 = vmul.f32 %v911, %v903
        %v914 = vadd.f32 %v912, 0.0
        %v915 = vadd.f32 %v913, 0.0
        %s916 = sld [smem:[#allocation11 + $0x1]]
        %v917 = vstv %s916
        %v918 = vmul.f32 %v917, %v902
        %v919 = vmul.f32 %v917, %v903
        %922 = vrot.lane.b32.xlu0 %v918, 127
        %v923 = vpop.permute.xlu0 %922
        %924 = vrot.lane.b32.xlu0 %v919, 127
        %v925 = vpop.permute.xlu0 %924
        %v928 = vadd.f32 %v908, %v923
        %v929 = vadd.f32 %v909, %v925
        %s930 = sld [smem:[#allocation11 + $0x81]]
        %v931 = vstv %s930
        %v932 = vmul.f32 %v931, %v902
        %v933 = vmul.f32 %v931, %v903
        %936 = vrot.lane.b32.xlu0 %v932, 127
        %v937 = vpop.permute.xlu0 %936
        %938 = vrot.lane.b32.xlu0 %v933, 127
        %v939 = vpop.permute.xlu0 %938
        %v942 = vadd.f32 %v914, %v937
        %v943 = vadd.f32 %v915, %v939
        %s944 = sld [smem:[#allocation11 + $0x2]]
        %v945 = vstv %s944
        %v946 = vmul.f32 %v945, %v902
        %v947 = vmul.f32 %v945, %v903
        %950 = vrot.lane.b32.xlu0 %v946, 126
        %v951 = vpop.permute.xlu0 %950
        %952 = vrot.lane.b32.xlu0 %v947, 126
        %v953 = vpop.permute.xlu0 %952
        %v956 = vadd.f32 %v928, %v951
        %v957 = vadd.f32 %v929, %v953
        %s958 = sld [smem:[#allocation11 + $0x82]]
        %v959 = vstv %s958
        %v960 = vmul.f32 %v959, %v902
        %v961 = vmul.f32 %v959, %v903
        %964 = vrot.lane.b32.xlu0 %v960, 126
        %v965 = vpop.permute.xlu0 %964
        %966 = vrot.lane.b32.xlu0 %v961, 126
        %v967 = vpop.permute.xlu0 %966
        %v970 = vadd.f32 %v942, %v965
        %v971 = vadd.f32 %v943, %v967
        %v972 = vld [vmem:[#allocation2 + $0x1] sm:$0xff]
        %v973 = vld [vmem:[#allocation2 + $0x9] sm:$0xff]
        %s974 = sld [smem:[#allocation11 + $0x3]]
        %v975 = vstv %s974
        %v976 = vmul.f32 %v975, %v972
        %v977 = vmul.f32 %v975, %v973
        %v978 = vadd.f32 %v956, %v976
        %v979 = vadd.f32 %v957, %v977
        %s980 = sld [smem:[#allocation11 + $0x83]]
        %v981 = vstv %s980
        %v982 = vmul.f32 %v981, %v972
        %v983 = vmul.f32 %v981, %v973
        %v984 = vadd.f32 %v970, %v982
        %v985 = vadd.f32 %v971, %v983
        %s986 = sld [smem:[#allocation11 + $0x4]]
        %v987 = vstv %s986
        %v988 = vmul.f32 %v987, %v972
        %v989 = vmul.f32 %v987, %v973
        %992 = vrot.lane.b32.xlu0 %v988, 127
        %v993 = vpop.permute.xlu0 %992
        %994 = vrot.lane.b32.xlu0 %v989, 127
        %v995 = vpop.permute.xlu0 %994
        %v998 = vadd.f32 %v978, %v993
        %v999 = vadd.f32 %v979, %v995
        %s1000 = sld [smem:[#allocation11 + $0x84]]
        %v1001 = vstv %s1000
        %v1002 = vmul.f32 %v1001, %v972
        %v1003 = vmul.f32 %v1001, %v973
        %1006 = vrot.lane.b32.xlu0 %v1002, 127
        %v1007 = vpop.permute.xlu0 %1006
        %1008 = vrot.lane.b32.xlu0 %v1003, 127
        %v1009 = vpop.permute.xlu0 %1008
        %v1012 = vadd.f32 %v984, %v1007
        %v1013 = vadd.f32 %v985, %v1009
        %s1014 = sld [smem:[#allocation11 + $0x5]]
        %v1015 = vstv %s1014
        %v1016 = vmul.f32 %v1015, %v972
        %v1017 = vmul.f32 %v1015, %v973
        %1020 = vrot.lane.b32.xlu0 %v1016, 126
        %v1021 = vpop.permute.xlu0 %1020
        %1022 = vrot.lane.b32.xlu0 %v1017, 126
        %v1023 = vpop.permute.xlu0 %1022
        %v1026 = vadd.f32 %v998, %v1021
        %v1027 = vadd.f32 %v999, %v1023
        %s1028 = sld [smem:[#allocation11 + $0x85]]
        %v1029 = vstv %s1028
        %v1030 = vmul.f32 %v1029, %v972
        %v1031 = vmul.f32 %v1029, %v973
        %1034 = vrot.lane.b32.xlu0 %v1030, 126
        %v1035 = vpop.permute.xlu0 %1034
        %1036 = vrot.lane.b32.xlu0 %v1031, 126
        %v1037 = vpop.permute.xlu0 %1036
        %v1040 = vadd.f32 %v1012, %v1035
        %v1041 = vadd.f32 %v1013, %v1037
        %v1042 = vld [vmem:[#allocation2 + $0x2] sm:$0xff]
        %v1043 = vld [vmem:[#allocation2 + $0xa] sm:$0xff]
        %s1044 = sld [smem:[#allocation11 + $0x6]]
        %v1045 = vstv %s1044
        %v1046 = vmul.f32 %v1045, %v1042
        %v1047 = vmul.f32 %v1045, %v1043
        %v1048 = vadd.f32 %v1026, %v1046
        %v1049 = vadd.f32 %v1027, %v1047
        %s1050 = sld [smem:[#allocation11 + $0x86]]
        %v1051 = vstv %s1050
        %v1052 = vmul.f32 %v1051, %v1042
        %v1053 = vmul.f32 %v1051, %v1043
        %v1054 = vadd.f32 %v1040, %v1052
        %v1055 = vadd.f32 %v1041, %v1053
        %s1056 = sld [smem:[#allocation11 + $0x7]]
        %v1057 = vstv %s1056
        %v1058 = vmul.f32 %v1057, %v1042
        %v1059 = vmul.f32 %v1057, %v1043
        %1062 = vrot.lane.b32.xlu0 %v1058, 127
        %v1063 = vpop.permute.xlu0 %1062
        %1064 = vrot.lane.b32.xlu0 %v1059, 127
        %v1065 = vpop.permute.xlu0 %1064
        %v1068 = vadd.f32 %v1048, %v1063
        %v1069 = vadd.f32 %v1049, %v1065
        %s1070 = sld [smem:[#allocation11 + $0x87]]
        %v1071 = vstv %s1070
        %v1072 = vmul.f32 %v1071, %v1042
        %v1073 = vmul.f32 %v1071, %v1043
        %1076 = vrot.lane.b32.xlu0 %v1072, 127
        %v1077 = vpop.permute.xlu0 %1076
        %1078 = vrot.lane.b32.xlu0 %v1073, 127
        %v1079 = vpop.permute.xlu0 %1078
        %v1082 = vadd.f32 %v1054, %v1077
        %v1083 = vadd.f32 %v1055, %v1079
        %s1084 = sld [smem:[#allocation11 + $0x8]]
        %v1085 = vstv %s1084
        %v1086 = vmul.f32 %v1085, %v1042
        %v1087 = vmul.f32 %v1085, %v1043
        %1090 = vrot.lane.b32.xlu0 %v1086, 126
        %v1091 = vpop.permute.xlu0 %1090
        %1092 = vrot.lane.b32.xlu0 %v1087, 126
        %v1093 = vpop.permute.xlu0 %1092
        %v1096 = vadd.f32 %v1068, %v1091
        %v1097 = vadd.f32 %v1069, %v1093
        %s1098 = sld [smem:[#allocation11 + $0x88]]
        %v1099 = vstv %s1098
        %v1100 = vmul.f32 %v1099, %v1042
        %v1101 = vmul.f32 %v1099, %v1043
        %1104 = vrot.lane.b32.xlu0 %v1100, 126
        %v1105 = vpop.permute.xlu0 %1104
        %1106 = vrot.lane.b32.xlu0 %v1101, 126
        %v1107 = vpop.permute.xlu0 %1106
        %v1110 = vadd.f32 %v1082, %v1105
        %v1111 = vadd.f32 %v1083, %v1107
        %v1112 = vld [vmem:[%s877] sm:$0xff]
        %v1113 = vld [vmem:[%s877 + $0x8] sm:$0xff]
        %s1114 = sld [smem:[#allocation11 + $0x9]]
        %v1115 = vstv %s1114
        %v1116 = vmul.f32 %v1115, %v1112
        %v1117 = vmul.f32 %v1115, %v1113
        %v1118 = vadd.f32 %v1096, %v1116
        %v1119 = vadd.f32 %v1097, %v1117
        %s1120 = sld [smem:[#allocation11 + $0x89]]
        %v1121 = vstv %s1120
        %v1122 = vmul.f32 %v1121, %v1112
        %v1123 = vmul.f32 %v1121, %v1113
        %v1124 = vadd.f32 %v1110, %v1122
        %v1125 = vadd.f32 %v1111, %v1123
        %s1126 = sld [smem:[#allocation11 + $0xa]]
        %v1127 = vstv %s1126
        %v1128 = vmul.f32 %v1127, %v1112
        %v1129 = vmul.f32 %v1127, %v1113
        %1132 = vrot.lane.b32.xlu0 %v1128, 127
        %v1133 = vpop.permute.xlu0 %1132
        %1134 = vrot.lane.b32.xlu0 %v1129, 127
        %v1135 = vpop.permute.xlu0 %1134
        %v1138 = vadd.f32 %v1118, %v1133
        %v1139 = vadd.f32 %v1119, %v1135
        %s1140 = sld [smem:[#allocation11 + $0x8a]]
        %v1141 = vstv %s1140
        %v1142 = vmul.f32 %v1141, %v1112
        %v1143 = vmul.f32 %v1141, %v1113
        %1146 = vrot.lane.b32.xlu0 %v1142, 127
        %v1147 = vpop.permute.xlu0 %1146
        %1148 = vrot.lane.b32.xlu0 %v1143, 127
        %v1149 = vpop.permute.xlu0 %1148
        %v1152 = vadd.f32 %v1124, %v1147
        %v1153 = vadd.f32 %v1125, %v1149
        %s1154 = sld [smem:[#allocation11 + $0xb]]
        %v1155 = vstv %s1154
        %v1156 = vmul.f32 %v1155, %v1112
        %v1157 = vmul.f32 %v1155, %v1113
        %1160 = vrot.lane.b32.xlu0 %v1156, 126
        %v1161 = vpop.permute.xlu0 %1160
        %1162 = vrot.lane.b32.xlu0 %v1157, 126
        %v1163 = vpop.permute.xlu0 %1162
        %v1166 = vadd.f32 %v1138, %v1161
        %v1167 = vadd.f32 %v1139, %v1163
        %s1168 = sld [smem:[#allocation11 + $0x8b]]
        %v1169 = vstv %s1168
        %v1170 = vmul.f32 %v1169, %v1112
        %v1171 = vmul.f32 %v1169, %v1113
        %1174 = vrot.lane.b32.xlu0 %v1170, 126
        %v1175 = vpop.permute.xlu0 %1174
        %1176 = vrot.lane.b32.xlu0 %v1171, 126
        %v1177 = vpop.permute.xlu0 %1176
        %v1180 = vadd.f32 %v1152, %v1175
        %v1181 = vadd.f32 %v1153, %v1177
        %v1182 = vld [vmem:[%s877 + $0x1] sm:$0xff]
        %v1183 = vld [vmem:[%s877 + $0x9] sm:$0xff]
        %s1184 = sld [smem:[#allocation11 + $0xc]]
        %v1185 = vstv %s1184
        %v1186 = vmul.f32 %v1185, %v1182
        %v1187 = vmul.f32 %v1185, %v1183
        %v1188 = vadd.f32 %v1166, %v1186
        %v1189 = vadd.f32 %v1167, %v1187
        %s1190 = sld [smem:[#allocation11 + $0x8c]]
        %v1191 = vstv %s1190
        %v1192 = vmul.f32 %v1191, %v1182
        %v1193 = vmul.f32 %v1191, %v1183
        %v1194 = vadd.f32 %v1180, %v1192
        %v1195 = vadd.f32 %v1181, %v1193
        %s1196 = sld [smem:[#allocation11 + $0xd]]
        %v1197 = vstv %s1196
        %v1198 = vmul.f32 %v1197, %v1182
        %v1199 = vmul.f32 %v1197, %v1183
        %1202 = vrot.lane.b32.xlu0 %v1198, 127
        %v1203 = vpop.permute.xlu0 %1202
        %1204 = vrot.lane.b32.xlu0 %v1199, 127
        %v1205 = vpop.permute.xlu0 %1204
        %v1208 = vadd.f32 %v1188, %v1203
        %v1209 = vadd.f32 %v1189, %v1205
        %s1210 = sld [smem:[#allocation11 + $0x8d]]
        %v1211 = vstv %s1210
        %v1212 = vmul.f32 %v1211, %v1182
        %v1213 = vmul.f32 %v1211, %v1183
        %1216 = vrot.lane.b32.xlu0 %v1212, 127
        %v1217 = vpop.permute.xlu0 %1216
        %1218 = vrot.lane.b32.xlu0 %v1213, 127
        %v1219 = vpop.permute.xlu0 %1218
        %v1222 = vadd.f32 %v1194, %v1217
        %v1223 = vadd.f32 %v1195, %v1219
        %s1224 = sld [smem:[#allocation11 + $0xe]]
        %v1225 = vstv %s1224
        %v1226 = vmul.f32 %v1225, %v1182
        %v1227 = vmul.f32 %v1225, %v1183
        %1230 = vrot.lane.b32.xlu0 %v1226, 126
        %v1231 = vpop.permute.xlu0 %1230
        %1232 = vrot.lane.b32.xlu0 %v1227, 126
        %v1233 = vpop.permute.xlu0 %1232
        %v1236 = vadd.f32 %v1208, %v1231
        %v1237 = vadd.f32 %v1209, %v1233
        %s1238 = sld [smem:[#allocation11 + $0x8e]]
        %v1239 = vstv %s1238
        %v1240 = vmul.f32 %v1239, %v1182
        %v1241 = vmul.f32 %v1239, %v1183
        %1244 = vrot.lane.b32.xlu0 %v1240, 126
        %v1245 = vpop.permute.xlu0 %1244
        %1246 = vrot.lane.b32.xlu0 %v1241, 126
        %v1247 = vpop.permute.xlu0 %1246
        %v1250 = vadd.f32 %v1222, %v1245
        %v1251 = vadd.f32 %v1223, %v1247
        %v1252 = vld [vmem:[%s877 + $0x2] sm:$0xff]
        %v1253 = vld [vmem:[%s877 + $0xa] sm:$0xff]
        %s1254 = sld [smem:[#allocation11 + $0xf]]
        %v1255 = vstv %s1254
        %v1256 = vmul.f32 %v1255, %v1252
        %v1257 = vmul.f32 %v1255, %v1253
        %v1258 = vadd.f32 %v1236, %v1256
        %v1259 = vadd.f32 %v1237, %v1257
        %s1260 = sld [smem:[#allocation11 + $0x8f]]
        %v1261 = vstv %s1260
        %v1262 = vmul.f32 %v1261, %v1252
        %v1263 = vmul.f32 %v1261, %v1253
        %v1264 = vadd.f32 %v1250, %v1262
        %v1265 = vadd.f32 %v1251, %v1263
        %s1266 = sld [smem:[#allocation11 + $0x10]]
        %v1267 = vstv %s1266
        %v1268 = vmul.f32 %v1267, %v1252
        %v1269 = vmul.f32 %v1267, %v1253
        %1272 = vrot.lane.b32.xlu0 %v1268, 127
        %v1273 = vpop.permute.xlu0 %1272
        %1274 = vrot.lane.b32.xlu0 %v1269, 127
        %v1275 = vpop.permute.xlu0 %1274
        %v1278 = vadd.f32 %v1258, %v1273
        %v1279 = vadd.f32 %v1259, %v1275
        %s1280 = sld [smem:[#allocation11 + $0x90]]
        %v1281 = vstv %s1280
        %v1282 = vmul.f32 %v1281, %v1252
        %v1283 = vmul.f32 %v1281, %v1253
        %1286 = vrot.lane.b32.xlu0 %v1282, 127
        %v1287 = vpop.permute.xlu0 %1286
        %1288 = vrot.lane.b32.xlu0 %v1283, 127
        %v1289 = vpop.permute.xlu0 %1288
        %v1292 = vadd.f32 %v1264, %v1287
        %v1293 = vadd.f32 %v1265, %v1289
        %s1294 = sld [smem:[#allocation11 + $0x11]]
        %v1295 = vstv %s1294
        %v1296 = vmul.f32 %v1295, %v1252
        %v1297 = vmul.f32 %v1295, %v1253
        %1300 = vrot.lane.b32.xlu0 %v1296, 126
        %v1301 = vpop.permute.xlu0 %1300
        %1302 = vrot.lane.b32.xlu0 %v1297, 126
        %v1303 = vpop.permute.xlu0 %1302
        %v1306 = vadd.f32 %v1278, %v1301
        %v1307 = vadd.f32 %v1279, %v1303
        %s1308 = sld [smem:[#allocation11 + $0x91]]
        %v1309 = vstv %s1308
        %v1310 = vmul.f32 %v1309, %v1252
        %v1311 = vmul.f32 %v1309, %v1253
        %1314 = vrot.lane.b32.xlu0 %v1310, 126
        %v1315 = vpop.permute.xlu0 %1314
        %1316 = vrot.lane.b32.xlu0 %v1311, 126
        %v1317 = vpop.permute.xlu0 %1316
        %v1320 = vadd.f32 %v1292, %v1315
        %v1321 = vadd.f32 %v1293, %v1317
        %v1322 = vld [vmem:[%s888] sm:$0xff]
        %v1323 = vld [vmem:[%s888 + $0x8] sm:$0xff]
        %s1324 = sld [smem:[#allocation11 + $0x12]]
        %v1325 = vstv %s1324
        %v1326 = vmul.f32 %v1325, %v1322
        %v1327 = vmul.f32 %v1325, %v1323
        %v1328 = vadd.f32 %v1306, %v1326
        %v1329 = vadd.f32 %v1307, %v1327
        %s1330 = sld [smem:[#allocation11 + $0x92]]
        %v1331 = vstv %s1330
        %v1332 = vmul.f32 %v1331, %v1322
        %v1333 = vmul.f32 %v1331, %v1323
        %v1334 = vadd.f32 %v1320, %v1332
        %v1335 = vadd.f32 %v1321, %v1333
        %s1336 = sld [smem:[#allocation11 + $0x13]]
        %v1337 = vstv %s1336
        %v1338 = vmul.f32 %v1337, %v1322
        %v1339 = vmul.f32 %v1337, %v1323
        %1342 = vrot.lane.b32.xlu0 %v1338, 127
        %v1343 = vpop.permute.xlu0 %1342
        %1344 = vrot.lane.b32.xlu0 %v1339, 127
        %v1345 = vpop.permute.xlu0 %1344
        %v1348 = vadd.f32 %v1328, %v1343
        %v1349 = vadd.f32 %v1329, %v1345
        %s1350 = sld [smem:[#allocation11 + $0x93]]
        %v1351 = vstv %s1350
        %v1352 = vmul.f32 %v1351, %v1322
        %v1353 = vmul.f32 %v1351, %v1323
        %1356 = vrot.lane.b32.xlu0 %v1352, 127
        %v1357 = vpop.permute.xlu0 %1356
        %1358 = vrot.lane.b32.xlu0 %v1353, 127
        %v1359 = vpop.permute.xlu0 %1358
        %v1362 = vadd.f32 %v1334, %v1357
        %v1363 = vadd.f32 %v1335, %v1359
        %s1364 = sld [smem:[#allocation11 + $0x14]]
        %v1365 = vstv %s1364
        %v1366 = vmul.f32 %v1365, %v1322
        %v1367 = vmul.f32 %v1365, %v1323
        %1370 = vrot.lane.b32.xlu0 %v1366, 126
        %v1371 = vpop.permute.xlu0 %1370
        %1372 = vrot.lane.b32.xlu0 %v1367, 126
        %v1373 = vpop.permute.xlu0 %1372
        %v1376 = vadd.f32 %v1348, %v1371
        %v1377 = vadd.f32 %v1349, %v1373
        %s1378 = sld [smem:[#allocation11 + $0x94]]
        %v1379 = vstv %s1378
        %v1380 = vmul.f32 %v1379, %v1322
        %v1381 = vmul.f32 %v1379, %v1323
        %1384 = vrot.lane.b32.xlu0 %v1380, 126
        %v1385 = vpop.permute.xlu0 %1384
        %1386 = vrot.lane.b32.xlu0 %v1381, 126
        %v1387 = vpop.permute.xlu0 %1386
        %v1390 = vadd.f32 %v1362, %v1385
        %v1391 = vadd.f32 %v1363, %v1387
        %v1392 = vld [vmem:[%s888 + $0x1] sm:$0xff]
        %v1393 = vld [vmem:[%s888 + $0x9] sm:$0xff]
        %s1394 = sld [smem:[#allocation11 + $0x15]]
        %v1395 = vstv %s1394
        %v1396 = vmul.f32 %v1395, %v1392
        %v1397 = vmul.f32 %v1395, %v1393
        %v1398 = vadd.f32 %v1376, %v1396
        %v1399 = vadd.f32 %v1377, %v1397
        %s1400 = sld [smem:[#allocation11 + $0x95]]
        %v1401 = vstv %s1400
        %v1402 = vmul.f32 %v1401, %v1392
        %v1403 = vmul.f32 %v1401, %v1393
        %v1404 = vadd.f32 %v1390, %v1402
        %v1405 = vadd.f32 %v1391, %v1403
        %s1406 = sld [smem:[#allocation11 + $0x16]]
        %v1407 = vstv %s1406
        %v1408 = vmul.f32 %v1407, %v1392
        %v1409 = vmul.f32 %v1407, %v1393
        %1412 = vrot.lane.b32.xlu0 %v1408, 127
        %v1413 = vpop.permute.xlu0 %1412
        %1414 = vrot.lane.b32.xlu0 %v1409, 127
        %v1415 = vpop.permute.xlu0 %1414
        %v1418 = vadd.f32 %v1398, %v1413
        %v1419 = vadd.f32 %v1399, %v1415
        %s1420 = sld [smem:[#allocation11 + $0x96]]
        %v1421 = vstv %s1420
        %v1422 = vmul.f32 %v1421, %v1392
        %v1423 = vmul.f32 %v1421, %v1393
        %1426 = vrot.lane.b32.xlu0 %v1422, 127
        %v1427 = vpop.permute.xlu0 %1426
        %1428 = vrot.lane.b32.xlu0 %v1423, 127
        %v1429 = vpop.permute.xlu0 %1428
        %v1432 = vadd.f32 %v1404, %v1427
        %v1433 = vadd.f32 %v1405, %v1429
        %s1434 = sld [smem:[#allocation11 + $0x17]]
        %v1435 = vstv %s1434
        %v1436 = vmul.f32 %v1435, %v1392
        %v1437 = vmul.f32 %v1435, %v1393
        %1440 = vrot.lane.b32.xlu0 %v1436, 126
        %v1441 = vpop.permute.xlu0 %1440
        %1442 = vrot.lane.b32.xlu0 %v1437, 126
        %v1443 = vpop.permute.xlu0 %1442
        %v1446 = vadd.f32 %v1418, %v1441
        %v1447 = vadd.f32 %v1419, %v1443
        %s1448 = sld [smem:[#allocation11 + $0x97]]
        %v1449 = vstv %s1448
        %v1450 = vmul.f32 %v1449, %v1392
        %v1451 = vmul.f32 %v1449, %v1393
        %1454 = vrot.lane.b32.xlu0 %v1450, 126
        %v1455 = vpop.permute.xlu0 %1454
        %1456 = vrot.lane.b32.xlu0 %v1451, 126
        %v1457 = vpop.permute.xlu0 %1456
        %v1460 = vadd.f32 %v1432, %v1455
        %v1461 = vadd.f32 %v1433, %v1457
        %v1462 = vld [vmem:[%s888 + $0x2] sm:$0xff]
        %v1463 = vld [vmem:[%s888 + $0xa] sm:$0xff]
        %s1464 = sld [smem:[#allocation11 + $0x18]]
        %v1465 = vstv %s1464
        %v1466 = vmul.f32 %v1465, %v1462
        %v1467 = vmul.f32 %v1465, %v1463
        %v1468 = vadd.f32 %v1446, %v1466
        %v1469 = vadd.f32 %v1447, %v1467
        %s1470 = sld [smem:[#allocation11 + $0x98]]
        %v1471 = vstv %s1470
        %v1472 = vmul.f32 %v1471, %v1462
        %v1473 = vmul.f32 %v1471, %v1463
        %v1474 = vadd.f32 %v1460, %v1472
        %v1475 = vadd.f32 %v1461, %v1473
        %s1476 = sld [smem:[#allocation11 + $0x19]]
        %v1477 = vstv %s1476
        %v1478 = vmul.f32 %v1477, %v1462
        %v1479 = vmul.f32 %v1477, %v1463
        %1482 = vrot.lane.b32.xlu0 %v1478, 127
        %v1483 = vpop.permute.xlu0 %1482
        %1484 = vrot.lane.b32.xlu0 %v1479, 127
        %v1485 = vpop.permute.xlu0 %1484
        %v1488 = vadd.f32 %v1468, %v1483
        %v1489 = vadd.f32 %v1469, %v1485
        %s1490 = sld [smem:[#allocation11 + $0x99]]
        %v1491 = vstv %s1490
        %v1492 = vmul.f32 %v1491, %v1462
        %v1493 = vmul.f32 %v1491, %v1463
        %1496 = vrot.lane.b32.xlu0 %v1492, 127
        %v1497 = vpop.permute.xlu0 %1496
        %1498 = vrot.lane.b32.xlu0 %v1493, 127
        %v1499 = vpop.permute.xlu0 %1498
        %v1502 = vadd.f32 %v1474, %v1497
        %v1503 = vadd.f32 %v1475, %v1499
        %s1504 = sld [smem:[#allocation11 + $0x1a]]
        %v1505 = vstv %s1504
        %v1506 = vmul.f32 %v1505, %v1462
        %v1507 = vmul.f32 %v1505, %v1463
        %1510 = vrot.lane.b32.xlu0 %v1506, 126
        %v1511 = vpop.permute.xlu0 %1510
        %1512 = vrot.lane.b32.xlu0 %v1507, 126
        %v1513 = vpop.permute.xlu0 %1512
        %v1516 = vadd.f32 %v1488, %v1511
        %v1517 = vadd.f32 %v1489, %v1513
        %s1518 = sld [smem:[#allocation11 + $0x9a]]
        %v1519 = vstv %s1518
        %v1520 = vmul.f32 %v1519, %v1462
        %v1521 = vmul.f32 %v1519, %v1463
        %1524 = vrot.lane.b32.xlu0 %v1520, 126
        %v1525 = vpop.permute.xlu0 %1524
        %1526 = vrot.lane.b32.xlu0 %v1521, 126
        %v1527 = vpop.permute.xlu0 %1526
        %v1530 = vadd.f32 %v1502, %v1525
        %v1531 = vadd.f32 %v1503, %v1527
        %v1532 = vld [vmem:[%s899] sm:$0xff]
        %v1533 = vld [vmem:[%s899 + $0x8] sm:$0xff]
        %s1534 = sld [smem:[#allocation11 + $0x1b]]
        %v1535 = vstv %s1534
        %v1536 = vmul.f32 %v1535, %v1532
        %v1537 = vmul.f32 %v1535, %v1533
        %v1538 = vadd.f32 %v1516, %v1536
        %v1539 = vadd.f32 %v1517, %v1537
        %s1540 = sld [smem:[#allocation11 + $0x9b]]
        %v1541 = vstv %s1540
        %v1542 = vmul.f32 %v1541, %v1532
        %v1543 = vmul.f32 %v1541, %v1533
        %v1544 = vadd.f32 %v1530, %v1542
        %v1545 = vadd.f32 %v1531, %v1543
        %s1546 = sld [smem:[#allocation11 + $0x1c]]
        %v1547 = vstv %s1546
        %v1548 = vmul.f32 %v1547, %v1532
        %v1549 = vmul.f32 %v1547, %v1533
        %1552 = vrot.lane.b32.xlu0 %v1548, 127
        %v1553 = vpop.permute.xlu0 %1552
        %1554 = vrot.lane.b32.xlu0 %v1549, 127
        %v1555 = vpop.permute.xlu0 %1554
        %v1558 = vadd.f32 %v1538, %v1553
        %v1559 = vadd.f32 %v1539, %v1555
        %s1560 = sld [smem:[#allocation11 + $0x9c]]
        %v1561 = vstv %s1560
        %v1562 = vmul.f32 %v1561, %v1532
        %v1563 = vmul.f32 %v1561, %v1533
        %1566 = vrot.lane.b32.xlu0 %v1562, 127
        %v1567 = vpop.permute.xlu0 %1566
        %1568 = vrot.lane.b32.xlu0 %v1563, 127
        %v1569 = vpop.permute.xlu0 %1568
        %v1572 = vadd.f32 %v1544, %v1567
        %v1573 = vadd.f32 %v1545, %v1569
        %s1574 = sld [smem:[#allocation11 + $0x1d]]
        %v1575 = vstv %s1574
        %v1576 = vmul.f32 %v1575, %v1532
        %v1577 = vmul.f32 %v1575, %v1533
        %1580 = vrot.lane.b32.xlu0 %v1576, 126
        %v1581 = vpop.permute.xlu0 %1580
        %1582 = vrot.lane.b32.xlu0 %v1577, 126
        %v1583 = vpop.permute.xlu0 %1582
        %v1586 = vadd.f32 %v1558, %v1581
        %v1587 = vadd.f32 %v1559, %v1583
        %s1588 = sld [smem:[#allocation11 + $0x9d]]
        %v1589 = vstv %s1588
        %v1590 = vmul.f32 %v1589, %v1532
        %v1591 = vmul.f32 %v1589, %v1533
        %1594 = vrot.lane.b32.xlu0 %v1590, 126
        %v1595 = vpop.permute.xlu0 %1594
        %1596 = vrot.lane.b32.xlu0 %v1591, 126
        %v1597 = vpop.permute.xlu0 %1596
        %v1600 = vadd.f32 %v1572, %v1595
        %v1601 = vadd.f32 %v1573, %v1597
        %v1602 = vld [vmem:[%s899 + $0x1] sm:$0xff]
        %v1603 = vld [vmem:[%s899 + $0x9] sm:$0xff]
        %s1604 = sld [smem:[#allocation11 + $0x1e]]
        %v1605 = vstv %s1604
        %v1606 = vmul.f32 %v1605, %v1602
        %v1607 = vmul.f32 %v1605, %v1603
        %v1608 = vadd.f32 %v1586, %v1606
        %v1609 = vadd.f32 %v1587, %v1607
        %s1610 = sld [smem:[#allocation11 + $0x9e]]
        %v1611 = vstv %s1610
        %v1612 = vmul.f32 %v1611, %v1602
        %v1613 = vmul.f32 %v1611, %v1603
        %v1614 = vadd.f32 %v1600, %v1612
        %v1615 = vadd.f32 %v1601, %v1613
        %s1616 = sld [smem:[#allocation11 + $0x1f]]
        %v1617 = vstv %s1616
        %v1618 = vmul.f32 %v1617, %v1602
        %v1619 = vmul.f32 %v1617, %v1603
        %1622 = vrot.lane.b32.xlu0 %v1618, 127
        %v1623 = vpop.permute.xlu0 %1622
        %1624 = vrot.lane.b32.xlu0 %v1619, 127
        %v1625 = vpop.permute.xlu0 %1624
        %v1628 = vadd.f32 %v1608, %v1623
        %v1629 = vadd.f32 %v1609, %v1625
        %s1630 = sld [smem:[#allocation11 + $0x9f]]
        %v1631 = vstv %s1630
        %v1632 = vmul.f32 %v1631, %v1602
        %v1633 = vmul.f32 %v1631, %v1603
        %1636 = vrot.lane.b32.xlu0 %v1632, 127
        %v1637 = vpop.permute.xlu0 %1636
        %1638 = vrot.lane.b32.xlu0 %v1633, 127
        %v1639 = vpop.permute.xlu0 %1638
        %v1642 = vadd.f32 %v1614, %v1637
        %v1643 = vadd.f32 %v1615, %v1639
        %s1644 = sld [smem:[#allocation11 + $0x20]]
        %v1645 = vstv %s1644
        %v1646 = vmul.f32 %v1645, %v1602
        %v1647 = vmul.f32 %v1645, %v1603
        %1650 = vrot.lane.b32.xlu0 %v1646, 126
        %v1651 = vpop.permute.xlu0 %1650
        %1652 = vrot.lane.b32.xlu0 %v1647, 126
        %v1653 = vpop.permute.xlu0 %1652
        %v1656 = vadd.f32 %v1628, %v1651
        %v1657 = vadd.f32 %v1629, %v1653
        %s1658 = sld [smem:[#allocation11 + $0xa0]]
        %v1659 = vstv %s1658
        %v1660 = vmul.f32 %v1659, %v1602
        %v1661 = vmul.f32 %v1659, %v1603
        %1664 = vrot.lane.b32.xlu0 %v1660, 126
        %v1665 = vpop.permute.xlu0 %1664
        %1666 = vrot.lane.b32.xlu0 %v1661, 126
        %v1667 = vpop.permute.xlu0 %1666
        %v1670 = vadd.f32 %v1642, %v1665
        %v1671 = vadd.f32 %v1643, %v1667
        %v1672 = vld [vmem:[%s899 + $0x2] sm:$0xff]
        %v1673 = vld [vmem:[%s899 + $0xa] sm:$0xff]
        %s1674 = sld [smem:[#allocation11 + $0x21]]
        %v1675 = vstv %s1674
        %v1676 = vmul.f32 %v1675, %v1672
        %v1677 = vmul.f32 %v1675, %v1673
        %v1678 = vadd.f32 %v1656, %v1676
        %v1679 = vadd.f32 %v1657, %v1677
        %s1680 = sld [smem:[#allocation11 + $0xa1]]
        %v1681 = vstv %s1680
        %v1682 = vmul.f32 %v1681, %v1672
        %v1683 = vmul.f32 %v1681, %v1673
        %v1684 = vadd.f32 %v1670, %v1682
        %v1685 = vadd.f32 %v1671, %v1683
        %s1686 = sld [smem:[#allocation11 + $0x22]]
        %v1687 = vstv %s1686
        %v1688 = vmul.f32 %v1687, %v1672
        %v1689 = vmul.f32 %v1687, %v1673
        %1692 = vrot.lane.b32.xlu0 %v1688, 127
        %v1693 = vpop.permute.xlu0 %1692
        %1694 = vrot.lane.b32.xlu0 %v1689, 127
        %v1695 = vpop.permute.xlu0 %1694
        %v1698 = vadd.f32 %v1678, %v1693
        %v1699 = vadd.f32 %v1679, %v1695
        %s1700 = sld [smem:[#allocation11 + $0xa2]]
        %v1701 = vstv %s1700
        %v1702 = vmul.f32 %v1701, %v1672
        %v1703 = vmul.f32 %v1701, %v1673
        %1706 = vrot.lane.b32.xlu0 %v1702, 127
        %v1707 = vpop.permute.xlu0 %1706
        %1708 = vrot.lane.b32.xlu0 %v1703, 127
        %v1709 = vpop.permute.xlu0 %1708
        %v1712 = vadd.f32 %v1684, %v1707
        %v1713 = vadd.f32 %v1685, %v1709
        %s1714 = sld [smem:[#allocation11 + $0x23]]
        %v1715 = vstv %s1714
        %v1716 = vmul.f32 %v1715, %v1672
        %v1717 = vmul.f32 %v1715, %v1673
        %1720 = vrot.lane.b32.xlu0 %v1716, 126
        %v1721 = vpop.permute.xlu0 %1720
        %1722 = vrot.lane.b32.xlu0 %v1717, 126
        %v1723 = vpop.permute.xlu0 %1722
        %v1726 = vadd.f32 %v1698, %v1721
        %v1727 = vadd.f32 %v1699, %v1723
        %s1728 = sld [smem:[#allocation11 + $0xa3]]
        %v1729 = vstv %s1728
        %v1730 = vmul.f32 %v1729, %v1672
        %v1731 = vmul.f32 %v1729, %v1673
        %1734 = vrot.lane.b32.xlu0 %v1730, 126
        %v1735 = vpop.permute.xlu0 %1734
        %1736 = vrot.lane.b32.xlu0 %v1731, 126
        %v1737 = vpop.permute.xlu0 %1736
        %v1740 = vadd.f32 %v1712, %v1735
        %v1741 = vadd.f32 %v1713, %v1737
        %s1742 = sld [smem:[#allocation13]]
        %v1743 = vstv %s1742
        %v1744 = vadd.f32 %v1726, %v1743
        %v1745 = vadd.f32 %v1727, %v1743
        %s1746 = sld [smem:[#allocation13 + $0x1]]
        %v1747 = vstv %s1746
        %v1748 = vadd.f32 %v1740, %v1747
        %v1749 = vadd.f32 %v1741, %v1747
        %1752 = vrot.lane.b32.xlu0 %v1744, 1
        %v1753 = vpop.permute.xlu0 %1752
        %1754 = vrot.lane.b32.xlu0 %v1745, 1
        %v1755 = vpop.permute.xlu0 %1754
        %1758 = vst.msk [vmem:[#allocation3 + $0x1] sm:$0xff] %vm866, %v1753
        %1759 = vst.msk [vmem:[#allocation3 + $0x9] sm:$0xff] %vm866, %v1755
        %1762 = vrot.lane.b32.xlu0 %v1748, 1
        %v1763 = vpop.permute.xlu0 %1762
        %1764 = vrot.lane.b32.xlu0 %v1749, 1
        %v1765 = vpop.permute.xlu0 %1764
        %s1768 = scalar_lea.vmem [#allocation3], 24
        %1769 = vst.msk [vmem:[%s1768 + $0x1] sm:$0xff] %vm866, %v1763
        %1770 = vst.msk [vmem:[%s1768 + $0x9] sm:$0xff] %vm866, %v1765
        %v1771 = vld [vmem:[#allocation3] sm:$0xff]
        %v1772 = vld [vmem:[#allocation3 + $0x8] sm:$0xff]
        %s1773 = sld [smem:[#allocation14]]
        %v1774 = vstv %s1773
        %v1775 = vmul.f32 %v1774, %v1771
        %v1776 = vmul.f32 %v1774, %v1772
        %v1777 = vadd.f32 %v1775, 0.0
        %v1778 = vadd.f32 %v1776, 0.0
        %s1779 = sld [smem:[#allocation14 + $0x80]]
        %v1780 = vstv %s1779
        %v1781 = vmul.f32 %v1780, %v1771
        %v1782 = vmul.f32 %v1780, %v1772
        %v1783 = vadd.f32 %v1781, 0.0
        %v1784 = vadd.f32 %v1782, 0.0
        %s1785 = sld [smem:[#allocation14 + $0x1]]
        %v1786 = vstv %s1785
        %v1787 = vmul.f32 %v1786, %v1771
        %v1788 = vmul.f32 %v1786, %v1772
        %1791 = vrot.lane.b32.xlu0 %v1787, 127
        %v1792 = vpop.permute.xlu0 %1791
        %1793 = vrot.lane.b32.xlu0 %v1788, 127
        %v1794 = vpop.permute.xlu0 %1793
        %v1797 = vadd.f32 %v1777, %v1792
        %v1798 = vadd.f32 %v1778, %v1794
        %s1799 = sld [smem:[#allocation14 + $0x81]]
        %v1800 = vstv %s1799
        %v1801 = vmul.f32 %v1800, %v1771
        %v1802 = vmul.f32 %v1800, %v1772
        %1805 = vrot.lane.b32.xlu0 %v1801, 127
        %v1806 = vpop.permute.xlu0 %1805
        %1807 = vrot.lane.b32.xlu0 %v1802, 127
        %v1808 = vpop.permute.xlu0 %1807
        %v1811 = vadd.f32 %v1783, %v1806
        %v1812 = vadd.f32 %v1784, %v1808
        %s1813 = sld [smem:[#allocation14 + $0x2]]
        %v1814 = vstv %s1813
        %v1815 = vmul.f32 %v1814, %v1771
        %v1816 = vmul.f32 %v1814, %v1772
        %1819 = vrot.lane.b32.xlu0 %v1815, 126
        %v1820 = vpop.permute.xlu0 %1819
        %1821 = vrot.lane.b32.xlu0 %v1816, 126
        %v1822 = vpop.permute.xlu0 %1821
        %v1825 = vadd.f32 %v1797, %v1820
        %v1826 = vadd.f32 %v1798, %v1822
        %s1827 = sld [smem:[#allocation14 + $0x82]]
        %v1828 = vstv %s1827
        %v1829 = vmul.f32 %v1828, %v1771
        %v1830 = vmul.f32 %v1828, %v1772
        %1833 = vrot.lane.b32.xlu0 %v1829, 126
        %v1834 = vpop.permute.xlu0 %1833
        %1835 = vrot.lane.b32.xlu0 %v1830, 126
        %v1836 = vpop.permute.xlu0 %1835
        %v1839 = vadd.f32 %v1811, %v1834
        %v1840 = vadd.f32 %v1812, %v1836
        %v1841 = vld [vmem:[#allocation3 + $0x1] sm:$0xff]
        %v1842 = vld [vmem:[#allocation3 + $0x9] sm:$0xff]
        %s1843 = sld [smem:[#allocation14 + $0x3]]
        %v1844 = vstv %s1843
        %v1845 = vmul.f32 %v1844, %v1841
        %v1846 = vmul.f32 %v1844, %v1842
        %v1847 = vadd.f32 %v1825, %v1845
        %v1848 = vadd.f32 %v1826, %v1846
        %s1849 = sld [smem:[#allocation14 + $0x83]]
        %v1850 = vstv %s1849
        %v1851 = vmul.f32 %v1850, %v1841
        %v1852 = vmul.f32 %v1850, %v1842
        %v1853 = vadd.f32 %v1839, %v1851
        %v1854 = vadd.f32 %v1840, %v1852
        %s1855 = sld [smem:[#allocation14 + $0x4]]
        %v1856 = vstv %s1855
        %v1857 = vmul.f32 %v1856, %v1841
        %v1858 = vmul.f32 %v1856, %v1842
        %1861 = vrot.lane.b32.xlu0 %v1857, 127
        %v1862 = vpop.permute.xlu0 %1861
        %1863 = vrot.lane.b32.xlu0 %v1858, 127
        %v1864 = vpop.permute.xlu0 %1863
        %v1867 = vadd.f32 %v1847, %v1862
        %v1868 = vadd.f32 %v1848, %v1864
        %s1869 = sld [smem:[#allocation14 + $0x84]]
        %v1870 = vstv %s1869
        %v1871 = vmul.f32 %v1870, %v1841
        %v1872 = vmul.f32 %v1870, %v1842
        %1875 = vrot.lane.b32.xlu0 %v1871, 127
        %v1876 = vpop.permute.xlu0 %1875
        %1877 = vrot.lane.b32.xlu0 %v1872, 127
        %v1878 = vpop.permute.xlu0 %1877
        %v1881 = vadd.f32 %v1853, %v1876
        %v1882 = vadd.f32 %v1854, %v1878
        %s1883 = sld [smem:[#allocation14 + $0x5]]
        %v1884 = vstv %s1883
        %v1885 = vmul.f32 %v1884, %v1841
        %v1886 = vmul.f32 %v1884, %v1842
        %1889 = vrot.lane.b32.xlu0 %v1885, 126
        %v1890 = vpop.permute.xlu0 %1889
        %1891 = vrot.lane.b32.xlu0 %v1886, 126
        %v1892 = vpop.permute.xlu0 %1891
        %v1895 = vadd.f32 %v1867, %v1890
        %v1896 = vadd.f32 %v1868, %v1892
        %s1897 = sld [smem:[#allocation14 + $0x85]]
        %v1898 = vstv %s1897
        %v1899 = vmul.f32 %v1898, %v1841
        %v1900 = vmul.f32 %v1898, %v1842
        %1903 = vrot.lane.b32.xlu0 %v1899, 126
        %v1904 = vpop.permute.xlu0 %1903
        %1905 = vrot.lane.b32.xlu0 %v1900, 126
        %v1906 = vpop.permute.xlu0 %1905
        %v1909 = vadd.f32 %v1881, %v1904
        %v1910 = vadd.f32 %v1882, %v1906
        %v1911 = vld [vmem:[#allocation3 + $0x2] sm:$0xff]
        %v1912 = vld [vmem:[#allocation3 + $0xa] sm:$0xff]
        %s1913 = sld [smem:[#allocation14 + $0x6]]
        %v1914 = vstv %s1913
        %v1915 = vmul.f32 %v1914, %v1911
        %v1916 = vmul.f32 %v1914, %v1912
        %v1917 = vadd.f32 %v1895, %v1915
        %v1918 = vadd.f32 %v1896, %v1916
        %s1919 = sld [smem:[#allocation14 + $0x86]]
        %v1920 = vstv %s1919
        %v1921 = vmul.f32 %v1920, %v1911
        %v1922 = vmul.f32 %v1920, %v1912
        %v1923 = vadd.f32 %v1909, %v1921
        %v1924 = vadd.f32 %v1910, %v1922
        %s1925 = sld [smem:[#allocation14 + $0x7]]
        %v1926 = vstv %s1925
        %v1927 = vmul.f32 %v1926, %v1911
        %v1928 = vmul.f32 %v1926, %v1912
        %1931 = vrot.lane.b32.xlu0 %v1927, 127
        %v1932 = vpop.permute.xlu0 %1931
        %1933 = vrot.lane.b32.xlu0 %v1928, 127
        %v1934 = vpop.permute.xlu0 %1933
        %v1937 = vadd.f32 %v1917, %v1932
        %v1938 = vadd.f32 %v1918, %v1934
        %s1939 = sld [smem:[#allocation14 + $0x87]]
        %v1940 = vstv %s1939
        %v1941 = vmul.f32 %v1940, %v1911
        %v1942 = vmul.f32 %v1940, %v1912
        %1945 = vrot.lane.b32.xlu0 %v1941, 127
        %v1946 = vpop.permute.xlu0 %1945
        %1947 = vrot.lane.b32.xlu0 %v1942, 127
        %v1948 = vpop.permute.xlu0 %1947
        %v1951 = vadd.f32 %v1923, %v1946
        %v1952 = vadd.f32 %v1924, %v1948
        %s1953 = sld [smem:[#allocation14 + $0x8]]
        %v1954 = vstv %s1953
        %v1955 = vmul.f32 %v1954, %v1911
        %v1956 = vmul.f32 %v1954, %v1912
        %1959 = vrot.lane.b32.xlu0 %v1955, 126
        %v1960 = vpop.permute.xlu0 %1959
        %1961 = vrot.lane.b32.xlu0 %v1956, 126
        %v1962 = vpop.permute.xlu0 %1961
        %v1965 = vadd.f32 %v1937, %v1960
        %v1966 = vadd.f32 %v1938, %v1962
        %s1967 = sld [smem:[#allocation14 + $0x88]]
        %v1968 = vstv %s1967
        %v1969 = vmul.f32 %v1968, %v1911
        %v1970 = vmul.f32 %v1968, %v1912
        %1973 = vrot.lane.b32.xlu0 %v1969, 126
        %v1974 = vpop.permute.xlu0 %1973
        %1975 = vrot.lane.b32.xlu0 %v1970, 126
        %v1976 = vpop.permute.xlu0 %1975
        %v1979 = vadd.f32 %v1951, %v1974
        %v1980 = vadd.f32 %v1952, %v1976
        %v1981 = vld [vmem:[%s1768] sm:$0xff]
        %v1982 = vld [vmem:[%s1768 + $0x8] sm:$0xff]
        %s1983 = sld [smem:[#allocation14 + $0x9]]
        %v1984 = vstv %s1983
        %v1985 = vmul.f32 %v1984, %v1981
        %v1986 = vmul.f32 %v1984, %v1982
        %v1987 = vadd.f32 %v1965, %v1985
        %v1988 = vadd.f32 %v1966, %v1986
        %s1989 = sld [smem:[#allocation14 + $0x89]]
        %v1990 = vstv %s1989
        %v1991 = vmul.f32 %v1990, %v1981
        %v1992 = vmul.f32 %v1990, %v1982
        %v1993 = vadd.f32 %v1979, %v1991
        %v1994 = vadd.f32 %v1980, %v1992
        %s1995 = sld [smem:[#allocation14 + $0xa]]
        %v1996 = vstv %s1995
        %v1997 = vmul.f32 %v1996, %v1981
        %v1998 = vmul.f32 %v1996, %v1982
        %2001 = vrot.lane.b32.xlu0 %v1997, 127
        %v2002 = vpop.permute.xlu0 %2001
        %2003 = vrot.lane.b32.xlu0 %v1998, 127
        %v2004 = vpop.permute.xlu0 %2003
        %v2007 = vadd.f32 %v1987, %v2002
        %v2008 = vadd.f32 %v1988, %v2004
        %s2009 = sld [smem:[#allocation14 + $0x8a]]
        %v2010 = vstv %s2009
        %v2011 = vmul.f32 %v2010, %v1981
        %v2012 = vmul.f32 %v2010, %v1982
        %2015 = vrot.lane.b32.xlu0 %v2011, 127
        %v2016 = vpop.permute.xlu0 %2015
        %2017 = vrot.lane.b32.xlu0 %v2012, 127
        %v2018 = vpop.permute.xlu0 %2017
        %v2021 = vadd.f32 %v1993, %v2016
        %v2022 = vadd.f32 %v1994, %v2018
        %s2023 = sld [smem:[#allocation14 + $0xb]]
        %v2024 = vstv %s2023
        %v2025 = vmul.f32 %v2024, %v1981
        %v2026 = vmul.f32 %v2024, %v1982
        %2029 = vrot.lane.b32.xlu0 %v2025, 126
        %v2030 = vpop.permute.xlu0 %2029
        %2031 = vrot.lane.b32.xlu0 %v2026, 126
        %v2032 = vpop.permute.xlu0 %2031
        %v2035 = vadd.f32 %v2007, %v2030
        %v2036 = vadd.f32 %v2008, %v2032
        %s2037 = sld [smem:[#allocation14 + $0x8b]]
        %v2038 = vstv %s2037
        %v2039 = vmul.f32 %v2038, %v1981
        %v2040 = vmul.f32 %v2038, %v1982
        %2043 = vrot.lane.b32.xlu0 %v2039, 126
        %v2044 = vpop.permute.xlu0 %2043
        %2045 = vrot.lane.b32.xlu0 %v2040, 126
        %v2046 = vpop.permute.xlu0 %2045
        %v2049 = vadd.f32 %v2021, %v2044
        %v2050 = vadd.f32 %v2022, %v2046
        %v2051 = vld [vmem:[%s1768 + $0x1] sm:$0xff]
        %v2052 = vld [vmem:[%s1768 + $0x9] sm:$0xff]
        %s2053 = sld [smem:[#allocation14 + $0xc]]
        %v2054 = vstv %s2053
        %v2055 = vmul.f32 %v2054, %v2051
        %v2056 = vmul.f32 %v2054, %v2052
        %v2057 = vadd.f32 %v2035, %v2055
        %v2058 = vadd.f32 %v2036, %v2056
        %s2059 = sld [smem:[#allocation14 + $0x8c]]
        %v2060 = vstv %s2059
        %v2061 = vmul.f32 %v2060, %v2051
        %v2062 = vmul.f32 %v2060, %v2052
        %v2063 = vadd.f32 %v2049, %v2061
        %v2064 = vadd.f32 %v2050, %v2062
        %s2065 = sld [smem:[#allocation14 + $0xd]]
        %v2066 = vstv %s2065
        %v2067 = vmul.f32 %v2066, %v2051
        %v2068 = vmul.f32 %v2066, %v2052
        %2071 = vrot.lane.b32.xlu0 %v2067, 127
        %v2072 = vpop.permute.xlu0 %2071
        %2073 = vrot.lane.b32.xlu0 %v2068, 127
        %v2074 = vpop.permute.xlu0 %2073
        %v2077 = vadd.f32 %v2057, %v2072
        %v2078 = vadd.f32 %v2058, %v2074
        %s2079 = sld [smem:[#allocation14 + $0x8d]]
        %v2080 = vstv %s2079
        %v2081 = vmul.f32 %v2080, %v2051
        %v2082 = vmul.f32 %v2080, %v2052
        %2085 = vrot.lane.b32.xlu0 %v2081, 127
        %v2086 = vpop.permute.xlu0 %2085
        %2087 = vrot.lane.b32.xlu0 %v2082, 127
        %v2088 = vpop.permute.xlu0 %2087
        %v2091 = vadd.f32 %v2063, %v2086
        %v2092 = vadd.f32 %v2064, %v2088
        %s2093 = sld [smem:[#allocation14 + $0xe]]
        %v2094 = vstv %s2093
        %v2095 = vmul.f32 %v2094, %v2051
        %v2096 = vmul.f32 %v2094, %v2052
        %2099 = vrot.lane.b32.xlu0 %v2095, 126
        %v2100 = vpop.permute.xlu0 %2099
        %2101 = vrot.lane.b32.xlu0 %v2096, 126
        %v2102 = vpop.permute.xlu0 %2101
        %v2105 = vadd.f32 %v2077, %v2100
        %v2106 = vadd.f32 %v2078, %v2102
        %s2107 = sld [smem:[#allocation14 + $0x8e]]
        %v2108 = vstv %s2107
        %v2109 = vmul.f32 %v2108, %v2051
        %v2110 = vmul.f32 %v2108, %v2052
        %2113 = vrot.lane.b32.xlu0 %v2109, 126
        %v2114 = vpop.permute.xlu0 %2113
        %2115 = vrot.lane.b32.xlu0 %v2110, 126
        %v2116 = vpop.permute.xlu0 %2115
        %v2119 = vadd.f32 %v2091, %v2114
        %v2120 = vadd.f32 %v2092, %v2116
        %v2121 = vld [vmem:[%s1768 + $0x2] sm:$0xff]
        %v2122 = vld [vmem:[%s1768 + $0xa] sm:$0xff]
        %s2123 = sld [smem:[#allocation14 + $0xf]]
        %v2124 = vstv %s2123
        %v2125 = vmul.f32 %v2124, %v2121
        %v2126 = vmul.f32 %v2124, %v2122
        %v2127 = vadd.f32 %v2105, %v2125
        %v2128 = vadd.f32 %v2106, %v2126
        %s2129 = sld [smem:[#allocation14 + $0x8f]]
        %v2130 = vstv %s2129
        %v2131 = vmul.f32 %v2130, %v2121
        %v2132 = vmul.f32 %v2130, %v2122
        %v2133 = vadd.f32 %v2119, %v2131
        %v2134 = vadd.f32 %v2120, %v2132
        %s2135 = sld [smem:[#allocation14 + $0x10]]
        %v2136 = vstv %s2135
        %v2137 = vmul.f32 %v2136, %v2121
        %v2138 = vmul.f32 %v2136, %v2122
        %2141 = vrot.lane.b32.xlu0 %v2137, 127
        %v2142 = vpop.permute.xlu0 %2141
        %2143 = vrot.lane.b32.xlu0 %v2138, 127
        %v2144 = vpop.permute.xlu0 %2143
        %v2147 = vadd.f32 %v2127, %v2142
        %v2148 = vadd.f32 %v2128, %v2144
        %s2149 = sld [smem:[#allocation14 + $0x90]]
        %v2150 = vstv %s2149
        %v2151 = vmul.f32 %v2150, %v2121
        %v2152 = vmul.f32 %v2150, %v2122
        %2155 = vrot.lane.b32.xlu0 %v2151, 127
        %v2156 = vpop.permute.xlu0 %2155
        %2157 = vrot.lane.b32.xlu0 %v2152, 127
        %v2158 = vpop.permute.xlu0 %2157
        %v2161 = vadd.f32 %v2133, %v2156
        %v2162 = vadd.f32 %v2134, %v2158
        %s2163 = sld [smem:[#allocation14 + $0x11]]
        %v2164 = vstv %s2163
        %v2165 = vmul.f32 %v2164, %v2121
        %v2166 = vmul.f32 %v2164, %v2122
        %2169 = vrot.lane.b32.xlu0 %v2165, 126
        %v2170 = vpop.permute.xlu0 %2169
        %2171 = vrot.lane.b32.xlu0 %v2166, 126
        %v2172 = vpop.permute.xlu0 %2171
        %v2175 = vadd.f32 %v2147, %v2170
        %v2176 = vadd.f32 %v2148, %v2172
        %s2177 = sld [smem:[#allocation14 + $0x91]]
        %v2178 = vstv %s2177
        %v2179 = vmul.f32 %v2178, %v2121
        %v2180 = vmul.f32 %v2178, %v2122
        %2183 = vrot.lane.b32.xlu0 %v2179, 126
        %v2184 = vpop.permute.xlu0 %2183
        %2185 = vrot.lane.b32.xlu0 %v2180, 126
        %v2186 = vpop.permute.xlu0 %2185
        %v2189 = vadd.f32 %v2161, %v2184
        %v2190 = vadd.f32 %v2162, %v2186
        %s2191 = sld [smem:[#allocation16]]
        %v2192 = vstv %s2191
        %v2193 = vadd.f32 %v2175, %v2192
        %v2194 = vadd.f32 %v2176, %v2192
        %s2195 = sld [smem:[#allocation16 + $0x1]]
        %v2196 = vstv %s2195
        %v2197 = vadd.f32 %v2189, %v2196
        %v2198 = vadd.f32 %v2190, %v2196
        %2201 = vrot.lane.b32.xlu0 %v737, 1
        %v2202 = vpop.permute.xlu0 %2201
        %2203 = vrot.lane.b32.xlu0 %v738, 1
        %v2204 = vpop.permute.xlu0 %2203
        %2207 = vst.msk [vmem:[#allocation2 + $0x1] sm:$0xff] %vm866, %v2202
        %2208 = vst.msk [vmem:[#allocation2 + $0x9] sm:$0xff] %vm866, %v2204
        %2211 = vrot.lane.b32.xlu0 %v740, 1
        %v2212 = vpop.permute.xlu0 %2211
        %2213 = vrot.lane.b32.xlu0 %v741, 1
        %v2214 = vpop.permute.xlu0 %2213
        %2217 = vst.msk [vmem:[%s877 + $0x1] sm:$0xff] %vm866, %v2212
        %2218 = vst.msk [vmem:[%s877 + $0x9] sm:$0xff] %vm866, %v2214
        %2221 = vrot.lane.b32.xlu0 %v743, 1
        %v2222 = vpop.permute.xlu0 %2221
        %2223 = vrot.lane.b32.xlu0 %v744, 1
        %v2224 = vpop.permute.xlu0 %2223
        %2227 = vst.msk [vmem:[%s888 + $0x1] sm:$0xff] %vm866, %v2222
        %2228 = vst.msk [vmem:[%s888 + $0x9] sm:$0xff] %vm866, %v2224
        %2231 = vrot.lane.b32.xlu0 %v746, 1
        %v2232 = vpop.permute.xlu0 %2231
        %2233 = vrot.lane.b32.xlu0 %v747, 1
        %v2234 = vpop.permute.xlu0 %2233
        %2237 = vst.msk [vmem:[%s899 + $0x1] sm:$0xff] %vm866, %v2232
        %2238 = vst.msk [vmem:[%s899 + $0x9] sm:$0xff] %vm866, %v2234
        %v2239 = vld [vmem:[#allocation2] sm:$0xff]
        %v2240 = vld [vmem:[#allocation2 + $0x8] sm:$0xff]
        %s2241 = sld [smem:[#allocation17]]
        %v2242 = vstv %s2241
        %v2243 = vmul.f32 %v2242, %v2239
        %v2244 = vmul.f32 %v2242, %v2240
        %v2245 = vadd.f32 %v2243, 0.0
        %v2246 = vadd.f32 %v2244, 0.0
        %s2247 = sld [smem:[#allocation17 + $0x80]]
        %v2248 = vstv %s2247
        %v2249 = vmul.f32 %v2248, %v2239
        %v2250 = vmul.f32 %v2248, %v2240
        %v2251 = vadd.f32 %v2249, 0.0
        %v2252 = vadd.f32 %v2250, 0.0
        %s2253 = sld [smem:[#allocation17 + $0x1]]
        %v2254 = vstv %s2253
        %v2255 = vmul.f32 %v2254, %v2239
        %v2256 = vmul.f32 %v2254, %v2240
        %2259 = vrot.lane.b32.xlu0 %v2255, 127
        %v2260 = vpop.permute.xlu0 %2259
        %2261 = vrot.lane.b32.xlu0 %v2256, 127
        %v2262 = vpop.permute.xlu0 %2261
        %v2265 = vadd.f32 %v2245, %v2260
        %v2266 = vadd.f32 %v2246, %v2262
        %s2267 = sld [smem:[#allocation17 + $0x81]]
        %v2268 = vstv %s2267
        %v2269 = vmul.f32 %v2268, %v2239
        %v2270 = vmul.f32 %v2268, %v2240
        %2273 = vrot.lane.b32.xlu0 %v2269, 127
        %v2274 = vpop.permute.xlu0 %2273
        %2275 = vrot.lane.b32.xlu0 %v2270, 127
        %v2276 = vpop.permute.xlu0 %2275
        %v2279 = vadd.f32 %v2251, %v2274
        %v2280 = vadd.f32 %v2252, %v2276
        %s2281 = sld [smem:[#allocation17 + $0x2]]
        %v2282 = vstv %s2281
        %v2283 = vmul.f32 %v2282, %v2239
        %v2284 = vmul.f32 %v2282, %v2240
        %2287 = vrot.lane.b32.xlu0 %v2283, 126
        %v2288 = vpop.permute.xlu0 %2287
        %2289 = vrot.lane.b32.xlu0 %v2284, 126
        %v2290 = vpop.permute.xlu0 %2289
        %v2293 = vadd.f32 %v2265, %v2288
        %v2294 = vadd.f32 %v2266, %v2290
        %s2295 = sld [smem:[#allocation17 + $0x82]]
        %v2296 = vstv %s2295
        %v2297 = vmul.f32 %v2296, %v2239
        %v2298 = vmul.f32 %v2296, %v2240
        %2301 = vrot.lane.b32.xlu0 %v2297, 126
        %v2302 = vpop.permute.xlu0 %2301
        %2303 = vrot.lane.b32.xlu0 %v2298, 126
        %v2304 = vpop.permute.xlu0 %2303
        %v2307 = vadd.f32 %v2279, %v2302
        %v2308 = vadd.f32 %v2280, %v2304
        %v2309 = vld [vmem:[#allocation2 + $0x1] sm:$0xff]
        %v2310 = vld [vmem:[#allocation2 + $0x9] sm:$0xff]
        %s2311 = sld [smem:[#allocation17 + $0x3]]
        %v2312 = vstv %s2311
        %v2313 = vmul.f32 %v2312, %v2309
        %v2314 = vmul.f32 %v2312, %v2310
        %v2315 = vadd.f32 %v2293, %v2313
        %v2316 = vadd.f32 %v2294, %v2314
        %s2317 = sld [smem:[#allocation17 + $0x83]]
        %v2318 = vstv %s2317
        %v2319 = vmul.f32 %v2318, %v2309
        %v2320 = vmul.f32 %v2318, %v2310
        %v2321 = vadd.f32 %v2307, %v2319
        %v2322 = vadd.f32 %v2308, %v2320
        %s2323 = sld [smem:[#allocation17 + $0x4]]
        %v2324 = vstv %s2323
        %v2325 = vmul.f32 %v2324, %v2309
        %v2326 = vmul.f32 %v2324, %v2310
        %2329 = vrot.lane.b32.xlu0 %v2325, 127
        %v2330 = vpop.permute.xlu0 %2329
        %2331 = vrot.lane.b32.xlu0 %v2326, 127
        %v2332 = vpop.permute.xlu0 %2331
        %v2335 = vadd.f32 %v2315, %v2330
        %v2336 = vadd.f32 %v2316, %v2332
        %s2337 = sld [smem:[#allocation17 + $0x84]]
        %v2338 = vstv %s2337
        %v2339 = vmul.f32 %v2338, %v2309
        %v2340 = vmul.f32 %v2338, %v2310
        %2343 = vrot.lane.b32.xlu0 %v2339, 127
        %v2344 = vpop.permute.xlu0 %2343
        %2345 = vrot.lane.b32.xlu0 %v2340, 127
        %v2346 = vpop.permute.xlu0 %2345
        %v2349 = vadd.f32 %v2321, %v2344
        %v2350 = vadd.f32 %v2322, %v2346
        %s2351 = sld [smem:[#allocation17 + $0x5]]
        %v2352 = vstv %s2351
        %v2353 = vmul.f32 %v2352, %v2309
        %v2354 = vmul.f32 %v2352, %v2310
        %2357 = vrot.lane.b32.xlu0 %v2353, 126
        %v2358 = vpop.permute.xlu0 %2357
        %2359 = vrot.lane.b32.xlu0 %v2354, 126
        %v2360 = vpop.permute.xlu0 %2359
        %v2363 = vadd.f32 %v2335, %v2358
        %v2364 = vadd.f32 %v2336, %v2360
        %s2365 = sld [smem:[#allocation17 + $0x85]]
        %v2366 = vstv %s2365
        %v2367 = vmul.f32 %v2366, %v2309
        %v2368 = vmul.f32 %v2366, %v2310
        %2371 = vrot.lane.b32.xlu0 %v2367, 126
        %v2372 = vpop.permute.xlu0 %2371
        %2373 = vrot.lane.b32.xlu0 %v2368, 126
        %v2374 = vpop.permute.xlu0 %2373
        %v2377 = vadd.f32 %v2349, %v2372
        %v2378 = vadd.f32 %v2350, %v2374
        %v2379 = vld [vmem:[#allocation2 + $0x2] sm:$0xff]
        %v2380 = vld [vmem:[#allocation2 + $0xa] sm:$0xff]
        %s2381 = sld [smem:[#allocation17 + $0x6]]
        %v2382 = vstv %s2381
        %v2383 = vmul.f32 %v2382, %v2379
        %v2384 = vmul.f32 %v2382, %v2380
        %v2385 = vadd.f32 %v2363, %v2383
        %v2386 = vadd.f32 %v2364, %v2384
        %s2387 = sld [smem:[#allocation17 + $0x86]]
        %v2388 = vstv %s2387
        %v2389 = vmul.f32 %v2388, %v2379
        %v2390 = vmul.f32 %v2388, %v2380
        %v2391 = vadd.f32 %v2377, %v2389
        %v2392 = vadd.f32 %v2378, %v2390
        %s2393 = sld [smem:[#allocation17 + $0x7]]
        %v2394 = vstv %s2393
        %v2395 = vmul.f32 %v2394, %v2379
        %v2396 = vmul.f32 %v2394, %v2380
        %2399 = vrot.lane.b32.xlu0 %v2395, 127
        %v2400 = vpop.permute.xlu0 %2399
        %2401 = vrot.lane.b32.xlu0 %v2396, 127
        %v2402 = vpop.permute.xlu0 %2401
        %v2405 = vadd.f32 %v2385, %v2400
        %v2406 = vadd.f32 %v2386, %v2402
        %s2407 = sld [smem:[#allocation17 + $0x87]]
        %v2408 = vstv %s2407
        %v2409 = vmul.f32 %v2408, %v2379
        %v2410 = vmul.f32 %v2408, %v2380
        %2413 = vrot.lane.b32.xlu0 %v2409, 127
        %v2414 = vpop.permute.xlu0 %2413
        %2415 = vrot.lane.b32.xlu0 %v2410, 127
        %v2416 = vpop.permute.xlu0 %2415
        %v2419 = vadd.f32 %v2391, %v2414
        %v2420 = vadd.f32 %v2392, %v2416
        %s2421 = sld [smem:[#allocation17 + $0x8]]
        %v2422 = vstv %s2421
        %v2423 = vmul.f32 %v2422, %v2379
        %v2424 = vmul.f32 %v2422, %v2380
        %2427 = vrot.lane.b32.xlu0 %v2423, 126
        %v2428 = vpop.permute.xlu0 %2427
        %2429 = vrot.lane.b32.xlu0 %v2424, 126
        %v2430 = vpop.permute.xlu0 %2429
        %v2433 = vadd.f32 %v2405, %v2428
        %v2434 = vadd.f32 %v2406, %v2430
        %s2435 = sld [smem:[#allocation17 + $0x88]]
        %v2436 = vstv %s2435
        %v2437 = vmul.f32 %v2436, %v2379
        %v2438 = vmul.f32 %v2436, %v2380
        %2441 = vrot.lane.b32.xlu0 %v2437, 126
        %v2442 = vpop.permute.xlu0 %2441
        %2443 = vrot.lane.b32.xlu0 %v2438, 126
        %v2444 = vpop.permute.xlu0 %2443
        %v2447 = vadd.f32 %v2419, %v2442
        %v2448 = vadd.f32 %v2420, %v2444
        %v2449 = vld [vmem:[%s877] sm:$0xff]
        %v2450 = vld [vmem:[%s877 + $0x8] sm:$0xff]
        %s2451 = sld [smem:[#allocation17 + $0x9]]
        %v2452 = vstv %s2451
        %v2453 = vmul.f32 %v2452, %v2449
        %v2454 = vmul.f32 %v2452, %v2450
        %v2455 = vadd.f32 %v2433, %v2453
        %v2456 = vadd.f32 %v2434, %v2454
        %s2457 = sld [smem:[#allocation17 + $0x89]]
        %v2458 = vstv %s2457
        %v2459 = vmul.f32 %v2458, %v2449
        %v2460 = vmul.f32 %v2458, %v2450
        %v2461 = vadd.f32 %v2447, %v2459
        %v2462 = vadd.f32 %v2448, %v2460
        %s2463 = sld [smem:[#allocation17 + $0xa]]
        %v2464 = vstv %s2463
        %v2465 = vmul.f32 %v2464, %v2449
        %v2466 = vmul.f32 %v2464, %v2450
        %2469 = vrot.lane.b32.xlu0 %v2465, 127
        %v2470 = vpop.permute.xlu0 %2469
        %2471 = vrot.lane.b32.xlu0 %v2466, 127
        %v2472 = vpop.permute.xlu0 %2471
        %v2475 = vadd.f32 %v2455, %v2470
        %v2476 = vadd.f32 %v2456, %v2472
        %s2477 = sld [smem:[#allocation17 + $0x8a]]
        %v2478 = vstv %s2477
        %v2479 = vmul.f32 %v2478, %v2449
        %v2480 = vmul.f32 %v2478, %v2450
        %2483 = vrot.lane.b32.xlu0 %v2479, 127
        %v2484 = vpop.permute.xlu0 %2483
        %2485 = vrot.lane.b32.xlu0 %v2480, 127
        %v2486 = vpop.permute.xlu0 %2485
        %v2489 = vadd.f32 %v2461, %v2484
        %v2490 = vadd.f32 %v2462, %v2486
        %s2491 = sld [smem:[#allocation17 + $0xb]]
        %v2492 = vstv %s2491
        %v2493 = vmul.f32 %v2492, %v2449
        %v2494 = vmul.f32 %v2492, %v2450
        %2497 = vrot.lane.b32.xlu0 %v2493, 126
        %v2498 = vpop.permute.xlu0 %2497
        %2499 = vrot.lane.b32.xlu0 %v2494, 126
        %v2500 = vpop.permute.xlu0 %2499
        %v2503 = vadd.f32 %v2475, %v2498
        %v2504 = vadd.f32 %v2476, %v2500
        %s2505 = sld [smem:[#allocation17 + $0x8b]]
        %v2506 = vstv %s2505
        %v2507 = vmul.f32 %v2506, %v2449
        %v2508 = vmul.f32 %v2506, %v2450
        %2511 = vrot.lane.b32.xlu0 %v2507, 126
        %v2512 = vpop.permute.xlu0 %2511
        %2513 = vrot.lane.b32.xlu0 %v2508, 126
        %v2514 = vpop.permute.xlu0 %2513
        %v2517 = vadd.f32 %v2489, %v2512
        %v2518 = vadd.f32 %v2490, %v2514
        %v2519 = vld [vmem:[%s877 + $0x1] sm:$0xff]
        %v2520 = vld [vmem:[%s877 + $0x9] sm:$0xff]
        %s2521 = sld [smem:[#allocation17 + $0xc]]
        %v2522 = vstv %s2521
        %v2523 = vmul.f32 %v2522, %v2519
        %v2524 = vmul.f32 %v2522, %v2520
        %v2525 = vadd.f32 %v2503, %v2523
        %v2526 = vadd.f32 %v2504, %v2524
        %s2527 = sld [smem:[#allocation17 + $0x8c]]
        %v2528 = vstv %s2527
        %v2529 = vmul.f32 %v2528, %v2519
        %v2530 = vmul.f32 %v2528, %v2520
        %v2531 = vadd.f32 %v2517, %v2529
        %v2532 = vadd.f32 %v2518, %v2530
        %s2533 = sld [smem:[#allocation17 + $0xd]]
        %v2534 = vstv %s2533
        %v2535 = vmul.f32 %v2534, %v2519
        %v2536 = vmul.f32 %v2534, %v2520
        %2539 = vrot.lane.b32.xlu0 %v2535, 127
        %v2540 = vpop.permute.xlu0 %2539
        %2541 = vrot.lane.b32.xlu0 %v2536, 127
        %v2542 = vpop.permute.xlu0 %2541
        %v2545 = vadd.f32 %v2525, %v2540
        %v2546 = vadd.f32 %v2526, %v2542
        %s2547 = sld [smem:[#allocation17 + $0x8d]]
        %v2548 = vstv %s2547
        %v2549 = vmul.f32 %v2548, %v2519
        %v2550 = vmul.f32 %v2548, %v2520
        %2553 = vrot.lane.b32.xlu0 %v2549, 127
        %v2554 = vpop.permute.xlu0 %2553
        %2555 = vrot.lane.b32.xlu0 %v2550, 127
        %v2556 = vpop.permute.xlu0 %2555
        %v2559 = vadd.f32 %v2531, %v2554
        %v2560 = vadd.f32 %v2532, %v2556
        %s2561 = sld [smem:[#allocation17 + $0xe]]
        %v2562 = vstv %s2561
        %v2563 = vmul.f32 %v2562, %v2519
        %v2564 = vmul.f32 %v2562, %v2520
        %2567 = vrot.lane.b32.xlu0 %v2563, 126
        %v2568 = vpop.permute.xlu0 %2567
        %2569 = vrot.lane.b32.xlu0 %v2564, 126
        %v2570 = vpop.permute.xlu0 %2569
        %v2573 = vadd.f32 %v2545, %v2568
        %v2574 = vadd.f32 %v2546, %v2570
        %s2575 = sld [smem:[#allocation17 + $0x8e]]
        %v2576 = vstv %s2575
        %v2577 = vmul.f32 %v2576, %v2519
        %v2578 = vmul.f32 %v2576, %v2520
        %2581 = vrot.lane.b32.xlu0 %v2577, 126
        %v2582 = vpop.permute.xlu0 %2581
        %2583 = vrot.lane.b32.xlu0 %v2578, 126
        %v2584 = vpop.permute.xlu0 %2583
        %v2587 = vadd.f32 %v2559, %v2582
        %v2588 = vadd.f32 %v2560, %v2584
        %v2589 = vld [vmem:[%s877 + $0x2] sm:$0xff]
        %v2590 = vld [vmem:[%s877 + $0xa] sm:$0xff]
        %s2591 = sld [smem:[#allocation17 + $0xf]]
        %v2592 = vstv %s2591
        %v2593 = vmul.f32 %v2592, %v2589
        %v2594 = vmul.f32 %v2592, %v2590
        %v2595 = vadd.f32 %v2573, %v2593
        %v2596 = vadd.f32 %v2574, %v2594
        %s2597 = sld [smem:[#allocation17 + $0x8f]]
        %v2598 = vstv %s2597
        %v2599 = vmul.f32 %v2598, %v2589
        %v2600 = vmul.f32 %v2598, %v2590
        %v2601 = vadd.f32 %v2587, %v2599
        %v2602 = vadd.f32 %v2588, %v2600
        %s2603 = sld [smem:[#allocation17 + $0x10]]
        %v2604 = vstv %s2603
        %v2605 = vmul.f32 %v2604, %v2589
        %v2606 = vmul.f32 %v2604, %v2590
        %2609 = vrot.lane.b32.xlu0 %v2605, 127
        %v2610 = vpop.permute.xlu0 %2609
        %2611 = vrot.lane.b32.xlu0 %v2606, 127
        %v2612 = vpop.permute.xlu0 %2611
        %v2615 = vadd.f32 %v2595, %v2610
        %v2616 = vadd.f32 %v2596, %v2612
        %s2617 = sld [smem:[#allocation17 + $0x90]]
        %v2618 = vstv %s2617
        %v2619 = vmul.f32 %v2618, %v2589
        %v2620 = vmul.f32 %v2618, %v2590
        %2623 = vrot.lane.b32.xlu0 %v2619, 127
        %v2624 = vpop.permute.xlu0 %2623
        %2625 = vrot.lane.b32.xlu0 %v2620, 127
        %v2626 = vpop.permute.xlu0 %2625
        %v2629 = vadd.f32 %v2601, %v2624
        %v2630 = vadd.f32 %v2602, %v2626
        %s2631 = sld [smem:[#allocation17 + $0x11]]
        %v2632 = vstv %s2631
        %v2633 = vmul.f32 %v2632, %v2589
        %v2634 = vmul.f32 %v2632, %v2590
        %2637 = vrot.lane.b32.xlu0 %v2633, 126
        %v2638 = vpop.permute.xlu0 %2637
        %2639 = vrot.lane.b32.xlu0 %v2634, 126
        %v2640 = vpop.permute.xlu0 %2639
        %v2643 = vadd.f32 %v2615, %v2638
        %v2644 = vadd.f32 %v2616, %v2640
        %s2645 = sld [smem:[#allocation17 + $0x91]]
        %v2646 = vstv %s2645
        %v2647 = vmul.f32 %v2646, %v2589
        %v2648 = vmul.f32 %v2646, %v2590
        %2651 = vrot.lane.b32.xlu0 %v2647, 126
        %v2652 = vpop.permute.xlu0 %2651
        %2653 = vrot.lane.b32.xlu0 %v2648, 126
        %v2654 = vpop.permute.xlu0 %2653
        %v2657 = vadd.f32 %v2629, %v2652
        %v2658 = vadd.f32 %v2630, %v2654
        %v2659 = vld [vmem:[%s888] sm:$0xff]
        %v2660 = vld [vmem:[%s888 + $0x8] sm:$0xff]
        %s2661 = sld [smem:[#allocation17 + $0x12]]
        %v2662 = vstv %s2661
        %v2663 = vmul.f32 %v2662, %v2659
        %v2664 = vmul.f32 %v2662, %v2660
        %v2665 = vadd.f32 %v2643, %v2663
        %v2666 = vadd.f32 %v2644, %v2664
        %s2667 = sld [smem:[#allocation17 + $0x92]]
        %v2668 = vstv %s2667
        %v2669 = vmul.f32 %v2668, %v2659
        %v2670 = vmul.f32 %v2668, %v2660
        %v2671 = vadd.f32 %v2657, %v2669
        %v2672 = vadd.f32 %v2658, %v2670
        %s2673 = sld [smem:[#allocation17 + $0x13]]
        %v2674 = vstv %s2673
        %v2675 = vmul.f32 %v2674, %v2659
        %v2676 = vmul.f32 %v2674, %v2660
        %2679 = vrot.lane.b32.xlu0 %v2675, 127
        %v2680 = vpop.permute.xlu0 %2679
        %2681 = vrot.lane.b32.xlu0 %v2676, 127
        %v2682 = vpop.permute.xlu0 %2681
        %v2685 = vadd.f32 %v2665, %v2680
        %v2686 = vadd.f32 %v2666, %v2682
        %s2687 = sld [smem:[#allocation17 + $0x93]]
        %v2688 = vstv %s2687
        %v2689 = vmul.f32 %v2688, %v2659
        %v2690 = vmul.f32 %v2688, %v2660
        %2693 = vrot.lane.b32.xlu0 %v2689, 127
        %v2694 = vpop.permute.xlu0 %2693
        %2695 = vrot.lane.b32.xlu0 %v2690, 127
        %v2696 = vpop.permute.xlu0 %2695
        %v2699 = vadd.f32 %v2671, %v2694
        %v2700 = vadd.f32 %v2672, %v2696
        %s2701 = sld [smem:[#allocation17 + $0x14]]
        %v2702 = vstv %s2701
        %v2703 = vmul.f32 %v2702, %v2659
        %v2704 = vmul.f32 %v2702, %v2660
        %2707 = vrot.lane.b32.xlu0 %v2703, 126
        %v2708 = vpop.permute.xlu0 %2707
        %2709 = vrot.lane.b32.xlu0 %v2704, 126
        %v2710 = vpop.permute.xlu0 %2709
        %v2713 = vadd.f32 %v2685, %v2708
        %v2714 = vadd.f32 %v2686, %v2710
        %s2715 = sld [smem:[#allocation17 + $0x94]]
        %v2716 = vstv %s2715
        %v2717 = vmul.f32 %v2716, %v2659
        %v2718 = vmul.f32 %v2716, %v2660
        %2721 = vrot.lane.b32.xlu0 %v2717, 126
        %v2722 = vpop.permute.xlu0 %2721
        %2723 = vrot.lane.b32.xlu0 %v2718, 126
        %v2724 = vpop.permute.xlu0 %2723
        %v2727 = vadd.f32 %v2699, %v2722
        %v2728 = vadd.f32 %v2700, %v2724
        %v2729 = vld [vmem:[%s888 + $0x1] sm:$0xff]
        %v2730 = vld [vmem:[%s888 + $0x9] sm:$0xff]
        %s2731 = sld [smem:[#allocation17 + $0x15]]
        %v2732 = vstv %s2731
        %v2733 = vmul.f32 %v2732, %v2729
        %v2734 = vmul.f32 %v2732, %v2730
        %v2735 = vadd.f32 %v2713, %v2733
        %v2736 = vadd.f32 %v2714, %v2734
        %s2737 = sld [smem:[#allocation17 + $0x95]]
        %v2738 = vstv %s2737
        %v2739 = vmul.f32 %v2738, %v2729
        %v2740 = vmul.f32 %v2738, %v2730
        %v2741 = vadd.f32 %v2727, %v2739
        %v2742 = vadd.f32 %v2728, %v2740
        %s2743 = sld [smem:[#allocation17 + $0x16]]
        %v2744 = vstv %s2743
        %v2745 = vmul.f32 %v2744, %v2729
        %v2746 = vmul.f32 %v2744, %v2730
        %2749 = vrot.lane.b32.xlu0 %v2745, 127
        %v2750 = vpop.permute.xlu0 %2749
        %2751 = vrot.lane.b32.xlu0 %v2746, 127
        %v2752 = vpop.permute.xlu0 %2751
        %v2755 = vadd.f32 %v2735, %v2750
        %v2756 = vadd.f32 %v2736, %v2752
        %s2757 = sld [smem:[#allocation17 + $0x96]]
        %v2758 = vstv %s2757
        %v2759 = vmul.f32 %v2758, %v2729
        %v2760 = vmul.f32 %v2758, %v2730
        %2763 = vrot.lane.b32.xlu0 %v2759, 127
        %v2764 = vpop.permute.xlu0 %2763
        %2765 = vrot.lane.b32.xlu0 %v2760, 127
        %v2766 = vpop.permute.xlu0 %2765
        %v2769 = vadd.f32 %v2741, %v2764
        %v2770 = vadd.f32 %v2742, %v2766
        %s2771 = sld [smem:[#allocation17 + $0x17]]
        %v2772 = vstv %s2771
        %v2773 = vmul.f32 %v2772, %v2729
        %v2774 = vmul.f32 %v2772, %v2730
        %2777 = vrot.lane.b32.xlu0 %v2773, 126
        %v2778 = vpop.permute.xlu0 %2777
        %2779 = vrot.lane.b32.xlu0 %v2774, 126
        %v2780 = vpop.permute.xlu0 %2779
        %v2783 = vadd.f32 %v2755, %v2778
        %v2784 = vadd.f32 %v2756, %v2780
        %s2785 = sld [smem:[#allocation17 + $0x97]]
        %v2786 = vstv %s2785
        %v2787 = vmul.f32 %v2786, %v2729
        %v2788 = vmul.f32 %v2786, %v2730
        %2791 = vrot.lane.b32.xlu0 %v2787, 126
        %v2792 = vpop.permute.xlu0 %2791
        %2793 = vrot.lane.b32.xlu0 %v2788, 126
        %v2794 = vpop.permute.xlu0 %2793
        %v2797 = vadd.f32 %v2769, %v2792
        %v2798 = vadd.f32 %v2770, %v2794
        %v2799 = vld [vmem:[%s888 + $0x2] sm:$0xff]
        %v2800 = vld [vmem:[%s888 + $0xa] sm:$0xff]
        %s2801 = sld [smem:[#allocation17 + $0x18]]
        %v2802 = vstv %s2801
        %v2803 = vmul.f32 %v2802, %v2799
        %v2804 = vmul.f32 %v2802, %v2800
        %v2805 = vadd.f32 %v2783, %v2803
        %v2806 = vadd.f32 %v2784, %v2804
        %s2807 = sld [smem:[#allocation17 + $0x98]]
        %v2808 = vstv %s2807
        %v2809 = vmul.f32 %v2808, %v2799
        %v2810 = vmul.f32 %v2808, %v2800
        %v2811 = vadd.f32 %v2797, %v2809
        %v2812 = vadd.f32 %v2798, %v2810
        %s2813 = sld [smem:[#allocation17 + $0x19]]
        %v2814 = vstv %s2813
        %v2815 = vmul.f32 %v2814, %v2799
        %v2816 = vmul.f32 %v2814, %v2800
        %2819 = vrot.lane.b32.xlu0 %v2815, 127
        %v2820 = vpop.permute.xlu0 %2819
        %2821 = vrot.lane.b32.xlu0 %v2816, 127
        %v2822 = vpop.permute.xlu0 %2821
        %v2825 = vadd.f32 %v2805, %v2820
        %v2826 = vadd.f32 %v2806, %v2822
        %s2827 = sld [smem:[#allocation17 + $0x99]]
        %v2828 = vstv %s2827
        %v2829 = vmul.f32 %v2828, %v2799
        %v2830 = vmul.f32 %v2828, %v2800
        %2833 = vrot.lane.b32.xlu0 %v2829, 127
        %v2834 = vpop.permute.xlu0 %2833
        %2835 = vrot.lane.b32.xlu0 %v2830, 127
        %v2836 = vpop.permute.xlu0 %2835
        %v2839 = vadd.f32 %v2811, %v2834
        %v2840 = vadd.f32 %v2812, %v2836
        %s2841 = sld [smem:[#allocation17 + $0x1a]]
        %v2842 = vstv %s2841
        %v2843 = vmul.f32 %v2842, %v2799
        %v2844 = vmul.f32 %v2842, %v2800
        %2847 = vrot.lane.b32.xlu0 %v2843, 126
        %v2848 = vpop.permute.xlu0 %2847
        %2849 = vrot.lane.b32.xlu0 %v2844, 126
        %v2850 = vpop.permute.xlu0 %2849
        %v2853 = vadd.f32 %v2825, %v2848
        %v2854 = vadd.f32 %v2826, %v2850
        %s2855 = sld [smem:[#allocation17 + $0x9a]]
        %v2856 = vstv %s2855
        %v2857 = vmul.f32 %v2856, %v2799
        %v2858 = vmul.f32 %v2856, %v2800
        %2861 = vrot.lane.b32.xlu0 %v2857, 126
        %v2862 = vpop.permute.xlu0 %2861
        %2863 = vrot.lane.b32.xlu0 %v2858, 126
        %v2864 = vpop.permute.xlu0 %2863
        %v2867 = vadd.f32 %v2839, %v2862
        %v2868 = vadd.f32 %v2840, %v2864
        %v2869 = vld [vmem:[%s899] sm:$0xff]
        %v2870 = vld [vmem:[%s899 + $0x8] sm:$0xff]
        %s2871 = sld [smem:[#allocation17 + $0x1b]]
        %v2872 = vstv %s2871
        %v2873 = vmul.f32 %v2872, %v2869
        %v2874 = vmul.f32 %v2872, %v2870
        %v2875 = vadd.f32 %v2853, %v2873
        %v2876 = vadd.f32 %v2854, %v2874
        %s2877 = sld [smem:[#allocation17 + $0x9b]]
        %v2878 = vstv %s2877
        %v2879 = vmul.f32 %v2878, %v2869
        %v2880 = vmul.f32 %v2878, %v2870
        %v2881 = vadd.f32 %v2867, %v2879
        %v2882 = vadd.f32 %v2868, %v2880
        %s2883 = sld [smem:[#allocation17 + $0x1c]]
        %v2884 = vstv %s2883
        %v2885 = vmul.f32 %v2884, %v2869
        %v2886 = vmul.f32 %v2884, %v2870
        %2889 = vrot.lane.b32.xlu0 %v2885, 127
        %v2890 = vpop.permute.xlu0 %2889
        %2891 = vrot.lane.b32.xlu0 %v2886, 127
        %v2892 = vpop.permute.xlu0 %2891
        %v2895 = vadd.f32 %v2875, %v2890
        %v2896 = vadd.f32 %v2876, %v2892
        %s2897 = sld [smem:[#allocation17 + $0x9c]]
        %v2898 = vstv %s2897
        %v2899 = vmul.f32 %v2898, %v2869
        %v2900 = vmul.f32 %v2898, %v2870
        %2903 = vrot.lane.b32.xlu0 %v2899, 127
        %v2904 = vpop.permute.xlu0 %2903
        %2905 = vrot.lane.b32.xlu0 %v2900, 127
        %v2906 = vpop.permute.xlu0 %2905
        %v2909 = vadd.f32 %v2881, %v2904
        %v2910 = vadd.f32 %v2882, %v2906
        %s2911 = sld [smem:[#allocation17 + $0x1d]]
        %v2912 = vstv %s2911
        %v2913 = vmul.f32 %v2912, %v2869
        %v2914 = vmul.f32 %v2912, %v2870
        %2917 = vrot.lane.b32.xlu0 %v2913, 126
        %v2918 = vpop.permute.xlu0 %2917
        %2919 = vrot.lane.b32.xlu0 %v2914, 126
        %v2920 = vpop.permute.xlu0 %2919
        %v2923 = vadd.f32 %v2895, %v2918
        %v2924 = vadd.f32 %v2896, %v2920
        %s2925 = sld [smem:[#allocation17 + $0x9d]]
        %v2926 = vstv %s2925
        %v2927 = vmul.f32 %v2926, %v2869
        %v2928 = vmul.f32 %v2926, %v2870
        %2931 = vrot.lane.b32.xlu0 %v2927, 126
        %v2932 = vpop.permute.xlu0 %2931
        %2933 = vrot.lane.b32.xlu0 %v2928, 126
        %v2934 = vpop.permute.xlu0 %2933
        %v2937 = vadd.f32 %v2909, %v2932
        %v2938 = vadd.f32 %v2910, %v2934
        %v2939 = vld [vmem:[%s899 + $0x1] sm:$0xff]
        %v2940 = vld [vmem:[%s899 + $0x9] sm:$0xff]
        %s2941 = sld [smem:[#allocation17 + $0x1e]]
        %v2942 = vstv %s2941
        %v2943 = vmul.f32 %v2942, %v2939
        %v2944 = vmul.f32 %v2942, %v2940
        %v2945 = vadd.f32 %v2923, %v2943
        %v2946 = vadd.f32 %v2924, %v2944
        %s2947 = sld [smem:[#allocation17 + $0x9e]]
        %v2948 = vstv %s2947
        %v2949 = vmul.f32 %v2948, %v2939
        %v2950 = vmul.f32 %v2948, %v2940
        %v2951 = vadd.f32 %v2937, %v2949
        %v2952 = vadd.f32 %v2938, %v2950
        %s2953 = sld [smem:[#allocation17 + $0x1f]]
        %v2954 = vstv %s2953
        %v2955 = vmul.f32 %v2954, %v2939
        %v2956 = vmul.f32 %v2954, %v2940
        %2959 = vrot.lane.b32.xlu0 %v2955, 127
        %v2960 = vpop.permute.xlu0 %2959
        %2961 = vrot.lane.b32.xlu0 %v2956, 127
        %v2962 = vpop.permute.xlu0 %2961
        %v2965 = vadd.f32 %v2945, %v2960
        %v2966 = vadd.f32 %v2946, %v2962
        %s2967 = sld [smem:[#allocation17 + $0x9f]]
        %v2968 = vstv %s2967
        %v2969 = vmul.f32 %v2968, %v2939
        %v2970 = vmul.f32 %v2968, %v2940
        %2973 = vrot.lane.b32.xlu0 %v2969, 127
        %v2974 = vpop.permute.xlu0 %2973
        %2975 = vrot.lane.b32.xlu0 %v2970, 127
        %v2976 = vpop.permute.xlu0 %2975
        %v2979 = vadd.f32 %v2951, %v2974
        %v2980 = vadd.f32 %v2952, %v2976
        %s2981 = sld [smem:[#allocation17 + $0x20]]
        %v2982 = vstv %s2981
        %v2983 = vmul.f32 %v2982, %v2939
        %v2984 = vmul.f32 %v2982, %v2940
        %2987 = vrot.lane.b32.xlu0 %v2983, 126
        %v2988 = vpop.permute.xlu0 %2987
        %2989 = vrot.lane.b32.xlu0 %v2984, 126
        %v2990 = vpop.permute.xlu0 %2989
        %v2993 = vadd.f32 %v2965, %v2988
        %v2994 = vadd.f32 %v2966, %v2990
        %s2995 = sld [smem:[#allocation17 + $0xa0]]
        %v2996 = vstv %s2995
        %v2997 = vmul.f32 %v2996, %v2939
        %v2998 = vmul.f32 %v2996, %v2940
        %3001 = vrot.lane.b32.xlu0 %v2997, 126
        %v3002 = vpop.permute.xlu0 %3001
        %3003 = vrot.lane.b32.xlu0 %v2998, 126
        %v3004 = vpop.permute.xlu0 %3003
        %v3007 = vadd.f32 %v2979, %v3002
        %v3008 = vadd.f32 %v2980, %v3004
        %v3009 = vld [vmem:[%s899 + $0x2] sm:$0xff]
        %v3010 = vld [vmem:[%s899 + $0xa] sm:$0xff]
        %s3011 = sld [smem:[#allocation17 + $0x21]]
        %v3012 = vstv %s3011
        %v3013 = vmul.f32 %v3012, %v3009
        %v3014 = vmul.f32 %v3012, %v3010
        %v3015 = vadd.f32 %v2993, %v3013
        %v3016 = vadd.f32 %v2994, %v3014
        %s3017 = sld [smem:[#allocation17 + $0xa1]]
        %v3018 = vstv %s3017
        %v3019 = vmul.f32 %v3018, %v3009
        %v3020 = vmul.f32 %v3018, %v3010
        %v3021 = vadd.f32 %v3007, %v3019
        %v3022 = vadd.f32 %v3008, %v3020
        %s3023 = sld [smem:[#allocation17 + $0x22]]
        %v3024 = vstv %s3023
        %v3025 = vmul.f32 %v3024, %v3009
        %v3026 = vmul.f32 %v3024, %v3010
        %3029 = vrot.lane.b32.xlu0 %v3025, 127
        %v3030 = vpop.permute.xlu0 %3029
        %3031 = vrot.lane.b32.xlu0 %v3026, 127
        %v3032 = vpop.permute.xlu0 %3031
        %v3035 = vadd.f32 %v3015, %v3030
        %v3036 = vadd.f32 %v3016, %v3032
        %s3037 = sld [smem:[#allocation17 + $0xa2]]
        %v3038 = vstv %s3037
        %v3039 = vmul.f32 %v3038, %v3009
        %v3040 = vmul.f32 %v3038, %v3010
        %3043 = vrot.lane.b32.xlu0 %v3039, 127
        %v3044 = vpop.permute.xlu0 %3043
        %3045 = vrot.lane.b32.xlu0 %v3040, 127
        %v3046 = vpop.permute.xlu0 %3045
        %v3049 = vadd.f32 %v3021, %v3044
        %v3050 = vadd.f32 %v3022, %v3046
        %s3051 = sld [smem:[#allocation17 + $0x23]]
        %v3052 = vstv %s3051
        %v3053 = vmul.f32 %v3052, %v3009
        %v3054 = vmul.f32 %v3052, %v3010
        %3057 = vrot.lane.b32.xlu0 %v3053, 126
        %v3058 = vpop.permute.xlu0 %3057
        %3059 = vrot.lane.b32.xlu0 %v3054, 126
        %v3060 = vpop.permute.xlu0 %3059
        %v3063 = vadd.f32 %v3035, %v3058
        %v3064 = vadd.f32 %v3036, %v3060
        %s3065 = sld [smem:[#allocation17 + $0xa3]]
        %v3066 = vstv %s3065
        %v3067 = vmul.f32 %v3066, %v3009
        %v3068 = vmul.f32 %v3066, %v3010
        %3071 = vrot.lane.b32.xlu0 %v3067, 126
        %v3072 = vpop.permute.xlu0 %3071
        %3073 = vrot.lane.b32.xlu0 %v3068, 126
        %v3074 = vpop.permute.xlu0 %3073
        %v3077 = vadd.f32 %v3049, %v3072
        %v3078 = vadd.f32 %v3050, %v3074
        %s3079 = sld [smem:[#allocation19]]
        %v3080 = vstv %s3079
        %v3081 = vadd.f32 %v3063, %v3080
        %v3082 = vadd.f32 %v3064, %v3080
        %s3083 = sld [smem:[#allocation19 + $0x1]]
        %v3084 = vstv %s3083
        %v3085 = vadd.f32 %v3077, %v3084
        %v3086 = vadd.f32 %v3078, %v3084
        %3089 = vrot.lane.b32.xlu0 %v3081, 1
        %v3090 = vpop.permute.xlu0 %3089
        %3091 = vrot.lane.b32.xlu0 %v3082, 1
        %v3092 = vpop.permute.xlu0 %3091
        %3095 = vst.msk [vmem:[#allocation3 + $0x1] sm:$0xff] %vm866, %v3090
        %3096 = vst.msk [vmem:[#allocation3 + $0x9] sm:$0xff] %vm866, %v3092
        %3099 = vrot.lane.b32.xlu0 %v3085, 1
        %v3100 = vpop.permute.xlu0 %3099
        %3101 = vrot.lane.b32.xlu0 %v3086, 1
        %v3102 = vpop.permute.xlu0 %3101
        %3105 = vst.msk [vmem:[%s1768 + $0x1] sm:$0xff] %vm866, %v3100
        %3106 = vst.msk [vmem:[%s1768 + $0x9] sm:$0xff] %vm866, %v3102
        %v3107 = vld [vmem:[#allocation3] sm:$0xff]
        %v3108 = vld [vmem:[#allocation3 + $0x8] sm:$0xff]
        %s3109 = sld [smem:[#allocation20]]
        %v3110 = vstv %s3109
        %v3111 = vmul.f32 %v3110, %v3107
        %v3112 = vmul.f32 %v3110, %v3108
        %v3113 = vadd.f32 %v3111, 0.0
        %v3114 = vadd.f32 %v3112, 0.0
        %s3115 = sld [smem:[#allocation20 + $0x80]]
        %v3116 = vstv %s3115
        %v3117 = vmul.f32 %v3116, %v3107
        %v3118 = vmul.f32 %v3116, %v3108
        %v3119 = vadd.f32 %v3117, 0.0
        %v3120 = vadd.f32 %v3118, 0.0
        %s3121 = sld [smem:[#allocation20 + $0x1]]
        %v3122 = vstv %s3121
        %v3123 = vmul.f32 %v3122, %v3107
        %v3124 = vmul.f32 %v3122, %v3108
        %3127 = vrot.lane.b32.xlu0 %v3123, 127
        %v3128 = vpop.permute.xlu0 %3127
        %3129 = vrot.lane.b32.xlu0 %v3124, 127
        %v3130 = vpop.permute.xlu0 %3129
        %v3133 = vadd.f32 %v3113, %v3128
        %v3134 = vadd.f32 %v3114, %v3130
        %s3135 = sld [smem:[#allocation20 + $0x81]]
        %v3136 = vstv %s3135
        %v3137 = vmul.f32 %v3136, %v3107
        %v3138 = vmul.f32 %v3136, %v3108
        %3141 = vrot.lane.b32.xlu0 %v3137, 127
        %v3142 = vpop.permute.xlu0 %3141
        %3143 = vrot.lane.b32.xlu0 %v3138, 127
        %v3144 = vpop.permute.xlu0 %3143
        %v3147 = vadd.f32 %v3119, %v3142
        %v3148 = vadd.f32 %v3120, %v3144
        %s3149 = sld [smem:[#allocation20 + $0x2]]
        %v3150 = vstv %s3149
        %v3151 = vmul.f32 %v3150, %v3107
        %v3152 = vmul.f32 %v3150, %v3108
        %3155 = vrot.lane.b32.xlu0 %v3151, 126
        %v3156 = vpop.permute.xlu0 %3155
        %3157 = vrot.lane.b32.xlu0 %v3152, 126
        %v3158 = vpop.permute.xlu0 %3157
        %v3161 = vadd.f32 %v3133, %v3156
        %v3162 = vadd.f32 %v3134, %v3158
        %s3163 = sld [smem:[#allocation20 + $0x82]]
        %v3164 = vstv %s3163
        %v3165 = vmul.f32 %v3164, %v3107
        %v3166 = vmul.f32 %v3164, %v3108
        %3169 = vrot.lane.b32.xlu0 %v3165, 126
        %v3170 = vpop.permute.xlu0 %3169
        %3171 = vrot.lane.b32.xlu0 %v3166, 126
        %v3172 = vpop.permute.xlu0 %3171
        %v3175 = vadd.f32 %v3147, %v3170
        %v3176 = vadd.f32 %v3148, %v3172
        %v3177 = vld [vmem:[#allocation3 + $0x1] sm:$0xff]
        %v3178 = vld [vmem:[#allocation3 + $0x9] sm:$0xff]
        %s3179 = sld [smem:[#allocation20 + $0x3]]
        %v3180 = vstv %s3179
        %v3181 = vmul.f32 %v3180, %v3177
        %v3182 = vmul.f32 %v3180, %v3178
        %v3183 = vadd.f32 %v3161, %v3181
        %v3184 = vadd.f32 %v3162, %v3182
        %s3185 = sld [smem:[#allocation20 + $0x83]]
        %v3186 = vstv %s3185
        %v3187 = vmul.f32 %v3186, %v3177
        %v3188 = vmul.f32 %v3186, %v3178
        %v3189 = vadd.f32 %v3175, %v3187
        %v3190 = vadd.f32 %v3176, %v3188
        %s3191 = sld [smem:[#allocation20 + $0x4]]
        %v3192 = vstv %s3191
        %v3193 = vmul.f32 %v3192, %v3177
        %v3194 = vmul.f32 %v3192, %v3178
        %3197 = vrot.lane.b32.xlu0 %v3193, 127
        %v3198 = vpop.permute.xlu0 %3197
        %3199 = vrot.lane.b32.xlu0 %v3194, 127
        %v3200 = vpop.permute.xlu0 %3199
        %v3203 = vadd.f32 %v3183, %v3198
        %v3204 = vadd.f32 %v3184, %v3200
        %s3205 = sld [smem:[#allocation20 + $0x84]]
        %v3206 = vstv %s3205
        %v3207 = vmul.f32 %v3206, %v3177
        %v3208 = vmul.f32 %v3206, %v3178
        %3211 = vrot.lane.b32.xlu0 %v3207, 127
        %v3212 = vpop.permute.xlu0 %3211
        %3213 = vrot.lane.b32.xlu0 %v3208, 127
        %v3214 = vpop.permute.xlu0 %3213
        %v3217 = vadd.f32 %v3189, %v3212
        %v3218 = vadd.f32 %v3190, %v3214
        %s3219 = sld [smem:[#allocation20 + $0x5]]
        %v3220 = vstv %s3219
        %v3221 = vmul.f32 %v3220, %v3177
        %v3222 = vmul.f32 %v3220, %v3178
        %3225 = vrot.lane.b32.xlu0 %v3221, 126
        %v3226 = vpop.permute.xlu0 %3225
        %3227 = vrot.lane.b32.xlu0 %v3222, 126
        %v3228 = vpop.permute.xlu0 %3227
        %v3231 = vadd.f32 %v3203, %v3226
        %v3232 = vadd.f32 %v3204, %v3228
        %s3233 = sld [smem:[#allocation20 + $0x85]]
        %v3234 = vstv %s3233
        %v3235 = vmul.f32 %v3234, %v3177
        %v3236 = vmul.f32 %v3234, %v3178
        %3239 = vrot.lane.b32.xlu0 %v3235, 126
        %v3240 = vpop.permute.xlu0 %3239
        %3241 = vrot.lane.b32.xlu0 %v3236, 126
        %v3242 = vpop.permute.xlu0 %3241
        %v3245 = vadd.f32 %v3217, %v3240
        %v3246 = vadd.f32 %v3218, %v3242
        %v3247 = vld [vmem:[#allocation3 + $0x2] sm:$0xff]
        %v3248 = vld [vmem:[#allocation3 + $0xa] sm:$0xff]
        %s3249 = sld [smem:[#allocation20 + $0x6]]
        %v3250 = vstv %s3249
        %v3251 = vmul.f32 %v3250, %v3247
        %v3252 = vmul.f32 %v3250, %v3248
        %v3253 = vadd.f32 %v3231, %v3251
        %v3254 = vadd.f32 %v3232, %v3252
        %s3255 = sld [smem:[#allocation20 + $0x86]]
        %v3256 = vstv %s3255
        %v3257 = vmul.f32 %v3256, %v3247
        %v3258 = vmul.f32 %v3256, %v3248
        %v3259 = vadd.f32 %v3245, %v3257
        %v3260 = vadd.f32 %v3246, %v3258
        %s3261 = sld [smem:[#allocation20 + $0x7]]
        %v3262 = vstv %s3261
        %v3263 = vmul.f32 %v3262, %v3247
        %v3264 = vmul.f32 %v3262, %v3248
        %3267 = vrot.lane.b32.xlu0 %v3263, 127
        %v3268 = vpop.permute.xlu0 %3267
        %3269 = vrot.lane.b32.xlu0 %v3264, 127
        %v3270 = vpop.permute.xlu0 %3269
        %v3273 = vadd.f32 %v3253, %v3268
        %v3274 = vadd.f32 %v3254, %v3270
        %s3275 = sld [smem:[#allocation20 + $0x87]]
        %v3276 = vstv %s3275
        %v3277 = vmul.f32 %v3276, %v3247
        %v3278 = vmul.f32 %v3276, %v3248
        %3281 = vrot.lane.b32.xlu0 %v3277, 127
        %v3282 = vpop.permute.xlu0 %3281
        %3283 = vrot.lane.b32.xlu0 %v3278, 127
        %v3284 = vpop.permute.xlu0 %3283
        %v3287 = vadd.f32 %v3259, %v3282
        %v3288 = vadd.f32 %v3260, %v3284
        %s3289 = sld [smem:[#allocation20 + $0x8]]
        %v3290 = vstv %s3289
        %v3291 = vmul.f32 %v3290, %v3247
        %v3292 = vmul.f32 %v3290, %v3248
        %3295 = vrot.lane.b32.xlu0 %v3291, 126
        %v3296 = vpop.permute.xlu0 %3295
        %3297 = vrot.lane.b32.xlu0 %v3292, 126
        %v3298 = vpop.permute.xlu0 %3297
        %v3301 = vadd.f32 %v3273, %v3296
        %v3302 = vadd.f32 %v3274, %v3298
        %s3303 = sld [smem:[#allocation20 + $0x88]]
        %v3304 = vstv %s3303
        %v3305 = vmul.f32 %v3304, %v3247
        %v3306 = vmul.f32 %v3304, %v3248
        %3309 = vrot.lane.b32.xlu0 %v3305, 126
        %v3310 = vpop.permute.xlu0 %3309
        %3311 = vrot.lane.b32.xlu0 %v3306, 126
        %v3312 = vpop.permute.xlu0 %3311
        %v3315 = vadd.f32 %v3287, %v3310
        %v3316 = vadd.f32 %v3288, %v3312
        %v3317 = vld [vmem:[%s1768] sm:$0xff]
        %v3318 = vld [vmem:[%s1768 + $0x8] sm:$0xff]
        %s3319 = sld [smem:[#allocation20 + $0x9]]
        %v3320 = vstv %s3319
        %v3321 = vmul.f32 %v3320, %v3317
        %v3322 = vmul.f32 %v3320, %v3318
        %v3323 = vadd.f32 %v3301, %v3321
        %v3324 = vadd.f32 %v3302, %v3322
        %s3325 = sld [smem:[#allocation20 + $0x89]]
        %v3326 = vstv %s3325
        %v3327 = vmul.f32 %v3326, %v3317
        %v3328 = vmul.f32 %v3326, %v3318
        %v3329 = vadd.f32 %v3315, %v3327
        %v3330 = vadd.f32 %v3316, %v3328
        %s3331 = sld [smem:[#allocation20 + $0xa]]
        %v3332 = vstv %s3331
        %v3333 = vmul.f32 %v3332, %v3317
        %v3334 = vmul.f32 %v3332, %v3318
        %3337 = vrot.lane.b32.xlu0 %v3333, 127
        %v3338 = vpop.permute.xlu0 %3337
        %3339 = vrot.lane.b32.xlu0 %v3334, 127
        %v3340 = vpop.permute.xlu0 %3339
        %v3343 = vadd.f32 %v3323, %v3338
        %v3344 = vadd.f32 %v3324, %v3340
        %s3345 = sld [smem:[#allocation20 + $0x8a]]
        %v3346 = vstv %s3345
        %v3347 = vmul.f32 %v3346, %v3317
        %v3348 = vmul.f32 %v3346, %v3318
        %3351 = vrot.lane.b32.xlu0 %v3347, 127
        %v3352 = vpop.permute.xlu0 %3351
        %3353 = vrot.lane.b32.xlu0 %v3348, 127
        %v3354 = vpop.permute.xlu0 %3353
        %v3357 = vadd.f32 %v3329, %v3352
        %v3358 = vadd.f32 %v3330, %v3354
        %s3359 = sld [smem:[#allocation20 + $0xb]]
        %v3360 = vstv %s3359
        %v3361 = vmul.f32 %v3360, %v3317
        %v3362 = vmul.f32 %v3360, %v3318
        %3365 = vrot.lane.b32.xlu0 %v3361, 126
        %v3366 = vpop.permute.xlu0 %3365
        %3367 = vrot.lane.b32.xlu0 %v3362, 126
        %v3368 = vpop.permute.xlu0 %3367
        %v3371 = vadd.f32 %v3343, %v3366
        %v3372 = vadd.f32 %v3344, %v3368
        %s3373 = sld [smem:[#allocation20 + $0x8b]]
        %v3374 = vstv %s3373
        %v3375 = vmul.f32 %v3374, %v3317
        %v3376 = vmul.f32 %v3374, %v3318
        %3379 = vrot.lane.b32.xlu0 %v3375, 126
        %v3380 = vpop.permute.xlu0 %3379
        %3381 = vrot.lane.b32.xlu0 %v3376, 126
        %v3382 = vpop.permute.xlu0 %3381
        %v3385 = vadd.f32 %v3357, %v3380
        %v3386 = vadd.f32 %v3358, %v3382
        %v3387 = vld [vmem:[%s1768 + $0x1] sm:$0xff]
        %v3388 = vld [vmem:[%s1768 + $0x9] sm:$0xff]
        %s3389 = sld [smem:[#allocation20 + $0xc]]
        %v3390 = vstv %s3389
        %v3391 = vmul.f32 %v3390, %v3387
        %v3392 = vmul.f32 %v3390, %v3388
        %v3393 = vadd.f32 %v3371, %v3391
        %v3394 = vadd.f32 %v3372, %v3392
        %s3395 = sld [smem:[#allocation20 + $0x8c]]
        %v3396 = vstv %s3395
        %v3397 = vmul.f32 %v3396, %v3387
        %v3398 = vmul.f32 %v3396, %v3388
        %v3399 = vadd.f32 %v3385, %v3397
        %v3400 = vadd.f32 %v3386, %v3398
        %s3401 = sld [smem:[#allocation20 + $0xd]]
        %v3402 = vstv %s3401
        %v3403 = vmul.f32 %v3402, %v3387
        %v3404 = vmul.f32 %v3402, %v3388
        %3407 = vrot.lane.b32.xlu0 %v3403, 127
        %v3408 = vpop.permute.xlu0 %3407
        %3409 = vrot.lane.b32.xlu0 %v3404, 127
        %v3410 = vpop.permute.xlu0 %3409
        %v3413 = vadd.f32 %v3393, %v3408
        %v3414 = vadd.f32 %v3394, %v3410
        %s3415 = sld [smem:[#allocation20 + $0x8d]]
        %v3416 = vstv %s3415
        %v3417 = vmul.f32 %v3416, %v3387
        %v3418 = vmul.f32 %v3416, %v3388
        %3421 = vrot.lane.b32.xlu0 %v3417, 127
        %v3422 = vpop.permute.xlu0 %3421
        %3423 = vrot.lane.b32.xlu0 %v3418, 127
        %v3424 = vpop.permute.xlu0 %3423
        %v3427 = vadd.f32 %v3399, %v3422
        %v3428 = vadd.f32 %v3400, %v3424
        %s3429 = sld [smem:[#allocation20 + $0xe]]
        %v3430 = vstv %s3429
        %v3431 = vmul.f32 %v3430, %v3387
        %v3432 = vmul.f32 %v3430, %v3388
        %3435 = vrot.lane.b32.xlu0 %v3431, 126
        %v3436 = vpop.permute.xlu0 %3435
        %3437 = vrot.lane.b32.xlu0 %v3432, 126
        %v3438 = vpop.permute.xlu0 %3437
        %v3441 = vadd.f32 %v3413, %v3436
        %v3442 = vadd.f32 %v3414, %v3438
        %s3443 = sld [smem:[#allocation20 + $0x8e]]
        %v3444 = vstv %s3443
        %v3445 = vmul.f32 %v3444, %v3387
        %v3446 = vmul.f32 %v3444, %v3388
        %3449 = vrot.lane.b32.xlu0 %v3445, 126
        %v3450 = vpop.permute.xlu0 %3449
        %3451 = vrot.lane.b32.xlu0 %v3446, 126
        %v3452 = vpop.permute.xlu0 %3451
        %v3455 = vadd.f32 %v3427, %v3450
        %v3456 = vadd.f32 %v3428, %v3452
        %v3457 = vld [vmem:[%s1768 + $0x2] sm:$0xff]
        %v3458 = vld [vmem:[%s1768 + $0xa] sm:$0xff]
        %s3459 = sld [smem:[#allocation20 + $0xf]]
        %v3460 = vstv %s3459
        %v3461 = vmul.f32 %v3460, %v3457
        %v3462 = vmul.f32 %v3460, %v3458
        %v3463 = vadd.f32 %v3441, %v3461
        %v3464 = vadd.f32 %v3442, %v3462
        %s3465 = sld [smem:[#allocation20 + $0x8f]]
        %v3466 = vstv %s3465
        %v3467 = vmul.f32 %v3466, %v3457
        %v3468 = vmul.f32 %v3466, %v3458
        %v3469 = vadd.f32 %v3455, %v3467
        %v3470 = vadd.f32 %v3456, %v3468
        %s3471 = sld [smem:[#allocation20 + $0x10]]
        %v3472 = vstv %s3471
        %v3473 = vmul.f32 %v3472, %v3457
        %v3474 = vmul.f32 %v3472, %v3458
        %3477 = vrot.lane.b32.xlu0 %v3473, 127
        %v3478 = vpop.permute.xlu0 %3477
        %3479 = vrot.lane.b32.xlu0 %v3474, 127
        %v3480 = vpop.permute.xlu0 %3479
        %v3483 = vadd.f32 %v3463, %v3478
        %v3484 = vadd.f32 %v3464, %v3480
        %s3485 = sld [smem:[#allocation20 + $0x90]]
        %v3486 = vstv %s3485
        %v3487 = vmul.f32 %v3486, %v3457
        %v3488 = vmul.f32 %v3486, %v3458
        %3491 = vrot.lane.b32.xlu0 %v3487, 127
        %v3492 = vpop.permute.xlu0 %3491
        %3493 = vrot.lane.b32.xlu0 %v3488, 127
        %v3494 = vpop.permute.xlu0 %3493
        %v3497 = vadd.f32 %v3469, %v3492
        %v3498 = vadd.f32 %v3470, %v3494
        %s3499 = sld [smem:[#allocation20 + $0x11]]
        %v3500 = vstv %s3499
        %v3501 = vmul.f32 %v3500, %v3457
        %v3502 = vmul.f32 %v3500, %v3458
        %3505 = vrot.lane.b32.xlu0 %v3501, 126
        %v3506 = vpop.permute.xlu0 %3505
        %3507 = vrot.lane.b32.xlu0 %v3502, 126
        %v3508 = vpop.permute.xlu0 %3507
        %v3511 = vadd.f32 %v3483, %v3506
        %v3512 = vadd.f32 %v3484, %v3508
        %s3513 = sld [smem:[#allocation20 + $0x91]]
        %v3514 = vstv %s3513
        %v3515 = vmul.f32 %v3514, %v3457
        %v3516 = vmul.f32 %v3514, %v3458
        %3519 = vrot.lane.b32.xlu0 %v3515, 126
        %v3520 = vpop.permute.xlu0 %3519
        %3521 = vrot.lane.b32.xlu0 %v3516, 126
        %v3522 = vpop.permute.xlu0 %3521
        %v3525 = vadd.f32 %v3497, %v3520
        %v3526 = vadd.f32 %v3498, %v3522
        %s3527 = sld [smem:[#allocation22]]
        %v3528 = vstv %s3527
        %v3529 = vadd.f32 %v3511, %v3528
        %v3530 = vadd.f32 %v3512, %v3528
        %s3531 = sld [smem:[#allocation22 + $0x1]]
        %v3532 = vstv %s3531
        %v3533 = vadd.f32 %v3525, %v3532
        %v3534 = vadd.f32 %v3526, %v3532
        %v3535 = vmul.f32 %v842, %v2193
        %v3536 = vmul.f32 %v857, %v2194
        %v3537 = vpack.c.bf16 %v3536, %v3535
        %v3538 = vpack.c.bf16 %v3530, %v3529
        %vm3539 = vcmask 130048
        %v3541 = vsel %vm3539, %v3537, 0
        %3543 = vmatpush.bf16.msra.mxu0 0
        %3544 = vmatpush.bf16.msra.mxu0 0
        %3545 = vmatpush.bf16.msra.mxu0 0
        %3546 = vmatpush.bf16.msra.mxu0 0
        %3547 = vmatpush.bf16.msra.mxu0 0
        %3548 = vmatpush.bf16.msra.mxu0 0
        %3549 = vmatpush.bf16.msra.mxu0 0
        %3550 = vmatpush.bf16.msra.mxu0 %v3538
        %3551 = vmatmul.bf16.gmra.mxu0 %v3541
        %v3552 = vpop.f32.mrf.mxu0
        %v3553 = vadd.f32 0.0, %v3552
        %v3554 = vpop.f32.mrf.mxu0
        %v3555 = vadd.f32 0.0, %v3554
        %3556 = vdwg.mxu0
        %v3557 = vmul.f32 %v842, %v2197
        %v3558 = vmul.f32 %v857, %v2198
        %v3559 = vpack.c.bf16 %v3558, %v3557
        %v3560 = vpack.c.bf16 %v3534, %v3533
        %v3562 = vsel %vm3539, %v3559, 0
        %3564 = vmatpush.bf16.msra.mxu0 0
        %3565 = vmatpush.bf16.msra.mxu0 0
        %3566 = vmatpush.bf16.msra.mxu0 0
        %3567 = vmatpush.bf16.msra.mxu0 0
        %3568 = vmatpush.bf16.msra.mxu0 0
        %3569 = vmatpush.bf16.msra.mxu0 0
        %3570 = vmatpush.bf16.msra.mxu0 0
        %3571 = vmatpush.bf16.msra.mxu0 %v3560
        %3572 = vmatmul.bf16.gmra.mxu0 %v3562
        %v3573 = vpop.f32.mrf.mxu0
        %v3574 = vadd.f32 0.0, %v3573
        %v3575 = vpop.f32.mrf.mxu0
        %v3576 = vadd.f32 0.0, %v3575
        %3577 = vdwg.mxu0
        %3580 = vrot.lane.b32.xlu0 %v3553, 1
        %v3581 = vpop.permute.xlu0 %3580
        %3582 = vrot.lane.b32.xlu0 %v3555, 1
        %v3583 = vpop.permute.xlu0 %3582
        %3586 = vst.msk [vmem:[#allocation3 + $0x1] sm:$0xff] %vm866, %v3581
        %3587 = vst.msk [vmem:[#allocation3 + $0x9] sm:$0xff] %vm866, %v3583
        %3590 = vrot.lane.b32.xlu0 %v3574, 1
        %v3591 = vpop.permute.xlu0 %3590
        %3592 = vrot.lane.b32.xlu0 %v3576, 1
        %v3593 = vpop.permute.xlu0 %3592
        %3596 = vst.msk [vmem:[%s1768 + $0x1] sm:$0xff] %vm866, %v3591
        %3597 = vst.msk [vmem:[%s1768 + $0x9] sm:$0xff] %vm866, %v3593
        %v3598 = vld [vmem:[#allocation3] sm:$0xff]
        %v3599 = vld [vmem:[#allocation3 + $0x8] sm:$0xff]
        %s3600 = sld [smem:[#allocation23]]
        %v3601 = vstv %s3600
        %v3602 = vmul.f32 %v3601, %v3598
        %v3603 = vmul.f32 %v3601, %v3599
        %v3604 = vadd.f32 %v3602, 0.0
        %v3605 = vadd.f32 %v3603, 0.0
        %s3606 = sld [smem:[#allocation23 + $0x80]]
        %v3607 = vstv %s3606
        %v3608 = vmul.f32 %v3607, %v3598
        %v3609 = vmul.f32 %v3607, %v3599
        %v3610 = vadd.f32 %v3608, 0.0
        %v3611 = vadd.f32 %v3609, 0.0
        %s3612 = sld [smem:[#allocation23 + $0x100]]
        %v3613 = vstv %s3612
        %v3614 = vmul.f32 %v3613, %v3598
        %v3615 = vmul.f32 %v3613, %v3599
        %v3616 = vadd.f32 %v3614, 0.0
        %v3617 = vadd.f32 %v3615, 0.0
        %s3618 = sld [smem:[#allocation23 + $0x180]]
        %v3619 = vstv %s3618
        %v3620 = vmul.f32 %v3619, %v3598
        %v3621 = vmul.f32 %v3619, %v3599
        %v3622 = vadd.f32 %v3620, 0.0
        %v3623 = vadd.f32 %v3621, 0.0
        %s3624 = sld [smem:[#allocation23 + $0x1]]
        %v3625 = vstv %s3624
        %v3626 = vmul.f32 %v3625, %v3598
        %v3627 = vmul.f32 %v3625, %v3599
        %3630 = vrot.lane.b32.xlu0 %v3626, 127
        %v3631 = vpop.permute.xlu0 %3630
        %3632 = vrot.lane.b32.xlu0 %v3627, 127
        %v3633 = vpop.permute.xlu0 %3632
        %v3636 = vadd.f32 %v3604, %v3631
        %v3637 = vadd.f32 %v3605, %v3633
        %s3638 = sld [smem:[#allocation23 + $0x81]]
        %v3639 = vstv %s3638
        %v3640 = vmul.f32 %v3639, %v3598
        %v3641 = vmul.f32 %v3639, %v3599
        %3644 = vrot.lane.b32.xlu0 %v3640, 127
        %v3645 = vpop.permute.xlu0 %3644
        %3646 = vrot.lane.b32.xlu0 %v3641, 127
        %v3647 = vpop.permute.xlu0 %3646
        %v3650 = vadd.f32 %v3610, %v3645
        %v3651 = vadd.f32 %v3611, %v3647
        %s3652 = sld [smem:[#allocation23 + $0x101]]
        %v3653 = vstv %s3652
        %v3654 = vmul.f32 %v3653, %v3598
        %v3655 = vmul.f32 %v3653, %v3599
        %3658 = vrot.lane.b32.xlu0 %v3654, 127
        %v3659 = vpop.permute.xlu0 %3658
        %3660 = vrot.lane.b32.xlu0 %v3655, 127
        %v3661 = vpop.permute.xlu0 %3660
        %v3664 = vadd.f32 %v3616, %v3659
        %v3665 = vadd.f32 %v3617, %v3661
        %s3666 = sld [smem:[#allocation23 + $0x181]]
        %v3667 = vstv %s3666
        %v3668 = vmul.f32 %v3667, %v3598
        %v3669 = vmul.f32 %v3667, %v3599
        %3672 = vrot.lane.b32.xlu0 %v3668, 127
        %v3673 = vpop.permute.xlu0 %3672
        %3674 = vrot.lane.b32.xlu0 %v3669, 127
        %v3675 = vpop.permute.xlu0 %3674
        %v3678 = vadd.f32 %v3622, %v3673
        %v3679 = vadd.f32 %v3623, %v3675
        %s3680 = sld [smem:[#allocation23 + $0x2]]
        %v3681 = vstv %s3680
        %v3682 = vmul.f32 %v3681, %v3598
        %v3683 = vmul.f32 %v3681, %v3599
        %3686 = vrot.lane.b32.xlu0 %v3682, 126
        %v3687 = vpop.permute.xlu0 %3686
        %3688 = vrot.lane.b32.xlu0 %v3683, 126
        %v3689 = vpop.permute.xlu0 %3688
        %v3692 = vadd.f32 %v3636, %v3687
        %v3693 = vadd.f32 %v3637, %v3689
        %s3694 = sld [smem:[#allocation23 + $0x82]]
        %v3695 = vstv %s3694
        %v3696 = vmul.f32 %v3695, %v3598
        %v3697 = vmul.f32 %v3695, %v3599
        %3700 = vrot.lane.b32.xlu0 %v3696, 126
        %v3701 = vpop.permute.xlu0 %3700
        %3702 = vrot.lane.b32.xlu0 %v3697, 126
        %v3703 = vpop.permute.xlu0 %3702
        %v3706 = vadd.f32 %v3650, %v3701
        %v3707 = vadd.f32 %v3651, %v3703
        %s3708 = sld [smem:[#allocation23 + $0x102]]
        %v3709 = vstv %s3708
        %v3710 = vmul.f32 %v3709, %v3598
        %v3711 = vmul.f32 %v3709, %v3599
        %3714 = vrot.lane.b32.xlu0 %v3710, 126
        %v3715 = vpop.permute.xlu0 %3714
        %3716 = vrot.lane.b32.xlu0 %v3711, 126
        %v3717 = vpop.permute.xlu0 %3716
        %v3720 = vadd.f32 %v3664, %v3715
        %v3721 = vadd.f32 %v3665, %v3717
        %s3722 = sld [smem:[#allocation23 + $0x182]]
        %v3723 = vstv %s3722
        %v3724 = vmul.f32 %v3723, %v3598
        %v3725 = vmul.f32 %v3723, %v3599
        %3728 = vrot.lane.b32.xlu0 %v3724, 126
        %v3729 = vpop.permute.xlu0 %3728
        %3730 = vrot.lane.b32.xlu0 %v3725, 126
        %v3731 = vpop.permute.xlu0 %3730
        %v3734 = vadd.f32 %v3678, %v3729
        %v3735 = vadd.f32 %v3679, %v3731
        %v3736 = vld [vmem:[#allocation3 + $0x1] sm:$0xff]
        %v3737 = vld [vmem:[#allocation3 + $0x9] sm:$0xff]
        %s3738 = sld [smem:[#allocation23 + $0x3]]
        %v3739 = vstv %s3738
        %v3740 = vmul.f32 %v3739, %v3736
        %v3741 = vmul.f32 %v3739, %v3737
        %v3742 = vadd.f32 %v3692, %v3740
        %v3743 = vadd.f32 %v3693, %v3741
        %s3744 = sld [smem:[#allocation23 + $0x83]]
        %v3745 = vstv %s3744
        %v3746 = vmul.f32 %v3745, %v3736
        %v3747 = vmul.f32 %v3745, %v3737
        %v3748 = vadd.f32 %v3706, %v3746
        %v3749 = vadd.f32 %v3707, %v3747
        %s3750 = sld [smem:[#allocation23 + $0x103]]
        %v3751 = vstv %s3750
        %v3752 = vmul.f32 %v3751, %v3736
        %v3753 = vmul.f32 %v3751, %v3737
        %v3754 = vadd.f32 %v3720, %v3752
        %v3755 = vadd.f32 %v3721, %v3753
        %s3756 = sld [smem:[#allocation23 + $0x183]]
        %v3757 = vstv %s3756
        %v3758 = vmul.f32 %v3757, %v3736
        %v3759 = vmul.f32 %v3757, %v3737
        %v3760 = vadd.f32 %v3734, %v3758
        %v3761 = vadd.f32 %v3735, %v3759
        %s3762 = sld [smem:[#allocation23 + $0x4]]
        %v3763 = vstv %s3762
        %v3764 = vmul.f32 %v3763, %v3736
        %v3765 = vmul.f32 %v3763, %v3737
        %3768 = vrot.lane.b32.xlu0 %v3764, 127
        %v3769 = vpop.permute.xlu0 %3768
        %3770 = vrot.lane.b32.xlu0 %v3765, 127
        %v3771 = vpop.permute.xlu0 %3770
        %v3774 = vadd.f32 %v3742, %v3769
        %v3775 = vadd.f32 %v3743, %v3771
        %s3776 = sld [smem:[#allocation23 + $0x84]]
        %v3777 = vstv %s3776
        %v3778 = vmul.f32 %v3777, %v3736
        %v3779 = vmul.f32 %v3777, %v3737
        %3782 = vrot.lane.b32.xlu0 %v3778, 127
        %v3783 = vpop.permute.xlu0 %3782
        %3784 = vrot.lane.b32.xlu0 %v3779, 127
        %v3785 = vpop.permute.xlu0 %3784
        %v3788 = vadd.f32 %v3748, %v3783
        %v3789 = vadd.f32 %v3749, %v3785
        %s3790 = sld [smem:[#allocation23 + $0x104]]
        %v3791 = vstv %s3790
        %v3792 = vmul.f32 %v3791, %v3736
        %v3793 = vmul.f32 %v3791, %v3737
        %3796 = vrot.lane.b32.xlu0 %v3792, 127
        %v3797 = vpop.permute.xlu0 %3796
        %3798 = vrot.lane.b32.xlu0 %v3793, 127
        %v3799 = vpop.permute.xlu0 %3798
        %v3802 = vadd.f32 %v3754, %v3797
        %v3803 = vadd.f32 %v3755, %v3799
        %s3804 = sld [smem:[#allocation23 + $0x184]]
        %v3805 = vstv %s3804
        %v3806 = vmul.f32 %v3805, %v3736
        %v3807 = vmul.f32 %v3805, %v3737
        %3810 = vrot.lane.b32.xlu0 %v3806, 127
        %v3811 = vpop.permute.xlu0 %3810
        %3812 = vrot.lane.b32.xlu0 %v3807, 127
        %v3813 = vpop.permute.xlu0 %3812
        %v3816 = vadd.f32 %v3760, %v3811
        %v3817 = vadd.f32 %v3761, %v3813
        %s3818 = sld [smem:[#allocation23 + $0x5]]
        %v3819 = vstv %s3818
        %v3820 = vmul.f32 %v3819, %v3736
        %v3821 = vmul.f32 %v3819, %v3737
        %3824 = vrot.lane.b32.xlu0 %v3820, 126
        %v3825 = vpop.permute.xlu0 %3824
        %3826 = vrot.lane.b32.xlu0 %v3821, 126
        %v3827 = vpop.permute.xlu0 %3826
        %v3830 = vadd.f32 %v3774, %v3825
        %v3831 = vadd.f32 %v3775, %v3827
        %s3832 = sld [smem:[#allocation23 + $0x85]]
        %v3833 = vstv %s3832
        %v3834 = vmul.f32 %v3833, %v3736
        %v3835 = vmul.f32 %v3833, %v3737
        %3838 = vrot.lane.b32.xlu0 %v3834, 126
        %v3839 = vpop.permute.xlu0 %3838
        %3840 = vrot.lane.b32.xlu0 %v3835, 126
        %v3841 = vpop.permute.xlu0 %3840
        %v3844 = vadd.f32 %v3788, %v3839
        %v3845 = vadd.f32 %v3789, %v3841
        %s3846 = sld [smem:[#allocation23 + $0x105]]
        %v3847 = vstv %s3846
        %v3848 = vmul.f32 %v3847, %v3736
        %v3849 = vmul.f32 %v3847, %v3737
        %3852 = vrot.lane.b32.xlu0 %v3848, 126
        %v3853 = vpop.permute.xlu0 %3852
        %3854 = vrot.lane.b32.xlu0 %v3849, 126
        %v3855 = vpop.permute.xlu0 %3854
        %v3858 = vadd.f32 %v3802, %v3853
        %v3859 = vadd.f32 %v3803, %v3855
        %s3860 = sld [smem:[#allocation23 + $0x185]]
        %v3861 = vstv %s3860
        %v3862 = vmul.f32 %v3861, %v3736
        %v3863 = vmul.f32 %v3861, %v3737
        %3866 = vrot.lane.b32.xlu0 %v3862, 126
        %v3867 = vpop.permute.xlu0 %3866
        %3868 = vrot.lane.b32.xlu0 %v3863, 126
        %v3869 = vpop.permute.xlu0 %3868
        %v3872 = vadd.f32 %v3816, %v3867
        %v3873 = vadd.f32 %v3817, %v3869
        %v3874 = vld [vmem:[#allocation3 + $0x2] sm:$0xff]
        %v3875 = vld [vmem:[#allocation3 + $0xa] sm:$0xff]
        %s3876 = sld [smem:[#allocation23 + $0x6]]
        %v3877 = vstv %s3876
        %v3878 = vmul.f32 %v3877, %v3874
        %v3879 = vmul.f32 %v3877, %v3875
        %v3880 = vadd.f32 %v3830, %v3878
        %v3881 = vadd.f32 %v3831, %v3879
        %s3882 = sld [smem:[#allocation23 + $0x86]]
        %v3883 = vstv %s3882
        %v3884 = vmul.f32 %v3883, %v3874
        %v3885 = vmul.f32 %v3883, %v3875
        %v3886 = vadd.f32 %v3844, %v3884
        %v3887 = vadd.f32 %v3845, %v3885
        %s3888 = sld [smem:[#allocation23 + $0x106]]
        %v3889 = vstv %s3888
        %v3890 = vmul.f32 %v3889, %v3874
        %v3891 = vmul.f32 %v3889, %v3875
        %v3892 = vadd.f32 %v3858, %v3890
        %v3893 = vadd.f32 %v3859, %v3891
        %s3894 = sld [smem:[#allocation23 + $0x186]]
        %v3895 = vstv %s3894
        %v3896 = vmul.f32 %v3895, %v3874
        %v3897 = vmul.f32 %v3895, %v3875
        %v3898 = vadd.f32 %v3872, %v3896
        %v3899 = vadd.f32 %v3873, %v3897
        %s3900 = sld [smem:[#allocation23 + $0x7]]
        %v3901 = vstv %s3900
        %v3902 = vmul.f32 %v3901, %v3874
        %v3903 = vmul.f32 %v3901, %v3875
        %3906 = vrot.lane.b32.xlu0 %v3902, 127
        %v3907 = vpop.permute.xlu0 %3906
        %3908 = vrot.lane.b32.xlu0 %v3903, 127
        %v3909 = vpop.permute.xlu0 %3908
        %v3912 = vadd.f32 %v3880, %v3907
        %v3913 = vadd.f32 %v3881, %v3909
        %s3914 = sld [smem:[#allocation23 + $0x87]]
        %v3915 = vstv %s3914
        %v3916 = vmul.f32 %v3915, %v3874
        %v3917 = vmul.f32 %v3915, %v3875
        %3920 = vrot.lane.b32.xlu0 %v3916, 127
        %v3921 = vpop.permute.xlu0 %3920
        %3922 = vrot.lane.b32.xlu0 %v3917, 127
        %v3923 = vpop.permute.xlu0 %3922
        %v3926 = vadd.f32 %v3886, %v3921
        %v3927 = vadd.f32 %v3887, %v3923
        %s3928 = sld [smem:[#allocation23 + $0x107]]
        %v3929 = vstv %s3928
        %v3930 = vmul.f32 %v3929, %v3874
        %v3931 = vmul.f32 %v3929, %v3875
        %3934 = vrot.lane.b32.xlu0 %v3930, 127
        %v3935 = vpop.permute.xlu0 %3934
        %3936 = vrot.lane.b32.xlu0 %v3931, 127
        %v3937 = vpop.permute.xlu0 %3936
        %v3940 = vadd.f32 %v3892, %v3935
        %v3941 = vadd.f32 %v3893, %v3937
        %s3942 = sld [smem:[#allocation23 + $0x187]]
        %v3943 = vstv %s3942
        %v3944 = vmul.f32 %v3943, %v3874
        %v3945 = vmul.f32 %v3943, %v3875
        %3948 = vrot.lane.b32.xlu0 %v3944, 127
        %v3949 = vpop.permute.xlu0 %3948
        %3950 = vrot.lane.b32.xlu0 %v3945, 127
        %v3951 = vpop.permute.xlu0 %3950
        %v3954 = vadd.f32 %v3898, %v3949
        %v3955 = vadd.f32 %v3899, %v3951
        %s3956 = sld [smem:[#allocation23 + $0x8]]
        %v3957 = vstv %s3956
        %v3958 = vmul.f32 %v3957, %v3874
        %v3959 = vmul.f32 %v3957, %v3875
        %3962 = vrot.lane.b32.xlu0 %v3958, 126
        %v3963 = vpop.permute.xlu0 %3962
        %3964 = vrot.lane.b32.xlu0 %v3959, 126
        %v3965 = vpop.permute.xlu0 %3964
        %v3968 = vadd.f32 %v3912, %v3963
        %v3969 = vadd.f32 %v3913, %v3965
        %s3970 = sld [smem:[#allocation23 + $0x88]]
        %v3971 = vstv %s3970
        %v3972 = vmul.f32 %v3971, %v3874
        %v3973 = vmul.f32 %v3971, %v3875
        %3976 = vrot.lane.b32.xlu0 %v3972, 126
        %v3977 = vpop.permute.xlu0 %3976
        %3978 = vrot.lane.b32.xlu0 %v3973, 126
        %v3979 = vpop.permute.xlu0 %3978
        %v3982 = vadd.f32 %v3926, %v3977
        %v3983 = vadd.f32 %v3927, %v3979
        %s3984 = sld [smem:[#allocation23 + $0x108]]
        %v3985 = vstv %s3984
        %v3986 = vmul.f32 %v3985, %v3874
        %v3987 = vmul.f32 %v3985, %v3875
        %3990 = vrot.lane.b32.xlu0 %v3986, 126
        %v3991 = vpop.permute.xlu0 %3990
        %3992 = vrot.lane.b32.xlu0 %v3987, 126
        %v3993 = vpop.permute.xlu0 %3992
        %v3996 = vadd.f32 %v3940, %v3991
        %v3997 = vadd.f32 %v3941, %v3993
        %s3998 = sld [smem:[#allocation23 + $0x188]]
        %v3999 = vstv %s3998
        %v4000 = vmul.f32 %v3999, %v3874
        %v4001 = vmul.f32 %v3999, %v3875
        %4004 = vrot.lane.b32.xlu0 %v4000, 126
        %v4005 = vpop.permute.xlu0 %4004
        %4006 = vrot.lane.b32.xlu0 %v4001, 126
        %v4007 = vpop.permute.xlu0 %4006
        %v4010 = vadd.f32 %v3954, %v4005
        %v4011 = vadd.f32 %v3955, %v4007
        %v4012 = vld [vmem:[%s1768] sm:$0xff]
        %v4013 = vld [vmem:[%s1768 + $0x8] sm:$0xff]
        %s4014 = sld [smem:[#allocation23 + $0x9]]
        %v4015 = vstv %s4014
        %v4016 = vmul.f32 %v4015, %v4012
        %v4017 = vmul.f32 %v4015, %v4013
        %v4018 = vadd.f32 %v3968, %v4016
        %v4019 = vadd.f32 %v3969, %v4017
        %s4020 = sld [smem:[#allocation23 + $0x89]]
        %v4021 = vstv %s4020
        %v4022 = vmul.f32 %v4021, %v4012
        %v4023 = vmul.f32 %v4021, %v4013
        %v4024 = vadd.f32 %v3982, %v4022
        %v4025 = vadd.f32 %v3983, %v4023
        %s4026 = sld [smem:[#allocation23 + $0x109]]
        %v4027 = vstv %s4026
        %v4028 = vmul.f32 %v4027, %v4012
        %v4029 = vmul.f32 %v4027, %v4013
        %v4030 = vadd.f32 %v3996, %v4028
        %v4031 = vadd.f32 %v3997, %v4029
        %s4032 = sld [smem:[#allocation23 + $0x189]]
        %v4033 = vstv %s4032
        %v4034 = vmul.f32 %v4033, %v4012
        %v4035 = vmul.f32 %v4033, %v4013
        %v4036 = vadd.f32 %v4010, %v4034
        %v4037 = vadd.f32 %v4011, %v4035
        %s4038 = sld [smem:[#allocation23 + $0xa]]
        %v4039 = vstv %s4038
        %v4040 = vmul.f32 %v4039, %v4012
        %v4041 = vmul.f32 %v4039, %v4013
        %4044 = vrot.lane.b32.xlu0 %v4040, 127
        %v4045 = vpop.permute.xlu0 %4044
        %4046 = vrot.lane.b32.xlu0 %v4041, 127
        %v4047 = vpop.permute.xlu0 %4046
        %v4050 = vadd.f32 %v4018, %v4045
        %v4051 = vadd.f32 %v4019, %v4047
        %s4052 = sld [smem:[#allocation23 + $0x8a]]
        %v4053 = vstv %s4052
        %v4054 = vmul.f32 %v4053, %v4012
        %v4055 = vmul.f32 %v4053, %v4013
        %4058 = vrot.lane.b32.xlu0 %v4054, 127
        %v4059 = vpop.permute.xlu0 %4058
        %4060 = vrot.lane.b32.xlu0 %v4055, 127
        %v4061 = vpop.permute.xlu0 %4060
        %v4064 = vadd.f32 %v4024, %v4059
        %v4065 = vadd.f32 %v4025, %v4061
        %s4066 = sld [smem:[#allocation23 + $0x10a]]
        %v4067 = vstv %s4066
        %v4068 = vmul.f32 %v4067, %v4012
        %v4069 = vmul.f32 %v4067, %v4013
        %4072 = vrot.lane.b32.xlu0 %v4068, 127
        %v4073 = vpop.permute.xlu0 %4072
        %4074 = vrot.lane.b32.xlu0 %v4069, 127
        %v4075 = vpop.permute.xlu0 %4074
        %v4078 = vadd.f32 %v4030, %v4073
        %v4079 = vadd.f32 %v4031, %v4075
        %s4080 = sld [smem:[#allocation23 + $0x18a]]
        %v4081 = vstv %s4080
        %v4082 = vmul.f32 %v4081, %v4012
        %v4083 = vmul.f32 %v4081, %v4013
        %4086 = vrot.lane.b32.xlu0 %v4082, 127
        %v4087 = vpop.permute.xlu0 %4086
        %4088 = vrot.lane.b32.xlu0 %v4083, 127
        %v4089 = vpop.permute.xlu0 %4088
        %v4092 = vadd.f32 %v4036, %v4087
        %v4093 = vadd.f32 %v4037, %v4089
        %s4094 = sld [smem:[#allocation23 + $0xb]]
        %v4095 = vstv %s4094
        %v4096 = vmul.f32 %v4095, %v4012
        %v4097 = vmul.f32 %v4095, %v4013
        %4100 = vrot.lane.b32.xlu0 %v4096, 126
        %v4101 = vpop.permute.xlu0 %4100
        %4102 = vrot.lane.b32.xlu0 %v4097, 126
        %v4103 = vpop.permute.xlu0 %4102
        %v4106 = vadd.f32 %v4050, %v4101
        %v4107 = vadd.f32 %v4051, %v4103
        %s4108 = sld [smem:[#allocation23 + $0x8b]]
        %v4109 = vstv %s4108
        %v4110 = vmul.f32 %v4109, %v4012
        %v4111 = vmul.f32 %v4109, %v4013
        %4114 = vrot.lane.b32.xlu0 %v4110, 126
        %v4115 = vpop.permute.xlu0 %4114
        %4116 = vrot.lane.b32.xlu0 %v4111, 126
        %v4117 = vpop.permute.xlu0 %4116
        %v4120 = vadd.f32 %v4064, %v4115
        %v4121 = vadd.f32 %v4065, %v4117
        %s4122 = sld [smem:[#allocation23 + $0x10b]]
        %v4123 = vstv %s4122
        %v4124 = vmul.f32 %v4123, %v4012
        %v4125 = vmul.f32 %v4123, %v4013
        %4128 = vrot.lane.b32.xlu0 %v4124, 126
        %v4129 = vpop.permute.xlu0 %4128
        %4130 = vrot.lane.b32.xlu0 %v4125, 126
        %v4131 = vpop.permute.xlu0 %4130
        %v4134 = vadd.f32 %v4078, %v4129
        %v4135 = vadd.f32 %v4079, %v4131
        %s4136 = sld [smem:[#allocation23 + $0x18b]]
        %v4137 = vstv %s4136
        %v4138 = vmul.f32 %v4137, %v4012
        %v4139 = vmul.f32 %v4137, %v4013
        %4142 = vrot.lane.b32.xlu0 %v4138, 126
        %v4143 = vpop.permute.xlu0 %4142
        %4144 = vrot.lane.b32.xlu0 %v4139, 126
        %v4145 = vpop.permute.xlu0 %4144
        %v4148 = vadd.f32 %v4092, %v4143
        %v4149 = vadd.f32 %v4093, %v4145
        %v4150 = vld [vmem:[%s1768 + $0x1] sm:$0xff]
        %v4151 = vld [vmem:[%s1768 + $0x9] sm:$0xff]
        %s4152 = sld [smem:[#allocation23 + $0xc]]
        %v4153 = vstv %s4152
        %v4154 = vmul.f32 %v4153, %v4150
        %v4155 = vmul.f32 %v4153, %v4151
        %v4156 = vadd.f32 %v4106, %v4154
        %v4157 = vadd.f32 %v4107, %v4155
        %s4158 = sld [smem:[#allocation23 + $0x8c]]
        %v4159 = vstv %s4158
        %v4160 = vmul.f32 %v4159, %v4150
        %v4161 = vmul.f32 %v4159, %v4151
        %v4162 = vadd.f32 %v4120, %v4160
        %v4163 = vadd.f32 %v4121, %v4161
        %s4164 = sld [smem:[#allocation23 + $0x10c]]
        %v4165 = vstv %s4164
        %v4166 = vmul.f32 %v4165, %v4150
        %v4167 = vmul.f32 %v4165, %v4151
        %v4168 = vadd.f32 %v4134, %v4166
        %v4169 = vadd.f32 %v4135, %v4167
        %s4170 = sld [smem:[#allocation23 + $0x18c]]
        %v4171 = vstv %s4170
        %v4172 = vmul.f32 %v4171, %v4150
        %v4173 = vmul.f32 %v4171, %v4151
        %v4174 = vadd.f32 %v4148, %v4172
        %v4175 = vadd.f32 %v4149, %v4173
        %s4176 = sld [smem:[#allocation23 + $0xd]]
        %v4177 = vstv %s4176
        %v4178 = vmul.f32 %v4177, %v4150
        %v4179 = vmul.f32 %v4177, %v4151
        %4182 = vrot.lane.b32.xlu0 %v4178, 127
        %v4183 = vpop.permute.xlu0 %4182
        %4184 = vrot.lane.b32.xlu0 %v4179, 127
        %v4185 = vpop.permute.xlu0 %4184
        %v4188 = vadd.f32 %v4156, %v4183
        %v4189 = vadd.f32 %v4157, %v4185
        %s4190 = sld [smem:[#allocation23 + $0x8d]]
        %v4191 = vstv %s4190
        %v4192 = vmul.f32 %v4191, %v4150
        %v4193 = vmul.f32 %v4191, %v4151
        %4196 = vrot.lane.b32.xlu0 %v4192, 127
        %v4197 = vpop.permute.xlu0 %4196
        %4198 = vrot.lane.b32.xlu0 %v4193, 127
        %v4199 = vpop.permute.xlu0 %4198
        %v4202 = vadd.f32 %v4162, %v4197
        %v4203 = vadd.f32 %v4163, %v4199
        %s4204 = sld [smem:[#allocation23 + $0x10d]]
        %v4205 = vstv %s4204
        %v4206 = vmul.f32 %v4205, %v4150
        %v4207 = vmul.f32 %v4205, %v4151
        %4210 = vrot.lane.b32.xlu0 %v4206, 127
        %v4211 = vpop.permute.xlu0 %4210
        %4212 = vrot.lane.b32.xlu0 %v4207, 127
        %v4213 = vpop.permute.xlu0 %4212
        %v4216 = vadd.f32 %v4168, %v4211
        %v4217 = vadd.f32 %v4169, %v4213
        %s4218 = sld [smem:[#allocation23 + $0x18d]]
        %v4219 = vstv %s4218
        %v4220 = vmul.f32 %v4219, %v4150
        %v4221 = vmul.f32 %v4219, %v4151
        %4224 = vrot.lane.b32.xlu0 %v4220, 127
        %v4225 = vpop.permute.xlu0 %4224
        %4226 = vrot.lane.b32.xlu0 %v4221, 127
        %v4227 = vpop.permute.xlu0 %4226
        %v4230 = vadd.f32 %v4174, %v4225
        %v4231 = vadd.f32 %v4175, %v4227
        %s4232 = sld [smem:[#allocation23 + $0xe]]
        %v4233 = vstv %s4232
        %v4234 = vmul.f32 %v4233, %v4150
        %v4235 = vmul.f32 %v4233, %v4151
        %4238 = vrot.lane.b32.xlu0 %v4234, 126
        %v4239 = vpop.permute.xlu0 %4238
        %4240 = vrot.lane.b32.xlu0 %v4235, 126
        %v4241 = vpop.permute.xlu0 %4240
        %v4244 = vadd.f32 %v4188, %v4239
        %v4245 = vadd.f32 %v4189, %v4241
        %s4246 = sld [smem:[#allocation23 + $0x8e]]
        %v4247 = vstv %s4246
        %v4248 = vmul.f32 %v4247, %v4150
        %v4249 = vmul.f32 %v4247, %v4151
        %4252 = vrot.lane.b32.xlu0 %v4248, 126
        %v4253 = vpop.permute.xlu0 %4252
        %4254 = vrot.lane.b32.xlu0 %v4249, 126
        %v4255 = vpop.permute.xlu0 %4254
        %v4258 = vadd.f32 %v4202, %v4253
        %v4259 = vadd.f32 %v4203, %v4255
        %s4260 = sld [smem:[#allocation23 + $0x10e]]
        %v4261 = vstv %s4260
        %v4262 = vmul.f32 %v4261, %v4150
        %v4263 = vmul.f32 %v4261, %v4151
        %4266 = vrot.lane.b32.xlu0 %v4262, 126
        %v4267 = vpop.permute.xlu0 %4266
        %4268 = vrot.lane.b32.xlu0 %v4263, 126
        %v4269 = vpop.permute.xlu0 %4268
        %v4272 = vadd.f32 %v4216, %v4267
        %v4273 = vadd.f32 %v4217, %v4269
        %s4274 = sld [smem:[#allocation23 + $0x18e]]
        %v4275 = vstv %s4274
        %v4276 = vmul.f32 %v4275, %v4150
        %v4277 = vmul.f32 %v4275, %v4151
        %4280 = vrot.lane.b32.xlu0 %v4276, 126
        %v4281 = vpop.permute.xlu0 %4280
        %4282 = vrot.lane.b32.xlu0 %v4277, 126
        %v4283 = vpop.permute.xlu0 %4282
        %v4286 = vadd.f32 %v4230, %v4281
        %v4287 = vadd.f32 %v4231, %v4283
        %v4288 = vld [vmem:[%s1768 + $0x2] sm:$0xff]
        %v4289 = vld [vmem:[%s1768 + $0xa] sm:$0xff]
        %s4290 = sld [smem:[#allocation23 + $0xf]]
        %v4291 = vstv %s4290
        %v4292 = vmul.f32 %v4291, %v4288
        %v4293 = vmul.f32 %v4291, %v4289
        %v4294 = vadd.f32 %v4244, %v4292
        %v4295 = vadd.f32 %v4245, %v4293
        %s4296 = sld [smem:[#allocation23 + $0x8f]]
        %v4297 = vstv %s4296
        %v4298 = vmul.f32 %v4297, %v4288
        %v4299 = vmul.f32 %v4297, %v4289
        %v4300 = vadd.f32 %v4258, %v4298
        %v4301 = vadd.f32 %v4259, %v4299
        %s4302 = sld [smem:[#allocation23 + $0x10f]]
        %v4303 = vstv %s4302
        %v4304 = vmul.f32 %v4303, %v4288
        %v4305 = vmul.f32 %v4303, %v4289
        %v4306 = vadd.f32 %v4272, %v4304
        %v4307 = vadd.f32 %v4273, %v4305
        %s4308 = sld [smem:[#allocation23 + $0x18f]]
        %v4309 = vstv %s4308
        %v4310 = vmul.f32 %v4309, %v4288
        %v4311 = vmul.f32 %v4309, %v4289
        %v4312 = vadd.f32 %v4286, %v4310
        %v4313 = vadd.f32 %v4287, %v4311
        %s4314 = sld [smem:[#allocation23 + $0x10]]
        %v4315 = vstv %s4314
        %v4316 = vmul.f32 %v4315, %v4288
        %v4317 = vmul.f32 %v4315, %v4289
        %4320 = vrot.lane.b32.xlu0 %v4316, 127
        %v4321 = vpop.permute.xlu0 %4320
        %4322 = vrot.lane.b32.xlu0 %v4317, 127
        %v4323 = vpop.permute.xlu0 %4322
        %v4326 = vadd.f32 %v4294, %v4321
        %v4327 = vadd.f32 %v4295, %v4323
        %s4328 = sld [smem:[#allocation23 + $0x90]]
        %v4329 = vstv %s4328
        %v4330 = vmul.f32 %v4329, %v4288
        %v4331 = vmul.f32 %v4329, %v4289
        %4334 = vrot.lane.b32.xlu0 %v4330, 127
        %v4335 = vpop.permute.xlu0 %4334
        %4336 = vrot.lane.b32.xlu0 %v4331, 127
        %v4337 = vpop.permute.xlu0 %4336
        %v4340 = vadd.f32 %v4300, %v4335
        %v4341 = vadd.f32 %v4301, %v4337
        %s4342 = sld [smem:[#allocation23 + $0x110]]
        %v4343 = vstv %s4342
        %v4344 = vmul.f32 %v4343, %v4288
        %v4345 = vmul.f32 %v4343, %v4289
        %4348 = vrot.lane.b32.xlu0 %v4344, 127
        %v4349 = vpop.permute.xlu0 %4348
        %4350 = vrot.lane.b32.xlu0 %v4345, 127
        %v4351 = vpop.permute.xlu0 %4350
        %v4354 = vadd.f32 %v4306, %v4349
        %v4355 = vadd.f32 %v4307, %v4351
        %s4356 = sld [smem:[#allocation23 + $0x190]]
        %v4357 = vstv %s4356
        %v4358 = vmul.f32 %v4357, %v4288
        %v4359 = vmul.f32 %v4357, %v4289
        %4362 = vrot.lane.b32.xlu0 %v4358, 127
        %v4363 = vpop.permute.xlu0 %4362
        %4364 = vrot.lane.b32.xlu0 %v4359, 127
        %v4365 = vpop.permute.xlu0 %4364
        %v4368 = vadd.f32 %v4312, %v4363
        %v4369 = vadd.f32 %v4313, %v4365
        %s4370 = sld [smem:[#allocation23 + $0x11]]
        %v4371 = vstv %s4370
        %v4372 = vmul.f32 %v4371, %v4288
        %v4373 = vmul.f32 %v4371, %v4289
        %4376 = vrot.lane.b32.xlu0 %v4372, 126
        %v4377 = vpop.permute.xlu0 %4376
        %4378 = vrot.lane.b32.xlu0 %v4373, 126
        %v4379 = vpop.permute.xlu0 %4378
        %v4382 = vadd.f32 %v4326, %v4377
        %v4383 = vadd.f32 %v4327, %v4379
        %s4384 = sld [smem:[#allocation23 + $0x91]]
        %v4385 = vstv %s4384
        %v4386 = vmul.f32 %v4385, %v4288
        %v4387 = vmul.f32 %v4385, %v4289
        %4390 = vrot.lane.b32.xlu0 %v4386, 126
        %v4391 = vpop.permute.xlu0 %4390
        %4392 = vrot.lane.b32.xlu0 %v4387, 126
        %v4393 = vpop.permute.xlu0 %4392
        %v4396 = vadd.f32 %v4340, %v4391
        %v4397 = vadd.f32 %v4341, %v4393
        %s4398 = sld [smem:[#allocation23 + $0x111]]
        %v4399 = vstv %s4398
        %v4400 = vmul.f32 %v4399, %v4288
        %v4401 = vmul.f32 %v4399, %v4289
        %4404 = vrot.lane.b32.xlu0 %v4400, 126
        %v4405 = vpop.permute.xlu0 %4404
        %4406 = vrot.lane.b32.xlu0 %v4401, 126
        %v4407 = vpop.permute.xlu0 %4406
        %v4410 = vadd.f32 %v4354, %v4405
        %v4411 = vadd.f32 %v4355, %v4407
        %s4412 = sld [smem:[#allocation23 + $0x191]]
        %v4413 = vstv %s4412
        %v4414 = vmul.f32 %v4413, %v4288
        %v4415 = vmul.f32 %v4413, %v4289
        %4418 = vrot.lane.b32.xlu0 %v4414, 126
        %v4419 = vpop.permute.xlu0 %4418
        %4420 = vrot.lane.b32.xlu0 %v4415, 126
        %v4421 = vpop.permute.xlu0 %4420
        %v4424 = vadd.f32 %v4368, %v4419
        %v4425 = vadd.f32 %v4369, %v4421
        %s4426 = sld [smem:[#allocation25]]
        %v4427 = vstv %s4426
        %v4428 = vadd.f32 %v4382, %v4427
        %v4429 = vadd.f32 %v4383, %v4427
        %s4430 = sld [smem:[#allocation25 + $0x1]]
        %v4431 = vstv %s4430
        %v4432 = vadd.f32 %v4396, %v4431
        %v4433 = vadd.f32 %v4397, %v4431
        %s4434 = sld [smem:[#allocation25 + $0x2]]
        %v4435 = vstv %s4434
        %v4436 = vadd.f32 %v4410, %v4435
        %v4437 = vadd.f32 %v4411, %v4435
        %s4438 = sld [smem:[#allocation25 + $0x3]]
        %v4439 = vstv %s4438
        %v4440 = vadd.f32 %v4424, %v4439
        %v4441 = vadd.f32 %v4425, %v4439
        %v4442 = vmax.f32 %v4428, 0.0
        %v4443 = vmax.f32 %v4429, 0.0
        %4444 = vst.msk [vmem:[%s694] sm:$0xff] %vm3539, %v4442
        %4445 = vst.msk [vmem:[%s694 + $0x8] sm:$0xff] %vm3539, %v4443
        %v4446 = vmax.f32 %v4432, 0.0
        %v4447 = vmax.f32 %v4433, 0.0
        %s4448 = scalar_lea.vmem %s694, 16 [#allocation26]
        %4449 = vst.msk [vmem:[%s4448] sm:$0xff] %vm3539, %v4446
        %4450 = vst.msk [vmem:[%s4448 + $0x8] sm:$0xff] %vm3539, %v4447
        %v4451 = vmax.f32 %v4436, 0.0
        %v4452 = vmax.f32 %v4437, 0.0
        %s4453 = scalar_lea.vmem %s694, 32 [#allocation26]
        %4454 = vst.msk [vmem:[%s4453] sm:$0xff] %vm3539, %v4451
        %4455 = vst.msk [vmem:[%s4453 + $0x8] sm:$0xff] %vm3539, %v4452
        %v4456 = vmax.f32 %v4440, 0.0
        %v4457 = vmax.f32 %v4441, 0.0
        %s4458 = scalar_lea.vmem %s694, 48 [#allocation26]
        %4459 = vst.msk [vmem:[%s4458] sm:$0xff] %vm3539, %v4456
        %4460 = vst.msk [vmem:[%s4458 + $0x8] sm:$0xff] %vm3539, %v4457
        %s4461 = sand.u32 %s392, 1
        %s4462 = scalar_lea.sflag [#allocation6], %s4461
        %s4463 = sand.u32 %s392, 1
        %s4464 = smul.addr %s4463, 64
        %s4465 = scalar_lea.vmem [#allocation26], %s4464
        // Predicated region
        $region137: #{spaceatt_forward.1} parent=83 // pred_check
          %p4466 = pneg %p402
        $region138: #{spaceatt_forward.1} parent=83 // pred_check_branch
          %4468 = sbr.rel (%p4466) target = $region140
        $region139: #{spaceatt_forward.1} parent=83 // pred_region
          %4470 = vsyncadd %s4462, 0
          %s4471 = smul.addr %s38, 8
          %s4472 = smul.addr %s4471, 8
          %s4473 = scalar_lea.hbm %s16, %s4472
          %s4474 = sshll.u32 %s4465, 4
          %s4475 = int_to_ptr.vmem [resolvable:$true] %s4474
          %s4476 = sshll.u32 %s4473, 4
          %s4477 = int_to_ptr.hbm [resolvable:$true] %s4476
          %4482 = dma.vmem_to_hbm [thread:$0]  %s4475, 1024, %s4477, %s4462, 128, 128, 8
        $region140: #{spaceatt_forward.1} parent=83 // pred_fallthru
          _
      $region84: #{spaceatt_forward.1} parent=5 // pred_fallthru
        _
      %p4483 = scmp.le.s32.totalorder 2, %s33
      // Predicated region
      $region141: #{spaceatt_forward.1} parent=5 // pred_check
        %p4484 = pneg %p4483
      $region142: #{spaceatt_forward.1} parent=5 // pred_check_branch
        %4486 = sbr.rel (%p4484) target = $region144
      $region143: #{spaceatt_forward.1} parent=5 // pred_region
        %s4487 = ssub.s32 %s33, 2
        // Predicated region
        $region145: #{spaceatt_forward.1} parent=143 // pred_check
          %p4488 = pneg %p408
        $region146: #{spaceatt_forward.1} parent=143 // pred_check_branch
          %4490 = sbr.rel (%p4488) target = $region148
        $region147: #{spaceatt_forward.1} parent=143 // pred_region
          %s4491 = sand.u32 %s393, 1
          %s4492 = scalar_lea.sflag [#allocation6], %s4491
          %s4493 = sand.u32 %s393, 1
          %s4494 = smul.addr %s4493, 64
          %s4495 = scalar_lea.vmem [#allocation26], %s4494
          %4497 = dma.done %s4492, 1024
        $region148: #{spaceatt_forward.1} parent=143 // pred_fallthru
          _
      $region144: #{spaceatt_forward.1} parent=5 // pred_fallthru
        _
    $region6: #{spaceatt_forward.1} parent=1 // loop_footer
      %s37 = sadd.s32 1, %s33
    $region7: #{spaceatt_forward.1} parent=1 // loop_footer_branch
      %32 = sbr.rel target = $region3
    $region8: #{spaceatt_forward.1} parent=1 // loop_exit
      _
    %4498 = vsyncpa [#allocation6], 1
    %s4499 = scalar_lea.sflag [#allocation6], 1
    %4500 = vsyncpa %s4499, 1
    %4501 = vsyncpa [#allocation7], 1
    %s4502 = scalar_lea.sflag [#allocation7], 1
    %4503 = vsyncpa %s4502, 1
    %4504 = vsyncpa [#allocation9], 1
    %4505 = vsyncpa [#allocation12], 1
    %4506 = vsyncpa [#allocation15], 1
    %4507 = vsyncpa [#allocation18], 1
    %4508 = vsyncpa [#allocation21], 1
    %4509 = vsyncpa [#allocation24], 1

</llo_original>
